<compile_context>
chip_gen: v7x
topology: tpu7x:2x2x1
jax: 0.10.0
libtpu: 0.0.40
codegen_flags: <defaults>
</compile_context>

<pallas_src>
import jax
import jax.numpy as jnp
from jax.experimental import pallas as pl
from jax.experimental.pallas import tpu as pltpu

IN_DIM = 2048
H1, H2, H3 = 1024, 512, 256
OUT_PAD = 128  # lane-padded width of the final (256, 1) layer


def _round_up(n, m):
    return ((n + m - 1) // m) * m


def _mlp_kernel(x_ref, w1_ref, b1_ref, w2_ref, b2_ref, w3_ref, b3_ref,
                w4_ref, b4_ref, o_ref):
    # TODO(synk): Dropout layers are identity here (eval-mode forward); no
    # stochastic masking is applied.
    x = x_ref[...]  # bf16 (TB, 2048)

    # Layer 1: (TB, 2048) @ (2048, 1024), f32 accumulate, bias/ReLU in f32.
    h1 = jnp.dot(x, w1_ref[...], preferred_element_type=jnp.float32) + b1_ref[...]
    h1 = jnp.maximum(h1, 0.0)

    # Layer 2: (TB, 1024) @ (1024, 512).
    h2 = jnp.dot(h1.astype(jnp.bfloat16), w2_ref[...],
                 preferred_element_type=jnp.float32) + b2_ref[...]
    h2 = jnp.maximum(h2, 0.0)

    # Layer 3: (TB, 512) @ (512, 256).
    h3 = jnp.dot(h2.astype(jnp.bfloat16), w3_ref[...],
                 preferred_element_type=jnp.float32) + b3_ref[...]
    h3 = jnp.maximum(h3, 0.0)

    # Layer 4: (TB, 256) @ (256, 128) where only column 0 is real.
    out = jnp.dot(h3.astype(jnp.bfloat16), w4_ref[...],
                  preferred_element_type=jnp.float32) + b4_ref[...]
    o_ref[...] = out.astype(o_ref.dtype)


def policy_network_forward(x, params, tile_b=256):
    """x: (B, 2048) float32. Returns (B,) float32 — matches squeeze(1)."""
    B = x.shape[0]
    w1, b1, w2, b2, w3, b3, w4p, b4p = params

    # Batch tile: multiple of 16 (bf16 sublane packing), capped at tile_b.
    TB = min(tile_b, _round_up(B, 16))
    Bp = _round_up(B, TB)
    if Bp != B:
        x = jnp.pad(x, ((0, Bp - B), (0, 0)))
    x_bf16 = x.astype(jnp.bfloat16)

    def weight_spec(shape):
        # Weights/biases: same block every grid step -> fetched once, VMEM-resident.
        return pl.BlockSpec(shape, lambda i: (0, 0))

    out_padded = pl.pallas_call(
        _mlp_kernel,
        out_shape=jax.ShapeDtypeStruct((Bp, OUT_PAD), jnp.float32),
        grid=(Bp // TB,),
        in_specs=[
            pl.BlockSpec((TB, IN_DIM), lambda i: (i, 0)),   # activation tile
            weight_spec((IN_DIM, H1)), weight_spec((1, H1)),
            weight_spec((H1, H2)), weight_spec((1, H2)),
            weight_spec((H2, H3)), weight_spec((1, H3)),
            weight_spec((H3, OUT_PAD)), weight_spec((1, OUT_PAD)),
        ],
        out_specs=pl.BlockSpec((TB, OUT_PAD), lambda i: (i, 0)),
        compiler_params=pltpu.CompilerParams(
            dimension_semantics=("parallel",),   # megacore sharding on v7x
            vmem_limit_bytes=48 << 20,           # fits v7x's 64 MiB VMEM
        ),
    )(x_bf16, w1, b1, w2, b2, w3, b3, w4p, b4p)

    # Column 0 is the real Linear(256, 1) output; slicing it implements the
    # `.squeeze(1)` of the PyTorch module.  Drop padded rows.
    return out_padded[:B, 0]


def init_params(key):
    """PyTorch nn.Linear default init: U(-1/sqrt(fan_in), 1/sqrt(fan_in)).

    Weights stored as bf16 (HBM-bound regime), biases kept f32 (added on the
    f32 MXU accumulator).
    """
    def linear(key, fan_in, fan_out):
        kw, kb = jax.random.split(key)
        bound = 1.0 / jnp.sqrt(fan_in)
        w = jax.random.uniform(kw, (fan_in, fan_out), jnp.float32, -bound, bound)
        b = jax.random.uniform(kb, (1, fan_out), jnp.float32, -bound, bound)
        return w.astype(jnp.bfloat16), b

    k1, k2, k3, k4 = jax.random.split(key, 4)
    w1, b1 = linear(k1, IN_DIM, H1)
    w2, b2 = linear(k2, H1, H2)
    w3, b3 = linear(k3, H2, H3)
    w4, b4 = linear(k4, H3, 1)

    # Zero-pad the final layer to a lane-dense (256, 128) / (1, 128) slab.
    w4p = jnp.zeros((H3, OUT_PAD), jnp.bfloat16).at[:, :1].set(w4)
    b4p = jnp.zeros((1, OUT_PAD), jnp.float32).at[:, :1].set(b4)
    return (w1, b1, w2, b2, w3, b3, w4p, b4p)


def _ref_forward(x, params):
    """Plain-JAX reference with the same bf16-weight / f32-accumulate numerics."""
    w1, b1, w2, b2, w3, b3, w4p, b4p = params
    h = x.astype(jnp.bfloat16)
    h = jnp.maximum(jnp.dot(h, w1, preferred_element_type=jnp.float32) + b1, 0.0)
    h = h.astype(jnp.bfloat16)
    h = jnp.maximum(jnp.dot(h, w2, preferred_element_type=jnp.float32) + b2, 0.0)
    h = h.astype(jnp.bfloat16)
    h = jnp.maximum(jnp.dot(h, w3, preferred_element_type=jnp.float32) + b3, 0.0)
    h = h.astype(jnp.bfloat16)
    out = jnp.dot(h, w4p, preferred_element_type=jnp.float32) + b4p
    return out[:, 0]


if __name__ == "__main__":
    key = jax.random.PRNGKey(0)
    k_params, k_x = jax.random.split(key)

    params = init_params(k_params)
    B = 16  # small test batch (multiple of 16 for bf16 sublane packing)
    x = jax.random.normal(k_x, (B, IN_DIM), jnp.float32)

    out = policy_network_forward(x, params)
    out = jax.block_until_ready(out)

    ref = _ref_forward(x, params)
    assert out.shape == (B,)
    assert jnp.allclose(out, ref, atol=1e-2, rtol=1e-2), (
        f"max abs err {jnp.max(jnp.abs(out - ref))}")

    print("KERNEL_OK")
</pallas_src>

<mosaic_0001>
module attributes {stable_mosaic.version = 11 : i64} {
  func.func @_mlp_kernel(%arg0: i32, %arg1: memref<16x2048xbf16, #tpu.memory_space<vmem>>, %arg2: memref<2048x1024xbf16, #tpu.memory_space<vmem>>, %arg3: memref<1x1024xf32, #tpu.memory_space<vmem>>, %arg4: memref<1024x512xbf16, #tpu.memory_space<vmem>>, %arg5: memref<1x512xf32, #tpu.memory_space<vmem>>, %arg6: memref<512x256xbf16, #tpu.memory_space<vmem>>, %arg7: memref<1x256xf32, #tpu.memory_space<vmem>>, %arg8: memref<256x128xbf16, #tpu.memory_space<vmem>>, %arg9: memref<1x128xf32, #tpu.memory_space<vmem>>, %arg10: memref<16x128xf32, #tpu.memory_space<vmem>>) attributes {dimension_semantics = [#tpu.dimension_semantics<parallel>], iteration_bounds = array<i64: 1>, scalar_prefetch = 0 : i64, scratch_operands = 0 : i64, tpu.core_type = #tpu.core_type<tc>, window_params = [{transform_indices = @transform_0, window_bounds = array<i64: 16, 2048>}, {pipeline_mode = #tpu.pipeline_mode<synchronous>, transform_indices = @transform_1, window_bounds = array<i64: 2048, 1024>}, {pipeline_mode = #tpu.pipeline_mode<synchronous>, transform_indices = @transform_2, window_bounds = array<i64: 1, 1024>}, {pipeline_mode = #tpu.pipeline_mode<synchronous>, transform_indices = @transform_3, window_bounds = array<i64: 1024, 512>}, {pipeline_mode = #tpu.pipeline_mode<synchronous>, transform_indices = @transform_4, window_bounds = array<i64: 1, 512>}, {pipeline_mode = #tpu.pipeline_mode<synchronous>, transform_indices = @transform_5, window_bounds = array<i64: 512, 256>}, {pipeline_mode = #tpu.pipeline_mode<synchronous>, transform_indices = @transform_6, window_bounds = array<i64: 1, 256>}, {pipeline_mode = #tpu.pipeline_mode<synchronous>, transform_indices = @transform_7, window_bounds = array<i64: 256, 128>}, {pipeline_mode = #tpu.pipeline_mode<synchronous>, transform_indices = @transform_8, window_bounds = array<i64: 1, 128>}, {transform_indices = @transform_9, window_bounds = array<i64: 16, 128>}]} {
    %c0 = arith.constant 0 : index
    %c0_0 = arith.constant 0 : index
    %0 = vector.load %arg1[%c0, %c0_0] : memref<16x2048xbf16, #tpu.memory_space<vmem>>, vector<16x2048xbf16>
    %c0_1 = arith.constant 0 : index
    %c0_2 = arith.constant 0 : index
    %1 = vector.load %arg2[%c0_1, %c0_2] : memref<2048x1024xbf16, #tpu.memory_space<vmem>>, vector<2048x1024xbf16>
    %cst = arith.constant dense<0.000000e+00> : vector<16x1024xf32>
    %2 = tpu.matmul %0, %1, %cst {dimension_numbers = #tpu.dot_dimension_numbers<[1], [0], [0], [1], [0, 0, 1, 1], [], []>} : vector<16x2048xbf16>, vector<2048x1024xbf16>, vector<16x1024xf32> -> vector<16x1024xf32>
    %c0_3 = arith.constant 0 : index
    %c0_4 = arith.constant 0 : index
    %3 = vector.load %arg3[%c0_3, %c0_4] : memref<1x1024xf32, #tpu.memory_space<vmem>>, vector<1x1024xf32>
    %4 = vector.broadcast %3 : vector<1x1024xf32> to vector<16x1024xf32>
    %5 = arith.addf %2, %4 : vector<16x1024xf32>
    %cst_5 = arith.constant 0.000000e+00 : f32
    %6 = vector.broadcast %cst_5 : f32 to vector<16x1024xf32>
    %7 = arith.maximumf %5, %6 : vector<16x1024xf32>
    %8 = arith.truncf %7 : vector<16x1024xf32> to vector<16x1024xbf16>
    %c0_6 = arith.constant 0 : index
    %c0_7 = arith.constant 0 : index
    %9 = vector.load %arg4[%c0_6, %c0_7] : memref<1024x512xbf16, #tpu.memory_space<vmem>>, vector<1024x512xbf16>
    %cst_8 = arith.constant dense<0.000000e+00> : vector<16x512xf32>
    %10 = tpu.matmul %8, %9, %cst_8 {dimension_numbers = #tpu.dot_dimension_numbers<[1], [0], [0], [1], [0, 0, 1, 1], [], []>} : vector<16x1024xbf16>, vector<1024x512xbf16>, vector<16x512xf32> -> vector<16x512xf32>
    %c0_9 = arith.constant 0 : index
    %c0_10 = arith.constant 0 : index
    %11 = vector.load %arg5[%c0_9, %c0_10] : memref<1x512xf32, #tpu.memory_space<vmem>>, vector<1x512xf32>
    %12 = vector.broadcast %11 : vector<1x512xf32> to vector<16x512xf32>
    %13 = arith.addf %10, %12 : vector<16x512xf32>
    %cst_11 = arith.constant 0.000000e+00 : f32
    %14 = vector.broadcast %cst_11 : f32 to vector<16x512xf32>
    %15 = arith.maximumf %13, %14 : vector<16x512xf32>
    %16 = arith.truncf %15 : vector<16x512xf32> to vector<16x512xbf16>
    %c0_12 = arith.constant 0 : index
    %c0_13 = arith.constant 0 : index
    %17 = vector.load %arg6[%c0_12, %c0_13] : memref<512x256xbf16, #tpu.memory_space<vmem>>, vector<512x256xbf16>
    %cst_14 = arith.constant dense<0.000000e+00> : vector<16x256xf32>
    %18 = tpu.matmul %16, %17, %cst_14 {dimension_numbers = #tpu.dot_dimension_numbers<[1], [0], [0], [1], [0, 0, 1, 1], [], []>} : vector<16x512xbf16>, vector<512x256xbf16>, vector<16x256xf32> -> vector<16x256xf32>
    %c0_15 = arith.constant 0 : index
    %c0_16 = arith.constant 0 : index
    %19 = vector.load %arg7[%c0_15, %c0_16] : memref<1x256xf32, #tpu.memory_space<vmem>>, vector<1x256xf32>
    %20 = vector.broadcast %19 : vector<1x256xf32> to vector<16x256xf32>
    %21 = arith.addf %18, %20 : vector<16x256xf32>
    %cst_17 = arith.constant 0.000000e+00 : f32
    %22 = vector.broadcast %cst_17 : f32 to vector<16x256xf32>
    %23 = arith.maximumf %21, %22 : vector<16x256xf32>
    %24 = arith.truncf %23 : vector<16x256xf32> to vector<16x256xbf16>
    %c0_18 = arith.constant 0 : index
    %c0_19 = arith.constant 0 : index
    %25 = vector.load %arg8[%c0_18, %c0_19] : memref<256x128xbf16, #tpu.memory_space<vmem>>, vector<256x128xbf16>
    %cst_20 = arith.constant dense<0.000000e+00> : vector<16x128xf32>
    %26 = tpu.matmul %24, %25, %cst_20 {dimension_numbers = #tpu.dot_dimension_numbers<[1], [0], [0], [1], [0, 0, 1, 1], [], []>} : vector<16x256xbf16>, vector<256x128xbf16>, vector<16x128xf32> -> vector<16x128xf32>
    %c0_21 = arith.constant 0 : index
    %c0_22 = arith.constant 0 : index
    %27 = vector.load %arg9[%c0_21, %c0_22] : memref<1x128xf32, #tpu.memory_space<vmem>>, vector<1x128xf32>
    %28 = vector.broadcast %27 : vector<1x128xf32> to vector<16x128xf32>
    %29 = arith.addf %26, %28 : vector<16x128xf32>
    %c0_23 = arith.constant 0 : index
    %c0_24 = arith.constant 0 : index
    %30 = vector.load %arg10[%c0_23, %c0_24] : memref<16x128xf32, #tpu.memory_space<vmem>>, vector<16x128xf32>
    tpu.vector_store %arg10[%c0_23, %c0_24], %29 {strides = array<i32>} : memref<16x128xf32, #tpu.memory_space<vmem>>, vector<16x128xf32>,
    return
  }
  func.func @transform_0(%arg0: i32) -> (i32, i32) {
    %c0_i32 = arith.constant 0 : i32
    %c0_i32_0 = arith.constant 0 : i32
    return %arg0, %c0_i32 : i32, i32
  }
  func.func @transform_1(%arg0: i32) -> (i32, i32) {
    %c0_i32 = arith.constant 0 : i32
    %c0_i32_0 = arith.constant 0 : i32
    %c0_i32_1 = arith.constant 0 : i32
    return %c0_i32, %c0_i32_0 : i32, i32
  }
  func.func @transform_2(%arg0: i32) -> (i32, i32) {
    %c0_i32 = arith.constant 0 : i32
    %c0_i32_0 = arith.constant 0 : i32
    %c0_i32_1 = arith.constant 0 : i32
    return %c0_i32, %c0_i32_0 : i32, i32
  }
  func.func @transform_3(%arg0: i32) -> (i32, i32) {
    %c0_i32 = arith.constant 0 : i32
    %c0_i32_0 = arith.constant 0 : i32
    %c0_i32_1 = arith.constant 0 : i32
    return %c0_i32, %c0_i32_0 : i32, i32
  }
  func.func @transform_4(%arg0: i32) -> (i32, i32) {
    %c0_i32 = arith.constant 0 : i32
    %c0_i32_0 = arith.constant 0 : i32
    %c0_i32_1 = arith.constant 0 : i32
    return %c0_i32, %c0_i32_0 : i32, i32
  }
  func.func @transform_5(%arg0: i32) -> (i32, i32) {
    %c0_i32 = arith.constant 0 : i32
    %c0_i32_0 = arith.constant 0 : i32
    %c0_i32_1 = arith.constant 0 : i32
    return %c0_i32, %c0_i32_0 : i32, i32
  }
  func.func @transform_6(%arg0: i32) -> (i32, i32) {
    %c0_i32 = arith.constant 0 : i32
    %c0_i32_0 = arith.constant 0 : i32
    %c0_i32_1 = arith.constant 0 : i32
    return %c0_i32, %c0_i32_0 : i32, i32
  }
  func.func @transform_7(%arg0: i32) -> (i32, i32) {
    %c0_i32 = arith.constant 0 : i32
    %c0_i32_0 = arith.constant 0 : i32
    %c0_i32_1 = arith.constant 0 : i32
    return %c0_i32, %c0_i32_0 : i32, i32
  }
  func.func @transform_8(%arg0: i32) -> (i32, i32) {
    %c0_i32 = arith.constant 0 : i32
    %c0_i32_0 = arith.constant 0 : i32
    %c0_i32_1 = arith.constant 0 : i32
    return %c0_i32, %c0_i32_0 : i32, i32
  }
  func.func @transform_9(%arg0: i32) -> (i32, i32) {
    %c0_i32 = arith.constant 0 : i32
    %c0_i32_0 = arith.constant 0 : i32
    return %arg0, %c0_i32 : i32, i32
  }
}

</mosaic_0001>

<llo_original>
// kernel: tpu_custom_call.1
$region0: #{tpu_custom_call.1}
  #allocation0 [shape = 'u32[]', space=smem, size = 0x4, offset = 0x4, fixed_abs, tag = 'smem constant byte address 0x4 - core index']
  #allocation1 [shape = 'u32[144,128]{1,0:T(1,128)}', space=vmem, size = 0x12000, scoped, tag = 'internal scratch']
  %s0 = inlined_call_operand.hbm [shape: bf16[16,2048], index: 0, kind: input, shape index: {}]
  %s1 = inlined_call_operand.hbm [shape: bf16[2048,1024], index: 1, kind: input, shape index: {}]
  %s2 = inlined_call_operand.hbm [shape: f32[1,1024], index: 2, kind: input, shape index: {}]
  %s3 = inlined_call_operand.hbm [shape: bf16[1024,512], index: 3, kind: input, shape index: {}]
  %s4 = inlined_call_operand.hbm [shape: f32[1,512], index: 4, kind: input, shape index: {}]
  %s5 = inlined_call_operand.hbm [shape: bf16[512,256], index: 5, kind: input, shape index: {}]
  %s6 = inlined_call_operand.hbm [shape: f32[1,256], index: 6, kind: input, shape index: {}]
  %s7 = inlined_call_operand.hbm [shape: bf16[256,128], index: 7, kind: input, shape index: {}]
  %s8 = inlined_call_operand.hbm [shape: f32[1,128], index: 8, kind: input, shape index: {}]
  %s9 = inlined_call_operand.hbm [shape: f32[16,128], index: 9, kind: output, shape index: {}]
  %s10 = sld [smem:[#allocation0]]
  $region82: #{tpu_custom_call.1} parent=0
    _
  %s12 = ssub.s32 1, %s10
  %s13 = scalar_select 0, %s12, %s10
  $region1: #{tpu_custom_call.1} parent=0
    #allocation2 [shape = 'u8[65536]{0}', space=vmem, size = 0x10000, scoped, tag = 'input window, operand 0, single buffered']
    #allocation3 [shape = 's32[1]{0}', space=sflag, size = 0x4, scoped, tag = 'scoped memory for tpu_custom_call.1']
    #allocation4 [shape = 's32[1]{0}', space=sflag, size = 0x4, scoped, tag = 'scoped memory for tpu_custom_call.1']
    #allocation5 [shape = 'u8[4194304]{0}', space=vmem, size = 0x400000, scoped, tag = 'input window, operand 1, single buffered']
    #allocation6 [shape = 's32[1]{0}', space=sflag, size = 0x4, scoped, tag = 'scoped memory for tpu_custom_call.1']
    #allocation7 [shape = 'u8[4096]{0}', space=vmem, size = 0x1000, scoped, tag = 'input window, operand 2, single buffered']
    #allocation8 [shape = 'u8[1048576]{0}', space=vmem, size = 0x100000, scoped, tag = 'input window, operand 3, single buffered']
    #allocation9 [shape = 's32[1]{0}', space=sflag, size = 0x4, scoped, tag = 'scoped memory for tpu_custom_call.1']
    #allocation10 [shape = 'u8[2048]{0}', space=vmem, size = 0x800, scoped, tag = 'input window, operand 4, single buffered']
    #allocation11 [shape = 'u8[262144]{0}', space=vmem, size = 0x40000, scoped, tag = 'input window, operand 5, single buffered']
    #allocation12 [shape = 's32[1]{0}', space=sflag, size = 0x4, scoped, tag = 'scoped memory for tpu_custom_call.1']
    #allocation13 [shape = 'u8[1024]{0}', space=vmem, size = 0x400, scoped, tag = 'input window, operand 6, single buffered']
    #allocation14 [shape = 'u8[65536]{0}', space=vmem, size = 0x10000, scoped, tag = 'input window, operand 7, single buffered']
    #allocation15 [shape = 's32[1]{0}', space=sflag, size = 0x4, scoped, tag = 'scoped memory for tpu_custom_call.1']
    #allocation16 [shape = 'u8[512]{0}', space=vmem, size = 0x400, scoped, tag = 'input window, operand 8, single buffered']
    #allocation17 [shape = 'u8[8192]{0}', space=vmem, size = 0x2000, scoped, tag = 'output window, operand 0, single buffered']
    %14 = vsyncpa [#allocation3], 0
    %15 = vsyncpa [#allocation6], 0
    %16 = vsyncpa [#allocation9], 0
    %17 = vsyncpa [#allocation12], 0
    %18 = vsyncpa [#allocation15], 0
    %19 = vsyncpa [#allocation4], 0
    // Predicated region
    $region2: #{tpu_custom_call.1} parent=1 // pred_check
      _
    $region3: #{tpu_custom_call.1} parent=1 // pred_check_branch
      %21 = sbr.rel (0) target = $region5
    $region4: #{tpu_custom_call.1} parent=1 // pred_region
      %s23 = ssub.s32 2048, 2048
      %24 = vsyncadd [#allocation3], %s23
      %s25 = sshll.u32 [#allocation2], 4
      %s26 = int_to_ptr.vmem [resolvable:$true] %s25
      %31 = dma.hbm_to_vmem [thread:$0]  %s0, 2048, %s26, [#allocation3], 1024, 1024, 64
    $region5: #{tpu_custom_call.1} parent=1 // pred_fallthru
      _
    // Predicated region
    $region6: #{tpu_custom_call.1} parent=1 // pred_check
      _
    $region7: #{tpu_custom_call.1} parent=1 // pred_check_branch
      %33 = sbr.rel (0) target = $region9
    $region8: #{tpu_custom_call.1} parent=1 // pred_region
      %s35 = ssub.s32 131072, 131072
      %36 = vsyncadd [#allocation6], %s35
      %s37 = sshll.u32 [#allocation5], 4
      %s38 = int_to_ptr.vmem [resolvable:$true] %s37
      %43 = dma.hbm_to_vmem [thread:$0]  %s1, 131072, %s38, [#allocation6], 512, 512, 32
    $region9: #{tpu_custom_call.1} parent=1 // pred_fallthru
      _
    // Predicated region
    $region10: #{tpu_custom_call.1} parent=1 // pred_check
      _
    $region11: #{tpu_custom_call.1} parent=1 // pred_check_branch
      %45 = sbr.rel (0) target = $region13
    $region12: #{tpu_custom_call.1} parent=1 // pred_region
      %s47 = ssub.s32 128, 128
      %48 = vsyncadd [#allocation6], %s47
      %s50 = sshll.u32 [#allocation7], 4
      %s51 = int_to_ptr.vmem [resolvable:$true] %s50
      %53 = dma.hbm_to_vmem [thread:$0]  %s2, 128, %s51, [#allocation6]
    $region13: #{tpu_custom_call.1} parent=1 // pred_fallthru
      _
    // Predicated region
    $region14: #{tpu_custom_call.1} parent=1 // pred_check
      _
    $region15: #{tpu_custom_call.1} parent=1 // pred_check_branch
      %55 = sbr.rel (0) target = $region17
    $region16: #{tpu_custom_call.1} parent=1 // pred_region
      %s57 = ssub.s32 32768, 32768
      %58 = vsyncadd [#allocation9], %s57
      %s59 = sshll.u32 [#allocation8], 4
      %s60 = int_to_ptr.vmem [resolvable:$true] %s59
      %65 = dma.hbm_to_vmem [thread:$0]  %s3, 32768, %s60, [#allocation9], 256, 256, 16
    $region17: #{tpu_custom_call.1} parent=1 // pred_fallthru
      _
    // Predicated region
    $region18: #{tpu_custom_call.1} parent=1 // pred_check
      _
    $region19: #{tpu_custom_call.1} parent=1 // pred_check_branch
      %67 = sbr.rel (0) target = $region21
    $region20: #{tpu_custom_call.1} parent=1 // pred_region
      %s69 = ssub.s32 64, 64
      %70 = vsyncadd [#allocation9], %s69
      %s72 = sshll.u32 [#allocation10], 4
      %s73 = int_to_ptr.vmem [resolvable:$true] %s72
      %75 = dma.hbm_to_vmem [thread:$0]  %s4, 64, %s73, [#allocation9]
    $region21: #{tpu_custom_call.1} parent=1 // pred_fallthru
      _
    // Predicated region
    $region22: #{tpu_custom_call.1} parent=1 // pred_check
      _
    $region23: #{tpu_custom_call.1} parent=1 // pred_check_branch
      %77 = sbr.rel (0) target = $region25
    $region24: #{tpu_custom_call.1} parent=1 // pred_region
      %s79 = ssub.s32 8192, 8192
      %80 = vsyncadd [#allocation12], %s79
      %s81 = sshll.u32 [#allocation11], 4
      %s82 = int_to_ptr.vmem [resolvable:$true] %s81
      %87 = dma.hbm_to_vmem [thread:$0]  %s5, 8192, %s82, [#allocation12], 128, 128, 8
    $region25: #{tpu_custom_call.1} parent=1 // pred_fallthru
      _
    // Predicated region
    $region26: #{tpu_custom_call.1} parent=1 // pred_check
      _
    $region27: #{tpu_custom_call.1} parent=1 // pred_check_branch
      %89 = sbr.rel (0) target = $region29
    $region28: #{tpu_custom_call.1} parent=1 // pred_region
      %s91 = ssub.s32 32, 32
      %92 = vsyncadd [#allocation12], %s91
      %s94 = sshll.u32 [#allocation13], 4
      %s95 = int_to_ptr.vmem [resolvable:$true] %s94
      %97 = dma.hbm_to_vmem [thread:$0]  %s6, 32, %s95, [#allocation12]
    $region29: #{tpu_custom_call.1} parent=1 // pred_fallthru
      _
    // Predicated region
    $region30: #{tpu_custom_call.1} parent=1 // pred_check
      _
    $region31: #{tpu_custom_call.1} parent=1 // pred_check_branch
      %99 = sbr.rel (0) target = $region33
    $region32: #{tpu_custom_call.1} parent=1 // pred_region
      %s101 = ssub.s32 2048, 2048
      %102 = vsyncadd [#allocation15], %s101
      %s103 = sshll.u32 [#allocation14], 4
      %s104 = int_to_ptr.vmem [resolvable:$true] %s103
      %109 = dma.hbm_to_vmem [thread:$0]  %s7, 2048, %s104, [#allocation15], 64, 64, 4
    $region33: #{tpu_custom_call.1} parent=1 // pred_fallthru
      _
    // Predicated region
    $region34: #{tpu_custom_call.1} parent=1 // pred_check
      _
    $region35: #{tpu_custom_call.1} parent=1 // pred_check_branch
      %111 = sbr.rel (0) target = $region37
    $region36: #{tpu_custom_call.1} parent=1 // pred_region
      %s113 = ssub.s32 16, 16
      %114 = vsyncadd [#allocation15], %s113
      %s116 = sshll.u32 [#allocation16], 4
      %s117 = int_to_ptr.vmem [resolvable:$true] %s116
      %119 = dma.hbm_to_vmem [thread:$0]  %s8, 16, %s117, [#allocation15]
    $region37: #{tpu_custom_call.1} parent=1 // pred_fallthru
      _
    // Predicated region
    $region38: #{tpu_custom_call.1} parent=1 // pred_check
      _
    $region39: #{tpu_custom_call.1} parent=1 // pred_check_branch
      %121 = sbr.rel (0) target = $region41
    $region40: #{tpu_custom_call.1} parent=1 // pred_region
      %122 = dma.done [#allocation3], 2048
    $region41: #{tpu_custom_call.1} parent=1 // pred_fallthru
      _
    // Predicated region
    $region42: #{tpu_custom_call.1} parent=1 // pred_check
      _
    $region43: #{tpu_custom_call.1} parent=1 // pred_check_branch
      %124 = sbr.rel (0) target = $region45
    $region44: #{tpu_custom_call.1} parent=1 // pred_region
      %125 = dma.done [#allocation6], 131072
    $region45: #{tpu_custom_call.1} parent=1 // pred_fallthru
      _
    // Predicated region
    $region46: #{tpu_custom_call.1} parent=1 // pred_check
      _
    $region47: #{tpu_custom_call.1} parent=1 // pred_check_branch
      %127 = sbr.rel (0) target = $region49
    $region48: #{tpu_custom_call.1} parent=1 // pred_region
      %128 = dma.done [#allocation6], 128
    $region49: #{tpu_custom_call.1} parent=1 // pred_fallthru
      _
    // Predicated region
    $region50: #{tpu_custom_call.1} parent=1 // pred_check
      _
    $region51: #{tpu_custom_call.1} parent=1 // pred_check_branch
      %130 = sbr.rel (0) target = $region53
    $region52: #{tpu_custom_call.1} parent=1 // pred_region
      %131 = dma.done [#allocation9], 32768
    $region53: #{tpu_custom_call.1} parent=1 // pred_fallthru
      _
    // Predicated region
    $region54: #{tpu_custom_call.1} parent=1 // pred_check
      _
    $region55: #{tpu_custom_call.1} parent=1 // pred_check_branch
      %133 = sbr.rel (0) target = $region57
    $region56: #{tpu_custom_call.1} parent=1 // pred_region
      %134 = dma.done [#allocation9], 64
    $region57: #{tpu_custom_call.1} parent=1 // pred_fallthru
      _
    // Predicated region
    $region58: #{tpu_custom_call.1} parent=1 // pred_check
      _
    $region59: #{tpu_custom_call.1} parent=1 // pred_check_branch
      %136 = sbr.rel (0) target = $region61
    $region60: #{tpu_custom_call.1} parent=1 // pred_region
      %137 = dma.done [#allocation12], 8192
    $region61: #{tpu_custom_call.1} parent=1 // pred_fallthru
      _
    // Predicated region
    $region62: #{tpu_custom_call.1} parent=1 // pred_check
      _
    $region63: #{tpu_custom_call.1} parent=1 // pred_check_branch
      %139 = sbr.rel (0) target = $region65
    $region64: #{tpu_custom_call.1} parent=1 // pred_region
      %140 = dma.done [#allocation12], 32
    $region65: #{tpu_custom_call.1} parent=1 // pred_fallthru
      _
    // Predicated region
    $region66: #{tpu_custom_call.1} parent=1 // pred_check
      _
    $region67: #{tpu_custom_call.1} parent=1 // pred_check_branch
      %142 = sbr.rel (0) target = $region69
    $region68: #{tpu_custom_call.1} parent=1 // pred_region
      %143 = dma.done [#allocation15], 2048
    $region69: #{tpu_custom_call.1} parent=1 // pred_fallthru
      _
    // Predicated region
    $region70: #{tpu_custom_call.1} parent=1 // pred_check
      _
    $region71: #{tpu_custom_call.1} parent=1 // pred_check_branch
      %145 = sbr.rel (0) target = $region73
    $region72: #{tpu_custom_call.1} parent=1 // pred_region
      %146 = dma.done [#allocation15], 16
    $region73: #{tpu_custom_call.1} parent=1 // pred_fallthru
      _
    %v148 = vld [vmem:[#allocation2] sm:$0xff]
    %v149 = vld [vmem:[#allocation2 + $0x8] sm:$0xff]
    %v150 = vld [vmem:[#allocation2 + $0x10] sm:$0xff]
    %v151 = vld [vmem:[#allocation2 + $0x18] sm:$0xff]
    %v152 = vld [vmem:[#allocation2 + $0x20] sm:$0xff]
    %v153 = vld [vmem:[#allocation2 + $0x28] sm:$0xff]
    %v154 = vld [vmem:[#allocation2 + $0x30] sm:$0xff]
    %v155 = vld [vmem:[#allocation2 + $0x38] sm:$0xff]
    %v156 = vld [vmem:[#allocation2 + $0x40] sm:$0xff]
    %v157 = vld [vmem:[#allocation2 + $0x48] sm:$0xff]
    %v158 = vld [vmem:[#allocation2 + $0x50] sm:$0xff]
    %v159 = vld [vmem:[#allocation2 + $0x58] sm:$0xff]
    %v160 = vld [vmem:[#allocation2 + $0x60] sm:$0xff]
    %v161 = vld [vmem:[#allocation2 + $0x68] sm:$0xff]
    %v162 = vld [vmem:[#allocation2 + $0x70] sm:$0xff]
    %v163 = vld [vmem:[#allocation2 + $0x78] sm:$0xff]
    %v164 = vld [vmem:[#allocation5] sm:$0xff]
    %v165 = vld [vmem:[#allocation5 + $0x8] sm:$0xff]
    %v166 = vld [vmem:[#allocation5 + $0x10] sm:$0xff]
    %v167 = vld [vmem:[#allocation5 + $0x18] sm:$0xff]
    %v168 = vld [vmem:[#allocation5 + $0x20] sm:$0xff]
    %v169 = vld [vmem:[#allocation5 + $0x28] sm:$0xff]
    %v170 = vld [vmem:[#allocation5 + $0x30] sm:$0xff]
    %v171 = vld [vmem:[#allocation5 + $0x38] sm:$0xff]
    %v172 = vld [vmem:[#allocation5 + $0x40] sm:$0xff]
    %v173 = vld [vmem:[#allocation5 + $0x48] sm:$0xff]
    %v174 = vld [vmem:[#allocation5 + $0x50] sm:$0xff]
    %v175 = vld [vmem:[#allocation5 + $0x58] sm:$0xff]
    %v176 = vld [vmem:[#allocation5 + $0x60] sm:$0xff]
    %v177 = vld [vmem:[#allocation5 + $0x68] sm:$0xff]
    %v178 = vld [vmem:[#allocation5 + $0x70] sm:$0xff]
    %v179 = vld [vmem:[#allocation5 + $0x78] sm:$0xff]
    %v180 = vld [vmem:[#allocation5 + $0x80] sm:$0xff]
    %v181 = vld [vmem:[#allocation5 + $0x88] sm:$0xff]
    %v182 = vld [vmem:[#allocation5 + $0x90] sm:$0xff]
    %v183 = vld [vmem:[#allocation5 + $0x98] sm:$0xff]
    %v184 = vld [vmem:[#allocation5 + $0xa0] sm:$0xff]
    %v185 = vld [vmem:[#allocation5 + $0xa8] sm:$0xff]
    %v186 = vld [vmem:[#allocation5 + $0xb0] sm:$0xff]
    %v187 = vld [vmem:[#allocation5 + $0xb8] sm:$0xff]
    %v188 = vld [vmem:[#allocation5 + $0xc0] sm:$0xff]
    %v189 = vld [vmem:[#allocation5 + $0xc8] sm:$0xff]
    %v190 = vld [vmem:[#allocation5 + $0xd0] sm:$0xff]
    %v191 = vld [vmem:[#allocation5 + $0xd8] sm:$0xff]
    %v192 = vld [vmem:[#allocation5 + $0xe0] sm:$0xff]
    %v193 = vld [vmem:[#allocation5 + $0xe8] sm:$0xff]
    %v194 = vld [vmem:[#allocation5 + $0xf0] sm:$0xff]
    %v195 = vld [vmem:[#allocation5 + $0xf8] sm:$0xff]
    %v196 = vld [vmem:[#allocation5 + $0x100] sm:$0xff]
    %v197 = vld [vmem:[#allocation5 + $0x108] sm:$0xff]
    %v198 = vld [vmem:[#allocation5 + $0x110] sm:$0xff]
    %v199 = vld [vmem:[#allocation5 + $0x118] sm:$0xff]
    %v200 = vld [vmem:[#allocation5 + $0x120] sm:$0xff]
    %v201 = vld [vmem:[#allocation5 + $0x128] sm:$0xff]
    %v202 = vld [vmem:[#allocation5 + $0x130] sm:$0xff]
    %v203 = vld [vmem:[#allocation5 + $0x138] sm:$0xff]
    %v204 = vld [vmem:[#allocation5 + $0x140] sm:$0xff]
    %v205 = vld [vmem:[#allocation5 + $0x148] sm:$0xff]
    %v206 = vld [vmem:[#allocation5 + $0x150] sm:$0xff]
    %v207 = vld [vmem:[#allocation5 + $0x158] sm:$0xff]
    %v208 = vld [vmem:[#allocation5 + $0x160] sm:$0xff]
    %v209 = vld [vmem:[#allocation5 + $0x168] sm:$0xff]
    %v210 = vld [vmem:[#allocation5 + $0x170] sm:$0xff]
    %v211 = vld [vmem:[#allocation5 + $0x178] sm:$0xff]
    %v212 = vld [vmem:[#allocation5 + $0x180] sm:$0xff]
    %v213 = vld [vmem:[#allocation5 + $0x188] sm:$0xff]
    %v214 = vld [vmem:[#allocation5 + $0x190] sm:$0xff]
    %v215 = vld [vmem:[#allocation5 + $0x198] sm:$0xff]
    %v216 = vld [vmem:[#allocation5 + $0x1a0] sm:$0xff]
    %v217 = vld [vmem:[#allocation5 + $0x1a8] sm:$0xff]
    %v218 = vld [vmem:[#allocation5 + $0x1b0] sm:$0xff]
    %v219 = vld [vmem:[#allocation5 + $0x1b8] sm:$0xff]
    %v220 = vld [vmem:[#allocation5 + $0x1c0] sm:$0xff]
    %v221 = vld [vmem:[#allocation5 + $0x1c8] sm:$0xff]
    %v222 = vld [vmem:[#allocation5 + $0x1d0] sm:$0xff]
    %v223 = vld [vmem:[#allocation5 + $0x1d8] sm:$0xff]
    %v224 = vld [vmem:[#allocation5 + $0x1e0] sm:$0xff]
    %v225 = vld [vmem:[#allocation5 + $0x1e8] sm:$0xff]
    %v226 = vld [vmem:[#allocation5 + $0x1f0] sm:$0xff]
    %v227 = vld [vmem:[#allocation5 + $0x1f8] sm:$0xff]
    %v228 = vld [vmem:[#allocation5 + $0x200] sm:$0xff]
    %v229 = vld [vmem:[#allocation5 + $0x208] sm:$0xff]
    %v230 = vld [vmem:[#allocation5 + $0x210] sm:$0xff]
    %v231 = vld [vmem:[#allocation5 + $0x218] sm:$0xff]
    %v232 = vld [vmem:[#allocation5 + $0x220] sm:$0xff]
    %v233 = vld [vmem:[#allocation5 + $0x228] sm:$0xff]
    %v234 = vld [vmem:[#allocation5 + $0x230] sm:$0xff]
    %v235 = vld [vmem:[#allocation5 + $0x238] sm:$0xff]
    %v236 = vld [vmem:[#allocation5 + $0x240] sm:$0xff]
    %v237 = vld [vmem:[#allocation5 + $0x248] sm:$0xff]
    %v238 = vld [vmem:[#allocation5 + $0x250] sm:$0xff]
    %v239 = vld [vmem:[#allocation5 + $0x258] sm:$0xff]
    %v240 = vld [vmem:[#allocation5 + $0x260] sm:$0xff]
    %v241 = vld [vmem:[#allocation5 + $0x268] sm:$0xff]
    %v242 = vld [vmem:[#allocation5 + $0x270] sm:$0xff]
    %v243 = vld [vmem:[#allocation5 + $0x278] sm:$0xff]
    %v244 = vld [vmem:[#allocation5 + $0x280] sm:$0xff]
    %v245 = vld [vmem:[#allocation5 + $0x288] sm:$0xff]
    %v246 = vld [vmem:[#allocation5 + $0x290] sm:$0xff]
    %v247 = vld [vmem:[#allocation5 + $0x298] sm:$0xff]
    %v248 = vld [vmem:[#allocation5 + $0x2a0] sm:$0xff]
    %v249 = vld [vmem:[#allocation5 + $0x2a8] sm:$0xff]
    %v250 = vld [vmem:[#allocation5 + $0x2b0] sm:$0xff]
    %v251 = vld [vmem:[#allocation5 + $0x2b8] sm:$0xff]
    %v252 = vld [vmem:[#allocation5 + $0x2c0] sm:$0xff]
    %v253 = vld [vmem:[#allocation5 + $0x2c8] sm:$0xff]
    %v254 = vld [vmem:[#allocation5 + $0x2d0] sm:$0xff]
    %v255 = vld [vmem:[#allocation5 + $0x2d8] sm:$0xff]
    %v256 = vld [vmem:[#allocation5 + $0x2e0] sm:$0xff]
    %v257 = vld [vmem:[#allocation5 + $0x2e8] sm:$0xff]
    %v258 = vld [vmem:[#allocation5 + $0x2f0] sm:$0xff]
    %v259 = vld [vmem:[#allocation5 + $0x2f8] sm:$0xff]
    %v260 = vld [vmem:[#allocation5 + $0x300] sm:$0xff]
    %v261 = vld [vmem:[#allocation5 + $0x308] sm:$0xff]
    %v262 = vld [vmem:[#allocation5 + $0x310] sm:$0xff]
    %v263 = vld [vmem:[#allocation5 + $0x318] sm:$0xff]
    %v264 = vld [vmem:[#allocation5 + $0x320] sm:$0xff]
    %v265 = vld [vmem:[#allocation5 + $0x328] sm:$0xff]
    %v266 = vld [vmem:[#allocation5 + $0x330] sm:$0xff]
    %v267 = vld [vmem:[#allocation5 + $0x338] sm:$0xff]
    %v268 = vld [vmem:[#allocation5 + $0x340] sm:$0xff]
    %v269 = vld [vmem:[#allocation5 + $0x348] sm:$0xff]
    %v270 = vld [vmem:[#allocation5 + $0x350] sm:$0xff]
    %v271 = vld [vmem:[#allocation5 + $0x358] sm:$0xff]
    %v272 = vld [vmem:[#allocation5 + $0x360] sm:$0xff]
    %v273 = vld [vmem:[#allocation5 + $0x368] sm:$0xff]
    %v274 = vld [vmem:[#allocation5 + $0x370] sm:$0xff]
    %v275 = vld [vmem:[#allocation5 + $0x378] sm:$0xff]
    %v276 = vld [vmem:[#allocation5 + $0x380] sm:$0xff]
    %v277 = vld [vmem:[#allocation5 + $0x388] sm:$0xff]
    %v278 = vld [vmem:[#allocation5 + $0x390] sm:$0xff]
    %v279 = vld [vmem:[#allocation5 + $0x398] sm:$0xff]
    %v280 = vld [vmem:[#allocation5 + $0x3a0] sm:$0xff]
    %v281 = vld [vmem:[#allocation5 + $0x3a8] sm:$0xff]
    %v282 = vld [vmem:[#allocation5 + $0x3b0] sm:$0xff]
    %v283 = vld [vmem:[#allocation5 + $0x3b8] sm:$0xff]
    %v284 = vld [vmem:[#allocation5 + $0x3c0] sm:$0xff]
    %v285 = vld [vmem:[#allocation5 + $0x3c8] sm:$0xff]
    %v286 = vld [vmem:[#allocation5 + $0x3d0] sm:$0xff]
    %v287 = vld [vmem:[#allocation5 + $0x3d8] sm:$0xff]
    %v288 = vld [vmem:[#allocation5 + $0x3e0] sm:$0xff]
    %v289 = vld [vmem:[#allocation5 + $0x3e8] sm:$0xff]
    %v290 = vld [vmem:[#allocation5 + $0x3f0] sm:$0xff]
    %v291 = vld [vmem:[#allocation5 + $0x3f8] sm:$0xff]
    %v292 = vld [vmem:[#allocation5 + $0x400] sm:$0xff]
    %v293 = vld [vmem:[#allocation5 + $0x408] sm:$0xff]
    %v294 = vld [vmem:[#allocation5 + $0x410] sm:$0xff]
    %v295 = vld [vmem:[#allocation5 + $0x418] sm:$0xff]
    %v296 = vld [vmem:[#allocation5 + $0x420] sm:$0xff]
    %v297 = vld [vmem:[#allocation5 + $0x428] sm:$0xff]
    %v298 = vld [vmem:[#allocation5 + $0x430] sm:$0xff]
    %v299 = vld [vmem:[#allocation5 + $0x438] sm:$0xff]
    %v300 = vld [vmem:[#allocation5 + $0x440] sm:$0xff]
    %v301 = vld [vmem:[#allocation5 + $0x448] sm:$0xff]
    %v302 = vld [vmem:[#allocation5 + $0x450] sm:$0xff]
    %v303 = vld [vmem:[#allocation5 + $0x458] sm:$0xff]
    %v304 = vld [vmem:[#allocation5 + $0x460] sm:$0xff]
    %v305 = vld [vmem:[#allocation5 + $0x468] sm:$0xff]
    %v306 = vld [vmem:[#allocation5 + $0x470] sm:$0xff]
    %v307 = vld [vmem:[#allocation5 + $0x478] sm:$0xff]
    %v308 = vld [vmem:[#allocation5 + $0x480] sm:$0xff]
    %v309 = vld [vmem:[#allocation5 + $0x488] sm:$0xff]
    %v310 = vld [vmem:[#allocation5 + $0x490] sm:$0xff]
    %v311 = vld [vmem:[#allocation5 + $0x498] sm:$0xff]
    %v312 = vld [vmem:[#allocation5 + $0x4a0] sm:$0xff]
    %v313 = vld [vmem:[#allocation5 + $0x4a8] sm:$0xff]
    %v314 = vld [vmem:[#allocation5 + $0x4b0] sm:$0xff]
    %v315 = vld [vmem:[#allocation5 + $0x4b8] sm:$0xff]
    %v316 = vld [vmem:[#allocation5 + $0x4c0] sm:$0xff]
    %v317 = vld [vmem:[#allocation5 + $0x4c8] sm:$0xff]
    %v318 = vld [vmem:[#allocation5 + $0x4d0] sm:$0xff]
    %v319 = vld [vmem:[#allocation5 + $0x4d8] sm:$0xff]
    %v320 = vld [vmem:[#allocation5 + $0x4e0] sm:$0xff]
    %v321 = vld [vmem:[#allocation5 + $0x4e8] sm:$0xff]
    %v322 = vld [vmem:[#allocation5 + $0x4f0] sm:$0xff]
    %v323 = vld [vmem:[#allocation5 + $0x4f8] sm:$0xff]
    %v324 = vld [vmem:[#allocation5 + $0x500] sm:$0xff]
    %v325 = vld [vmem:[#allocation5 + $0x508] sm:$0xff]
    %v326 = vld [vmem:[#allocation5 + $0x510] sm:$0xff]
    %v327 = vld [vmem:[#allocation5 + $0x518] sm:$0xff]
    %v328 = vld [vmem:[#allocation5 + $0x520] sm:$0xff]
    %v329 = vld [vmem:[#allocation5 + $0x528] sm:$0xff]
    %v330 = vld [vmem:[#allocation5 + $0x530] sm:$0xff]
    %v331 = vld [vmem:[#allocation5 + $0x538] sm:$0xff]
    %v332 = vld [vmem:[#allocation5 + $0x540] sm:$0xff]
    %v333 = vld [vmem:[#allocation5 + $0x548] sm:$0xff]
    %v334 = vld [vmem:[#allocation5 + $0x550] sm:$0xff]
    %v335 = vld [vmem:[#allocation5 + $0x558] sm:$0xff]
    %v336 = vld [vmem:[#allocation5 + $0x560] sm:$0xff]
    %v337 = vld [vmem:[#allocation5 + $0x568] sm:$0xff]
    %v338 = vld [vmem:[#allocation5 + $0x570] sm:$0xff]
    %v339 = vld [vmem:[#allocation5 + $0x578] sm:$0xff]
    %v340 = vld [vmem:[#allocation5 + $0x580] sm:$0xff]
    %v341 = vld [vmem:[#allocation5 + $0x588] sm:$0xff]
    %v342 = vld [vmem:[#allocation5 + $0x590] sm:$0xff]
    %v343 = vld [vmem:[#allocation5 + $0x598] sm:$0xff]
    %v344 = vld [vmem:[#allocation5 + $0x5a0] sm:$0xff]
    %v345 = vld [vmem:[#allocation5 + $0x5a8] sm:$0xff]
    %v346 = vld [vmem:[#allocation5 + $0x5b0] sm:$0xff]
    %v347 = vld [vmem:[#allocation5 + $0x5b8] sm:$0xff]
    %v348 = vld [vmem:[#allocation5 + $0x5c0] sm:$0xff]
    %v349 = vld [vmem:[#allocation5 + $0x5c8] sm:$0xff]
    %v350 = vld [vmem:[#allocation5 + $0x5d0] sm:$0xff]
    %v351 = vld [vmem:[#allocation5 + $0x5d8] sm:$0xff]
    %v352 = vld [vmem:[#allocation5 + $0x5e0] sm:$0xff]
    %v353 = vld [vmem:[#allocation5 + $0x5e8] sm:$0xff]
    %v354 = vld [vmem:[#allocation5 + $0x5f0] sm:$0xff]
    %v355 = vld [vmem:[#allocation5 + $0x5f8] sm:$0xff]
    %v356 = vld [vmem:[#allocation5 + $0x600] sm:$0xff]
    %v357 = vld [vmem:[#allocation5 + $0x608] sm:$0xff]
    %v358 = vld [vmem:[#allocation5 + $0x610] sm:$0xff]
    %v359 = vld [vmem:[#allocation5 + $0x618] sm:$0xff]
    %v360 = vld [vmem:[#allocation5 + $0x620] sm:$0xff]
    %v361 = vld [vmem:[#allocation5 + $0x628] sm:$0xff]
    %v362 = vld [vmem:[#allocation5 + $0x630] sm:$0xff]
    %v363 = vld [vmem:[#allocation5 + $0x638] sm:$0xff]
    %v364 = vld [vmem:[#allocation5 + $0x640] sm:$0xff]
    %v365 = vld [vmem:[#allocation5 + $0x648] sm:$0xff]
    %v366 = vld [vmem:[#allocation5 + $0x650] sm:$0xff]
    %v367 = vld [vmem:[#allocation5 + $0x658] sm:$0xff]
    %v368 = vld [vmem:[#allocation5 + $0x660] sm:$0xff]
    %v369 = vld [vmem:[#allocation5 + $0x668] sm:$0xff]
    %v370 = vld [vmem:[#allocation5 + $0x670] sm:$0xff]
    %v371 = vld [vmem:[#allocation5 + $0x678] sm:$0xff]
    %v372 = vld [vmem:[#allocation5 + $0x680] sm:$0xff]
    %v373 = vld [vmem:[#allocation5 + $0x688] sm:$0xff]
    %v374 = vld [vmem:[#allocation5 + $0x690] sm:$0xff]
    %v375 = vld [vmem:[#allocation5 + $0x698] sm:$0xff]
    %v376 = vld [vmem:[#allocation5 + $0x6a0] sm:$0xff]
    %v377 = vld [vmem:[#allocation5 + $0x6a8] sm:$0xff]
    %v378 = vld [vmem:[#allocation5 + $0x6b0] sm:$0xff]
    %v379 = vld [vmem:[#allocation5 + $0x6b8] sm:$0xff]
    %v380 = vld [vmem:[#allocation5 + $0x6c0] sm:$0xff]
    %v381 = vld [vmem:[#allocation5 + $0x6c8] sm:$0xff]
    %v382 = vld [vmem:[#allocation5 + $0x6d0] sm:$0xff]
    %v383 = vld [vmem:[#allocation5 + $0x6d8] sm:$0xff]
    %v384 = vld [vmem:[#allocation5 + $0x6e0] sm:$0xff]
    %v385 = vld [vmem:[#allocation5 + $0x6e8] sm:$0xff]
    %v386 = vld [vmem:[#allocation5 + $0x6f0] sm:$0xff]
    %v387 = vld [vmem:[#allocation5 + $0x6f8] sm:$0xff]
    %v388 = vld [vmem:[#allocation5 + $0x700] sm:$0xff]
    %v389 = vld [vmem:[#allocation5 + $0x708] sm:$0xff]
    %v390 = vld [vmem:[#allocation5 + $0x710] sm:$0xff]
    %v391 = vld [vmem:[#allocation5 + $0x718] sm:$0xff]
    %v392 = vld [vmem:[#allocation5 + $0x720] sm:$0xff]
    %v393 = vld [vmem:[#allocation5 + $0x728] sm:$0xff]
    %v394 = vld [vmem:[#allocation5 + $0x730] sm:$0xff]
    %v395 = vld [vmem:[#allocation5 + $0x738] sm:$0xff]
    %v396 = vld [vmem:[#allocation5 + $0x740] sm:$0xff]
    %v397 = vld [vmem:[#allocation5 + $0x748] sm:$0xff]
    %v398 = vld [vmem:[#allocation5 + $0x750] sm:$0xff]
    %v399 = vld [vmem:[#allocation5 + $0x758] sm:$0xff]
    %v400 = vld [vmem:[#allocation5 + $0x760] sm:$0xff]
    %v401 = vld [vmem:[#allocation5 + $0x768] sm:$0xff]
    %v402 = vld [vmem:[#allocation5 + $0x770] sm:$0xff]
    %v403 = vld [vmem:[#allocation5 + $0x778] sm:$0xff]
    %v404 = vld [vmem:[#allocation5 + $0x780] sm:$0xff]
    %v405 = vld [vmem:[#allocation5 + $0x788] sm:$0xff]
    %v406 = vld [vmem:[#allocation5 + $0x790] sm:$0xff]
    %v407 = vld [vmem:[#allocation5 + $0x798] sm:$0xff]
    %v408 = vld [vmem:[#allocation5 + $0x7a0] sm:$0xff]
    %v409 = vld [vmem:[#allocation5 + $0x7a8] sm:$0xff]
    %v410 = vld [vmem:[#allocation5 + $0x7b0] sm:$0xff]
    %v411 = vld [vmem:[#allocation5 + $0x7b8] sm:$0xff]
    %v412 = vld [vmem:[#allocation5 + $0x7c0] sm:$0xff]
    %v413 = vld [vmem:[#allocation5 + $0x7c8] sm:$0xff]
    %v414 = vld [vmem:[#allocation5 + $0x7d0] sm:$0xff]
    %v415 = vld [vmem:[#allocation5 + $0x7d8] sm:$0xff]
    %v416 = vld [vmem:[#allocation5 + $0x7e0] sm:$0xff]
    %v417 = vld [vmem:[#allocation5 + $0x7e8] sm:$0xff]
    %v418 = vld [vmem:[#allocation5 + $0x7f0] sm:$0xff]
    %v419 = vld [vmem:[#allocation5 + $0x7f8] sm:$0xff]
    %v420 = vld [vmem:[#allocation5 + $0x800] sm:$0xff]
    %v421 = vld [vmem:[#allocation5 + $0x808] sm:$0xff]
    %v422 = vld [vmem:[#allocation5 + $0x810] sm:$0xff]
    %v423 = vld [vmem:[#allocation5 + $0x818] sm:$0xff]
    %v424 = vld [vmem:[#allocation5 + $0x820] sm:$0xff]
    %v425 = vld [vmem:[#allocation5 + $0x828] sm:$0xff]
    %v426 = vld [vmem:[#allocation5 + $0x830] sm:$0xff]
    %v427 = vld [vmem:[#allocation5 + $0x838] sm:$0xff]
    %v428 = vld [vmem:[#allocation5 + $0x840] sm:$0xff]
    %v429 = vld [vmem:[#allocation5 + $0x848] sm:$0xff]
    %v430 = vld [vmem:[#allocation5 + $0x850] sm:$0xff]
    %v431 = vld [vmem:[#allocation5 + $0x858] sm:$0xff]
    %v432 = vld [vmem:[#allocation5 + $0x860] sm:$0xff]
    %v433 = vld [vmem:[#allocation5 + $0x868] sm:$0xff]
    %v434 = vld [vmem:[#allocation5 + $0x870] sm:$0xff]
    %v435 = vld [vmem:[#allocation5 + $0x878] sm:$0xff]
    %v436 = vld [vmem:[#allocation5 + $0x880] sm:$0xff]
    %v437 = vld [vmem:[#allocation5 + $0x888] sm:$0xff]
    %v438 = vld [vmem:[#allocation5 + $0x890] sm:$0xff]
    %v439 = vld [vmem:[#allocation5 + $0x898] sm:$0xff]
    %v440 = vld [vmem:[#allocation5 + $0x8a0] sm:$0xff]
    %v441 = vld [vmem:[#allocation5 + $0x8a8] sm:$0xff]
    %v442 = vld [vmem:[#allocation5 + $0x8b0] sm:$0xff]
    %v443 = vld [vmem:[#allocation5 + $0x8b8] sm:$0xff]
    %v444 = vld [vmem:[#allocation5 + $0x8c0] sm:$0xff]
    %v445 = vld [vmem:[#allocation5 + $0x8c8] sm:$0xff]
    %v446 = vld [vmem:[#allocation5 + $0x8d0] sm:$0xff]
    %v447 = vld [vmem:[#allocation5 + $0x8d8] sm:$0xff]
    %v448 = vld [vmem:[#allocation5 + $0x8e0] sm:$0xff]
    %v449 = vld [vmem:[#allocation5 + $0x8e8] sm:$0xff]
    %v450 = vld [vmem:[#allocation5 + $0x8f0] sm:$0xff]
    %v451 = vld [vmem:[#allocation5 + $0x8f8] sm:$0xff]
    %v452 = vld [vmem:[#allocation5 + $0x900] sm:$0xff]
    %v453 = vld [vmem:[#allocation5 + $0x908] sm:$0xff]
    %v454 = vld [vmem:[#allocation5 + $0x910] sm:$0xff]
    %v455 = vld [vmem:[#allocation5 + $0x918] sm:$0xff]
    %v456 = vld [vmem:[#allocation5 + $0x920] sm:$0xff]
    %v457 = vld [vmem:[#allocation5 + $0x928] sm:$0xff]
    %v458 = vld [vmem:[#allocation5 + $0x930] sm:$0xff]
    %v459 = vld [vmem:[#allocation5 + $0x938] sm:$0xff]
    %v460 = vld [vmem:[#allocation5 + $0x940] sm:$0xff]
    %v461 = vld [vmem:[#allocation5 + $0x948] sm:$0xff]
    %v462 = vld [vmem:[#allocation5 + $0x950] sm:$0xff]
    %v463 = vld [vmem:[#allocation5 + $0x958] sm:$0xff]
    %v464 = vld [vmem:[#allocation5 + $0x960] sm:$0xff]
    %v465 = vld [vmem:[#allocation5 + $0x968] sm:$0xff]
    %v466 = vld [vmem:[#allocation5 + $0x970] sm:$0xff]
    %v467 = vld [vmem:[#allocation5 + $0x978] sm:$0xff]
    %v468 = vld [vmem:[#allocation5 + $0x980] sm:$0xff]
    %v469 = vld [vmem:[#allocation5 + $0x988] sm:$0xff]
    %v470 = vld [vmem:[#allocation5 + $0x990] sm:$0xff]
    %v471 = vld [vmem:[#allocation5 + $0x998] sm:$0xff]
    %v472 = vld [vmem:[#allocation5 + $0x9a0] sm:$0xff]
    %v473 = vld [vmem:[#allocation5 + $0x9a8] sm:$0xff]
    %v474 = vld [vmem:[#allocation5 + $0x9b0] sm:$0xff]
    %v475 = vld [vmem:[#allocation5 + $0x9b8] sm:$0xff]
    %v476 = vld [vmem:[#allocation5 + $0x9c0] sm:$0xff]
    %v477 = vld [vmem:[#allocation5 + $0x9c8] sm:$0xff]
    %v478 = vld [vmem:[#allocation5 + $0x9d0] sm:$0xff]
    %v479 = vld [vmem:[#allocation5 + $0x9d8] sm:$0xff]
    %v480 = vld [vmem:[#allocation5 + $0x9e0] sm:$0xff]
    %v481 = vld [vmem:[#allocation5 + $0x9e8] sm:$0xff]
    %v482 = vld [vmem:[#allocation5 + $0x9f0] sm:$0xff]
    %v483 = vld [vmem:[#allocation5 + $0x9f8] sm:$0xff]
    %v484 = vld [vmem:[#allocation5 + $0xa00] sm:$0xff]
    %v485 = vld [vmem:[#allocation5 + $0xa08] sm:$0xff]
    %v486 = vld [vmem:[#allocation5 + $0xa10] sm:$0xff]
    %v487 = vld [vmem:[#allocation5 + $0xa18] sm:$0xff]
    %v488 = vld [vmem:[#allocation5 + $0xa20] sm:$0xff]
    %v489 = vld [vmem:[#allocation5 + $0xa28] sm:$0xff]
    %v490 = vld [vmem:[#allocation5 + $0xa30] sm:$0xff]
    %v491 = vld [vmem:[#allocation5 + $0xa38] sm:$0xff]
    %v492 = vld [vmem:[#allocation5 + $0xa40] sm:$0xff]
    %v493 = vld [vmem:[#allocation5 + $0xa48] sm:$0xff]
    %v494 = vld [vmem:[#allocation5 + $0xa50] sm:$0xff]
    %v495 = vld [vmem:[#allocation5 + $0xa58] sm:$0xff]
    %v496 = vld [vmem:[#allocation5 + $0xa60] sm:$0xff]
    %v497 = vld [vmem:[#allocation5 + $0xa68] sm:$0xff]
    %v498 = vld [vmem:[#allocation5 + $0xa70] sm:$0xff]
    %v499 = vld [vmem:[#allocation5 + $0xa78] sm:$0xff]
    %v500 = vld [vmem:[#allocation5 + $0xa80] sm:$0xff]
    %v501 = vld [vmem:[#allocation5 + $0xa88] sm:$0xff]
    %v502 = vld [vmem:[#allocation5 + $0xa90] sm:$0xff]
    %v503 = vld [vmem:[#allocation5 + $0xa98] sm:$0xff]
    %v504 = vld [vmem:[#allocation5 + $0xaa0] sm:$0xff]
    %v505 = vld [vmem:[#allocation5 + $0xaa8] sm:$0xff]
    %v506 = vld [vmem:[#allocation5 + $0xab0] sm:$0xff]
    %v507 = vld [vmem:[#allocation5 + $0xab8] sm:$0xff]
    %v508 = vld [vmem:[#allocation5 + $0xac0] sm:$0xff]
    %v509 = vld [vmem:[#allocation5 + $0xac8] sm:$0xff]
    %v510 = vld [vmem:[#allocation5 + $0xad0] sm:$0xff]
    %v511 = vld [vmem:[#allocation5 + $0xad8] sm:$0xff]
    %v512 = vld [vmem:[#allocation5 + $0xae0] sm:$0xff]
    %v513 = vld [vmem:[#allocation5 + $0xae8] sm:$0xff]
    %v514 = vld [vmem:[#allocation5 + $0xaf0] sm:$0xff]
    %v515 = vld [vmem:[#allocation5 + $0xaf8] sm:$0xff]
    %v516 = vld [vmem:[#allocation5 + $0xb00] sm:$0xff]
    %v517 = vld [vmem:[#allocation5 + $0xb08] sm:$0xff]
    %v518 = vld [vmem:[#allocation5 + $0xb10] sm:$0xff]
    %v519 = vld [vmem:[#allocation5 + $0xb18] sm:$0xff]
    %v520 = vld [vmem:[#allocation5 + $0xb20] sm:$0xff]
    %v521 = vld [vmem:[#allocation5 + $0xb28] sm:$0xff]
    %v522 = vld [vmem:[#allocation5 + $0xb30] sm:$0xff]
    %v523 = vld [vmem:[#allocation5 + $0xb38] sm:$0xff]
    %v524 = vld [vmem:[#allocation5 + $0xb40] sm:$0xff]
    %v525 = vld [vmem:[#allocation5 + $0xb48] sm:$0xff]
    %v526 = vld [vmem:[#allocation5 + $0xb50] sm:$0xff]
    %v527 = vld [vmem:[#allocation5 + $0xb58] sm:$0xff]
    %v528 = vld [vmem:[#allocation5 + $0xb60] sm:$0xff]
    %v529 = vld [vmem:[#allocation5 + $0xb68] sm:$0xff]
    %v530 = vld [vmem:[#allocation5 + $0xb70] sm:$0xff]
    %v531 = vld [vmem:[#allocation5 + $0xb78] sm:$0xff]
    %v532 = vld [vmem:[#allocation5 + $0xb80] sm:$0xff]
    %v533 = vld [vmem:[#allocation5 + $0xb88] sm:$0xff]
    %v534 = vld [vmem:[#allocation5 + $0xb90] sm:$0xff]
    %v535 = vld [vmem:[#allocation5 + $0xb98] sm:$0xff]
    %v536 = vld [vmem:[#allocation5 + $0xba0] sm:$0xff]
    %v537 = vld [vmem:[#allocation5 + $0xba8] sm:$0xff]
    %v538 = vld [vmem:[#allocation5 + $0xbb0] sm:$0xff]
    %v539 = vld [vmem:[#allocation5 + $0xbb8] sm:$0xff]
    %v540 = vld [vmem:[#allocation5 + $0xbc0] sm:$0xff]
    %v541 = vld [vmem:[#allocation5 + $0xbc8] sm:$0xff]
    %v542 = vld [vmem:[#allocation5 + $0xbd0] sm:$0xff]
    %v543 = vld [vmem:[#allocation5 + $0xbd8] sm:$0xff]
    %v544 = vld [vmem:[#allocation5 + $0xbe0] sm:$0xff]
    %v545 = vld [vmem:[#allocation5 + $0xbe8] sm:$0xff]
    %v546 = vld [vmem:[#allocation5 + $0xbf0] sm:$0xff]
    %v547 = vld [vmem:[#allocation5 + $0xbf8] sm:$0xff]
    %v548 = vld [vmem:[#allocation5 + $0xc00] sm:$0xff]
    %v549 = vld [vmem:[#allocation5 + $0xc08] sm:$0xff]
    %v550 = vld [vmem:[#allocation5 + $0xc10] sm:$0xff]
    %v551 = vld [vmem:[#allocation5 + $0xc18] sm:$0xff]
    %v552 = vld [vmem:[#allocation5 + $0xc20] sm:$0xff]
    %v553 = vld [vmem:[#allocation5 + $0xc28] sm:$0xff]
    %v554 = vld [vmem:[#allocation5 + $0xc30] sm:$0xff]
    %v555 = vld [vmem:[#allocation5 + $0xc38] sm:$0xff]
    %v556 = vld [vmem:[#allocation5 + $0xc40] sm:$0xff]
    %v557 = vld [vmem:[#allocation5 + $0xc48] sm:$0xff]
    %v558 = vld [vmem:[#allocation5 + $0xc50] sm:$0xff]
    %v559 = vld [vmem:[#allocation5 + $0xc58] sm:$0xff]
    %v560 = vld [vmem:[#allocation5 + $0xc60] sm:$0xff]
    %v561 = vld [vmem:[#allocation5 + $0xc68] sm:$0xff]
    %v562 = vld [vmem:[#allocation5 + $0xc70] sm:$0xff]
    %v563 = vld [vmem:[#allocation5 + $0xc78] sm:$0xff]
    %v564 = vld [vmem:[#allocation5 + $0xc80] sm:$0xff]
    %v565 = vld [vmem:[#allocation5 + $0xc88] sm:$0xff]
    %v566 = vld [vmem:[#allocation5 + $0xc90] sm:$0xff]
    %v567 = vld [vmem:[#allocation5 + $0xc98] sm:$0xff]
    %v568 = vld [vmem:[#allocation5 + $0xca0] sm:$0xff]
    %v569 = vld [vmem:[#allocation5 + $0xca8] sm:$0xff]
    %v570 = vld [vmem:[#allocation5 + $0xcb0] sm:$0xff]
    %v571 = vld [vmem:[#allocation5 + $0xcb8] sm:$0xff]
    %v572 = vld [vmem:[#allocation5 + $0xcc0] sm:$0xff]
    %v573 = vld [vmem:[#allocation5 + $0xcc8] sm:$0xff]
    %v574 = vld [vmem:[#allocation5 + $0xcd0] sm:$0xff]
    %v575 = vld [vmem:[#allocation5 + $0xcd8] sm:$0xff]
    %v576 = vld [vmem:[#allocation5 + $0xce0] sm:$0xff]
    %v577 = vld [vmem:[#allocation5 + $0xce8] sm:$0xff]
    %v578 = vld [vmem:[#allocation5 + $0xcf0] sm:$0xff]
    %v579 = vld [vmem:[#allocation5 + $0xcf8] sm:$0xff]
    %v580 = vld [vmem:[#allocation5 + $0xd00] sm:$0xff]
    %v581 = vld [vmem:[#allocation5 + $0xd08] sm:$0xff]
    %v582 = vld [vmem:[#allocation5 + $0xd10] sm:$0xff]
    %v583 = vld [vmem:[#allocation5 + $0xd18] sm:$0xff]
    %v584 = vld [vmem:[#allocation5 + $0xd20] sm:$0xff]
    %v585 = vld [vmem:[#allocation5 + $0xd28] sm:$0xff]
    %v586 = vld [vmem:[#allocation5 + $0xd30] sm:$0xff]
    %v587 = vld [vmem:[#allocation5 + $0xd38] sm:$0xff]
    %v588 = vld [vmem:[#allocation5 + $0xd40] sm:$0xff]
    %v589 = vld [vmem:[#allocation5 + $0xd48] sm:$0xff]
    %v590 = vld [vmem:[#allocation5 + $0xd50] sm:$0xff]
    %v591 = vld [vmem:[#allocation5 + $0xd58] sm:$0xff]
    %v592 = vld [vmem:[#allocation5 + $0xd60] sm:$0xff]
    %v593 = vld [vmem:[#allocation5 + $0xd68] sm:$0xff]
    %v594 = vld [vmem:[#allocation5 + $0xd70] sm:$0xff]
    %v595 = vld [vmem:[#allocation5 + $0xd78] sm:$0xff]
    %v596 = vld [vmem:[#allocation5 + $0xd80] sm:$0xff]
    %v597 = vld [vmem:[#allocation5 + $0xd88] sm:$0xff]
    %v598 = vld [vmem:[#allocation5 + $0xd90] sm:$0xff]
    %v599 = vld [vmem:[#allocation5 + $0xd98] sm:$0xff]
    %v600 = vld [vmem:[#allocation5 + $0xda0] sm:$0xff]
    %v601 = vld [vmem:[#allocation5 + $0xda8] sm:$0xff]
    %v602 = vld [vmem:[#allocation5 + $0xdb0] sm:$0xff]
    %v603 = vld [vmem:[#allocation5 + $0xdb8] sm:$0xff]
    %v604 = vld [vmem:[#allocation5 + $0xdc0] sm:$0xff]
    %v605 = vld [vmem:[#allocation5 + $0xdc8] sm:$0xff]
    %v606 = vld [vmem:[#allocation5 + $0xdd0] sm:$0xff]
    %v607 = vld [vmem:[#allocation5 + $0xdd8] sm:$0xff]
    %v608 = vld [vmem:[#allocation5 + $0xde0] sm:$0xff]
    %v609 = vld [vmem:[#allocation5 + $0xde8] sm:$0xff]
    %v610 = vld [vmem:[#allocation5 + $0xdf0] sm:$0xff]
    %v611 = vld [vmem:[#allocation5 + $0xdf8] sm:$0xff]
    %v612 = vld [vmem:[#allocation5 + $0xe00] sm:$0xff]
    %v613 = vld [vmem:[#allocation5 + $0xe08] sm:$0xff]
    %v614 = vld [vmem:[#allocation5 + $0xe10] sm:$0xff]
    %v615 = vld [vmem:[#allocation5 + $0xe18] sm:$0xff]
    %v616 = vld [vmem:[#allocation5 + $0xe20] sm:$0xff]
    %v617 = vld [vmem:[#allocation5 + $0xe28] sm:$0xff]
    %v618 = vld [vmem:[#allocation5 + $0xe30] sm:$0xff]
    %v619 = vld [vmem:[#allocation5 + $0xe38] sm:$0xff]
    %v620 = vld [vmem:[#allocation5 + $0xe40] sm:$0xff]
    %v621 = vld [vmem:[#allocation5 + $0xe48] sm:$0xff]
    %v622 = vld [vmem:[#allocation5 + $0xe50] sm:$0xff]
    %v623 = vld [vmem:[#allocation5 + $0xe58] sm:$0xff]
    %v624 = vld [vmem:[#allocation5 + $0xe60] sm:$0xff]
    %v625 = vld [vmem:[#allocation5 + $0xe68] sm:$0xff]
    %v626 = vld [vmem:[#allocation5 + $0xe70] sm:$0xff]
    %v627 = vld [vmem:[#allocation5 + $0xe78] sm:$0xff]
    %v628 = vld [vmem:[#allocation5 + $0xe80] sm:$0xff]
    %v629 = vld [vmem:[#allocation5 + $0xe88] sm:$0xff]
    %v630 = vld [vmem:[#allocation5 + $0xe90] sm:$0xff]
    %v631 = vld [vmem:[#allocation5 + $0xe98] sm:$0xff]
    %v632 = vld [vmem:[#allocation5 + $0xea0] sm:$0xff]
    %v633 = vld [vmem:[#allocation5 + $0xea8] sm:$0xff]
    %v634 = vld [vmem:[#allocation5 + $0xeb0] sm:$0xff]
    %v635 = vld [vmem:[#allocation5 + $0xeb8] sm:$0xff]
    %v636 = vld [vmem:[#allocation5 + $0xec0] sm:$0xff]
    %v637 = vld [vmem:[#allocation5 + $0xec8] sm:$0xff]
    %v638 = vld [vmem:[#allocation5 + $0xed0] sm:$0xff]
    %v639 = vld [vmem:[#allocation5 + $0xed8] sm:$0xff]
    %v640 = vld [vmem:[#allocation5 + $0xee0] sm:$0xff]
    %v641 = vld [vmem:[#allocation5 + $0xee8] sm:$0xff]
    %v642 = vld [vmem:[#allocation5 + $0xef0] sm:$0xff]
    %v643 = vld [vmem:[#allocation5 + $0xef8] sm:$0xff]
    %v644 = vld [vmem:[#allocation5 + $0xf00] sm:$0xff]
    %v645 = vld [vmem:[#allocation5 + $0xf08] sm:$0xff]
    %v646 = vld [vmem:[#allocation5 + $0xf10] sm:$0xff]
    %v647 = vld [vmem:[#allocation5 + $0xf18] sm:$0xff]
    %v648 = vld [vmem:[#allocation5 + $0xf20] sm:$0xff]
    %v649 = vld [vmem:[#allocation5 + $0xf28] sm:$0xff]
    %v650 = vld [vmem:[#allocation5 + $0xf30] sm:$0xff]
    %v651 = vld [vmem:[#allocation5 + $0xf38] sm:$0xff]
    %v652 = vld [vmem:[#allocation5 + $0xf40] sm:$0xff]
    %v653 = vld [vmem:[#allocation5 + $0xf48] sm:$0xff]
    %v654 = vld [vmem:[#allocation5 + $0xf50] sm:$0xff]
    %v655 = vld [vmem:[#allocation5 + $0xf58] sm:$0xff]
    %v656 = vld [vmem:[#allocation5 + $0xf60] sm:$0xff]
    %v657 = vld [vmem:[#allocation5 + $0xf68] sm:$0xff]
    %v658 = vld [vmem:[#allocation5 + $0xf70] sm:$0xff]
    %v659 = vld [vmem:[#allocation5 + $0xf78] sm:$0xff]
    %v660 = vld [vmem:[#allocation5 + $0xf80] sm:$0xff]
    %v661 = vld [vmem:[#allocation5 + $0xf88] sm:$0xff]
    %v662 = vld [vmem:[#allocation5 + $0xf90] sm:$0xff]
    %v663 = vld [vmem:[#allocation5 + $0xf98] sm:$0xff]
    %v664 = vld [vmem:[#allocation5 + $0xfa0] sm:$0xff]
    %v665 = vld [vmem:[#allocation5 + $0xfa8] sm:$0xff]
    %v666 = vld [vmem:[#allocation5 + $0xfb0] sm:$0xff]
    %v667 = vld [vmem:[#allocation5 + $0xfb8] sm:$0xff]
    %v668 = vld [vmem:[#allocation5 + $0xfc0] sm:$0xff]
    %v669 = vld [vmem:[#allocation5 + $0xfc8] sm:$0xff]
    %v670 = vld [vmem:[#allocation5 + $0xfd0] sm:$0xff]
    %v671 = vld [vmem:[#allocation5 + $0xfd8] sm:$0xff]
    %v672 = vld [vmem:[#allocation5 + $0xfe0] sm:$0xff]
    %v673 = vld [vmem:[#allocation5 + $0xfe8] sm:$0xff]
    %v674 = vld [vmem:[#allocation5 + $0xff0] sm:$0xff]
    %v675 = vld [vmem:[#allocation5 + $0xff8] sm:$0xff]
    %v676 = vld [vmem:[#allocation5 + $0x1000] sm:$0xff]
    %v677 = vld [vmem:[#allocation5 + $0x1008] sm:$0xff]
    %v678 = vld [vmem:[#allocation5 + $0x1010] sm:$0xff]
    %v679 = vld [vmem:[#allocation5 + $0x1018] sm:$0xff]
    %v680 = vld [vmem:[#allocation5 + $0x1020] sm:$0xff]
    %v681 = vld [vmem:[#allocation5 + $0x1028] sm:$0xff]
    %v682 = vld [vmem:[#allocation5 + $0x1030] sm:$0xff]
    %v683 = vld [vmem:[#allocation5 + $0x1038] sm:$0xff]
    %v684 = vld [vmem:[#allocation5 + $0x1040] sm:$0xff]
    %v685 = vld [vmem:[#allocation5 + $0x1048] sm:$0xff]
    %v686 = vld [vmem:[#allocation5 + $0x1050] sm:$0xff]
    %v687 = vld [vmem:[#allocation5 + $0x1058] sm:$0xff]
    %v688 = vld [vmem:[#allocation5 + $0x1060] sm:$0xff]
    %v689 = vld [vmem:[#allocation5 + $0x1068] sm:$0xff]
    %v690 = vld [vmem:[#allocation5 + $0x1070] sm:$0xff]
    %v691 = vld [vmem:[#allocation5 + $0x1078] sm:$0xff]
    %v692 = vld [vmem:[#allocation5 + $0x1080] sm:$0xff]
    %v693 = vld [vmem:[#allocation5 + $0x1088] sm:$0xff]
    %v694 = vld [vmem:[#allocation5 + $0x1090] sm:$0xff]
    %v695 = vld [vmem:[#allocation5 + $0x1098] sm:$0xff]
    %v696 = vld [vmem:[#allocation5 + $0x10a0] sm:$0xff]
    %v697 = vld [vmem:[#allocation5 + $0x10a8] sm:$0xff]
    %v698 = vld [vmem:[#allocation5 + $0x10b0] sm:$0xff]
    %v699 = vld [vmem:[#allocation5 + $0x10b8] sm:$0xff]
    %v700 = vld [vmem:[#allocation5 + $0x10c0] sm:$0xff]
    %v701 = vld [vmem:[#allocation5 + $0x10c8] sm:$0xff]
    %v702 = vld [vmem:[#allocation5 + $0x10d0] sm:$0xff]
    %v703 = vld [vmem:[#allocation5 + $0x10d8] sm:$0xff]
    %v704 = vld [vmem:[#allocation5 + $0x10e0] sm:$0xff]
    %v705 = vld [vmem:[#allocation5 + $0x10e8] sm:$0xff]
    %v706 = vld [vmem:[#allocation5 + $0x10f0] sm:$0xff]
    %v707 = vld [vmem:[#allocation5 + $0x10f8] sm:$0xff]
    %v708 = vld [vmem:[#allocation5 + $0x1100] sm:$0xff]
    %v709 = vld [vmem:[#allocation5 + $0x1108] sm:$0xff]
    %v710 = vld [vmem:[#allocation5 + $0x1110] sm:$0xff]
    %v711 = vld [vmem:[#allocation5 + $0x1118] sm:$0xff]
    %v712 = vld [vmem:[#allocation5 + $0x1120] sm:$0xff]
    %v713 = vld [vmem:[#allocation5 + $0x1128] sm:$0xff]
    %v714 = vld [vmem:[#allocation5 + $0x1130] sm:$0xff]
    %v715 = vld [vmem:[#allocation5 + $0x1138] sm:$0xff]
    %v716 = vld [vmem:[#allocation5 + $0x1140] sm:$0xff]
    %v717 = vld [vmem:[#allocation5 + $0x1148] sm:$0xff]
    %v718 = vld [vmem:[#allocation5 + $0x1150] sm:$0xff]
    %v719 = vld [vmem:[#allocation5 + $0x1158] sm:$0xff]
    %v720 = vld [vmem:[#allocation5 + $0x1160] sm:$0xff]
    %v721 = vld [vmem:[#allocation5 + $0x1168] sm:$0xff]
    %v722 = vld [vmem:[#allocation5 + $0x1170] sm:$0xff]
    %v723 = vld [vmem:[#allocation5 + $0x1178] sm:$0xff]
    %v724 = vld [vmem:[#allocation5 + $0x1180] sm:$0xff]
    %v725 = vld [vmem:[#allocation5 + $0x1188] sm:$0xff]
    %v726 = vld [vmem:[#allocation5 + $0x1190] sm:$0xff]
    %v727 = vld [vmem:[#allocation5 + $0x1198] sm:$0xff]
    %v728 = vld [vmem:[#allocation5 + $0x11a0] sm:$0xff]
    %v729 = vld [vmem:[#allocation5 + $0x11a8] sm:$0xff]
    %v730 = vld [vmem:[#allocation5 + $0x11b0] sm:$0xff]
    %v731 = vld [vmem:[#allocation5 + $0x11b8] sm:$0xff]
    %v732 = vld [vmem:[#allocation5 + $0x11c0] sm:$0xff]
    %v733 = vld [vmem:[#allocation5 + $0x11c8] sm:$0xff]
    %v734 = vld [vmem:[#allocation5 + $0x11d0] sm:$0xff]
    %v735 = vld [vmem:[#allocation5 + $0x11d8] sm:$0xff]
    %v736 = vld [vmem:[#allocation5 + $0x11e0] sm:$0xff]
    %v737 = vld [vmem:[#allocation5 + $0x11e8] sm:$0xff]
    %v738 = vld [vmem:[#allocation5 + $0x11f0] sm:$0xff]
    %v739 = vld [vmem:[#allocation5 + $0x11f8] sm:$0xff]
    %v740 = vld [vmem:[#allocation5 + $0x1200] sm:$0xff]
    %v741 = vld [vmem:[#allocation5 + $0x1208] sm:$0xff]
    %v742 = vld [vmem:[#allocation5 + $0x1210] sm:$0xff]
    %v743 = vld [vmem:[#allocation5 + $0x1218] sm:$0xff]
    %v744 = vld [vmem:[#allocation5 + $0x1220] sm:$0xff]
    %v745 = vld [vmem:[#allocation5 + $0x1228] sm:$0xff]
    %v746 = vld [vmem:[#allocation5 + $0x1230] sm:$0xff]
    %v747 = vld [vmem:[#allocation5 + $0x1238] sm:$0xff]
    %v748 = vld [vmem:[#allocation5 + $0x1240] sm:$0xff]
    %v749 = vld [vmem:[#allocation5 + $0x1248] sm:$0xff]
    %v750 = vld [vmem:[#allocation5 + $0x1250] sm:$0xff]
    %v751 = vld [vmem:[#allocation5 + $0x1258] sm:$0xff]
    %v752 = vld [vmem:[#allocation5 + $0x1260] sm:$0xff]
    %v753 = vld [vmem:[#allocation5 + $0x1268] sm:$0xff]
    %v754 = vld [vmem:[#allocation5 + $0x1270] sm:$0xff]
    %v755 = vld [vmem:[#allocation5 + $0x1278] sm:$0xff]
    %v756 = vld [vmem:[#allocation5 + $0x1280] sm:$0xff]
    %v757 = vld [vmem:[#allocation5 + $0x1288] sm:$0xff]
    %v758 = vld [vmem:[#allocation5 + $0x1290] sm:$0xff]
    %v759 = vld [vmem:[#allocation5 + $0x1298] sm:$0xff]
    %v760 = vld [vmem:[#allocation5 + $0x12a0] sm:$0xff]
    %v761 = vld [vmem:[#allocation5 + $0x12a8] sm:$0xff]
    %v762 = vld [vmem:[#allocation5 + $0x12b0] sm:$0xff]
    %v763 = vld [vmem:[#allocation5 + $0x12b8] sm:$0xff]
    %v764 = vld [vmem:[#allocation5 + $0x12c0] sm:$0xff]
    %v765 = vld [vmem:[#allocation5 + $0x12c8] sm:$0xff]
    %v766 = vld [vmem:[#allocation5 + $0x12d0] sm:$0xff]
    %v767 = vld [vmem:[#allocation5 + $0x12d8] sm:$0xff]
    %v768 = vld [vmem:[#allocation5 + $0x12e0] sm:$0xff]
    %v769 = vld [vmem:[#allocation5 + $0x12e8] sm:$0xff]
    %v770 = vld [vmem:[#allocation5 + $0x12f0] sm:$0xff]
    %v771 = vld [vmem:[#allocation5 + $0x12f8] sm:$0xff]
    %v772 = vld [vmem:[#allocation5 + $0x1300] sm:$0xff]
    %v773 = vld [vmem:[#allocation5 + $0x1308] sm:$0xff]
    %v774 = vld [vmem:[#allocation5 + $0x1310] sm:$0xff]
    %v775 = vld [vmem:[#allocation5 + $0x1318] sm:$0xff]
    %v776 = vld [vmem:[#allocation5 + $0x1320] sm:$0xff]
    %v777 = vld [vmem:[#allocation5 + $0x1328] sm:$0xff]
    %v778 = vld [vmem:[#allocation5 + $0x1330] sm:$0xff]
    %v779 = vld [vmem:[#allocation5 + $0x1338] sm:$0xff]
    %v780 = vld [vmem:[#allocation5 + $0x1340] sm:$0xff]
    %v781 = vld [vmem:[#allocation5 + $0x1348] sm:$0xff]
    %v782 = vld [vmem:[#allocation5 + $0x1350] sm:$0xff]
    %v783 = vld [vmem:[#allocation5 + $0x1358] sm:$0xff]
    %v784 = vld [vmem:[#allocation5 + $0x1360] sm:$0xff]
    %v785 = vld [vmem:[#allocation5 + $0x1368] sm:$0xff]
    %v786 = vld [vmem:[#allocation5 + $0x1370] sm:$0xff]
    %v787 = vld [vmem:[#allocation5 + $0x1378] sm:$0xff]
    %v788 = vld [vmem:[#allocation5 + $0x1380] sm:$0xff]
    %v789 = vld [vmem:[#allocation5 + $0x1388] sm:$0xff]
    %v790 = vld [vmem:[#allocation5 + $0x1390] sm:$0xff]
    %v791 = vld [vmem:[#allocation5 + $0x1398] sm:$0xff]
    %v792 = vld [vmem:[#allocation5 + $0x13a0] sm:$0xff]
    %v793 = vld [vmem:[#allocation5 + $0x13a8] sm:$0xff]
    %v794 = vld [vmem:[#allocation5 + $0x13b0] sm:$0xff]
    %v795 = vld [vmem:[#allocation5 + $0x13b8] sm:$0xff]
    %v796 = vld [vmem:[#allocation5 + $0x13c0] sm:$0xff]
    %v797 = vld [vmem:[#allocation5 + $0x13c8] sm:$0xff]
    %v798 = vld [vmem:[#allocation5 + $0x13d0] sm:$0xff]
    %v799 = vld [vmem:[#allocation5 + $0x13d8] sm:$0xff]
    %v800 = vld [vmem:[#allocation5 + $0x13e0] sm:$0xff]
    %v801 = vld [vmem:[#allocation5 + $0x13e8] sm:$0xff]
    %v802 = vld [vmem:[#allocation5 + $0x13f0] sm:$0xff]
    %v803 = vld [vmem:[#allocation5 + $0x13f8] sm:$0xff]
    %v804 = vld [vmem:[#allocation5 + $0x1400] sm:$0xff]
    %v805 = vld [vmem:[#allocation5 + $0x1408] sm:$0xff]
    %v806 = vld [vmem:[#allocation5 + $0x1410] sm:$0xff]
    %v807 = vld [vmem:[#allocation5 + $0x1418] sm:$0xff]
    %v808 = vld [vmem:[#allocation5 + $0x1420] sm:$0xff]
    %v809 = vld [vmem:[#allocation5 + $0x1428] sm:$0xff]
    %v810 = vld [vmem:[#allocation5 + $0x1430] sm:$0xff]
    %v811 = vld [vmem:[#allocation5 + $0x1438] sm:$0xff]
    %v812 = vld [vmem:[#allocation5 + $0x1440] sm:$0xff]
    %v813 = vld [vmem:[#allocation5 + $0x1448] sm:$0xff]
    %v814 = vld [vmem:[#allocation5 + $0x1450] sm:$0xff]
    %v815 = vld [vmem:[#allocation5 + $0x1458] sm:$0xff]
    %v816 = vld [vmem:[#allocation5 + $0x1460] sm:$0xff]
    %v817 = vld [vmem:[#allocation5 + $0x1468] sm:$0xff]
    %v818 = vld [vmem:[#allocation5 + $0x1470] sm:$0xff]
    %v819 = vld [vmem:[#allocation5 + $0x1478] sm:$0xff]
    %v820 = vld [vmem:[#allocation5 + $0x1480] sm:$0xff]
    %v821 = vld [vmem:[#allocation5 + $0x1488] sm:$0xff]
    %v822 = vld [vmem:[#allocation5 + $0x1490] sm:$0xff]
    %v823 = vld [vmem:[#allocation5 + $0x1498] sm:$0xff]
    %v824 = vld [vmem:[#allocation5 + $0x14a0] sm:$0xff]
    %v825 = vld [vmem:[#allocation5 + $0x14a8] sm:$0xff]
    %v826 = vld [vmem:[#allocation5 + $0x14b0] sm:$0xff]
    %v827 = vld [vmem:[#allocation5 + $0x14b8] sm:$0xff]
    %v828 = vld [vmem:[#allocation5 + $0x14c0] sm:$0xff]
    %v829 = vld [vmem:[#allocation5 + $0x14c8] sm:$0xff]
    %v830 = vld [vmem:[#allocation5 + $0x14d0] sm:$0xff]
    %v831 = vld [vmem:[#allocation5 + $0x14d8] sm:$0xff]
    %v832 = vld [vmem:[#allocation5 + $0x14e0] sm:$0xff]
    %v833 = vld [vmem:[#allocation5 + $0x14e8] sm:$0xff]
    %v834 = vld [vmem:[#allocation5 + $0x14f0] sm:$0xff]
    %v835 = vld [vmem:[#allocation5 + $0x14f8] sm:$0xff]
    %v836 = vld [vmem:[#allocation5 + $0x1500] sm:$0xff]
    %v837 = vld [vmem:[#allocation5 + $0x1508] sm:$0xff]
    %v838 = vld [vmem:[#allocation5 + $0x1510] sm:$0xff]
    %v839 = vld [vmem:[#allocation5 + $0x1518] sm:$0xff]
    %v840 = vld [vmem:[#allocation5 + $0x1520] sm:$0xff]
    %v841 = vld [vmem:[#allocation5 + $0x1528] sm:$0xff]
    %v842 = vld [vmem:[#allocation5 + $0x1530] sm:$0xff]
    %v843 = vld [vmem:[#allocation5 + $0x1538] sm:$0xff]
    %v844 = vld [vmem:[#allocation5 + $0x1540] sm:$0xff]
    %v845 = vld [vmem:[#allocation5 + $0x1548] sm:$0xff]
    %v846 = vld [vmem:[#allocation5 + $0x1550] sm:$0xff]
    %v847 = vld [vmem:[#allocation5 + $0x1558] sm:$0xff]
    %v848 = vld [vmem:[#allocation5 + $0x1560] sm:$0xff]
    %v849 = vld [vmem:[#allocation5 + $0x1568] sm:$0xff]
    %v850 = vld [vmem:[#allocation5 + $0x1570] sm:$0xff]
    %v851 = vld [vmem:[#allocation5 + $0x1578] sm:$0xff]
    %v852 = vld [vmem:[#allocation5 + $0x1580] sm:$0xff]
    %v853 = vld [vmem:[#allocation5 + $0x1588] sm:$0xff]
    %v854 = vld [vmem:[#allocation5 + $0x1590] sm:$0xff]
    %v855 = vld [vmem:[#allocation5 + $0x1598] sm:$0xff]
    %v856 = vld [vmem:[#allocation5 + $0x15a0] sm:$0xff]
    %v857 = vld [vmem:[#allocation5 + $0x15a8] sm:$0xff]
    %v858 = vld [vmem:[#allocation5 + $0x15b0] sm:$0xff]
    %v859 = vld [vmem:[#allocation5 + $0x15b8] sm:$0xff]
    %v860 = vld [vmem:[#allocation5 + $0x15c0] sm:$0xff]
    %v861 = vld [vmem:[#allocation5 + $0x15c8] sm:$0xff]
    %v862 = vld [vmem:[#allocation5 + $0x15d0] sm:$0xff]
    %v863 = vld [vmem:[#allocation5 + $0x15d8] sm:$0xff]
    %v864 = vld [vmem:[#allocation5 + $0x15e0] sm:$0xff]
    %v865 = vld [vmem:[#allocation5 + $0x15e8] sm:$0xff]
    %v866 = vld [vmem:[#allocation5 + $0x15f0] sm:$0xff]
    %v867 = vld [vmem:[#allocation5 + $0x15f8] sm:$0xff]
    %v868 = vld [vmem:[#allocation5 + $0x1600] sm:$0xff]
    %v869 = vld [vmem:[#allocation5 + $0x1608] sm:$0xff]
    %v870 = vld [vmem:[#allocation5 + $0x1610] sm:$0xff]
    %v871 = vld [vmem:[#allocation5 + $0x1618] sm:$0xff]
    %v872 = vld [vmem:[#allocation5 + $0x1620] sm:$0xff]
    %v873 = vld [vmem:[#allocation5 + $0x1628] sm:$0xff]
    %v874 = vld [vmem:[#allocation5 + $0x1630] sm:$0xff]
    %v875 = vld [vmem:[#allocation5 + $0x1638] sm:$0xff]
    %v876 = vld [vmem:[#allocation5 + $0x1640] sm:$0xff]
    %v877 = vld [vmem:[#allocation5 + $0x1648] sm:$0xff]
    %v878 = vld [vmem:[#allocation5 + $0x1650] sm:$0xff]
    %v879 = vld [vmem:[#allocation5 + $0x1658] sm:$0xff]
    %v880 = vld [vmem:[#allocation5 + $0x1660] sm:$0xff]
    %v881 = vld [vmem:[#allocation5 + $0x1668] sm:$0xff]
    %v882 = vld [vmem:[#allocation5 + $0x1670] sm:$0xff]
    %v883 = vld [vmem:[#allocation5 + $0x1678] sm:$0xff]
    %v884 = vld [vmem:[#allocation5 + $0x1680] sm:$0xff]
    %v885 = vld [vmem:[#allocation5 + $0x1688] sm:$0xff]
    %v886 = vld [vmem:[#allocation5 + $0x1690] sm:$0xff]
    %v887 = vld [vmem:[#allocation5 + $0x1698] sm:$0xff]
    %v888 = vld [vmem:[#allocation5 + $0x16a0] sm:$0xff]
    %v889 = vld [vmem:[#allocation5 + $0x16a8] sm:$0xff]
    %v890 = vld [vmem:[#allocation5 + $0x16b0] sm:$0xff]
    %v891 = vld [vmem:[#allocation5 + $0x16b8] sm:$0xff]
    %v892 = vld [vmem:[#allocation5 + $0x16c0] sm:$0xff]
    %v893 = vld [vmem:[#allocation5 + $0x16c8] sm:$0xff]
    %v894 = vld [vmem:[#allocation5 + $0x16d0] sm:$0xff]
    %v895 = vld [vmem:[#allocation5 + $0x16d8] sm:$0xff]
    %v896 = vld [vmem:[#allocation5 + $0x16e0] sm:$0xff]
    %v897 = vld [vmem:[#allocation5 + $0x16e8] sm:$0xff]
    %v898 = vld [vmem:[#allocation5 + $0x16f0] sm:$0xff]
    %v899 = vld [vmem:[#allocation5 + $0x16f8] sm:$0xff]
    %v900 = vld [vmem:[#allocation5 + $0x1700] sm:$0xff]
    %v901 = vld [vmem:[#allocation5 + $0x1708] sm:$0xff]
    %v902 = vld [vmem:[#allocation5 + $0x1710] sm:$0xff]
    %v903 = vld [vmem:[#allocation5 + $0x1718] sm:$0xff]
    %v904 = vld [vmem:[#allocation5 + $0x1720] sm:$0xff]
    %v905 = vld [vmem:[#allocation5 + $0x1728] sm:$0xff]
    %v906 = vld [vmem:[#allocation5 + $0x1730] sm:$0xff]
    %v907 = vld [vmem:[#allocation5 + $0x1738] sm:$0xff]
    %v908 = vld [vmem:[#allocation5 + $0x1740] sm:$0xff]
    %v909 = vld [vmem:[#allocation5 + $0x1748] sm:$0xff]
    %v910 = vld [vmem:[#allocation5 + $0x1750] sm:$0xff]
    %v911 = vld [vmem:[#allocation5 + $0x1758] sm:$0xff]
    %v912 = vld [vmem:[#allocation5 + $0x1760] sm:$0xff]
    %v913 = vld [vmem:[#allocation5 + $0x1768] sm:$0xff]
    %v914 = vld [vmem:[#allocation5 + $0x1770] sm:$0xff]
    %v915 = vld [vmem:[#allocation5 + $0x1778] sm:$0xff]
    %v916 = vld [vmem:[#allocation5 + $0x1780] sm:$0xff]
    %v917 = vld [vmem:[#allocation5 + $0x1788] sm:$0xff]
    %v918 = vld [vmem:[#allocation5 + $0x1790] sm:$0xff]
    %v919 = vld [vmem:[#allocation5 + $0x1798] sm:$0xff]
    %v920 = vld [vmem:[#allocation5 + $0x17a0] sm:$0xff]
    %v921 = vld [vmem:[#allocation5 + $0x17a8] sm:$0xff]
    %v922 = vld [vmem:[#allocation5 + $0x17b0] sm:$0xff]
    %v923 = vld [vmem:[#allocation5 + $0x17b8] sm:$0xff]
    %v924 = vld [vmem:[#allocation5 + $0x17c0] sm:$0xff]
    %v925 = vld [vmem:[#allocation5 + $0x17c8] sm:$0xff]
    %v926 = vld [vmem:[#allocation5 + $0x17d0] sm:$0xff]
    %v927 = vld [vmem:[#allocation5 + $0x17d8] sm:$0xff]
    %v928 = vld [vmem:[#allocation5 + $0x17e0] sm:$0xff]
    %v929 = vld [vmem:[#allocation5 + $0x17e8] sm:$0xff]
    %v930 = vld [vmem:[#allocation5 + $0x17f0] sm:$0xff]
    %v931 = vld [vmem:[#allocation5 + $0x17f8] sm:$0xff]
    %v932 = vld [vmem:[#allocation5 + $0x1800] sm:$0xff]
    %v933 = vld [vmem:[#allocation5 + $0x1808] sm:$0xff]
    %v934 = vld [vmem:[#allocation5 + $0x1810] sm:$0xff]
    %v935 = vld [vmem:[#allocation5 + $0x1818] sm:$0xff]
    %v936 = vld [vmem:[#allocation5 + $0x1820] sm:$0xff]
    %v937 = vld [vmem:[#allocation5 + $0x1828] sm:$0xff]
    %v938 = vld [vmem:[#allocation5 + $0x1830] sm:$0xff]
    %v939 = vld [vmem:[#allocation5 + $0x1838] sm:$0xff]
    %v940 = vld [vmem:[#allocation5 + $0x1840] sm:$0xff]
    %v941 = vld [vmem:[#allocation5 + $0x1848] sm:$0xff]
    %v942 = vld [vmem:[#allocation5 + $0x1850] sm:$0xff]
    %v943 = vld [vmem:[#allocation5 + $0x1858] sm:$0xff]
    %v944 = vld [vmem:[#allocation5 + $0x1860] sm:$0xff]
    %v945 = vld [vmem:[#allocation5 + $0x1868] sm:$0xff]
    %v946 = vld [vmem:[#allocation5 + $0x1870] sm:$0xff]
    %v947 = vld [vmem:[#allocation5 + $0x1878] sm:$0xff]
    %v948 = vld [vmem:[#allocation5 + $0x1880] sm:$0xff]
    %v949 = vld [vmem:[#allocation5 + $0x1888] sm:$0xff]
    %v950 = vld [vmem:[#allocation5 + $0x1890] sm:$0xff]
    %v951 = vld [vmem:[#allocation5 + $0x1898] sm:$0xff]
    %v952 = vld [vmem:[#allocation5 + $0x18a0] sm:$0xff]
    %v953 = vld [vmem:[#allocation5 + $0x18a8] sm:$0xff]
    %v954 = vld [vmem:[#allocation5 + $0x18b0] sm:$0xff]
    %v955 = vld [vmem:[#allocation5 + $0x18b8] sm:$0xff]
    %v956 = vld [vmem:[#allocation5 + $0x18c0] sm:$0xff]
    %v957 = vld [vmem:[#allocation5 + $0x18c8] sm:$0xff]
    %v958 = vld [vmem:[#allocation5 + $0x18d0] sm:$0xff]
    %v959 = vld [vmem:[#allocation5 + $0x18d8] sm:$0xff]
    %v960 = vld [vmem:[#allocation5 + $0x18e0] sm:$0xff]
    %v961 = vld [vmem:[#allocation5 + $0x18e8] sm:$0xff]
    %v962 = vld [vmem:[#allocation5 + $0x18f0] sm:$0xff]
    %v963 = vld [vmem:[#allocation5 + $0x18f8] sm:$0xff]
    %v964 = vld [vmem:[#allocation5 + $0x1900] sm:$0xff]
    %v965 = vld [vmem:[#allocation5 + $0x1908] sm:$0xff]
    %v966 = vld [vmem:[#allocation5 + $0x1910] sm:$0xff]
    %v967 = vld [vmem:[#allocation5 + $0x1918] sm:$0xff]
    %v968 = vld [vmem:[#allocation5 + $0x1920] sm:$0xff]
    %v969 = vld [vmem:[#allocation5 + $0x1928] sm:$0xff]
    %v970 = vld [vmem:[#allocation5 + $0x1930] sm:$0xff]
    %v971 = vld [vmem:[#allocation5 + $0x1938] sm:$0xff]
    %v972 = vld [vmem:[#allocation5 + $0x1940] sm:$0xff]
    %v973 = vld [vmem:[#allocation5 + $0x1948] sm:$0xff]
    %v974 = vld [vmem:[#allocation5 + $0x1950] sm:$0xff]
    %v975 = vld [vmem:[#allocation5 + $0x1958] sm:$0xff]
    %v976 = vld [vmem:[#allocation5 + $0x1960] sm:$0xff]
    %v977 = vld [vmem:[#allocation5 + $0x1968] sm:$0xff]
    %v978 = vld [vmem:[#allocation5 + $0x1970] sm:$0xff]
    %v979 = vld [vmem:[#allocation5 + $0x1978] sm:$0xff]
    %v980 = vld [vmem:[#allocation5 + $0x1980] sm:$0xff]
    %v981 = vld [vmem:[#allocation5 + $0x1988] sm:$0xff]
    %v982 = vld [vmem:[#allocation5 + $0x1990] sm:$0xff]
    %v983 = vld [vmem:[#allocation5 + $0x1998] sm:$0xff]
    %v984 = vld [vmem:[#allocation5 + $0x19a0] sm:$0xff]
    %v985 = vld [vmem:[#allocation5 + $0x19a8] sm:$0xff]
    %v986 = vld [vmem:[#allocation5 + $0x19b0] sm:$0xff]
    %v987 = vld [vmem:[#allocation5 + $0x19b8] sm:$0xff]
    %v988 = vld [vmem:[#allocation5 + $0x19c0] sm:$0xff]
    %v989 = vld [vmem:[#allocation5 + $0x19c8] sm:$0xff]
    %v990 = vld [vmem:[#allocation5 + $0x19d0] sm:$0xff]
    %v991 = vld [vmem:[#allocation5 + $0x19d8] sm:$0xff]
    %v992 = vld [vmem:[#allocation5 + $0x19e0] sm:$0xff]
    %v993 = vld [vmem:[#allocation5 + $0x19e8] sm:$0xff]
    %v994 = vld [vmem:[#allocation5 + $0x19f0] sm:$0xff]
    %v995 = vld [vmem:[#allocation5 + $0x19f8] sm:$0xff]
    %v996 = vld [vmem:[#allocation5 + $0x1a00] sm:$0xff]
    %v997 = vld [vmem:[#allocation5 + $0x1a08] sm:$0xff]
    %v998 = vld [vmem:[#allocation5 + $0x1a10] sm:$0xff]
    %v999 = vld [vmem:[#allocation5 + $0x1a18] sm:$0xff]
    %v1000 = vld [vmem:[#allocation5 + $0x1a20] sm:$0xff]
    %v1001 = vld [vmem:[#allocation5 + $0x1a28] sm:$0xff]
    %v1002 = vld [vmem:[#allocation5 + $0x1a30] sm:$0xff]
    %v1003 = vld [vmem:[#allocation5 + $0x1a38] sm:$0xff]
    %v1004 = vld [vmem:[#allocation5 + $0x1a40] sm:$0xff]
    %v1005 = vld [vmem:[#allocation5 + $0x1a48] sm:$0xff]
    %v1006 = vld [vmem:[#allocation5 + $0x1a50] sm:$0xff]
    %v1007 = vld [vmem:[#allocation5 + $0x1a58] sm:$0xff]
    %v1008 = vld [vmem:[#allocation5 + $0x1a60] sm:$0xff]
    %v1009 = vld [vmem:[#allocation5 + $0x1a68] sm:$0xff]
    %v1010 = vld [vmem:[#allocation5 + $0x1a70] sm:$0xff]
    %v1011 = vld [vmem:[#allocation5 + $0x1a78] sm:$0xff]
    %v1012 = vld [vmem:[#allocation5 + $0x1a80] sm:$0xff]
    %v1013 = vld [vmem:[#allocation5 + $0x1a88] sm:$0xff]
    %v1014 = vld [vmem:[#allocation5 + $0x1a90] sm:$0xff]
    %v1015 = vld [vmem:[#allocation5 + $0x1a98] sm:$0xff]
    %v1016 = vld [vmem:[#allocation5 + $0x1aa0] sm:$0xff]
    %v1017 = vld [vmem:[#allocation5 + $0x1aa8] sm:$0xff]
    %v1018 = vld [vmem:[#allocation5 + $0x1ab0] sm:$0xff]
    %v1019 = vld [vmem:[#allocation5 + $0x1ab8] sm:$0xff]
    %v1020 = vld [vmem:[#allocation5 + $0x1ac0] sm:$0xff]
    %v1021 = vld [vmem:[#allocation5 + $0x1ac8] sm:$0xff]
    %v1022 = vld [vmem:[#allocation5 + $0x1ad0] sm:$0xff]
    %v1023 = vld [vmem:[#allocation5 + $0x1ad8] sm:$0xff]
    %v1024 = vld [vmem:[#allocation5 + $0x1ae0] sm:$0xff]
    %v1025 = vld [vmem:[#allocation5 + $0x1ae8] sm:$0xff]
    %v1026 = vld [vmem:[#allocation5 + $0x1af0] sm:$0xff]
    %v1027 = vld [vmem:[#allocation5 + $0x1af8] sm:$0xff]
    %v1028 = vld [vmem:[#allocation5 + $0x1b00] sm:$0xff]
    %v1029 = vld [vmem:[#allocation5 + $0x1b08] sm:$0xff]
    %v1030 = vld [vmem:[#allocation5 + $0x1b10] sm:$0xff]
    %v1031 = vld [vmem:[#allocation5 + $0x1b18] sm:$0xff]
    %v1032 = vld [vmem:[#allocation5 + $0x1b20] sm:$0xff]
    %v1033 = vld [vmem:[#allocation5 + $0x1b28] sm:$0xff]
    %v1034 = vld [vmem:[#allocation5 + $0x1b30] sm:$0xff]
    %v1035 = vld [vmem:[#allocation5 + $0x1b38] sm:$0xff]
    %v1036 = vld [vmem:[#allocation5 + $0x1b40] sm:$0xff]
    %v1037 = vld [vmem:[#allocation5 + $0x1b48] sm:$0xff]
    %v1038 = vld [vmem:[#allocation5 + $0x1b50] sm:$0xff]
    %v1039 = vld [vmem:[#allocation5 + $0x1b58] sm:$0xff]
    %v1040 = vld [vmem:[#allocation5 + $0x1b60] sm:$0xff]
    %v1041 = vld [vmem:[#allocation5 + $0x1b68] sm:$0xff]
    %v1042 = vld [vmem:[#allocation5 + $0x1b70] sm:$0xff]
    %v1043 = vld [vmem:[#allocation5 + $0x1b78] sm:$0xff]
    %v1044 = vld [vmem:[#allocation5 + $0x1b80] sm:$0xff]
    %v1045 = vld [vmem:[#allocation5 + $0x1b88] sm:$0xff]
    %v1046 = vld [vmem:[#allocation5 + $0x1b90] sm:$0xff]
    %v1047 = vld [vmem:[#allocation5 + $0x1b98] sm:$0xff]
    %v1048 = vld [vmem:[#allocation5 + $0x1ba0] sm:$0xff]
    %v1049 = vld [vmem:[#allocation5 + $0x1ba8] sm:$0xff]
    %v1050 = vld [vmem:[#allocation5 + $0x1bb0] sm:$0xff]
    %v1051 = vld [vmem:[#allocation5 + $0x1bb8] sm:$0xff]
    %v1052 = vld [vmem:[#allocation5 + $0x1bc0] sm:$0xff]
    %v1053 = vld [vmem:[#allocation5 + $0x1bc8] sm:$0xff]
    %v1054 = vld [vmem:[#allocation5 + $0x1bd0] sm:$0xff]
    %v1055 = vld [vmem:[#allocation5 + $0x1bd8] sm:$0xff]
    %v1056 = vld [vmem:[#allocation5 + $0x1be0] sm:$0xff]
    %v1057 = vld [vmem:[#allocation5 + $0x1be8] sm:$0xff]
    %v1058 = vld [vmem:[#allocation5 + $0x1bf0] sm:$0xff]
    %v1059 = vld [vmem:[#allocation5 + $0x1bf8] sm:$0xff]
    %v1060 = vld [vmem:[#allocation5 + $0x1c00] sm:$0xff]
    %v1061 = vld [vmem:[#allocation5 + $0x1c08] sm:$0xff]
    %v1062 = vld [vmem:[#allocation5 + $0x1c10] sm:$0xff]
    %v1063 = vld [vmem:[#allocation5 + $0x1c18] sm:$0xff]
    %v1064 = vld [vmem:[#allocation5 + $0x1c20] sm:$0xff]
    %v1065 = vld [vmem:[#allocation5 + $0x1c28] sm:$0xff]
    %v1066 = vld [vmem:[#allocation5 + $0x1c30] sm:$0xff]
    %v1067 = vld [vmem:[#allocation5 + $0x1c38] sm:$0xff]
    %v1068 = vld [vmem:[#allocation5 + $0x1c40] sm:$0xff]
    %v1069 = vld [vmem:[#allocation5 + $0x1c48] sm:$0xff]
    %v1070 = vld [vmem:[#allocation5 + $0x1c50] sm:$0xff]
    %v1071 = vld [vmem:[#allocation5 + $0x1c58] sm:$0xff]
    %v1072 = vld [vmem:[#allocation5 + $0x1c60] sm:$0xff]
    %v1073 = vld [vmem:[#allocation5 + $0x1c68] sm:$0xff]
    %v1074 = vld [vmem:[#allocation5 + $0x1c70] sm:$0xff]
    %v1075 = vld [vmem:[#allocation5 + $0x1c78] sm:$0xff]
    %v1076 = vld [vmem:[#allocation5 + $0x1c80] sm:$0xff]
    %v1077 = vld [vmem:[#allocation5 + $0x1c88] sm:$0xff]
    %v1078 = vld [vmem:[#allocation5 + $0x1c90] sm:$0xff]
    %v1079 = vld [vmem:[#allocation5 + $0x1c98] sm:$0xff]
    %v1080 = vld [vmem:[#allocation5 + $0x1ca0] sm:$0xff]
    %v1081 = vld [vmem:[#allocation5 + $0x1ca8] sm:$0xff]
    %v1082 = vld [vmem:[#allocation5 + $0x1cb0] sm:$0xff]
    %v1083 = vld [vmem:[#allocation5 + $0x1cb8] sm:$0xff]
    %v1084 = vld [vmem:[#allocation5 + $0x1cc0] sm:$0xff]
    %v1085 = vld [vmem:[#allocation5 + $0x1cc8] sm:$0xff]
    %v1086 = vld [vmem:[#allocation5 + $0x1cd0] sm:$0xff]
    %v1087 = vld [vmem:[#allocation5 + $0x1cd8] sm:$0xff]
    %v1088 = vld [vmem:[#allocation5 + $0x1ce0] sm:$0xff]
    %v1089 = vld [vmem:[#allocation5 + $0x1ce8] sm:$0xff]
    %v1090 = vld [vmem:[#allocation5 + $0x1cf0] sm:$0xff]
    %v1091 = vld [vmem:[#allocation5 + $0x1cf8] sm:$0xff]
    %v1092 = vld [vmem:[#allocation5 + $0x1d00] sm:$0xff]
    %v1093 = vld [vmem:[#allocation5 + $0x1d08] sm:$0xff]
    %v1094 = vld [vmem:[#allocation5 + $0x1d10] sm:$0xff]
    %v1095 = vld [vmem:[#allocation5 + $0x1d18] sm:$0xff]
    %v1096 = vld [vmem:[#allocation5 + $0x1d20] sm:$0xff]
    %v1097 = vld [vmem:[#allocation5 + $0x1d28] sm:$0xff]
    %v1098 = vld [vmem:[#allocation5 + $0x1d30] sm:$0xff]
    %v1099 = vld [vmem:[#allocation5 + $0x1d38] sm:$0xff]
    %v1100 = vld [vmem:[#allocation5 + $0x1d40] sm:$0xff]
    %v1101 = vld [vmem:[#allocation5 + $0x1d48] sm:$0xff]
    %v1102 = vld [vmem:[#allocation5 + $0x1d50] sm:$0xff]
    %v1103 = vld [vmem:[#allocation5 + $0x1d58] sm:$0xff]
    %v1104 = vld [vmem:[#allocation5 + $0x1d60] sm:$0xff]
    %v1105 = vld [vmem:[#allocation5 + $0x1d68] sm:$0xff]
    %v1106 = vld [vmem:[#allocation5 + $0x1d70] sm:$0xff]
    %v1107 = vld [vmem:[#allocation5 + $0x1d78] sm:$0xff]
    %v1108 = vld [vmem:[#allocation5 + $0x1d80] sm:$0xff]
    %v1109 = vld [vmem:[#allocation5 + $0x1d88] sm:$0xff]
    %v1110 = vld [vmem:[#allocation5 + $0x1d90] sm:$0xff]
    %v1111 = vld [vmem:[#allocation5 + $0x1d98] sm:$0xff]
    %v1112 = vld [vmem:[#allocation5 + $0x1da0] sm:$0xff]
    %v1113 = vld [vmem:[#allocation5 + $0x1da8] sm:$0xff]
    %v1114 = vld [vmem:[#allocation5 + $0x1db0] sm:$0xff]
    %v1115 = vld [vmem:[#allocation5 + $0x1db8] sm:$0xff]
    %v1116 = vld [vmem:[#allocation5 + $0x1dc0] sm:$0xff]
    %v1117 = vld [vmem:[#allocation5 + $0x1dc8] sm:$0xff]
    %v1118 = vld [vmem:[#allocation5 + $0x1dd0] sm:$0xff]
    %v1119 = vld [vmem:[#allocation5 + $0x1dd8] sm:$0xff]
    %v1120 = vld [vmem:[#allocation5 + $0x1de0] sm:$0xff]
    %v1121 = vld [vmem:[#allocation5 + $0x1de8] sm:$0xff]
    %v1122 = vld [vmem:[#allocation5 + $0x1df0] sm:$0xff]
    %v1123 = vld [vmem:[#allocation5 + $0x1df8] sm:$0xff]
    %v1124 = vld [vmem:[#allocation5 + $0x1e00] sm:$0xff]
    %v1125 = vld [vmem:[#allocation5 + $0x1e08] sm:$0xff]
    %v1126 = vld [vmem:[#allocation5 + $0x1e10] sm:$0xff]
    %v1127 = vld [vmem:[#allocation5 + $0x1e18] sm:$0xff]
    %v1128 = vld [vmem:[#allocation5 + $0x1e20] sm:$0xff]
    %v1129 = vld [vmem:[#allocation5 + $0x1e28] sm:$0xff]
    %v1130 = vld [vmem:[#allocation5 + $0x1e30] sm:$0xff]
    %v1131 = vld [vmem:[#allocation5 + $0x1e38] sm:$0xff]
    %v1132 = vld [vmem:[#allocation5 + $0x1e40] sm:$0xff]
    %v1133 = vld [vmem:[#allocation5 + $0x1e48] sm:$0xff]
    %v1134 = vld [vmem:[#allocation5 + $0x1e50] sm:$0xff]
    %v1135 = vld [vmem:[#allocation5 + $0x1e58] sm:$0xff]
    %v1136 = vld [vmem:[#allocation5 + $0x1e60] sm:$0xff]
    %v1137 = vld [vmem:[#allocation5 + $0x1e68] sm:$0xff]
    %v1138 = vld [vmem:[#allocation5 + $0x1e70] sm:$0xff]
    %v1139 = vld [vmem:[#allocation5 + $0x1e78] sm:$0xff]
    %v1140 = vld [vmem:[#allocation5 + $0x1e80] sm:$0xff]
    %v1141 = vld [vmem:[#allocation5 + $0x1e88] sm:$0xff]
    %v1142 = vld [vmem:[#allocation5 + $0x1e90] sm:$0xff]
    %v1143 = vld [vmem:[#allocation5 + $0x1e98] sm:$0xff]
    %v1144 = vld [vmem:[#allocation5 + $0x1ea0] sm:$0xff]
    %v1145 = vld [vmem:[#allocation5 + $0x1ea8] sm:$0xff]
    %v1146 = vld [vmem:[#allocation5 + $0x1eb0] sm:$0xff]
    %v1147 = vld [vmem:[#allocation5 + $0x1eb8] sm:$0xff]
    %v1148 = vld [vmem:[#allocation5 + $0x1ec0] sm:$0xff]
    %v1149 = vld [vmem:[#allocation5 + $0x1ec8] sm:$0xff]
    %v1150 = vld [vmem:[#allocation5 + $0x1ed0] sm:$0xff]
    %v1151 = vld [vmem:[#allocation5 + $0x1ed8] sm:$0xff]
    %v1152 = vld [vmem:[#allocation5 + $0x1ee0] sm:$0xff]
    %v1153 = vld [vmem:[#allocation5 + $0x1ee8] sm:$0xff]
    %v1154 = vld [vmem:[#allocation5 + $0x1ef0] sm:$0xff]
    %v1155 = vld [vmem:[#allocation5 + $0x1ef8] sm:$0xff]
    %v1156 = vld [vmem:[#allocation5 + $0x1f00] sm:$0xff]
    %v1157 = vld [vmem:[#allocation5 + $0x1f08] sm:$0xff]
    %v1158 = vld [vmem:[#allocation5 + $0x1f10] sm:$0xff]
    %v1159 = vld [vmem:[#allocation5 + $0x1f18] sm:$0xff]
    %v1160 = vld [vmem:[#allocation5 + $0x1f20] sm:$0xff]
    %v1161 = vld [vmem:[#allocation5 + $0x1f28] sm:$0xff]
    %v1162 = vld [vmem:[#allocation5 + $0x1f30] sm:$0xff]
    %v1163 = vld [vmem:[#allocation5 + $0x1f38] sm:$0xff]
    %v1164 = vld [vmem:[#allocation5 + $0x1f40] sm:$0xff]
    %v1165 = vld [vmem:[#allocation5 + $0x1f48] sm:$0xff]
    %v1166 = vld [vmem:[#allocation5 + $0x1f50] sm:$0xff]
    %v1167 = vld [vmem:[#allocation5 + $0x1f58] sm:$0xff]
    %v1168 = vld [vmem:[#allocation5 + $0x1f60] sm:$0xff]
    %v1169 = vld [vmem:[#allocation5 + $0x1f68] sm:$0xff]
    %v1170 = vld [vmem:[#allocation5 + $0x1f70] sm:$0xff]
    %v1171 = vld [vmem:[#allocation5 + $0x1f78] sm:$0xff]
    %v1172 = vld [vmem:[#allocation5 + $0x1f80] sm:$0xff]
    %v1173 = vld [vmem:[#allocation5 + $0x1f88] sm:$0xff]
    %v1174 = vld [vmem:[#allocation5 + $0x1f90] sm:$0xff]
    %v1175 = vld [vmem:[#allocation5 + $0x1f98] sm:$0xff]
    %v1176 = vld [vmem:[#allocation5 + $0x1fa0] sm:$0xff]
    %v1177 = vld [vmem:[#allocation5 + $0x1fa8] sm:$0xff]
    %v1178 = vld [vmem:[#allocation5 + $0x1fb0] sm:$0xff]
    %v1179 = vld [vmem:[#allocation5 + $0x1fb8] sm:$0xff]
    %v1180 = vld [vmem:[#allocation5 + $0x1fc0] sm:$0xff]
    %v1181 = vld [vmem:[#allocation5 + $0x1fc8] sm:$0xff]
    %v1182 = vld [vmem:[#allocation5 + $0x1fd0] sm:$0xff]
    %v1183 = vld [vmem:[#allocation5 + $0x1fd8] sm:$0xff]
    %v1184 = vld [vmem:[#allocation5 + $0x1fe0] sm:$0xff]
    %v1185 = vld [vmem:[#allocation5 + $0x1fe8] sm:$0xff]
    %v1186 = vld [vmem:[#allocation5 + $0x1ff0] sm:$0xff]
    %v1187 = vld [vmem:[#allocation5 + $0x1ff8] sm:$0xff]
    %v1188 = vld [vmem:[#allocation7] sm:$0xff]
    %v1190 = vlaneseq
    %v1191 = vshrl.u32 %v1190, 7
    %v1192 = vsub.s32 0, %v1191
    %v1193 = vrot.slane %v1188, %v1192
    %v1194 = vlaneseq
    %v1195 = vshrl.u32 %v1194, 7
    %v1196 = vsub.s32 1, %v1195
    %v1197 = vrot.slane %v1188, %v1196
    %v1198 = vlaneseq
    %v1199 = vshrl.u32 %v1198, 7
    %v1200 = vsub.s32 2, %v1199
    %v1201 = vrot.slane %v1188, %v1200
    %v1202 = vlaneseq
    %v1203 = vshrl.u32 %v1202, 7
    %v1204 = vsub.s32 3, %v1203
    %v1205 = vrot.slane %v1188, %v1204
    %v1206 = vlaneseq
    %v1207 = vshrl.u32 %v1206, 7
    %v1208 = vsub.s32 4, %v1207
    %v1209 = vrot.slane %v1188, %v1208
    %v1210 = vlaneseq
    %v1211 = vshrl.u32 %v1210, 7
    %v1212 = vsub.s32 5, %v1211
    %v1213 = vrot.slane %v1188, %v1212
    %v1214 = vlaneseq
    %v1215 = vshrl.u32 %v1214, 7
    %v1216 = vsub.s32 6, %v1215
    %v1217 = vrot.slane %v1188, %v1216
    %v1218 = vlaneseq
    %v1219 = vshrl.u32 %v1218, 7
    %v1220 = vsub.s32 7, %v1219
    %v1221 = vrot.slane %v1188, %v1220
    %v1246 = vunpack.c.l.b16 %v148
    %v1247 = vunpack.c.h.b16 %v148
    %v1248 = vunpack.c.l.b16 %v149
    %v1249 = vunpack.c.h.b16 %v149
    %v1250 = vunpack.c.l.b16 %v150
    %v1251 = vunpack.c.h.b16 %v150
    %v1252 = vunpack.c.l.b16 %v151
    %v1253 = vunpack.c.h.b16 %v151
    %v1254 = vunpack.c.l.b16 %v152
    %v1255 = vunpack.c.h.b16 %v152
    %v1256 = vunpack.c.l.b16 %v153
    %v1257 = vunpack.c.h.b16 %v153
    %v1258 = vunpack.c.l.b16 %v154
    %v1259 = vunpack.c.h.b16 %v154
    %v1260 = vunpack.c.l.b16 %v155
    %v1261 = vunpack.c.h.b16 %v155
    %v1262 = vunpack.c.l.b16 %v156
    %v1263 = vunpack.c.h.b16 %v156
    %v1264 = vunpack.c.l.b16 %v157
    %v1265 = vunpack.c.h.b16 %v157
    %v1266 = vunpack.c.l.b16 %v158
    %v1267 = vunpack.c.h.b16 %v158
    %v1268 = vunpack.c.l.b16 %v159
    %v1269 = vunpack.c.h.b16 %v159
    %v1270 = vunpack.c.l.b16 %v160
    %v1271 = vunpack.c.h.b16 %v160
    %v1272 = vunpack.c.l.b16 %v161
    %v1273 = vunpack.c.h.b16 %v161
    %v1274 = vunpack.c.l.b16 %v162
    %v1275 = vunpack.c.h.b16 %v162
    %v1276 = vunpack.c.l.b16 %v163
    %v1277 = vunpack.c.h.b16 %v163
    %v1278 = vpack.c.b16 %v1262, %v1246
    %v1279 = vpack.c.b16 %v1263, %v1247
    %v1280 = vpack.c.b16 %v1264, %v1248
    %v1281 = vpack.c.b16 %v1265, %v1249
    %v1282 = vpack.c.b16 %v1266, %v1250
    %v1283 = vpack.c.b16 %v1267, %v1251
    %v1284 = vpack.c.b16 %v1268, %v1252
    %v1285 = vpack.c.b16 %v1269, %v1253
    %v1286 = vpack.c.b16 %v1270, %v1254
    %v1287 = vpack.c.b16 %v1271, %v1255
    %v1288 = vpack.c.b16 %v1272, %v1256
    %v1289 = vpack.c.b16 %v1273, %v1257
    %v1290 = vpack.c.b16 %v1274, %v1258
    %v1291 = vpack.c.b16 %v1275, %v1259
    %v1292 = vpack.c.b16 %v1276, %v1260
    %v1293 = vpack.c.b16 %v1277, %v1261
    %v2334 = vunpack.c.l.b16 %v164
    %v2335 = vunpack.c.h.b16 %v164
    %v2336 = vunpack.c.l.b16 %v165
    %v2337 = vunpack.c.h.b16 %v165
    %v2338 = vunpack.c.l.b16 %v166
    %v2339 = vunpack.c.h.b16 %v166
    %v2340 = vunpack.c.l.b16 %v167
    %v2341 = vunpack.c.h.b16 %v167
    %v2342 = vunpack.c.l.b16 %v168
    %v2343 = vunpack.c.h.b16 %v168
    %v2344 = vunpack.c.l.b16 %v169
    %v2345 = vunpack.c.h.b16 %v169
    %v2346 = vunpack.c.l.b16 %v170
    %v2347 = vunpack.c.h.b16 %v170
    %v2348 = vunpack.c.l.b16 %v171
    %v2349 = vunpack.c.h.b16 %v171
    %v2350 = vunpack.c.l.b16 %v172
    %v2351 = vunpack.c.h.b16 %v172
    %v2352 = vunpack.c.l.b16 %v173
    %v2353 = vunpack.c.h.b16 %v173
    %v2354 = vunpack.c.l.b16 %v174
    %v2355 = vunpack.c.h.b16 %v174
    %v2356 = vunpack.c.l.b16 %v175
    %v2357 = vunpack.c.h.b16 %v175
    %v2358 = vunpack.c.l.b16 %v176
    %v2359 = vunpack.c.h.b16 %v176
    %v2360 = vunpack.c.l.b16 %v177
    %v2361 = vunpack.c.h.b16 %v177
    %v2362 = vunpack.c.l.b16 %v178
    %v2363 = vunpack.c.h.b16 %v178
    %v2364 = vunpack.c.l.b16 %v179
    %v2365 = vunpack.c.h.b16 %v179
    %v2366 = vunpack.c.l.b16 %v180
    %v2367 = vunpack.c.h.b16 %v180
    %v2368 = vunpack.c.l.b16 %v181
    %v2369 = vunpack.c.h.b16 %v181
    %v2370 = vunpack.c.l.b16 %v182
    %v2371 = vunpack.c.h.b16 %v182
    %v2372 = vunpack.c.l.b16 %v183
    %v2373 = vunpack.c.h.b16 %v183
    %v2374 = vunpack.c.l.b16 %v184
    %v2375 = vunpack.c.h.b16 %v184
    %v2376 = vunpack.c.l.b16 %v185
    %v2377 = vunpack.c.h.b16 %v185
    %v2378 = vunpack.c.l.b16 %v186
    %v2379 = vunpack.c.h.b16 %v186
    %v2380 = vunpack.c.l.b16 %v187
    %v2381 = vunpack.c.h.b16 %v187
    %v2382 = vunpack.c.l.b16 %v188
    %v2383 = vunpack.c.h.b16 %v188
    %v2384 = vunpack.c.l.b16 %v189
    %v2385 = vunpack.c.h.b16 %v189
    %v2386 = vunpack.c.l.b16 %v190
    %v2387 = vunpack.c.h.b16 %v190
    %v2388 = vunpack.c.l.b16 %v191
    %v2389 = vunpack.c.h.b16 %v191
    %v2390 = vunpack.c.l.b16 %v192
    %v2391 = vunpack.c.h.b16 %v192
    %v2392 = vunpack.c.l.b16 %v193
    %v2393 = vunpack.c.h.b16 %v193
    %v2394 = vunpack.c.l.b16 %v194
    %v2395 = vunpack.c.h.b16 %v194
    %v2396 = vunpack.c.l.b16 %v195
    %v2397 = vunpack.c.h.b16 %v195
    %v2398 = vunpack.c.l.b16 %v196
    %v2399 = vunpack.c.h.b16 %v196
    %v2400 = vunpack.c.l.b16 %v197
    %v2401 = vunpack.c.h.b16 %v197
    %v2402 = vunpack.c.l.b16 %v198
    %v2403 = vunpack.c.h.b16 %v198
    %v2404 = vunpack.c.l.b16 %v199
    %v2405 = vunpack.c.h.b16 %v199
    %v2406 = vunpack.c.l.b16 %v200
    %v2407 = vunpack.c.h.b16 %v200
    %v2408 = vunpack.c.l.b16 %v201
    %v2409 = vunpack.c.h.b16 %v201
    %v2410 = vunpack.c.l.b16 %v202
    %v2411 = vunpack.c.h.b16 %v202
    %v2412 = vunpack.c.l.b16 %v203
    %v2413 = vunpack.c.h.b16 %v203
    %v2414 = vunpack.c.l.b16 %v204
    %v2415 = vunpack.c.h.b16 %v204
    %v2416 = vunpack.c.l.b16 %v205
    %v2417 = vunpack.c.h.b16 %v205
    %v2418 = vunpack.c.l.b16 %v206
    %v2419 = vunpack.c.h.b16 %v206
    %v2420 = vunpack.c.l.b16 %v207
    %v2421 = vunpack.c.h.b16 %v207
    %v2422 = vunpack.c.l.b16 %v208
    %v2423 = vunpack.c.h.b16 %v208
    %v2424 = vunpack.c.l.b16 %v209
    %v2425 = vunpack.c.h.b16 %v209
    %v2426 = vunpack.c.l.b16 %v210
    %v2427 = vunpack.c.h.b16 %v210
    %v2428 = vunpack.c.l.b16 %v211
    %v2429 = vunpack.c.h.b16 %v211
    %v2430 = vunpack.c.l.b16 %v212
    %v2431 = vunpack.c.h.b16 %v212
    %v2432 = vunpack.c.l.b16 %v213
    %v2433 = vunpack.c.h.b16 %v213
    %v2434 = vunpack.c.l.b16 %v214
    %v2435 = vunpack.c.h.b16 %v214
    %v2436 = vunpack.c.l.b16 %v215
    %v2437 = vunpack.c.h.b16 %v215
    %v2438 = vunpack.c.l.b16 %v216
    %v2439 = vunpack.c.h.b16 %v216
    %v2440 = vunpack.c.l.b16 %v217
    %v2441 = vunpack.c.h.b16 %v217
    %v2442 = vunpack.c.l.b16 %v218
    %v2443 = vunpack.c.h.b16 %v218
    %v2444 = vunpack.c.l.b16 %v219
    %v2445 = vunpack.c.h.b16 %v219
    %v2446 = vunpack.c.l.b16 %v220
    %v2447 = vunpack.c.h.b16 %v220
    %v2448 = vunpack.c.l.b16 %v221
    %v2449 = vunpack.c.h.b16 %v221
    %v2450 = vunpack.c.l.b16 %v222
    %v2451 = vunpack.c.h.b16 %v222
    %v2452 = vunpack.c.l.b16 %v223
    %v2453 = vunpack.c.h.b16 %v223
    %v2454 = vunpack.c.l.b16 %v224
    %v2455 = vunpack.c.h.b16 %v224
    %v2456 = vunpack.c.l.b16 %v225
    %v2457 = vunpack.c.h.b16 %v225
    %v2458 = vunpack.c.l.b16 %v226
    %v2459 = vunpack.c.h.b16 %v226
    %v2460 = vunpack.c.l.b16 %v227
    %v2461 = vunpack.c.h.b16 %v227
    %v2462 = vunpack.c.l.b16 %v228
    %v2463 = vunpack.c.h.b16 %v228
    %v2464 = vunpack.c.l.b16 %v229
    %v2465 = vunpack.c.h.b16 %v229
    %v2466 = vunpack.c.l.b16 %v230
    %v2467 = vunpack.c.h.b16 %v230
    %v2468 = vunpack.c.l.b16 %v231
    %v2469 = vunpack.c.h.b16 %v231
    %v2470 = vunpack.c.l.b16 %v232
    %v2471 = vunpack.c.h.b16 %v232
    %v2472 = vunpack.c.l.b16 %v233
    %v2473 = vunpack.c.h.b16 %v233
    %v2474 = vunpack.c.l.b16 %v234
    %v2475 = vunpack.c.h.b16 %v234
    %v2476 = vunpack.c.l.b16 %v235
    %v2477 = vunpack.c.h.b16 %v235
    %v2478 = vunpack.c.l.b16 %v236
    %v2479 = vunpack.c.h.b16 %v236
    %v2480 = vunpack.c.l.b16 %v237
    %v2481 = vunpack.c.h.b16 %v237
    %v2482 = vunpack.c.l.b16 %v238
    %v2483 = vunpack.c.h.b16 %v238
    %v2484 = vunpack.c.l.b16 %v239
    %v2485 = vunpack.c.h.b16 %v239
    %v2486 = vunpack.c.l.b16 %v240
    %v2487 = vunpack.c.h.b16 %v240
    %v2488 = vunpack.c.l.b16 %v241
    %v2489 = vunpack.c.h.b16 %v241
    %v2490 = vunpack.c.l.b16 %v242
    %v2491 = vunpack.c.h.b16 %v242
    %v2492 = vunpack.c.l.b16 %v243
    %v2493 = vunpack.c.h.b16 %v243
    %v2494 = vunpack.c.l.b16 %v244
    %v2495 = vunpack.c.h.b16 %v244
    %v2496 = vunpack.c.l.b16 %v245
    %v2497 = vunpack.c.h.b16 %v245
    %v2498 = vunpack.c.l.b16 %v246
    %v2499 = vunpack.c.h.b16 %v246
    %v2500 = vunpack.c.l.b16 %v247
    %v2501 = vunpack.c.h.b16 %v247
    %v2502 = vunpack.c.l.b16 %v248
    %v2503 = vunpack.c.h.b16 %v248
    %v2504 = vunpack.c.l.b16 %v249
    %v2505 = vunpack.c.h.b16 %v249
    %v2506 = vunpack.c.l.b16 %v250
    %v2507 = vunpack.c.h.b16 %v250
    %v2508 = vunpack.c.l.b16 %v251
    %v2509 = vunpack.c.h.b16 %v251
    %v2510 = vunpack.c.l.b16 %v252
    %v2511 = vunpack.c.h.b16 %v252
    %v2512 = vunpack.c.l.b16 %v253
    %v2513 = vunpack.c.h.b16 %v253
    %v2514 = vunpack.c.l.b16 %v254
    %v2515 = vunpack.c.h.b16 %v254
    %v2516 = vunpack.c.l.b16 %v255
    %v2517 = vunpack.c.h.b16 %v255
    %v2518 = vunpack.c.l.b16 %v256
    %v2519 = vunpack.c.h.b16 %v256
    %v2520 = vunpack.c.l.b16 %v257
    %v2521 = vunpack.c.h.b16 %v257
    %v2522 = vunpack.c.l.b16 %v258
    %v2523 = vunpack.c.h.b16 %v258
    %v2524 = vunpack.c.l.b16 %v259
    %v2525 = vunpack.c.h.b16 %v259
    %v2526 = vunpack.c.l.b16 %v260
    %v2527 = vunpack.c.h.b16 %v260
    %v2528 = vunpack.c.l.b16 %v261
    %v2529 = vunpack.c.h.b16 %v261
    %v2530 = vunpack.c.l.b16 %v262
    %v2531 = vunpack.c.h.b16 %v262
    %v2532 = vunpack.c.l.b16 %v263
    %v2533 = vunpack.c.h.b16 %v263
    %v2534 = vunpack.c.l.b16 %v264
    %v2535 = vunpack.c.h.b16 %v264
    %v2536 = vunpack.c.l.b16 %v265
    %v2537 = vunpack.c.h.b16 %v265
    %v2538 = vunpack.c.l.b16 %v266
    %v2539 = vunpack.c.h.b16 %v266
    %v2540 = vunpack.c.l.b16 %v267
    %v2541 = vunpack.c.h.b16 %v267
    %v2542 = vunpack.c.l.b16 %v268
    %v2543 = vunpack.c.h.b16 %v268
    %v2544 = vunpack.c.l.b16 %v269
    %v2545 = vunpack.c.h.b16 %v269
    %v2546 = vunpack.c.l.b16 %v270
    %v2547 = vunpack.c.h.b16 %v270
    %v2548 = vunpack.c.l.b16 %v271
    %v2549 = vunpack.c.h.b16 %v271
    %v2550 = vunpack.c.l.b16 %v272
    %v2551 = vunpack.c.h.b16 %v272
    %v2552 = vunpack.c.l.b16 %v273
    %v2553 = vunpack.c.h.b16 %v273
    %v2554 = vunpack.c.l.b16 %v274
    %v2555 = vunpack.c.h.b16 %v274
    %v2556 = vunpack.c.l.b16 %v275
    %v2557 = vunpack.c.h.b16 %v275
    %v2558 = vunpack.c.l.b16 %v276
    %v2559 = vunpack.c.h.b16 %v276
    %v2560 = vunpack.c.l.b16 %v277
    %v2561 = vunpack.c.h.b16 %v277
    %v2562 = vunpack.c.l.b16 %v278
    %v2563 = vunpack.c.h.b16 %v278
    %v2564 = vunpack.c.l.b16 %v279
    %v2565 = vunpack.c.h.b16 %v279
    %v2566 = vunpack.c.l.b16 %v280
    %v2567 = vunpack.c.h.b16 %v280
    %v2568 = vunpack.c.l.b16 %v281
    %v2569 = vunpack.c.h.b16 %v281
    %v2570 = vunpack.c.l.b16 %v282
    %v2571 = vunpack.c.h.b16 %v282
    %v2572 = vunpack.c.l.b16 %v283
    %v2573 = vunpack.c.h.b16 %v283
    %v2574 = vunpack.c.l.b16 %v284
    %v2575 = vunpack.c.h.b16 %v284
    %v2576 = vunpack.c.l.b16 %v285
    %v2577 = vunpack.c.h.b16 %v285
    %v2578 = vunpack.c.l.b16 %v286
    %v2579 = vunpack.c.h.b16 %v286
    %v2580 = vunpack.c.l.b16 %v287
    %v2581 = vunpack.c.h.b16 %v287
    %v2582 = vunpack.c.l.b16 %v288
    %v2583 = vunpack.c.h.b16 %v288
    %v2584 = vunpack.c.l.b16 %v289
    %v2585 = vunpack.c.h.b16 %v289
    %v2586 = vunpack.c.l.b16 %v290
    %v2587 = vunpack.c.h.b16 %v290
    %v2588 = vunpack.c.l.b16 %v291
    %v2589 = vunpack.c.h.b16 %v291
    %v2590 = vunpack.c.l.b16 %v292
    %v2591 = vunpack.c.h.b16 %v292
    %v2592 = vunpack.c.l.b16 %v293
    %v2593 = vunpack.c.h.b16 %v293
    %v2594 = vunpack.c.l.b16 %v294
    %v2595 = vunpack.c.h.b16 %v294
    %v2596 = vunpack.c.l.b16 %v295
    %v2597 = vunpack.c.h.b16 %v295
    %v2598 = vunpack.c.l.b16 %v296
    %v2599 = vunpack.c.h.b16 %v296
    %v2600 = vunpack.c.l.b16 %v297
    %v2601 = vunpack.c.h.b16 %v297
    %v2602 = vunpack.c.l.b16 %v298
    %v2603 = vunpack.c.h.b16 %v298
    %v2604 = vunpack.c.l.b16 %v299
    %v2605 = vunpack.c.h.b16 %v299
    %v2606 = vunpack.c.l.b16 %v300
    %v2607 = vunpack.c.h.b16 %v300
    %v2608 = vunpack.c.l.b16 %v301
    %v2609 = vunpack.c.h.b16 %v301
    %v2610 = vunpack.c.l.b16 %v302
    %v2611 = vunpack.c.h.b16 %v302
    %v2612 = vunpack.c.l.b16 %v303
    %v2613 = vunpack.c.h.b16 %v303
    %v2614 = vunpack.c.l.b16 %v304
    %v2615 = vunpack.c.h.b16 %v304
    %v2616 = vunpack.c.l.b16 %v305
    %v2617 = vunpack.c.h.b16 %v305
    %v2618 = vunpack.c.l.b16 %v306
    %v2619 = vunpack.c.h.b16 %v306
    %v2620 = vunpack.c.l.b16 %v307
    %v2621 = vunpack.c.h.b16 %v307
    %v2622 = vunpack.c.l.b16 %v308
    %v2623 = vunpack.c.h.b16 %v308
    %v2624 = vunpack.c.l.b16 %v309
    %v2625 = vunpack.c.h.b16 %v309
    %v2626 = vunpack.c.l.b16 %v310
    %v2627 = vunpack.c.h.b16 %v310
    %v2628 = vunpack.c.l.b16 %v311
    %v2629 = vunpack.c.h.b16 %v311
    %v2630 = vunpack.c.l.b16 %v312
    %v2631 = vunpack.c.h.b16 %v312
    %v2632 = vunpack.c.l.b16 %v313
    %v2633 = vunpack.c.h.b16 %v313
    %v2634 = vunpack.c.l.b16 %v314
    %v2635 = vunpack.c.h.b16 %v314
    %v2636 = vunpack.c.l.b16 %v315
    %v2637 = vunpack.c.h.b16 %v315
    %v2638 = vunpack.c.l.b16 %v316
    %v2639 = vunpack.c.h.b16 %v316
    %v2640 = vunpack.c.l.b16 %v317
    %v2641 = vunpack.c.h.b16 %v317
    %v2642 = vunpack.c.l.b16 %v318
    %v2643 = vunpack.c.h.b16 %v318
    %v2644 = vunpack.c.l.b16 %v319
    %v2645 = vunpack.c.h.b16 %v319
    %v2646 = vunpack.c.l.b16 %v320
    %v2647 = vunpack.c.h.b16 %v320
    %v2648 = vunpack.c.l.b16 %v321
    %v2649 = vunpack.c.h.b16 %v321
    %v2650 = vunpack.c.l.b16 %v322
    %v2651 = vunpack.c.h.b16 %v322
    %v2652 = vunpack.c.l.b16 %v323
    %v2653 = vunpack.c.h.b16 %v323
    %v2654 = vunpack.c.l.b16 %v324
    %v2655 = vunpack.c.h.b16 %v324
    %v2656 = vunpack.c.l.b16 %v325
    %v2657 = vunpack.c.h.b16 %v325
    %v2658 = vunpack.c.l.b16 %v326
    %v2659 = vunpack.c.h.b16 %v326
    %v2660 = vunpack.c.l.b16 %v327
    %v2661 = vunpack.c.h.b16 %v327
    %v2662 = vunpack.c.l.b16 %v328
    %v2663 = vunpack.c.h.b16 %v328
    %v2664 = vunpack.c.l.b16 %v329
    %v2665 = vunpack.c.h.b16 %v329
    %v2666 = vunpack.c.l.b16 %v330
    %v2667 = vunpack.c.h.b16 %v330
    %v2668 = vunpack.c.l.b16 %v331
    %v2669 = vunpack.c.h.b16 %v331
    %v2670 = vunpack.c.l.b16 %v332
    %v2671 = vunpack.c.h.b16 %v332
    %v2672 = vunpack.c.l.b16 %v333
    %v2673 = vunpack.c.h.b16 %v333
    %v2674 = vunpack.c.l.b16 %v334
    %v2675 = vunpack.c.h.b16 %v334
    %v2676 = vunpack.c.l.b16 %v335
    %v2677 = vunpack.c.h.b16 %v335
    %v2678 = vunpack.c.l.b16 %v336
    %v2679 = vunpack.c.h.b16 %v336
    %v2680 = vunpack.c.l.b16 %v337
    %v2681 = vunpack.c.h.b16 %v337
    %v2682 = vunpack.c.l.b16 %v338
    %v2683 = vunpack.c.h.b16 %v338
    %v2684 = vunpack.c.l.b16 %v339
    %v2685 = vunpack.c.h.b16 %v339
    %v2686 = vunpack.c.l.b16 %v340
    %v2687 = vunpack.c.h.b16 %v340
    %v2688 = vunpack.c.l.b16 %v341
    %v2689 = vunpack.c.h.b16 %v341
    %v2690 = vunpack.c.l.b16 %v342
    %v2691 = vunpack.c.h.b16 %v342
    %v2692 = vunpack.c.l.b16 %v343
    %v2693 = vunpack.c.h.b16 %v343
    %v2694 = vunpack.c.l.b16 %v344
    %v2695 = vunpack.c.h.b16 %v344
    %v2696 = vunpack.c.l.b16 %v345
    %v2697 = vunpack.c.h.b16 %v345
    %v2698 = vunpack.c.l.b16 %v346
    %v2699 = vunpack.c.h.b16 %v346
    %v2700 = vunpack.c.l.b16 %v347
    %v2701 = vunpack.c.h.b16 %v347
    %v2702 = vunpack.c.l.b16 %v348
    %v2703 = vunpack.c.h.b16 %v348
    %v2704 = vunpack.c.l.b16 %v349
    %v2705 = vunpack.c.h.b16 %v349
    %v2706 = vunpack.c.l.b16 %v350
    %v2707 = vunpack.c.h.b16 %v350
    %v2708 = vunpack.c.l.b16 %v351
    %v2709 = vunpack.c.h.b16 %v351
    %v2710 = vunpack.c.l.b16 %v352
    %v2711 = vunpack.c.h.b16 %v352
    %v2712 = vunpack.c.l.b16 %v353
    %v2713 = vunpack.c.h.b16 %v353
    %v2714 = vunpack.c.l.b16 %v354
    %v2715 = vunpack.c.h.b16 %v354
    %v2716 = vunpack.c.l.b16 %v355
    %v2717 = vunpack.c.h.b16 %v355
    %v2718 = vunpack.c.l.b16 %v356
    %v2719 = vunpack.c.h.b16 %v356
    %v2720 = vunpack.c.l.b16 %v357
    %v2721 = vunpack.c.h.b16 %v357
    %v2722 = vunpack.c.l.b16 %v358
    %v2723 = vunpack.c.h.b16 %v358
    %v2724 = vunpack.c.l.b16 %v359
    %v2725 = vunpack.c.h.b16 %v359
    %v2726 = vunpack.c.l.b16 %v360
    %v2727 = vunpack.c.h.b16 %v360
    %v2728 = vunpack.c.l.b16 %v361
    %v2729 = vunpack.c.h.b16 %v361
    %v2730 = vunpack.c.l.b16 %v362
    %v2731 = vunpack.c.h.b16 %v362
    %v2732 = vunpack.c.l.b16 %v363
    %v2733 = vunpack.c.h.b16 %v363
    %v2734 = vunpack.c.l.b16 %v364
    %v2735 = vunpack.c.h.b16 %v364
    %v2736 = vunpack.c.l.b16 %v365
    %v2737 = vunpack.c.h.b16 %v365
    %v2738 = vunpack.c.l.b16 %v366
    %v2739 = vunpack.c.h.b16 %v366
    %v2740 = vunpack.c.l.b16 %v367
    %v2741 = vunpack.c.h.b16 %v367
    %v2742 = vunpack.c.l.b16 %v368
    %v2743 = vunpack.c.h.b16 %v368
    %v2744 = vunpack.c.l.b16 %v369
    %v2745 = vunpack.c.h.b16 %v369
    %v2746 = vunpack.c.l.b16 %v370
    %v2747 = vunpack.c.h.b16 %v370
    %v2748 = vunpack.c.l.b16 %v371
    %v2749 = vunpack.c.h.b16 %v371
    %v2750 = vunpack.c.l.b16 %v372
    %v2751 = vunpack.c.h.b16 %v372
    %v2752 = vunpack.c.l.b16 %v373
    %v2753 = vunpack.c.h.b16 %v373
    %v2754 = vunpack.c.l.b16 %v374
    %v2755 = vunpack.c.h.b16 %v374
    %v2756 = vunpack.c.l.b16 %v375
    %v2757 = vunpack.c.h.b16 %v375
    %v2758 = vunpack.c.l.b16 %v376
    %v2759 = vunpack.c.h.b16 %v376
    %v2760 = vunpack.c.l.b16 %v377
    %v2761 = vunpack.c.h.b16 %v377
    %v2762 = vunpack.c.l.b16 %v378
    %v2763 = vunpack.c.h.b16 %v378
    %v2764 = vunpack.c.l.b16 %v379
    %v2765 = vunpack.c.h.b16 %v379
    %v2766 = vunpack.c.l.b16 %v380
    %v2767 = vunpack.c.h.b16 %v380
    %v2768 = vunpack.c.l.b16 %v381
    %v2769 = vunpack.c.h.b16 %v381
    %v2770 = vunpack.c.l.b16 %v382
    %v2771 = vunpack.c.h.b16 %v382
    %v2772 = vunpack.c.l.b16 %v383
    %v2773 = vunpack.c.h.b16 %v383
    %v2774 = vunpack.c.l.b16 %v384
    %v2775 = vunpack.c.h.b16 %v384
    %v2776 = vunpack.c.l.b16 %v385
    %v2777 = vunpack.c.h.b16 %v385
    %v2778 = vunpack.c.l.b16 %v386
    %v2779 = vunpack.c.h.b16 %v386
    %v2780 = vunpack.c.l.b16 %v387
    %v2781 = vunpack.c.h.b16 %v387
    %v2782 = vunpack.c.l.b16 %v388
    %v2783 = vunpack.c.h.b16 %v388
    %v2784 = vunpack.c.l.b16 %v389
    %v2785 = vunpack.c.h.b16 %v389
    %v2786 = vunpack.c.l.b16 %v390
    %v2787 = vunpack.c.h.b16 %v390
    %v2788 = vunpack.c.l.b16 %v391
    %v2789 = vunpack.c.h.b16 %v391
    %v2790 = vunpack.c.l.b16 %v392
    %v2791 = vunpack.c.h.b16 %v392
    %v2792 = vunpack.c.l.b16 %v393
    %v2793 = vunpack.c.h.b16 %v393
    %v2794 = vunpack.c.l.b16 %v394
    %v2795 = vunpack.c.h.b16 %v394
    %v2796 = vunpack.c.l.b16 %v395
    %v2797 = vunpack.c.h.b16 %v395
    %v2798 = vunpack.c.l.b16 %v396
    %v2799 = vunpack.c.h.b16 %v396
    %v2800 = vunpack.c.l.b16 %v397
    %v2801 = vunpack.c.h.b16 %v397
    %v2802 = vunpack.c.l.b16 %v398
    %v2803 = vunpack.c.h.b16 %v398
    %v2804 = vunpack.c.l.b16 %v399
    %v2805 = vunpack.c.h.b16 %v399
    %v2806 = vunpack.c.l.b16 %v400
    %v2807 = vunpack.c.h.b16 %v400
    %v2808 = vunpack.c.l.b16 %v401
    %v2809 = vunpack.c.h.b16 %v401
    %v2810 = vunpack.c.l.b16 %v402
    %v2811 = vunpack.c.h.b16 %v402
    %v2812 = vunpack.c.l.b16 %v403
    %v2813 = vunpack.c.h.b16 %v403
    %v2814 = vunpack.c.l.b16 %v404
    %v2815 = vunpack.c.h.b16 %v404
    %v2816 = vunpack.c.l.b16 %v405
    %v2817 = vunpack.c.h.b16 %v405
    %v2818 = vunpack.c.l.b16 %v406
    %v2819 = vunpack.c.h.b16 %v406
    %v2820 = vunpack.c.l.b16 %v407
    %v2821 = vunpack.c.h.b16 %v407
    %v2822 = vunpack.c.l.b16 %v408
    %v2823 = vunpack.c.h.b16 %v408
    %v2824 = vunpack.c.l.b16 %v409
    %v2825 = vunpack.c.h.b16 %v409
    %v2826 = vunpack.c.l.b16 %v410
    %v2827 = vunpack.c.h.b16 %v410
    %v2828 = vunpack.c.l.b16 %v411
    %v2829 = vunpack.c.h.b16 %v411
    %v2830 = vunpack.c.l.b16 %v412
    %v2831 = vunpack.c.h.b16 %v412
    %v2832 = vunpack.c.l.b16 %v413
    %v2833 = vunpack.c.h.b16 %v413
    %v2834 = vunpack.c.l.b16 %v414
    %v2835 = vunpack.c.h.b16 %v414
    %v2836 = vunpack.c.l.b16 %v415
    %v2837 = vunpack.c.h.b16 %v415
    %v2838 = vunpack.c.l.b16 %v416
    %v2839 = vunpack.c.h.b16 %v416
    %v2840 = vunpack.c.l.b16 %v417
    %v2841 = vunpack.c.h.b16 %v417
    %v2842 = vunpack.c.l.b16 %v418
    %v2843 = vunpack.c.h.b16 %v418
    %v2844 = vunpack.c.l.b16 %v419
    %v2845 = vunpack.c.h.b16 %v419
    %v2846 = vunpack.c.l.b16 %v420
    %v2847 = vunpack.c.h.b16 %v420
    %v2848 = vunpack.c.l.b16 %v421
    %v2849 = vunpack.c.h.b16 %v421
    %v2850 = vunpack.c.l.b16 %v422
    %v2851 = vunpack.c.h.b16 %v422
    %v2852 = vunpack.c.l.b16 %v423
    %v2853 = vunpack.c.h.b16 %v423
    %v2854 = vunpack.c.l.b16 %v424
    %v2855 = vunpack.c.h.b16 %v424
    %v2856 = vunpack.c.l.b16 %v425
    %v2857 = vunpack.c.h.b16 %v425
    %v2858 = vunpack.c.l.b16 %v426
    %v2859 = vunpack.c.h.b16 %v426
    %v2860 = vunpack.c.l.b16 %v427
    %v2861 = vunpack.c.h.b16 %v427
    %v2862 = vunpack.c.l.b16 %v428
    %v2863 = vunpack.c.h.b16 %v428
    %v2864 = vunpack.c.l.b16 %v429
    %v2865 = vunpack.c.h.b16 %v429
    %v2866 = vunpack.c.l.b16 %v430
    %v2867 = vunpack.c.h.b16 %v430
    %v2868 = vunpack.c.l.b16 %v431
    %v2869 = vunpack.c.h.b16 %v431
    %v2870 = vunpack.c.l.b16 %v432
    %v2871 = vunpack.c.h.b16 %v432
    %v2872 = vunpack.c.l.b16 %v433
    %v2873 = vunpack.c.h.b16 %v433
    %v2874 = vunpack.c.l.b16 %v434
    %v2875 = vunpack.c.h.b16 %v434
    %v2876 = vunpack.c.l.b16 %v435
    %v2877 = vunpack.c.h.b16 %v435
    %v2878 = vunpack.c.l.b16 %v436
    %v2879 = vunpack.c.h.b16 %v436
    %v2880 = vunpack.c.l.b16 %v437
    %v2881 = vunpack.c.h.b16 %v437
    %v2882 = vunpack.c.l.b16 %v438
    %v2883 = vunpack.c.h.b16 %v438
    %v2884 = vunpack.c.l.b16 %v439
    %v2885 = vunpack.c.h.b16 %v439
    %v2886 = vunpack.c.l.b16 %v440
    %v2887 = vunpack.c.h.b16 %v440
    %v2888 = vunpack.c.l.b16 %v441
    %v2889 = vunpack.c.h.b16 %v441
    %v2890 = vunpack.c.l.b16 %v442
    %v2891 = vunpack.c.h.b16 %v442
    %v2892 = vunpack.c.l.b16 %v443
    %v2893 = vunpack.c.h.b16 %v443
    %v2894 = vunpack.c.l.b16 %v444
    %v2895 = vunpack.c.h.b16 %v444
    %v2896 = vunpack.c.l.b16 %v445
    %v2897 = vunpack.c.h.b16 %v445
    %v2898 = vunpack.c.l.b16 %v446
    %v2899 = vunpack.c.h.b16 %v446
    %v2900 = vunpack.c.l.b16 %v447
    %v2901 = vunpack.c.h.b16 %v447
    %v2902 = vunpack.c.l.b16 %v448
    %v2903 = vunpack.c.h.b16 %v448
    %v2904 = vunpack.c.l.b16 %v449
    %v2905 = vunpack.c.h.b16 %v449
    %v2906 = vunpack.c.l.b16 %v450
    %v2907 = vunpack.c.h.b16 %v450
    %v2908 = vunpack.c.l.b16 %v451
    %v2909 = vunpack.c.h.b16 %v451
    %v2910 = vunpack.c.l.b16 %v452
    %v2911 = vunpack.c.h.b16 %v452
    %v2912 = vunpack.c.l.b16 %v453
    %v2913 = vunpack.c.h.b16 %v453
    %v2914 = vunpack.c.l.b16 %v454
    %v2915 = vunpack.c.h.b16 %v454
    %v2916 = vunpack.c.l.b16 %v455
    %v2917 = vunpack.c.h.b16 %v455
    %v2918 = vunpack.c.l.b16 %v456
    %v2919 = vunpack.c.h.b16 %v456
    %v2920 = vunpack.c.l.b16 %v457
    %v2921 = vunpack.c.h.b16 %v457
    %v2922 = vunpack.c.l.b16 %v458
    %v2923 = vunpack.c.h.b16 %v458
    %v2924 = vunpack.c.l.b16 %v459
    %v2925 = vunpack.c.h.b16 %v459
    %v2926 = vunpack.c.l.b16 %v460
    %v2927 = vunpack.c.h.b16 %v460
    %v2928 = vunpack.c.l.b16 %v461
    %v2929 = vunpack.c.h.b16 %v461
    %v2930 = vunpack.c.l.b16 %v462
    %v2931 = vunpack.c.h.b16 %v462
    %v2932 = vunpack.c.l.b16 %v463
    %v2933 = vunpack.c.h.b16 %v463
    %v2934 = vunpack.c.l.b16 %v464
    %v2935 = vunpack.c.h.b16 %v464
    %v2936 = vunpack.c.l.b16 %v465
    %v2937 = vunpack.c.h.b16 %v465
    %v2938 = vunpack.c.l.b16 %v466
    %v2939 = vunpack.c.h.b16 %v466
    %v2940 = vunpack.c.l.b16 %v467
    %v2941 = vunpack.c.h.b16 %v467
    %v2942 = vunpack.c.l.b16 %v468
    %v2943 = vunpack.c.h.b16 %v468
    %v2944 = vunpack.c.l.b16 %v469
    %v2945 = vunpack.c.h.b16 %v469
    %v2946 = vunpack.c.l.b16 %v470
    %v2947 = vunpack.c.h.b16 %v470
    %v2948 = vunpack.c.l.b16 %v471
    %v2949 = vunpack.c.h.b16 %v471
    %v2950 = vunpack.c.l.b16 %v472
    %v2951 = vunpack.c.h.b16 %v472
    %v2952 = vunpack.c.l.b16 %v473
    %v2953 = vunpack.c.h.b16 %v473
    %v2954 = vunpack.c.l.b16 %v474
    %v2955 = vunpack.c.h.b16 %v474
    %v2956 = vunpack.c.l.b16 %v475
    %v2957 = vunpack.c.h.b16 %v475
    %v2958 = vunpack.c.l.b16 %v476
    %v2959 = vunpack.c.h.b16 %v476
    %v2960 = vunpack.c.l.b16 %v477
    %v2961 = vunpack.c.h.b16 %v477
    %v2962 = vunpack.c.l.b16 %v478
    %v2963 = vunpack.c.h.b16 %v478
    %v2964 = vunpack.c.l.b16 %v479
    %v2965 = vunpack.c.h.b16 %v479
    %v2966 = vunpack.c.l.b16 %v480
    %v2967 = vunpack.c.h.b16 %v480
    %v2968 = vunpack.c.l.b16 %v481
    %v2969 = vunpack.c.h.b16 %v481
    %v2970 = vunpack.c.l.b16 %v482
    %v2971 = vunpack.c.h.b16 %v482
    %v2972 = vunpack.c.l.b16 %v483
    %v2973 = vunpack.c.h.b16 %v483
    %v2974 = vunpack.c.l.b16 %v484
    %v2975 = vunpack.c.h.b16 %v484
    %v2976 = vunpack.c.l.b16 %v485
    %v2977 = vunpack.c.h.b16 %v485
    %v2978 = vunpack.c.l.b16 %v486
    %v2979 = vunpack.c.h.b16 %v486
    %v2980 = vunpack.c.l.b16 %v487
    %v2981 = vunpack.c.h.b16 %v487
    %v2982 = vunpack.c.l.b16 %v488
    %v2983 = vunpack.c.h.b16 %v488
    %v2984 = vunpack.c.l.b16 %v489
    %v2985 = vunpack.c.h.b16 %v489
    %v2986 = vunpack.c.l.b16 %v490
    %v2987 = vunpack.c.h.b16 %v490
    %v2988 = vunpack.c.l.b16 %v491
    %v2989 = vunpack.c.h.b16 %v491
    %v2990 = vunpack.c.l.b16 %v492
    %v2991 = vunpack.c.h.b16 %v492
    %v2992 = vunpack.c.l.b16 %v493
    %v2993 = vunpack.c.h.b16 %v493
    %v2994 = vunpack.c.l.b16 %v494
    %v2995 = vunpack.c.h.b16 %v494
    %v2996 = vunpack.c.l.b16 %v495
    %v2997 = vunpack.c.h.b16 %v495
    %v2998 = vunpack.c.l.b16 %v496
    %v2999 = vunpack.c.h.b16 %v496
    %v3000 = vunpack.c.l.b16 %v497
    %v3001 = vunpack.c.h.b16 %v497
    %v3002 = vunpack.c.l.b16 %v498
    %v3003 = vunpack.c.h.b16 %v498
    %v3004 = vunpack.c.l.b16 %v499
    %v3005 = vunpack.c.h.b16 %v499
    %v3006 = vunpack.c.l.b16 %v500
    %v3007 = vunpack.c.h.b16 %v500
    %v3008 = vunpack.c.l.b16 %v501
    %v3009 = vunpack.c.h.b16 %v501
    %v3010 = vunpack.c.l.b16 %v502
    %v3011 = vunpack.c.h.b16 %v502
    %v3012 = vunpack.c.l.b16 %v503
    %v3013 = vunpack.c.h.b16 %v503
    %v3014 = vunpack.c.l.b16 %v504
    %v3015 = vunpack.c.h.b16 %v504
    %v3016 = vunpack.c.l.b16 %v505
    %v3017 = vunpack.c.h.b16 %v505
    %v3018 = vunpack.c.l.b16 %v506
    %v3019 = vunpack.c.h.b16 %v506
    %v3020 = vunpack.c.l.b16 %v507
    %v3021 = vunpack.c.h.b16 %v507
    %v3022 = vunpack.c.l.b16 %v508
    %v3023 = vunpack.c.h.b16 %v508
    %v3024 = vunpack.c.l.b16 %v509
    %v3025 = vunpack.c.h.b16 %v509
    %v3026 = vunpack.c.l.b16 %v510
    %v3027 = vunpack.c.h.b16 %v510
    %v3028 = vunpack.c.l.b16 %v511
    %v3029 = vunpack.c.h.b16 %v511
    %v3030 = vunpack.c.l.b16 %v512
    %v3031 = vunpack.c.h.b16 %v512
    %v3032 = vunpack.c.l.b16 %v513
    %v3033 = vunpack.c.h.b16 %v513
    %v3034 = vunpack.c.l.b16 %v514
    %v3035 = vunpack.c.h.b16 %v514
    %v3036 = vunpack.c.l.b16 %v515
    %v3037 = vunpack.c.h.b16 %v515
    %v3038 = vunpack.c.l.b16 %v516
    %v3039 = vunpack.c.h.b16 %v516
    %v3040 = vunpack.c.l.b16 %v517
    %v3041 = vunpack.c.h.b16 %v517
    %v3042 = vunpack.c.l.b16 %v518
    %v3043 = vunpack.c.h.b16 %v518
    %v3044 = vunpack.c.l.b16 %v519
    %v3045 = vunpack.c.h.b16 %v519
    %v3046 = vunpack.c.l.b16 %v520
    %v3047 = vunpack.c.h.b16 %v520
    %v3048 = vunpack.c.l.b16 %v521
    %v3049 = vunpack.c.h.b16 %v521
    %v3050 = vunpack.c.l.b16 %v522
    %v3051 = vunpack.c.h.b16 %v522
    %v3052 = vunpack.c.l.b16 %v523
    %v3053 = vunpack.c.h.b16 %v523
    %v3054 = vunpack.c.l.b16 %v524
    %v3055 = vunpack.c.h.b16 %v524
    %v3056 = vunpack.c.l.b16 %v525
    %v3057 = vunpack.c.h.b16 %v525
    %v3058 = vunpack.c.l.b16 %v526
    %v3059 = vunpack.c.h.b16 %v526
    %v3060 = vunpack.c.l.b16 %v527
    %v3061 = vunpack.c.h.b16 %v527
    %v3062 = vunpack.c.l.b16 %v528
    %v3063 = vunpack.c.h.b16 %v528
    %v3064 = vunpack.c.l.b16 %v529
    %v3065 = vunpack.c.h.b16 %v529
    %v3066 = vunpack.c.l.b16 %v530
    %v3067 = vunpack.c.h.b16 %v530
    %v3068 = vunpack.c.l.b16 %v531
    %v3069 = vunpack.c.h.b16 %v531
    %v3070 = vunpack.c.l.b16 %v532
    %v3071 = vunpack.c.h.b16 %v532
    %v3072 = vunpack.c.l.b16 %v533
    %v3073 = vunpack.c.h.b16 %v533
    %v3074 = vunpack.c.l.b16 %v534
    %v3075 = vunpack.c.h.b16 %v534
    %v3076 = vunpack.c.l.b16 %v535
    %v3077 = vunpack.c.h.b16 %v535
    %v3078 = vunpack.c.l.b16 %v536
    %v3079 = vunpack.c.h.b16 %v536
    %v3080 = vunpack.c.l.b16 %v537
    %v3081 = vunpack.c.h.b16 %v537
    %v3082 = vunpack.c.l.b16 %v538
    %v3083 = vunpack.c.h.b16 %v538
    %v3084 = vunpack.c.l.b16 %v539
    %v3085 = vunpack.c.h.b16 %v539
    %v3086 = vunpack.c.l.b16 %v540
    %v3087 = vunpack.c.h.b16 %v540
    %v3088 = vunpack.c.l.b16 %v541
    %v3089 = vunpack.c.h.b16 %v541
    %v3090 = vunpack.c.l.b16 %v542
    %v3091 = vunpack.c.h.b16 %v542
    %v3092 = vunpack.c.l.b16 %v543
    %v3093 = vunpack.c.h.b16 %v543
    %v3094 = vunpack.c.l.b16 %v544
    %v3095 = vunpack.c.h.b16 %v544
    %v3096 = vunpack.c.l.b16 %v545
    %v3097 = vunpack.c.h.b16 %v545
    %v3098 = vunpack.c.l.b16 %v546
    %v3099 = vunpack.c.h.b16 %v546
    %v3100 = vunpack.c.l.b16 %v547
    %v3101 = vunpack.c.h.b16 %v547
    %v3102 = vunpack.c.l.b16 %v548
    %v3103 = vunpack.c.h.b16 %v548
    %v3104 = vunpack.c.l.b16 %v549
    %v3105 = vunpack.c.h.b16 %v549
    %v3106 = vunpack.c.l.b16 %v550
    %v3107 = vunpack.c.h.b16 %v550
    %v3108 = vunpack.c.l.b16 %v551
    %v3109 = vunpack.c.h.b16 %v551
    %v3110 = vunpack.c.l.b16 %v552
    %v3111 = vunpack.c.h.b16 %v552
    %v3112 = vunpack.c.l.b16 %v553
    %v3113 = vunpack.c.h.b16 %v553
    %v3114 = vunpack.c.l.b16 %v554
    %v3115 = vunpack.c.h.b16 %v554
    %v3116 = vunpack.c.l.b16 %v555
    %v3117 = vunpack.c.h.b16 %v555
    %v3118 = vunpack.c.l.b16 %v556
    %v3119 = vunpack.c.h.b16 %v556
    %v3120 = vunpack.c.l.b16 %v557
    %v3121 = vunpack.c.h.b16 %v557
    %v3122 = vunpack.c.l.b16 %v558
    %v3123 = vunpack.c.h.b16 %v558
    %v3124 = vunpack.c.l.b16 %v559
    %v3125 = vunpack.c.h.b16 %v559
    %v3126 = vunpack.c.l.b16 %v560
    %v3127 = vunpack.c.h.b16 %v560
    %v3128 = vunpack.c.l.b16 %v561
    %v3129 = vunpack.c.h.b16 %v561
    %v3130 = vunpack.c.l.b16 %v562
    %v3131 = vunpack.c.h.b16 %v562
    %v3132 = vunpack.c.l.b16 %v563
    %v3133 = vunpack.c.h.b16 %v563
    %v3134 = vunpack.c.l.b16 %v564
    %v3135 = vunpack.c.h.b16 %v564
    %v3136 = vunpack.c.l.b16 %v565
    %v3137 = vunpack.c.h.b16 %v565
    %v3138 = vunpack.c.l.b16 %v566
    %v3139 = vunpack.c.h.b16 %v566
    %v3140 = vunpack.c.l.b16 %v567
    %v3141 = vunpack.c.h.b16 %v567
    %v3142 = vunpack.c.l.b16 %v568
    %v3143 = vunpack.c.h.b16 %v568
    %v3144 = vunpack.c.l.b16 %v569
    %v3145 = vunpack.c.h.b16 %v569
    %v3146 = vunpack.c.l.b16 %v570
    %v3147 = vunpack.c.h.b16 %v570
    %v3148 = vunpack.c.l.b16 %v571
    %v3149 = vunpack.c.h.b16 %v571
    %v3150 = vunpack.c.l.b16 %v572
    %v3151 = vunpack.c.h.b16 %v572
    %v3152 = vunpack.c.l.b16 %v573
    %v3153 = vunpack.c.h.b16 %v573
    %v3154 = vunpack.c.l.b16 %v574
    %v3155 = vunpack.c.h.b16 %v574
    %v3156 = vunpack.c.l.b16 %v575
    %v3157 = vunpack.c.h.b16 %v575
    %v3158 = vunpack.c.l.b16 %v576
    %v3159 = vunpack.c.h.b16 %v576
    %v3160 = vunpack.c.l.b16 %v577
    %v3161 = vunpack.c.h.b16 %v577
    %v3162 = vunpack.c.l.b16 %v578
    %v3163 = vunpack.c.h.b16 %v578
    %v3164 = vunpack.c.l.b16 %v579
    %v3165 = vunpack.c.h.b16 %v579
    %v3166 = vunpack.c.l.b16 %v580
    %v3167 = vunpack.c.h.b16 %v580
    %v3168 = vunpack.c.l.b16 %v581
    %v3169 = vunpack.c.h.b16 %v581
    %v3170 = vunpack.c.l.b16 %v582
    %v3171 = vunpack.c.h.b16 %v582
    %v3172 = vunpack.c.l.b16 %v583
    %v3173 = vunpack.c.h.b16 %v583
    %v3174 = vunpack.c.l.b16 %v584
    %v3175 = vunpack.c.h.b16 %v584
    %v3176 = vunpack.c.l.b16 %v585
    %v3177 = vunpack.c.h.b16 %v585
    %v3178 = vunpack.c.l.b16 %v586
    %v3179 = vunpack.c.h.b16 %v586
    %v3180 = vunpack.c.l.b16 %v587
    %v3181 = vunpack.c.h.b16 %v587
    %v3182 = vunpack.c.l.b16 %v588
    %v3183 = vunpack.c.h.b16 %v588
    %v3184 = vunpack.c.l.b16 %v589
    %v3185 = vunpack.c.h.b16 %v589
    %v3186 = vunpack.c.l.b16 %v590
    %v3187 = vunpack.c.h.b16 %v590
    %v3188 = vunpack.c.l.b16 %v591
    %v3189 = vunpack.c.h.b16 %v591
    %v3190 = vunpack.c.l.b16 %v592
    %v3191 = vunpack.c.h.b16 %v592
    %v3192 = vunpack.c.l.b16 %v593
    %v3193 = vunpack.c.h.b16 %v593
    %v3194 = vunpack.c.l.b16 %v594
    %v3195 = vunpack.c.h.b16 %v594
    %v3196 = vunpack.c.l.b16 %v595
    %v3197 = vunpack.c.h.b16 %v595
    %v3198 = vunpack.c.l.b16 %v596
    %v3199 = vunpack.c.h.b16 %v596
    %v3200 = vunpack.c.l.b16 %v597
    %v3201 = vunpack.c.h.b16 %v597
    %v3202 = vunpack.c.l.b16 %v598
    %v3203 = vunpack.c.h.b16 %v598
    %v3204 = vunpack.c.l.b16 %v599
    %v3205 = vunpack.c.h.b16 %v599
    %v3206 = vunpack.c.l.b16 %v600
    %v3207 = vunpack.c.h.b16 %v600
    %v3208 = vunpack.c.l.b16 %v601
    %v3209 = vunpack.c.h.b16 %v601
    %v3210 = vunpack.c.l.b16 %v602
    %v3211 = vunpack.c.h.b16 %v602
    %v3212 = vunpack.c.l.b16 %v603
    %v3213 = vunpack.c.h.b16 %v603
    %v3214 = vunpack.c.l.b16 %v604
    %v3215 = vunpack.c.h.b16 %v604
    %v3216 = vunpack.c.l.b16 %v605
    %v3217 = vunpack.c.h.b16 %v605
    %v3218 = vunpack.c.l.b16 %v606
    %v3219 = vunpack.c.h.b16 %v606
    %v3220 = vunpack.c.l.b16 %v607
    %v3221 = vunpack.c.h.b16 %v607
    %v3222 = vunpack.c.l.b16 %v608
    %v3223 = vunpack.c.h.b16 %v608
    %v3224 = vunpack.c.l.b16 %v609
    %v3225 = vunpack.c.h.b16 %v609
    %v3226 = vunpack.c.l.b16 %v610
    %v3227 = vunpack.c.h.b16 %v610
    %v3228 = vunpack.c.l.b16 %v611
    %v3229 = vunpack.c.h.b16 %v611
    %v3230 = vunpack.c.l.b16 %v612
    %v3231 = vunpack.c.h.b16 %v612
    %v3232 = vunpack.c.l.b16 %v613
    %v3233 = vunpack.c.h.b16 %v613
    %v3234 = vunpack.c.l.b16 %v614
    %v3235 = vunpack.c.h.b16 %v614
    %v3236 = vunpack.c.l.b16 %v615
    %v3237 = vunpack.c.h.b16 %v615
    %v3238 = vunpack.c.l.b16 %v616
    %v3239 = vunpack.c.h.b16 %v616
    %v3240 = vunpack.c.l.b16 %v617
    %v3241 = vunpack.c.h.b16 %v617
    %v3242 = vunpack.c.l.b16 %v618
    %v3243 = vunpack.c.h.b16 %v618
    %v3244 = vunpack.c.l.b16 %v619
    %v3245 = vunpack.c.h.b16 %v619
    %v3246 = vunpack.c.l.b16 %v620
    %v3247 = vunpack.c.h.b16 %v620
    %v3248 = vunpack.c.l.b16 %v621
    %v3249 = vunpack.c.h.b16 %v621
    %v3250 = vunpack.c.l.b16 %v622
    %v3251 = vunpack.c.h.b16 %v622
    %v3252 = vunpack.c.l.b16 %v623
    %v3253 = vunpack.c.h.b16 %v623
    %v3254 = vunpack.c.l.b16 %v624
    %v3255 = vunpack.c.h.b16 %v624
    %v3256 = vunpack.c.l.b16 %v625
    %v3257 = vunpack.c.h.b16 %v625
    %v3258 = vunpack.c.l.b16 %v626
    %v3259 = vunpack.c.h.b16 %v626
    %v3260 = vunpack.c.l.b16 %v627
    %v3261 = vunpack.c.h.b16 %v627
    %v3262 = vunpack.c.l.b16 %v628
    %v3263 = vunpack.c.h.b16 %v628
    %v3264 = vunpack.c.l.b16 %v629
    %v3265 = vunpack.c.h.b16 %v629
    %v3266 = vunpack.c.l.b16 %v630
    %v3267 = vunpack.c.h.b16 %v630
    %v3268 = vunpack.c.l.b16 %v631
    %v3269 = vunpack.c.h.b16 %v631
    %v3270 = vunpack.c.l.b16 %v632
    %v3271 = vunpack.c.h.b16 %v632
    %v3272 = vunpack.c.l.b16 %v633
    %v3273 = vunpack.c.h.b16 %v633
    %v3274 = vunpack.c.l.b16 %v634
    %v3275 = vunpack.c.h.b16 %v634
    %v3276 = vunpack.c.l.b16 %v635
    %v3277 = vunpack.c.h.b16 %v635
    %v3278 = vunpack.c.l.b16 %v636
    %v3279 = vunpack.c.h.b16 %v636
    %v3280 = vunpack.c.l.b16 %v637
    %v3281 = vunpack.c.h.b16 %v637
    %v3282 = vunpack.c.l.b16 %v638
    %v3283 = vunpack.c.h.b16 %v638
    %v3284 = vunpack.c.l.b16 %v639
    %v3285 = vunpack.c.h.b16 %v639
    %v3286 = vunpack.c.l.b16 %v640
    %v3287 = vunpack.c.h.b16 %v640
    %v3288 = vunpack.c.l.b16 %v641
    %v3289 = vunpack.c.h.b16 %v641
    %v3290 = vunpack.c.l.b16 %v642
    %v3291 = vunpack.c.h.b16 %v642
    %v3292 = vunpack.c.l.b16 %v643
    %v3293 = vunpack.c.h.b16 %v643
    %v3294 = vunpack.c.l.b16 %v644
    %v3295 = vunpack.c.h.b16 %v644
    %v3296 = vunpack.c.l.b16 %v645
    %v3297 = vunpack.c.h.b16 %v645
    %v3298 = vunpack.c.l.b16 %v646
    %v3299 = vunpack.c.h.b16 %v646
    %v3300 = vunpack.c.l.b16 %v647
    %v3301 = vunpack.c.h.b16 %v647
    %v3302 = vunpack.c.l.b16 %v648
    %v3303 = vunpack.c.h.b16 %v648
    %v3304 = vunpack.c.l.b16 %v649
    %v3305 = vunpack.c.h.b16 %v649
    %v3306 = vunpack.c.l.b16 %v650
    %v3307 = vunpack.c.h.b16 %v650
    %v3308 = vunpack.c.l.b16 %v651
    %v3309 = vunpack.c.h.b16 %v651
    %v3310 = vunpack.c.l.b16 %v652
    %v3311 = vunpack.c.h.b16 %v652
    %v3312 = vunpack.c.l.b16 %v653
    %v3313 = vunpack.c.h.b16 %v653
    %v3314 = vunpack.c.l.b16 %v654
    %v3315 = vunpack.c.h.b16 %v654
    %v3316 = vunpack.c.l.b16 %v655
    %v3317 = vunpack.c.h.b16 %v655
    %v3318 = vunpack.c.l.b16 %v656
    %v3319 = vunpack.c.h.b16 %v656
    %v3320 = vunpack.c.l.b16 %v657
    %v3321 = vunpack.c.h.b16 %v657
    %v3322 = vunpack.c.l.b16 %v658
    %v3323 = vunpack.c.h.b16 %v658
    %v3324 = vunpack.c.l.b16 %v659
    %v3325 = vunpack.c.h.b16 %v659
    %v3326 = vunpack.c.l.b16 %v660
    %v3327 = vunpack.c.h.b16 %v660
    %v3328 = vunpack.c.l.b16 %v661
    %v3329 = vunpack.c.h.b16 %v661
    %v3330 = vunpack.c.l.b16 %v662
    %v3331 = vunpack.c.h.b16 %v662
    %v3332 = vunpack.c.l.b16 %v663
    %v3333 = vunpack.c.h.b16 %v663
    %v3334 = vunpack.c.l.b16 %v664
    %v3335 = vunpack.c.h.b16 %v664
    %v3336 = vunpack.c.l.b16 %v665
    %v3337 = vunpack.c.h.b16 %v665
    %v3338 = vunpack.c.l.b16 %v666
    %v3339 = vunpack.c.h.b16 %v666
    %v3340 = vunpack.c.l.b16 %v667
    %v3341 = vunpack.c.h.b16 %v667
    %v3342 = vunpack.c.l.b16 %v668
    %v3343 = vunpack.c.h.b16 %v668
    %v3344 = vunpack.c.l.b16 %v669
    %v3345 = vunpack.c.h.b16 %v669
    %v3346 = vunpack.c.l.b16 %v670
    %v3347 = vunpack.c.h.b16 %v670
    %v3348 = vunpack.c.l.b16 %v671
    %v3349 = vunpack.c.h.b16 %v671
    %v3350 = vunpack.c.l.b16 %v672
    %v3351 = vunpack.c.h.b16 %v672
    %v3352 = vunpack.c.l.b16 %v673
    %v3353 = vunpack.c.h.b16 %v673
    %v3354 = vunpack.c.l.b16 %v674
    %v3355 = vunpack.c.h.b16 %v674
    %v3356 = vunpack.c.l.b16 %v675
    %v3357 = vunpack.c.h.b16 %v675
    %v3358 = vunpack.c.l.b16 %v676
    %v3359 = vunpack.c.h.b16 %v676
    %v3360 = vunpack.c.l.b16 %v677
    %v3361 = vunpack.c.h.b16 %v677
    %v3362 = vunpack.c.l.b16 %v678
    %v3363 = vunpack.c.h.b16 %v678
    %v3364 = vunpack.c.l.b16 %v679
    %v3365 = vunpack.c.h.b16 %v679
    %v3366 = vunpack.c.l.b16 %v680
    %v3367 = vunpack.c.h.b16 %v680
    %v3368 = vunpack.c.l.b16 %v681
    %v3369 = vunpack.c.h.b16 %v681
    %v3370 = vunpack.c.l.b16 %v682
    %v3371 = vunpack.c.h.b16 %v682
    %v3372 = vunpack.c.l.b16 %v683
    %v3373 = vunpack.c.h.b16 %v683
    %v3374 = vunpack.c.l.b16 %v684
    %v3375 = vunpack.c.h.b16 %v684
    %v3376 = vunpack.c.l.b16 %v685
    %v3377 = vunpack.c.h.b16 %v685
    %v3378 = vunpack.c.l.b16 %v686
    %v3379 = vunpack.c.h.b16 %v686
    %v3380 = vunpack.c.l.b16 %v687
    %v3381 = vunpack.c.h.b16 %v687
    %v3382 = vunpack.c.l.b16 %v688
    %v3383 = vunpack.c.h.b16 %v688
    %v3384 = vunpack.c.l.b16 %v689
    %v3385 = vunpack.c.h.b16 %v689
    %v3386 = vunpack.c.l.b16 %v690
    %v3387 = vunpack.c.h.b16 %v690
    %v3388 = vunpack.c.l.b16 %v691
    %v3389 = vunpack.c.h.b16 %v691
    %v3390 = vunpack.c.l.b16 %v692
    %v3391 = vunpack.c.h.b16 %v692
    %v3392 = vunpack.c.l.b16 %v693
    %v3393 = vunpack.c.h.b16 %v693
    %v3394 = vunpack.c.l.b16 %v694
    %v3395 = vunpack.c.h.b16 %v694
    %v3396 = vunpack.c.l.b16 %v695
    %v3397 = vunpack.c.h.b16 %v695
    %v3398 = vunpack.c.l.b16 %v696
    %v3399 = vunpack.c.h.b16 %v696
    %v3400 = vunpack.c.l.b16 %v697
    %v3401 = vunpack.c.h.b16 %v697
    %v3402 = vunpack.c.l.b16 %v698
    %v3403 = vunpack.c.h.b16 %v698
    %v3404 = vunpack.c.l.b16 %v699
    %v3405 = vunpack.c.h.b16 %v699
    %v3406 = vunpack.c.l.b16 %v700
    %v3407 = vunpack.c.h.b16 %v700
    %v3408 = vunpack.c.l.b16 %v701
    %v3409 = vunpack.c.h.b16 %v701
    %v3410 = vunpack.c.l.b16 %v702
    %v3411 = vunpack.c.h.b16 %v702
    %v3412 = vunpack.c.l.b16 %v703
    %v3413 = vunpack.c.h.b16 %v703
    %v3414 = vunpack.c.l.b16 %v704
    %v3415 = vunpack.c.h.b16 %v704
    %v3416 = vunpack.c.l.b16 %v705
    %v3417 = vunpack.c.h.b16 %v705
    %v3418 = vunpack.c.l.b16 %v706
    %v3419 = vunpack.c.h.b16 %v706
    %v3420 = vunpack.c.l.b16 %v707
    %v3421 = vunpack.c.h.b16 %v707
    %v3422 = vunpack.c.l.b16 %v708
    %v3423 = vunpack.c.h.b16 %v708
    %v3424 = vunpack.c.l.b16 %v709
    %v3425 = vunpack.c.h.b16 %v709
    %v3426 = vunpack.c.l.b16 %v710
    %v3427 = vunpack.c.h.b16 %v710
    %v3428 = vunpack.c.l.b16 %v711
    %v3429 = vunpack.c.h.b16 %v711
    %v3430 = vunpack.c.l.b16 %v712
    %v3431 = vunpack.c.h.b16 %v712
    %v3432 = vunpack.c.l.b16 %v713
    %v3433 = vunpack.c.h.b16 %v713
    %v3434 = vunpack.c.l.b16 %v714
    %v3435 = vunpack.c.h.b16 %v714
    %v3436 = vunpack.c.l.b16 %v715
    %v3437 = vunpack.c.h.b16 %v715
    %v3438 = vunpack.c.l.b16 %v716
    %v3439 = vunpack.c.h.b16 %v716
    %v3440 = vunpack.c.l.b16 %v717
    %v3441 = vunpack.c.h.b16 %v717
    %v3442 = vunpack.c.l.b16 %v718
    %v3443 = vunpack.c.h.b16 %v718
    %v3444 = vunpack.c.l.b16 %v719
    %v3445 = vunpack.c.h.b16 %v719
    %v3446 = vunpack.c.l.b16 %v720
    %v3447 = vunpack.c.h.b16 %v720
    %v3448 = vunpack.c.l.b16 %v721
    %v3449 = vunpack.c.h.b16 %v721
    %v3450 = vunpack.c.l.b16 %v722
    %v3451 = vunpack.c.h.b16 %v722
    %v3452 = vunpack.c.l.b16 %v723
    %v3453 = vunpack.c.h.b16 %v723
    %v3454 = vunpack.c.l.b16 %v724
    %v3455 = vunpack.c.h.b16 %v724
    %v3456 = vunpack.c.l.b16 %v725
    %v3457 = vunpack.c.h.b16 %v725
    %v3458 = vunpack.c.l.b16 %v726
    %v3459 = vunpack.c.h.b16 %v726
    %v3460 = vunpack.c.l.b16 %v727
    %v3461 = vunpack.c.h.b16 %v727
    %v3462 = vunpack.c.l.b16 %v728
    %v3463 = vunpack.c.h.b16 %v728
    %v3464 = vunpack.c.l.b16 %v729
    %v3465 = vunpack.c.h.b16 %v729
    %v3466 = vunpack.c.l.b16 %v730
    %v3467 = vunpack.c.h.b16 %v730
    %v3468 = vunpack.c.l.b16 %v731
    %v3469 = vunpack.c.h.b16 %v731
    %v3470 = vunpack.c.l.b16 %v732
    %v3471 = vunpack.c.h.b16 %v732
    %v3472 = vunpack.c.l.b16 %v733
    %v3473 = vunpack.c.h.b16 %v733
    %v3474 = vunpack.c.l.b16 %v734
    %v3475 = vunpack.c.h.b16 %v734
    %v3476 = vunpack.c.l.b16 %v735
    %v3477 = vunpack.c.h.b16 %v735
    %v3478 = vunpack.c.l.b16 %v736
    %v3479 = vunpack.c.h.b16 %v736
    %v3480 = vunpack.c.l.b16 %v737
    %v3481 = vunpack.c.h.b16 %v737
    %v3482 = vunpack.c.l.b16 %v738
    %v3483 = vunpack.c.h.b16 %v738
    %v3484 = vunpack.c.l.b16 %v739
    %v3485 = vunpack.c.h.b16 %v739
    %v3486 = vunpack.c.l.b16 %v740
    %v3487 = vunpack.c.h.b16 %v740
    %v3488 = vunpack.c.l.b16 %v741
    %v3489 = vunpack.c.h.b16 %v741
    %v3490 = vunpack.c.l.b16 %v742
    %v3491 = vunpack.c.h.b16 %v742
    %v3492 = vunpack.c.l.b16 %v743
    %v3493 = vunpack.c.h.b16 %v743
    %v3494 = vunpack.c.l.b16 %v744
    %v3495 = vunpack.c.h.b16 %v744
    %v3496 = vunpack.c.l.b16 %v745
    %v3497 = vunpack.c.h.b16 %v745
    %v3498 = vunpack.c.l.b16 %v746
    %v3499 = vunpack.c.h.b16 %v746
    %v3500 = vunpack.c.l.b16 %v747
    %v3501 = vunpack.c.h.b16 %v747
    %v3502 = vunpack.c.l.b16 %v748
    %v3503 = vunpack.c.h.b16 %v748
    %v3504 = vunpack.c.l.b16 %v749
    %v3505 = vunpack.c.h.b16 %v749
    %v3506 = vunpack.c.l.b16 %v750
    %v3507 = vunpack.c.h.b16 %v750
    %v3508 = vunpack.c.l.b16 %v751
    %v3509 = vunpack.c.h.b16 %v751
    %v3510 = vunpack.c.l.b16 %v752
    %v3511 = vunpack.c.h.b16 %v752
    %v3512 = vunpack.c.l.b16 %v753
    %v3513 = vunpack.c.h.b16 %v753
    %v3514 = vunpack.c.l.b16 %v754
    %v3515 = vunpack.c.h.b16 %v754
    %v3516 = vunpack.c.l.b16 %v755
    %v3517 = vunpack.c.h.b16 %v755
    %v3518 = vunpack.c.l.b16 %v756
    %v3519 = vunpack.c.h.b16 %v756
    %v3520 = vunpack.c.l.b16 %v757
    %v3521 = vunpack.c.h.b16 %v757
    %v3522 = vunpack.c.l.b16 %v758
    %v3523 = vunpack.c.h.b16 %v758
    %v3524 = vunpack.c.l.b16 %v759
    %v3525 = vunpack.c.h.b16 %v759
    %v3526 = vunpack.c.l.b16 %v760
    %v3527 = vunpack.c.h.b16 %v760
    %v3528 = vunpack.c.l.b16 %v761
    %v3529 = vunpack.c.h.b16 %v761
    %v3530 = vunpack.c.l.b16 %v762
    %v3531 = vunpack.c.h.b16 %v762
    %v3532 = vunpack.c.l.b16 %v763
    %v3533 = vunpack.c.h.b16 %v763
    %v3534 = vunpack.c.l.b16 %v764
    %v3535 = vunpack.c.h.b16 %v764
    %v3536 = vunpack.c.l.b16 %v765
    %v3537 = vunpack.c.h.b16 %v765
    %v3538 = vunpack.c.l.b16 %v766
    %v3539 = vunpack.c.h.b16 %v766
    %v3540 = vunpack.c.l.b16 %v767
    %v3541 = vunpack.c.h.b16 %v767
    %v3542 = vunpack.c.l.b16 %v768
    %v3543 = vunpack.c.h.b16 %v768
    %v3544 = vunpack.c.l.b16 %v769
    %v3545 = vunpack.c.h.b16 %v769
    %v3546 = vunpack.c.l.b16 %v770
    %v3547 = vunpack.c.h.b16 %v770
    %v3548 = vunpack.c.l.b16 %v771
    %v3549 = vunpack.c.h.b16 %v771
    %v3550 = vunpack.c.l.b16 %v772
    %v3551 = vunpack.c.h.b16 %v772
    %v3552 = vunpack.c.l.b16 %v773
    %v3553 = vunpack.c.h.b16 %v773
    %v3554 = vunpack.c.l.b16 %v774
    %v3555 = vunpack.c.h.b16 %v774
    %v3556 = vunpack.c.l.b16 %v775
    %v3557 = vunpack.c.h.b16 %v775
    %v3558 = vunpack.c.l.b16 %v776
    %v3559 = vunpack.c.h.b16 %v776
    %v3560 = vunpack.c.l.b16 %v777
    %v3561 = vunpack.c.h.b16 %v777
    %v3562 = vunpack.c.l.b16 %v778
    %v3563 = vunpack.c.h.b16 %v778
    %v3564 = vunpack.c.l.b16 %v779
    %v3565 = vunpack.c.h.b16 %v779
    %v3566 = vunpack.c.l.b16 %v780
    %v3567 = vunpack.c.h.b16 %v780
    %v3568 = vunpack.c.l.b16 %v781
    %v3569 = vunpack.c.h.b16 %v781
    %v3570 = vunpack.c.l.b16 %v782
    %v3571 = vunpack.c.h.b16 %v782
    %v3572 = vunpack.c.l.b16 %v783
    %v3573 = vunpack.c.h.b16 %v783
    %v3574 = vunpack.c.l.b16 %v784
    %v3575 = vunpack.c.h.b16 %v784
    %v3576 = vunpack.c.l.b16 %v785
    %v3577 = vunpack.c.h.b16 %v785
    %v3578 = vunpack.c.l.b16 %v786
    %v3579 = vunpack.c.h.b16 %v786
    %v3580 = vunpack.c.l.b16 %v787
    %v3581 = vunpack.c.h.b16 %v787
    %v3582 = vunpack.c.l.b16 %v788
    %v3583 = vunpack.c.h.b16 %v788
    %v3584 = vunpack.c.l.b16 %v789
    %v3585 = vunpack.c.h.b16 %v789
    %v3586 = vunpack.c.l.b16 %v790
    %v3587 = vunpack.c.h.b16 %v790
    %v3588 = vunpack.c.l.b16 %v791
    %v3589 = vunpack.c.h.b16 %v791
    %v3590 = vunpack.c.l.b16 %v792
    %v3591 = vunpack.c.h.b16 %v792
    %v3592 = vunpack.c.l.b16 %v793
    %v3593 = vunpack.c.h.b16 %v793
    %v3594 = vunpack.c.l.b16 %v794
    %v3595 = vunpack.c.h.b16 %v794
    %v3596 = vunpack.c.l.b16 %v795
    %v3597 = vunpack.c.h.b16 %v795
    %v3598 = vunpack.c.l.b16 %v796
    %v3599 = vunpack.c.h.b16 %v796
    %v3600 = vunpack.c.l.b16 %v797
    %v3601 = vunpack.c.h.b16 %v797
    %v3602 = vunpack.c.l.b16 %v798
    %v3603 = vunpack.c.h.b16 %v798
    %v3604 = vunpack.c.l.b16 %v799
    %v3605 = vunpack.c.h.b16 %v799
    %v3606 = vunpack.c.l.b16 %v800
    %v3607 = vunpack.c.h.b16 %v800
    %v3608 = vunpack.c.l.b16 %v801
    %v3609 = vunpack.c.h.b16 %v801
    %v3610 = vunpack.c.l.b16 %v802
    %v3611 = vunpack.c.h.b16 %v802
    %v3612 = vunpack.c.l.b16 %v803
    %v3613 = vunpack.c.h.b16 %v803
    %v3614 = vunpack.c.l.b16 %v804
    %v3615 = vunpack.c.h.b16 %v804
    %v3616 = vunpack.c.l.b16 %v805
    %v3617 = vunpack.c.h.b16 %v805
    %v3618 = vunpack.c.l.b16 %v806
    %v3619 = vunpack.c.h.b16 %v806
    %v3620 = vunpack.c.l.b16 %v807
    %v3621 = vunpack.c.h.b16 %v807
    %v3622 = vunpack.c.l.b16 %v808
    %v3623 = vunpack.c.h.b16 %v808
    %v3624 = vunpack.c.l.b16 %v809
    %v3625 = vunpack.c.h.b16 %v809
    %v3626 = vunpack.c.l.b16 %v810
    %v3627 = vunpack.c.h.b16 %v810
    %v3628 = vunpack.c.l.b16 %v811
    %v3629 = vunpack.c.h.b16 %v811
    %v3630 = vunpack.c.l.b16 %v812
    %v3631 = vunpack.c.h.b16 %v812
    %v3632 = vunpack.c.l.b16 %v813
    %v3633 = vunpack.c.h.b16 %v813
    %v3634 = vunpack.c.l.b16 %v814
    %v3635 = vunpack.c.h.b16 %v814
    %v3636 = vunpack.c.l.b16 %v815
    %v3637 = vunpack.c.h.b16 %v815
    %v3638 = vunpack.c.l.b16 %v816
    %v3639 = vunpack.c.h.b16 %v816
    %v3640 = vunpack.c.l.b16 %v817
    %v3641 = vunpack.c.h.b16 %v817
    %v3642 = vunpack.c.l.b16 %v818
    %v3643 = vunpack.c.h.b16 %v818
    %v3644 = vunpack.c.l.b16 %v819
    %v3645 = vunpack.c.h.b16 %v819
    %v3646 = vunpack.c.l.b16 %v820
    %v3647 = vunpack.c.h.b16 %v820
    %v3648 = vunpack.c.l.b16 %v821
    %v3649 = vunpack.c.h.b16 %v821
    %v3650 = vunpack.c.l.b16 %v822
    %v3651 = vunpack.c.h.b16 %v822
    %v3652 = vunpack.c.l.b16 %v823
    %v3653 = vunpack.c.h.b16 %v823
    %v3654 = vunpack.c.l.b16 %v824
    %v3655 = vunpack.c.h.b16 %v824
    %v3656 = vunpack.c.l.b16 %v825
    %v3657 = vunpack.c.h.b16 %v825
    %v3658 = vunpack.c.l.b16 %v826
    %v3659 = vunpack.c.h.b16 %v826
    %v3660 = vunpack.c.l.b16 %v827
    %v3661 = vunpack.c.h.b16 %v827
    %v3662 = vunpack.c.l.b16 %v828
    %v3663 = vunpack.c.h.b16 %v828
    %v3664 = vunpack.c.l.b16 %v829
    %v3665 = vunpack.c.h.b16 %v829
    %v3666 = vunpack.c.l.b16 %v830
    %v3667 = vunpack.c.h.b16 %v830
    %v3668 = vunpack.c.l.b16 %v831
    %v3669 = vunpack.c.h.b16 %v831
    %v3670 = vunpack.c.l.b16 %v832
    %v3671 = vunpack.c.h.b16 %v832
    %v3672 = vunpack.c.l.b16 %v833
    %v3673 = vunpack.c.h.b16 %v833
    %v3674 = vunpack.c.l.b16 %v834
    %v3675 = vunpack.c.h.b16 %v834
    %v3676 = vunpack.c.l.b16 %v835
    %v3677 = vunpack.c.h.b16 %v835
    %v3678 = vunpack.c.l.b16 %v836
    %v3679 = vunpack.c.h.b16 %v836
    %v3680 = vunpack.c.l.b16 %v837
    %v3681 = vunpack.c.h.b16 %v837
    %v3682 = vunpack.c.l.b16 %v838
    %v3683 = vunpack.c.h.b16 %v838
    %v3684 = vunpack.c.l.b16 %v839
    %v3685 = vunpack.c.h.b16 %v839
    %v3686 = vunpack.c.l.b16 %v840
    %v3687 = vunpack.c.h.b16 %v840
    %v3688 = vunpack.c.l.b16 %v841
    %v3689 = vunpack.c.h.b16 %v841
    %v3690 = vunpack.c.l.b16 %v842
    %v3691 = vunpack.c.h.b16 %v842
    %v3692 = vunpack.c.l.b16 %v843
    %v3693 = vunpack.c.h.b16 %v843
    %v3694 = vunpack.c.l.b16 %v844
    %v3695 = vunpack.c.h.b16 %v844
    %v3696 = vunpack.c.l.b16 %v845
    %v3697 = vunpack.c.h.b16 %v845
    %v3698 = vunpack.c.l.b16 %v846
    %v3699 = vunpack.c.h.b16 %v846
    %v3700 = vunpack.c.l.b16 %v847
    %v3701 = vunpack.c.h.b16 %v847
    %v3702 = vunpack.c.l.b16 %v848
    %v3703 = vunpack.c.h.b16 %v848
    %v3704 = vunpack.c.l.b16 %v849
    %v3705 = vunpack.c.h.b16 %v849
    %v3706 = vunpack.c.l.b16 %v850
    %v3707 = vunpack.c.h.b16 %v850
    %v3708 = vunpack.c.l.b16 %v851
    %v3709 = vunpack.c.h.b16 %v851
    %v3710 = vunpack.c.l.b16 %v852
    %v3711 = vunpack.c.h.b16 %v852
    %v3712 = vunpack.c.l.b16 %v853
    %v3713 = vunpack.c.h.b16 %v853
    %v3714 = vunpack.c.l.b16 %v854
    %v3715 = vunpack.c.h.b16 %v854
    %v3716 = vunpack.c.l.b16 %v855
    %v3717 = vunpack.c.h.b16 %v855
    %v3718 = vunpack.c.l.b16 %v856
    %v3719 = vunpack.c.h.b16 %v856
    %v3720 = vunpack.c.l.b16 %v857
    %v3721 = vunpack.c.h.b16 %v857
    %v3722 = vunpack.c.l.b16 %v858
    %v3723 = vunpack.c.h.b16 %v858
    %v3724 = vunpack.c.l.b16 %v859
    %v3725 = vunpack.c.h.b16 %v859
    %v3726 = vunpack.c.l.b16 %v860
    %v3727 = vunpack.c.h.b16 %v860
    %v3728 = vunpack.c.l.b16 %v861
    %v3729 = vunpack.c.h.b16 %v861
    %v3730 = vunpack.c.l.b16 %v862
    %v3731 = vunpack.c.h.b16 %v862
    %v3732 = vunpack.c.l.b16 %v863
    %v3733 = vunpack.c.h.b16 %v863
    %v3734 = vunpack.c.l.b16 %v864
    %v3735 = vunpack.c.h.b16 %v864
    %v3736 = vunpack.c.l.b16 %v865
    %v3737 = vunpack.c.h.b16 %v865
    %v3738 = vunpack.c.l.b16 %v866
    %v3739 = vunpack.c.h.b16 %v866
    %v3740 = vunpack.c.l.b16 %v867
    %v3741 = vunpack.c.h.b16 %v867
    %v3742 = vunpack.c.l.b16 %v868
    %v3743 = vunpack.c.h.b16 %v868
    %v3744 = vunpack.c.l.b16 %v869
    %v3745 = vunpack.c.h.b16 %v869
    %v3746 = vunpack.c.l.b16 %v870
    %v3747 = vunpack.c.h.b16 %v870
    %v3748 = vunpack.c.l.b16 %v871
    %v3749 = vunpack.c.h.b16 %v871
    %v3750 = vunpack.c.l.b16 %v872
    %v3751 = vunpack.c.h.b16 %v872
    %v3752 = vunpack.c.l.b16 %v873
    %v3753 = vunpack.c.h.b16 %v873
    %v3754 = vunpack.c.l.b16 %v874
    %v3755 = vunpack.c.h.b16 %v874
    %v3756 = vunpack.c.l.b16 %v875
    %v3757 = vunpack.c.h.b16 %v875
    %v3758 = vunpack.c.l.b16 %v876
    %v3759 = vunpack.c.h.b16 %v876
    %v3760 = vunpack.c.l.b16 %v877
    %v3761 = vunpack.c.h.b16 %v877
    %v3762 = vunpack.c.l.b16 %v878
    %v3763 = vunpack.c.h.b16 %v878
    %v3764 = vunpack.c.l.b16 %v879
    %v3765 = vunpack.c.h.b16 %v879
    %v3766 = vunpack.c.l.b16 %v880
    %v3767 = vunpack.c.h.b16 %v880
    %v3768 = vunpack.c.l.b16 %v881
    %v3769 = vunpack.c.h.b16 %v881
    %v3770 = vunpack.c.l.b16 %v882
    %v3771 = vunpack.c.h.b16 %v882
    %v3772 = vunpack.c.l.b16 %v883
    %v3773 = vunpack.c.h.b16 %v883
    %v3774 = vunpack.c.l.b16 %v884
    %v3775 = vunpack.c.h.b16 %v884
    %v3776 = vunpack.c.l.b16 %v885
    %v3777 = vunpack.c.h.b16 %v885
    %v3778 = vunpack.c.l.b16 %v886
    %v3779 = vunpack.c.h.b16 %v886
    %v3780 = vunpack.c.l.b16 %v887
    %v3781 = vunpack.c.h.b16 %v887
    %v3782 = vunpack.c.l.b16 %v888
    %v3783 = vunpack.c.h.b16 %v888
    %v3784 = vunpack.c.l.b16 %v889
    %v3785 = vunpack.c.h.b16 %v889
    %v3786 = vunpack.c.l.b16 %v890
    %v3787 = vunpack.c.h.b16 %v890
    %v3788 = vunpack.c.l.b16 %v891
    %v3789 = vunpack.c.h.b16 %v891
    %v3790 = vunpack.c.l.b16 %v892
    %v3791 = vunpack.c.h.b16 %v892
    %v3792 = vunpack.c.l.b16 %v893
    %v3793 = vunpack.c.h.b16 %v893
    %v3794 = vunpack.c.l.b16 %v894
    %v3795 = vunpack.c.h.b16 %v894
    %v3796 = vunpack.c.l.b16 %v895
    %v3797 = vunpack.c.h.b16 %v895
    %v3798 = vunpack.c.l.b16 %v896
    %v3799 = vunpack.c.h.b16 %v896
    %v3800 = vunpack.c.l.b16 %v897
    %v3801 = vunpack.c.h.b16 %v897
    %v3802 = vunpack.c.l.b16 %v898
    %v3803 = vunpack.c.h.b16 %v898
    %v3804 = vunpack.c.l.b16 %v899
    %v3805 = vunpack.c.h.b16 %v899
    %v3806 = vunpack.c.l.b16 %v900
    %v3807 = vunpack.c.h.b16 %v900
    %v3808 = vunpack.c.l.b16 %v901
    %v3809 = vunpack.c.h.b16 %v901
    %v3810 = vunpack.c.l.b16 %v902
    %v3811 = vunpack.c.h.b16 %v902
    %v3812 = vunpack.c.l.b16 %v903
    %v3813 = vunpack.c.h.b16 %v903
    %v3814 = vunpack.c.l.b16 %v904
    %v3815 = vunpack.c.h.b16 %v904
    %v3816 = vunpack.c.l.b16 %v905
    %v3817 = vunpack.c.h.b16 %v905
    %v3818 = vunpack.c.l.b16 %v906
    %v3819 = vunpack.c.h.b16 %v906
    %v3820 = vunpack.c.l.b16 %v907
    %v3821 = vunpack.c.h.b16 %v907
    %v3822 = vunpack.c.l.b16 %v908
    %v3823 = vunpack.c.h.b16 %v908
    %v3824 = vunpack.c.l.b16 %v909
    %v3825 = vunpack.c.h.b16 %v909
    %v3826 = vunpack.c.l.b16 %v910
    %v3827 = vunpack.c.h.b16 %v910
    %v3828 = vunpack.c.l.b16 %v911
    %v3829 = vunpack.c.h.b16 %v911
    %v3830 = vunpack.c.l.b16 %v912
    %v3831 = vunpack.c.h.b16 %v912
    %v3832 = vunpack.c.l.b16 %v913
    %v3833 = vunpack.c.h.b16 %v913
    %v3834 = vunpack.c.l.b16 %v914
    %v3835 = vunpack.c.h.b16 %v914
    %v3836 = vunpack.c.l.b16 %v915
    %v3837 = vunpack.c.h.b16 %v915
    %v3838 = vunpack.c.l.b16 %v916
    %v3839 = vunpack.c.h.b16 %v916
    %v3840 = vunpack.c.l.b16 %v917
    %v3841 = vunpack.c.h.b16 %v917
    %v3842 = vunpack.c.l.b16 %v918
    %v3843 = vunpack.c.h.b16 %v918
    %v3844 = vunpack.c.l.b16 %v919
    %v3845 = vunpack.c.h.b16 %v919
    %v3846 = vunpack.c.l.b16 %v920
    %v3847 = vunpack.c.h.b16 %v920
    %v3848 = vunpack.c.l.b16 %v921
    %v3849 = vunpack.c.h.b16 %v921
    %v3850 = vunpack.c.l.b16 %v922
    %v3851 = vunpack.c.h.b16 %v922
    %v3852 = vunpack.c.l.b16 %v923
    %v3853 = vunpack.c.h.b16 %v923
    %v3854 = vunpack.c.l.b16 %v924
    %v3855 = vunpack.c.h.b16 %v924
    %v3856 = vunpack.c.l.b16 %v925
    %v3857 = vunpack.c.h.b16 %v925
    %v3858 = vunpack.c.l.b16 %v926
    %v3859 = vunpack.c.h.b16 %v926
    %v3860 = vunpack.c.l.b16 %v927
    %v3861 = vunpack.c.h.b16 %v927
    %v3862 = vunpack.c.l.b16 %v928
    %v3863 = vunpack.c.h.b16 %v928
    %v3864 = vunpack.c.l.b16 %v929
    %v3865 = vunpack.c.h.b16 %v929
    %v3866 = vunpack.c.l.b16 %v930
    %v3867 = vunpack.c.h.b16 %v930
    %v3868 = vunpack.c.l.b16 %v931
    %v3869 = vunpack.c.h.b16 %v931
    %v3870 = vunpack.c.l.b16 %v932
    %v3871 = vunpack.c.h.b16 %v932
    %v3872 = vunpack.c.l.b16 %v933
    %v3873 = vunpack.c.h.b16 %v933
    %v3874 = vunpack.c.l.b16 %v934
    %v3875 = vunpack.c.h.b16 %v934
    %v3876 = vunpack.c.l.b16 %v935
    %v3877 = vunpack.c.h.b16 %v935
    %v3878 = vunpack.c.l.b16 %v936
    %v3879 = vunpack.c.h.b16 %v936
    %v3880 = vunpack.c.l.b16 %v937
    %v3881 = vunpack.c.h.b16 %v937
    %v3882 = vunpack.c.l.b16 %v938
    %v3883 = vunpack.c.h.b16 %v938
    %v3884 = vunpack.c.l.b16 %v939
    %v3885 = vunpack.c.h.b16 %v939
    %v3886 = vunpack.c.l.b16 %v940
    %v3887 = vunpack.c.h.b16 %v940
    %v3888 = vunpack.c.l.b16 %v941
    %v3889 = vunpack.c.h.b16 %v941
    %v3890 = vunpack.c.l.b16 %v942
    %v3891 = vunpack.c.h.b16 %v942
    %v3892 = vunpack.c.l.b16 %v943
    %v3893 = vunpack.c.h.b16 %v943
    %v3894 = vunpack.c.l.b16 %v944
    %v3895 = vunpack.c.h.b16 %v944
    %v3896 = vunpack.c.l.b16 %v945
    %v3897 = vunpack.c.h.b16 %v945
    %v3898 = vunpack.c.l.b16 %v946
    %v3899 = vunpack.c.h.b16 %v946
    %v3900 = vunpack.c.l.b16 %v947
    %v3901 = vunpack.c.h.b16 %v947
    %v3902 = vunpack.c.l.b16 %v948
    %v3903 = vunpack.c.h.b16 %v948
    %v3904 = vunpack.c.l.b16 %v949
    %v3905 = vunpack.c.h.b16 %v949
    %v3906 = vunpack.c.l.b16 %v950
    %v3907 = vunpack.c.h.b16 %v950
    %v3908 = vunpack.c.l.b16 %v951
    %v3909 = vunpack.c.h.b16 %v951
    %v3910 = vunpack.c.l.b16 %v952
    %v3911 = vunpack.c.h.b16 %v952
    %v3912 = vunpack.c.l.b16 %v953
    %v3913 = vunpack.c.h.b16 %v953
    %v3914 = vunpack.c.l.b16 %v954
    %v3915 = vunpack.c.h.b16 %v954
    %v3916 = vunpack.c.l.b16 %v955
    %v3917 = vunpack.c.h.b16 %v955
    %v3918 = vunpack.c.l.b16 %v956
    %v3919 = vunpack.c.h.b16 %v956
    %v3920 = vunpack.c.l.b16 %v957
    %v3921 = vunpack.c.h.b16 %v957
    %v3922 = vunpack.c.l.b16 %v958
    %v3923 = vunpack.c.h.b16 %v958
    %v3924 = vunpack.c.l.b16 %v959
    %v3925 = vunpack.c.h.b16 %v959
    %v3926 = vunpack.c.l.b16 %v960
    %v3927 = vunpack.c.h.b16 %v960
    %v3928 = vunpack.c.l.b16 %v961
    %v3929 = vunpack.c.h.b16 %v961
    %v3930 = vunpack.c.l.b16 %v962
    %v3931 = vunpack.c.h.b16 %v962
    %v3932 = vunpack.c.l.b16 %v963
    %v3933 = vunpack.c.h.b16 %v963
    %v3934 = vunpack.c.l.b16 %v964
    %v3935 = vunpack.c.h.b16 %v964
    %v3936 = vunpack.c.l.b16 %v965
    %v3937 = vunpack.c.h.b16 %v965
    %v3938 = vunpack.c.l.b16 %v966
    %v3939 = vunpack.c.h.b16 %v966
    %v3940 = vunpack.c.l.b16 %v967
    %v3941 = vunpack.c.h.b16 %v967
    %v3942 = vunpack.c.l.b16 %v968
    %v3943 = vunpack.c.h.b16 %v968
    %v3944 = vunpack.c.l.b16 %v969
    %v3945 = vunpack.c.h.b16 %v969
    %v3946 = vunpack.c.l.b16 %v970
    %v3947 = vunpack.c.h.b16 %v970
    %v3948 = vunpack.c.l.b16 %v971
    %v3949 = vunpack.c.h.b16 %v971
    %v3950 = vunpack.c.l.b16 %v972
    %v3951 = vunpack.c.h.b16 %v972
    %v3952 = vunpack.c.l.b16 %v973
    %v3953 = vunpack.c.h.b16 %v973
    %v3954 = vunpack.c.l.b16 %v974
    %v3955 = vunpack.c.h.b16 %v974
    %v3956 = vunpack.c.l.b16 %v975
    %v3957 = vunpack.c.h.b16 %v975
    %v3958 = vunpack.c.l.b16 %v976
    %v3959 = vunpack.c.h.b16 %v976
    %v3960 = vunpack.c.l.b16 %v977
    %v3961 = vunpack.c.h.b16 %v977
    %v3962 = vunpack.c.l.b16 %v978
    %v3963 = vunpack.c.h.b16 %v978
    %v3964 = vunpack.c.l.b16 %v979
    %v3965 = vunpack.c.h.b16 %v979
    %v3966 = vunpack.c.l.b16 %v980
    %v3967 = vunpack.c.h.b16 %v980
    %v3968 = vunpack.c.l.b16 %v981
    %v3969 = vunpack.c.h.b16 %v981
    %v3970 = vunpack.c.l.b16 %v982
    %v3971 = vunpack.c.h.b16 %v982
    %v3972 = vunpack.c.l.b16 %v983
    %v3973 = vunpack.c.h.b16 %v983
    %v3974 = vunpack.c.l.b16 %v984
    %v3975 = vunpack.c.h.b16 %v984
    %v3976 = vunpack.c.l.b16 %v985
    %v3977 = vunpack.c.h.b16 %v985
    %v3978 = vunpack.c.l.b16 %v986
    %v3979 = vunpack.c.h.b16 %v986
    %v3980 = vunpack.c.l.b16 %v987
    %v3981 = vunpack.c.h.b16 %v987
    %v3982 = vunpack.c.l.b16 %v988
    %v3983 = vunpack.c.h.b16 %v988
    %v3984 = vunpack.c.l.b16 %v989
    %v3985 = vunpack.c.h.b16 %v989
    %v3986 = vunpack.c.l.b16 %v990
    %v3987 = vunpack.c.h.b16 %v990
    %v3988 = vunpack.c.l.b16 %v991
    %v3989 = vunpack.c.h.b16 %v991
    %v3990 = vunpack.c.l.b16 %v992
    %v3991 = vunpack.c.h.b16 %v992
    %v3992 = vunpack.c.l.b16 %v993
    %v3993 = vunpack.c.h.b16 %v993
    %v3994 = vunpack.c.l.b16 %v994
    %v3995 = vunpack.c.h.b16 %v994
    %v3996 = vunpack.c.l.b16 %v995
    %v3997 = vunpack.c.h.b16 %v995
    %v3998 = vunpack.c.l.b16 %v996
    %v3999 = vunpack.c.h.b16 %v996
    %v4000 = vunpack.c.l.b16 %v997
    %v4001 = vunpack.c.h.b16 %v997
    %v4002 = vunpack.c.l.b16 %v998
    %v4003 = vunpack.c.h.b16 %v998
    %v4004 = vunpack.c.l.b16 %v999
    %v4005 = vunpack.c.h.b16 %v999
    %v4006 = vunpack.c.l.b16 %v1000
    %v4007 = vunpack.c.h.b16 %v1000
    %v4008 = vunpack.c.l.b16 %v1001
    %v4009 = vunpack.c.h.b16 %v1001
    %v4010 = vunpack.c.l.b16 %v1002
    %v4011 = vunpack.c.h.b16 %v1002
    %v4012 = vunpack.c.l.b16 %v1003
    %v4013 = vunpack.c.h.b16 %v1003
    %v4014 = vunpack.c.l.b16 %v1004
    %v4015 = vunpack.c.h.b16 %v1004
    %v4016 = vunpack.c.l.b16 %v1005
    %v4017 = vunpack.c.h.b16 %v1005
    %v4018 = vunpack.c.l.b16 %v1006
    %v4019 = vunpack.c.h.b16 %v1006
    %v4020 = vunpack.c.l.b16 %v1007
    %v4021 = vunpack.c.h.b16 %v1007
    %v4022 = vunpack.c.l.b16 %v1008
    %v4023 = vunpack.c.h.b16 %v1008
    %v4024 = vunpack.c.l.b16 %v1009
    %v4025 = vunpack.c.h.b16 %v1009
    %v4026 = vunpack.c.l.b16 %v1010
    %v4027 = vunpack.c.h.b16 %v1010
    %v4028 = vunpack.c.l.b16 %v1011
    %v4029 = vunpack.c.h.b16 %v1011
    %v4030 = vunpack.c.l.b16 %v1012
    %v4031 = vunpack.c.h.b16 %v1012
    %v4032 = vunpack.c.l.b16 %v1013
    %v4033 = vunpack.c.h.b16 %v1013
    %v4034 = vunpack.c.l.b16 %v1014
    %v4035 = vunpack.c.h.b16 %v1014
    %v4036 = vunpack.c.l.b16 %v1015
    %v4037 = vunpack.c.h.b16 %v1015
    %v4038 = vunpack.c.l.b16 %v1016
    %v4039 = vunpack.c.h.b16 %v1016
    %v4040 = vunpack.c.l.b16 %v1017
    %v4041 = vunpack.c.h.b16 %v1017
    %v4042 = vunpack.c.l.b16 %v1018
    %v4043 = vunpack.c.h.b16 %v1018
    %v4044 = vunpack.c.l.b16 %v1019
    %v4045 = vunpack.c.h.b16 %v1019
    %v4046 = vunpack.c.l.b16 %v1020
    %v4047 = vunpack.c.h.b16 %v1020
    %v4048 = vunpack.c.l.b16 %v1021
    %v4049 = vunpack.c.h.b16 %v1021
    %v4050 = vunpack.c.l.b16 %v1022
    %v4051 = vunpack.c.h.b16 %v1022
    %v4052 = vunpack.c.l.b16 %v1023
    %v4053 = vunpack.c.h.b16 %v1023
    %v4054 = vunpack.c.l.b16 %v1024
    %v4055 = vunpack.c.h.b16 %v1024
    %v4056 = vunpack.c.l.b16 %v1025
    %v4057 = vunpack.c.h.b16 %v1025
    %v4058 = vunpack.c.l.b16 %v1026
    %v4059 = vunpack.c.h.b16 %v1026
    %v4060 = vunpack.c.l.b16 %v1027
    %v4061 = vunpack.c.h.b16 %v1027
    %v4062 = vunpack.c.l.b16 %v1028
    %v4063 = vunpack.c.h.b16 %v1028
    %v4064 = vunpack.c.l.b16 %v1029
    %v4065 = vunpack.c.h.b16 %v1029
    %v4066 = vunpack.c.l.b16 %v1030
    %v4067 = vunpack.c.h.b16 %v1030
    %v4068 = vunpack.c.l.b16 %v1031
    %v4069 = vunpack.c.h.b16 %v1031
    %v4070 = vunpack.c.l.b16 %v1032
    %v4071 = vunpack.c.h.b16 %v1032
    %v4072 = vunpack.c.l.b16 %v1033
    %v4073 = vunpack.c.h.b16 %v1033
    %v4074 = vunpack.c.l.b16 %v1034
    %v4075 = vunpack.c.h.b16 %v1034
    %v4076 = vunpack.c.l.b16 %v1035
    %v4077 = vunpack.c.h.b16 %v1035
    %v4078 = vunpack.c.l.b16 %v1036
    %v4079 = vunpack.c.h.b16 %v1036
    %v4080 = vunpack.c.l.b16 %v1037
    %v4081 = vunpack.c.h.b16 %v1037
    %v4082 = vunpack.c.l.b16 %v1038
    %v4083 = vunpack.c.h.b16 %v1038
    %v4084 = vunpack.c.l.b16 %v1039
    %v4085 = vunpack.c.h.b16 %v1039
    %v4086 = vunpack.c.l.b16 %v1040
    %v4087 = vunpack.c.h.b16 %v1040
    %v4088 = vunpack.c.l.b16 %v1041
    %v4089 = vunpack.c.h.b16 %v1041
    %v4090 = vunpack.c.l.b16 %v1042
    %v4091 = vunpack.c.h.b16 %v1042
    %v4092 = vunpack.c.l.b16 %v1043
    %v4093 = vunpack.c.h.b16 %v1043
    %v4094 = vunpack.c.l.b16 %v1044
    %v4095 = vunpack.c.h.b16 %v1044
    %v4096 = vunpack.c.l.b16 %v1045
    %v4097 = vunpack.c.h.b16 %v1045
    %v4098 = vunpack.c.l.b16 %v1046
    %v4099 = vunpack.c.h.b16 %v1046
    %v4100 = vunpack.c.l.b16 %v1047
    %v4101 = vunpack.c.h.b16 %v1047
    %v4102 = vunpack.c.l.b16 %v1048
    %v4103 = vunpack.c.h.b16 %v1048
    %v4104 = vunpack.c.l.b16 %v1049
    %v4105 = vunpack.c.h.b16 %v1049
    %v4106 = vunpack.c.l.b16 %v1050
    %v4107 = vunpack.c.h.b16 %v1050
    %v4108 = vunpack.c.l.b16 %v1051
    %v4109 = vunpack.c.h.b16 %v1051
    %v4110 = vunpack.c.l.b16 %v1052
    %v4111 = vunpack.c.h.b16 %v1052
    %v4112 = vunpack.c.l.b16 %v1053
    %v4113 = vunpack.c.h.b16 %v1053
    %v4114 = vunpack.c.l.b16 %v1054
    %v4115 = vunpack.c.h.b16 %v1054
    %v4116 = vunpack.c.l.b16 %v1055
    %v4117 = vunpack.c.h.b16 %v1055
    %v4118 = vunpack.c.l.b16 %v1056
    %v4119 = vunpack.c.h.b16 %v1056
    %v4120 = vunpack.c.l.b16 %v1057
    %v4121 = vunpack.c.h.b16 %v1057
    %v4122 = vunpack.c.l.b16 %v1058
    %v4123 = vunpack.c.h.b16 %v1058
    %v4124 = vunpack.c.l.b16 %v1059
    %v4125 = vunpack.c.h.b16 %v1059
    %v4126 = vunpack.c.l.b16 %v1060
    %v4127 = vunpack.c.h.b16 %v1060
    %v4128 = vunpack.c.l.b16 %v1061
    %v4129 = vunpack.c.h.b16 %v1061
    %v4130 = vunpack.c.l.b16 %v1062
    %v4131 = vunpack.c.h.b16 %v1062
    %v4132 = vunpack.c.l.b16 %v1063
    %v4133 = vunpack.c.h.b16 %v1063
    %v4134 = vunpack.c.l.b16 %v1064
    %v4135 = vunpack.c.h.b16 %v1064
    %v4136 = vunpack.c.l.b16 %v1065
    %v4137 = vunpack.c.h.b16 %v1065
    %v4138 = vunpack.c.l.b16 %v1066
    %v4139 = vunpack.c.h.b16 %v1066
    %v4140 = vunpack.c.l.b16 %v1067
    %v4141 = vunpack.c.h.b16 %v1067
    %v4142 = vunpack.c.l.b16 %v1068
    %v4143 = vunpack.c.h.b16 %v1068
    %v4144 = vunpack.c.l.b16 %v1069
    %v4145 = vunpack.c.h.b16 %v1069
    %v4146 = vunpack.c.l.b16 %v1070
    %v4147 = vunpack.c.h.b16 %v1070
    %v4148 = vunpack.c.l.b16 %v1071
    %v4149 = vunpack.c.h.b16 %v1071
    %v4150 = vunpack.c.l.b16 %v1072
    %v4151 = vunpack.c.h.b16 %v1072
    %v4152 = vunpack.c.l.b16 %v1073
    %v4153 = vunpack.c.h.b16 %v1073
    %v4154 = vunpack.c.l.b16 %v1074
    %v4155 = vunpack.c.h.b16 %v1074
    %v4156 = vunpack.c.l.b16 %v1075
    %v4157 = vunpack.c.h.b16 %v1075
    %v4158 = vunpack.c.l.b16 %v1076
    %v4159 = vunpack.c.h.b16 %v1076
    %v4160 = vunpack.c.l.b16 %v1077
    %v4161 = vunpack.c.h.b16 %v1077
    %v4162 = vunpack.c.l.b16 %v1078
    %v4163 = vunpack.c.h.b16 %v1078
    %v4164 = vunpack.c.l.b16 %v1079
    %v4165 = vunpack.c.h.b16 %v1079
    %v4166 = vunpack.c.l.b16 %v1080
    %v4167 = vunpack.c.h.b16 %v1080
    %v4168 = vunpack.c.l.b16 %v1081
    %v4169 = vunpack.c.h.b16 %v1081
    %v4170 = vunpack.c.l.b16 %v1082
    %v4171 = vunpack.c.h.b16 %v1082
    %v4172 = vunpack.c.l.b16 %v1083
    %v4173 = vunpack.c.h.b16 %v1083
    %v4174 = vunpack.c.l.b16 %v1084
    %v4175 = vunpack.c.h.b16 %v1084
    %v4176 = vunpack.c.l.b16 %v1085
    %v4177 = vunpack.c.h.b16 %v1085
    %v4178 = vunpack.c.l.b16 %v1086
    %v4179 = vunpack.c.h.b16 %v1086
    %v4180 = vunpack.c.l.b16 %v1087
    %v4181 = vunpack.c.h.b16 %v1087
    %v4182 = vunpack.c.l.b16 %v1088
    %v4183 = vunpack.c.h.b16 %v1088
    %v4184 = vunpack.c.l.b16 %v1089
    %v4185 = vunpack.c.h.b16 %v1089
    %v4186 = vunpack.c.l.b16 %v1090
    %v4187 = vunpack.c.h.b16 %v1090
    %v4188 = vunpack.c.l.b16 %v1091
    %v4189 = vunpack.c.h.b16 %v1091
    %v4190 = vunpack.c.l.b16 %v1092
    %v4191 = vunpack.c.h.b16 %v1092
    %v4192 = vunpack.c.l.b16 %v1093
    %v4193 = vunpack.c.h.b16 %v1093
    %v4194 = vunpack.c.l.b16 %v1094
    %v4195 = vunpack.c.h.b16 %v1094
    %v4196 = vunpack.c.l.b16 %v1095
    %v4197 = vunpack.c.h.b16 %v1095
    %v4198 = vunpack.c.l.b16 %v1096
    %v4199 = vunpack.c.h.b16 %v1096
    %v4200 = vunpack.c.l.b16 %v1097
    %v4201 = vunpack.c.h.b16 %v1097
    %v4202 = vunpack.c.l.b16 %v1098
    %v4203 = vunpack.c.h.b16 %v1098
    %v4204 = vunpack.c.l.b16 %v1099
    %v4205 = vunpack.c.h.b16 %v1099
    %v4206 = vunpack.c.l.b16 %v1100
    %v4207 = vunpack.c.h.b16 %v1100
    %v4208 = vunpack.c.l.b16 %v1101
    %v4209 = vunpack.c.h.b16 %v1101
    %v4210 = vunpack.c.l.b16 %v1102
    %v4211 = vunpack.c.h.b16 %v1102
    %v4212 = vunpack.c.l.b16 %v1103
    %v4213 = vunpack.c.h.b16 %v1103
    %v4214 = vunpack.c.l.b16 %v1104
    %v4215 = vunpack.c.h.b16 %v1104
    %v4216 = vunpack.c.l.b16 %v1105
    %v4217 = vunpack.c.h.b16 %v1105
    %v4218 = vunpack.c.l.b16 %v1106
    %v4219 = vunpack.c.h.b16 %v1106
    %v4220 = vunpack.c.l.b16 %v1107
    %v4221 = vunpack.c.h.b16 %v1107
    %v4222 = vunpack.c.l.b16 %v1108
    %v4223 = vunpack.c.h.b16 %v1108
    %v4224 = vunpack.c.l.b16 %v1109
    %v4225 = vunpack.c.h.b16 %v1109
    %v4226 = vunpack.c.l.b16 %v1110
    %v4227 = vunpack.c.h.b16 %v1110
    %v4228 = vunpack.c.l.b16 %v1111
    %v4229 = vunpack.c.h.b16 %v1111
    %v4230 = vunpack.c.l.b16 %v1112
    %v4231 = vunpack.c.h.b16 %v1112
    %v4232 = vunpack.c.l.b16 %v1113
    %v4233 = vunpack.c.h.b16 %v1113
    %v4234 = vunpack.c.l.b16 %v1114
    %v4235 = vunpack.c.h.b16 %v1114
    %v4236 = vunpack.c.l.b16 %v1115
    %v4237 = vunpack.c.h.b16 %v1115
    %v4238 = vunpack.c.l.b16 %v1116
    %v4239 = vunpack.c.h.b16 %v1116
    %v4240 = vunpack.c.l.b16 %v1117
    %v4241 = vunpack.c.h.b16 %v1117
    %v4242 = vunpack.c.l.b16 %v1118
    %v4243 = vunpack.c.h.b16 %v1118
    %v4244 = vunpack.c.l.b16 %v1119
    %v4245 = vunpack.c.h.b16 %v1119
    %v4246 = vunpack.c.l.b16 %v1120
    %v4247 = vunpack.c.h.b16 %v1120
    %v4248 = vunpack.c.l.b16 %v1121
    %v4249 = vunpack.c.h.b16 %v1121
    %v4250 = vunpack.c.l.b16 %v1122
    %v4251 = vunpack.c.h.b16 %v1122
    %v4252 = vunpack.c.l.b16 %v1123
    %v4253 = vunpack.c.h.b16 %v1123
    %v4254 = vunpack.c.l.b16 %v1124
    %v4255 = vunpack.c.h.b16 %v1124
    %v4256 = vunpack.c.l.b16 %v1125
    %v4257 = vunpack.c.h.b16 %v1125
    %v4258 = vunpack.c.l.b16 %v1126
    %v4259 = vunpack.c.h.b16 %v1126
    %v4260 = vunpack.c.l.b16 %v1127
    %v4261 = vunpack.c.h.b16 %v1127
    %v4262 = vunpack.c.l.b16 %v1128
    %v4263 = vunpack.c.h.b16 %v1128
    %v4264 = vunpack.c.l.b16 %v1129
    %v4265 = vunpack.c.h.b16 %v1129
    %v4266 = vunpack.c.l.b16 %v1130
    %v4267 = vunpack.c.h.b16 %v1130
    %v4268 = vunpack.c.l.b16 %v1131
    %v4269 = vunpack.c.h.b16 %v1131
    %v4270 = vunpack.c.l.b16 %v1132
    %v4271 = vunpack.c.h.b16 %v1132
    %v4272 = vunpack.c.l.b16 %v1133
    %v4273 = vunpack.c.h.b16 %v1133
    %v4274 = vunpack.c.l.b16 %v1134
    %v4275 = vunpack.c.h.b16 %v1134
    %v4276 = vunpack.c.l.b16 %v1135
    %v4277 = vunpack.c.h.b16 %v1135
    %v4278 = vunpack.c.l.b16 %v1136
    %v4279 = vunpack.c.h.b16 %v1136
    %v4280 = vunpack.c.l.b16 %v1137
    %v4281 = vunpack.c.h.b16 %v1137
    %v4282 = vunpack.c.l.b16 %v1138
    %v4283 = vunpack.c.h.b16 %v1138
    %v4284 = vunpack.c.l.b16 %v1139
    %v4285 = vunpack.c.h.b16 %v1139
    %v4286 = vunpack.c.l.b16 %v1140
    %v4287 = vunpack.c.h.b16 %v1140
    %v4288 = vunpack.c.l.b16 %v1141
    %v4289 = vunpack.c.h.b16 %v1141
    %v4290 = vunpack.c.l.b16 %v1142
    %v4291 = vunpack.c.h.b16 %v1142
    %v4292 = vunpack.c.l.b16 %v1143
    %v4293 = vunpack.c.h.b16 %v1143
    %v4294 = vunpack.c.l.b16 %v1144
    %v4295 = vunpack.c.h.b16 %v1144
    %v4296 = vunpack.c.l.b16 %v1145
    %v4297 = vunpack.c.h.b16 %v1145
    %v4298 = vunpack.c.l.b16 %v1146
    %v4299 = vunpack.c.h.b16 %v1146
    %v4300 = vunpack.c.l.b16 %v1147
    %v4301 = vunpack.c.h.b16 %v1147
    %v4302 = vunpack.c.l.b16 %v1148
    %v4303 = vunpack.c.h.b16 %v1148
    %v4304 = vunpack.c.l.b16 %v1149
    %v4305 = vunpack.c.h.b16 %v1149
    %v4306 = vunpack.c.l.b16 %v1150
    %v4307 = vunpack.c.h.b16 %v1150
    %v4308 = vunpack.c.l.b16 %v1151
    %v4309 = vunpack.c.h.b16 %v1151
    %v4310 = vunpack.c.l.b16 %v1152
    %v4311 = vunpack.c.h.b16 %v1152
    %v4312 = vunpack.c.l.b16 %v1153
    %v4313 = vunpack.c.h.b16 %v1153
    %v4314 = vunpack.c.l.b16 %v1154
    %v4315 = vunpack.c.h.b16 %v1154
    %v4316 = vunpack.c.l.b16 %v1155
    %v4317 = vunpack.c.h.b16 %v1155
    %v4318 = vunpack.c.l.b16 %v1156
    %v4319 = vunpack.c.h.b16 %v1156
    %v4320 = vunpack.c.l.b16 %v1157
    %v4321 = vunpack.c.h.b16 %v1157
    %v4322 = vunpack.c.l.b16 %v1158
    %v4323 = vunpack.c.h.b16 %v1158
    %v4324 = vunpack.c.l.b16 %v1159
    %v4325 = vunpack.c.h.b16 %v1159
    %v4326 = vunpack.c.l.b16 %v1160
    %v4327 = vunpack.c.h.b16 %v1160
    %v4328 = vunpack.c.l.b16 %v1161
    %v4329 = vunpack.c.h.b16 %v1161
    %v4330 = vunpack.c.l.b16 %v1162
    %v4331 = vunpack.c.h.b16 %v1162
    %v4332 = vunpack.c.l.b16 %v1163
    %v4333 = vunpack.c.h.b16 %v1163
    %v4334 = vunpack.c.l.b16 %v1164
    %v4335 = vunpack.c.h.b16 %v1164
    %v4336 = vunpack.c.l.b16 %v1165
    %v4337 = vunpack.c.h.b16 %v1165
    %v4338 = vunpack.c.l.b16 %v1166
    %v4339 = vunpack.c.h.b16 %v1166
    %v4340 = vunpack.c.l.b16 %v1167
    %v4341 = vunpack.c.h.b16 %v1167
    %v4342 = vunpack.c.l.b16 %v1168
    %v4343 = vunpack.c.h.b16 %v1168
    %v4344 = vunpack.c.l.b16 %v1169
    %v4345 = vunpack.c.h.b16 %v1169
    %v4346 = vunpack.c.l.b16 %v1170
    %v4347 = vunpack.c.h.b16 %v1170
    %v4348 = vunpack.c.l.b16 %v1171
    %v4349 = vunpack.c.h.b16 %v1171
    %v4350 = vunpack.c.l.b16 %v1172
    %v4351 = vunpack.c.h.b16 %v1172
    %v4352 = vunpack.c.l.b16 %v1173
    %v4353 = vunpack.c.h.b16 %v1173
    %v4354 = vunpack.c.l.b16 %v1174
    %v4355 = vunpack.c.h.b16 %v1174
    %v4356 = vunpack.c.l.b16 %v1175
    %v4357 = vunpack.c.h.b16 %v1175
    %v4358 = vunpack.c.l.b16 %v1176
    %v4359 = vunpack.c.h.b16 %v1176
    %v4360 = vunpack.c.l.b16 %v1177
    %v4361 = vunpack.c.h.b16 %v1177
    %v4362 = vunpack.c.l.b16 %v1178
    %v4363 = vunpack.c.h.b16 %v1178
    %v4364 = vunpack.c.l.b16 %v1179
    %v4365 = vunpack.c.h.b16 %v1179
    %v4366 = vunpack.c.l.b16 %v1180
    %v4367 = vunpack.c.h.b16 %v1180
    %v4368 = vunpack.c.l.b16 %v1181
    %v4369 = vunpack.c.h.b16 %v1181
    %v4370 = vunpack.c.l.b16 %v1182
    %v4371 = vunpack.c.h.b16 %v1182
    %v4372 = vunpack.c.l.b16 %v1183
    %v4373 = vunpack.c.h.b16 %v1183
    %v4374 = vunpack.c.l.b16 %v1184
    %v4375 = vunpack.c.h.b16 %v1184
    %v4376 = vunpack.c.l.b16 %v1185
    %v4377 = vunpack.c.h.b16 %v1185
    %v4378 = vunpack.c.l.b16 %v1186
    %v4379 = vunpack.c.h.b16 %v1186
    %v4380 = vunpack.c.l.b16 %v1187
    %v4381 = vunpack.c.h.b16 %v1187
    %v4382 = vpack.c.b16 %v2342, %v2334
    %v4383 = vpack.c.b16 %v2343, %v2335
    %v4384 = vpack.c.b16 %v2344, %v2336
    %v4385 = vpack.c.b16 %v2345, %v2337
    %v4386 = vpack.c.b16 %v2346, %v2338
    %v4387 = vpack.c.b16 %v2347, %v2339
    %v4388 = vpack.c.b16 %v2348, %v2340
    %v4389 = vpack.c.b16 %v2349, %v2341
    %v4390 = vpack.c.b16 %v2358, %v2350
    %v4391 = vpack.c.b16 %v2359, %v2351
    %v4392 = vpack.c.b16 %v2360, %v2352
    %v4393 = vpack.c.b16 %v2361, %v2353
    %v4394 = vpack.c.b16 %v2362, %v2354
    %v4395 = vpack.c.b16 %v2363, %v2355
    %v4396 = vpack.c.b16 %v2364, %v2356
    %v4397 = vpack.c.b16 %v2365, %v2357
    %v4398 = vpack.c.b16 %v2374, %v2366
    %v4399 = vpack.c.b16 %v2375, %v2367
    %v4400 = vpack.c.b16 %v2376, %v2368
    %v4401 = vpack.c.b16 %v2377, %v2369
    %v4402 = vpack.c.b16 %v2378, %v2370
    %v4403 = vpack.c.b16 %v2379, %v2371
    %v4404 = vpack.c.b16 %v2380, %v2372
    %v4405 = vpack.c.b16 %v2381, %v2373
    %v4406 = vpack.c.b16 %v2390, %v2382
    %v4407 = vpack.c.b16 %v2391, %v2383
    %v4408 = vpack.c.b16 %v2392, %v2384
    %v4409 = vpack.c.b16 %v2393, %v2385
    %v4410 = vpack.c.b16 %v2394, %v2386
    %v4411 = vpack.c.b16 %v2395, %v2387
    %v4412 = vpack.c.b16 %v2396, %v2388
    %v4413 = vpack.c.b16 %v2397, %v2389
    %v4414 = vpack.c.b16 %v2406, %v2398
    %v4415 = vpack.c.b16 %v2407, %v2399
    %v4416 = vpack.c.b16 %v2408, %v2400
    %v4417 = vpack.c.b16 %v2409, %v2401
    %v4418 = vpack.c.b16 %v2410, %v2402
    %v4419 = vpack.c.b16 %v2411, %v2403
    %v4420 = vpack.c.b16 %v2412, %v2404
    %v4421 = vpack.c.b16 %v2413, %v2405
    %v4422 = vpack.c.b16 %v2422, %v2414
    %v4423 = vpack.c.b16 %v2423, %v2415
    %v4424 = vpack.c.b16 %v2424, %v2416
    %v4425 = vpack.c.b16 %v2425, %v2417
    %v4426 = vpack.c.b16 %v2426, %v2418
    %v4427 = vpack.c.b16 %v2427, %v2419
    %v4428 = vpack.c.b16 %v2428, %v2420
    %v4429 = vpack.c.b16 %v2429, %v2421
    %v4430 = vpack.c.b16 %v2438, %v2430
    %v4431 = vpack.c.b16 %v2439, %v2431
    %v4432 = vpack.c.b16 %v2440, %v2432
    %v4433 = vpack.c.b16 %v2441, %v2433
    %v4434 = vpack.c.b16 %v2442, %v2434
    %v4435 = vpack.c.b16 %v2443, %v2435
    %v4436 = vpack.c.b16 %v2444, %v2436
    %v4437 = vpack.c.b16 %v2445, %v2437
    %v4438 = vpack.c.b16 %v2454, %v2446
    %v4439 = vpack.c.b16 %v2455, %v2447
    %v4440 = vpack.c.b16 %v2456, %v2448
    %v4441 = vpack.c.b16 %v2457, %v2449
    %v4442 = vpack.c.b16 %v2458, %v2450
    %v4443 = vpack.c.b16 %v2459, %v2451
    %v4444 = vpack.c.b16 %v2460, %v2452
    %v4445 = vpack.c.b16 %v2461, %v2453
    %v4446 = vpack.c.b16 %v2470, %v2462
    %v4447 = vpack.c.b16 %v2471, %v2463
    %v4448 = vpack.c.b16 %v2472, %v2464
    %v4449 = vpack.c.b16 %v2473, %v2465
    %v4450 = vpack.c.b16 %v2474, %v2466
    %v4451 = vpack.c.b16 %v2475, %v2467
    %v4452 = vpack.c.b16 %v2476, %v2468
    %v4453 = vpack.c.b16 %v2477, %v2469
    %v4454 = vpack.c.b16 %v2486, %v2478
    %v4455 = vpack.c.b16 %v2487, %v2479
    %v4456 = vpack.c.b16 %v2488, %v2480
    %v4457 = vpack.c.b16 %v2489, %v2481
    %v4458 = vpack.c.b16 %v2490, %v2482
    %v4459 = vpack.c.b16 %v2491, %v2483
    %v4460 = vpack.c.b16 %v2492, %v2484
    %v4461 = vpack.c.b16 %v2493, %v2485
    %v4462 = vpack.c.b16 %v2502, %v2494
    %v4463 = vpack.c.b16 %v2503, %v2495
    %v4464 = vpack.c.b16 %v2504, %v2496
    %v4465 = vpack.c.b16 %v2505, %v2497
    %v4466 = vpack.c.b16 %v2506, %v2498
    %v4467 = vpack.c.b16 %v2507, %v2499
    %v4468 = vpack.c.b16 %v2508, %v2500
    %v4469 = vpack.c.b16 %v2509, %v2501
    %v4470 = vpack.c.b16 %v2518, %v2510
    %v4471 = vpack.c.b16 %v2519, %v2511
    %v4472 = vpack.c.b16 %v2520, %v2512
    %v4473 = vpack.c.b16 %v2521, %v2513
    %v4474 = vpack.c.b16 %v2522, %v2514
    %v4475 = vpack.c.b16 %v2523, %v2515
    %v4476 = vpack.c.b16 %v2524, %v2516
    %v4477 = vpack.c.b16 %v2525, %v2517
    %v4478 = vpack.c.b16 %v2534, %v2526
    %v4479 = vpack.c.b16 %v2535, %v2527
    %v4480 = vpack.c.b16 %v2536, %v2528
    %v4481 = vpack.c.b16 %v2537, %v2529
    %v4482 = vpack.c.b16 %v2538, %v2530
    %v4483 = vpack.c.b16 %v2539, %v2531
    %v4484 = vpack.c.b16 %v2540, %v2532
    %v4485 = vpack.c.b16 %v2541, %v2533
    %v4486 = vpack.c.b16 %v2550, %v2542
    %v4487 = vpack.c.b16 %v2551, %v2543
    %v4488 = vpack.c.b16 %v2552, %v2544
    %v4489 = vpack.c.b16 %v2553, %v2545
    %v4490 = vpack.c.b16 %v2554, %v2546
    %v4491 = vpack.c.b16 %v2555, %v2547
    %v4492 = vpack.c.b16 %v2556, %v2548
    %v4493 = vpack.c.b16 %v2557, %v2549
    %v4494 = vpack.c.b16 %v2566, %v2558
    %v4495 = vpack.c.b16 %v2567, %v2559
    %v4496 = vpack.c.b16 %v2568, %v2560
    %v4497 = vpack.c.b16 %v2569, %v2561
    %v4498 = vpack.c.b16 %v2570, %v2562
    %v4499 = vpack.c.b16 %v2571, %v2563
    %v4500 = vpack.c.b16 %v2572, %v2564
    %v4501 = vpack.c.b16 %v2573, %v2565
    %v4502 = vpack.c.b16 %v2582, %v2574
    %v4503 = vpack.c.b16 %v2583, %v2575
    %v4504 = vpack.c.b16 %v2584, %v2576
    %v4505 = vpack.c.b16 %v2585, %v2577
    %v4506 = vpack.c.b16 %v2586, %v2578
    %v4507 = vpack.c.b16 %v2587, %v2579
    %v4508 = vpack.c.b16 %v2588, %v2580
    %v4509 = vpack.c.b16 %v2589, %v2581
    %v4510 = vpack.c.b16 %v2598, %v2590
    %v4511 = vpack.c.b16 %v2599, %v2591
    %v4512 = vpack.c.b16 %v2600, %v2592
    %v4513 = vpack.c.b16 %v2601, %v2593
    %v4514 = vpack.c.b16 %v2602, %v2594
    %v4515 = vpack.c.b16 %v2603, %v2595
    %v4516 = vpack.c.b16 %v2604, %v2596
    %v4517 = vpack.c.b16 %v2605, %v2597
    %v4518 = vpack.c.b16 %v2614, %v2606
    %v4519 = vpack.c.b16 %v2615, %v2607
    %v4520 = vpack.c.b16 %v2616, %v2608
    %v4521 = vpack.c.b16 %v2617, %v2609
    %v4522 = vpack.c.b16 %v2618, %v2610
    %v4523 = vpack.c.b16 %v2619, %v2611
    %v4524 = vpack.c.b16 %v2620, %v2612
    %v4525 = vpack.c.b16 %v2621, %v2613
    %v4526 = vpack.c.b16 %v2630, %v2622
    %v4527 = vpack.c.b16 %v2631, %v2623
    %v4528 = vpack.c.b16 %v2632, %v2624
    %v4529 = vpack.c.b16 %v2633, %v2625
    %v4530 = vpack.c.b16 %v2634, %v2626
    %v4531 = vpack.c.b16 %v2635, %v2627
    %v4532 = vpack.c.b16 %v2636, %v2628
    %v4533 = vpack.c.b16 %v2637, %v2629
    %v4534 = vpack.c.b16 %v2646, %v2638
    %v4535 = vpack.c.b16 %v2647, %v2639
    %v4536 = vpack.c.b16 %v2648, %v2640
    %v4537 = vpack.c.b16 %v2649, %v2641
    %v4538 = vpack.c.b16 %v2650, %v2642
    %v4539 = vpack.c.b16 %v2651, %v2643
    %v4540 = vpack.c.b16 %v2652, %v2644
    %v4541 = vpack.c.b16 %v2653, %v2645
    %v4542 = vpack.c.b16 %v2662, %v2654
    %v4543 = vpack.c.b16 %v2663, %v2655
    %v4544 = vpack.c.b16 %v2664, %v2656
    %v4545 = vpack.c.b16 %v2665, %v2657
    %v4546 = vpack.c.b16 %v2666, %v2658
    %v4547 = vpack.c.b16 %v2667, %v2659
    %v4548 = vpack.c.b16 %v2668, %v2660
    %v4549 = vpack.c.b16 %v2669, %v2661
    %v4550 = vpack.c.b16 %v2678, %v2670
    %v4551 = vpack.c.b16 %v2679, %v2671
    %v4552 = vpack.c.b16 %v2680, %v2672
    %v4553 = vpack.c.b16 %v2681, %v2673
    %v4554 = vpack.c.b16 %v2682, %v2674
    %v4555 = vpack.c.b16 %v2683, %v2675
    %v4556 = vpack.c.b16 %v2684, %v2676
    %v4557 = vpack.c.b16 %v2685, %v2677
    %v4558 = vpack.c.b16 %v2694, %v2686
    %v4559 = vpack.c.b16 %v2695, %v2687
    %v4560 = vpack.c.b16 %v2696, %v2688
    %v4561 = vpack.c.b16 %v2697, %v2689
    %v4562 = vpack.c.b16 %v2698, %v2690
    %v4563 = vpack.c.b16 %v2699, %v2691
    %v4564 = vpack.c.b16 %v2700, %v2692
    %v4565 = vpack.c.b16 %v2701, %v2693
    %v4566 = vpack.c.b16 %v2710, %v2702
    %v4567 = vpack.c.b16 %v2711, %v2703
    %v4568 = vpack.c.b16 %v2712, %v2704
    %v4569 = vpack.c.b16 %v2713, %v2705
    %v4570 = vpack.c.b16 %v2714, %v2706
    %v4571 = vpack.c.b16 %v2715, %v2707
    %v4572 = vpack.c.b16 %v2716, %v2708
    %v4573 = vpack.c.b16 %v2717, %v2709
    %v4574 = vpack.c.b16 %v2726, %v2718
    %v4575 = vpack.c.b16 %v2727, %v2719
    %v4576 = vpack.c.b16 %v2728, %v2720
    %v4577 = vpack.c.b16 %v2729, %v2721
    %v4578 = vpack.c.b16 %v2730, %v2722
    %v4579 = vpack.c.b16 %v2731, %v2723
    %v4580 = vpack.c.b16 %v2732, %v2724
    %v4581 = vpack.c.b16 %v2733, %v2725
    %v4582 = vpack.c.b16 %v2742, %v2734
    %v4583 = vpack.c.b16 %v2743, %v2735
    %v4584 = vpack.c.b16 %v2744, %v2736
    %v4585 = vpack.c.b16 %v2745, %v2737
    %v4586 = vpack.c.b16 %v2746, %v2738
    %v4587 = vpack.c.b16 %v2747, %v2739
    %v4588 = vpack.c.b16 %v2748, %v2740
    %v4589 = vpack.c.b16 %v2749, %v2741
    %v4590 = vpack.c.b16 %v2758, %v2750
    %v4591 = vpack.c.b16 %v2759, %v2751
    %v4592 = vpack.c.b16 %v2760, %v2752
    %v4593 = vpack.c.b16 %v2761, %v2753
    %v4594 = vpack.c.b16 %v2762, %v2754
    %v4595 = vpack.c.b16 %v2763, %v2755
    %v4596 = vpack.c.b16 %v2764, %v2756
    %v4597 = vpack.c.b16 %v2765, %v2757
    %v4598 = vpack.c.b16 %v2774, %v2766
    %v4599 = vpack.c.b16 %v2775, %v2767
    %v4600 = vpack.c.b16 %v2776, %v2768
    %v4601 = vpack.c.b16 %v2777, %v2769
    %v4602 = vpack.c.b16 %v2778, %v2770
    %v4603 = vpack.c.b16 %v2779, %v2771
    %v4604 = vpack.c.b16 %v2780, %v2772
    %v4605 = vpack.c.b16 %v2781, %v2773
    %v4606 = vpack.c.b16 %v2790, %v2782
    %v4607 = vpack.c.b16 %v2791, %v2783
    %v4608 = vpack.c.b16 %v2792, %v2784
    %v4609 = vpack.c.b16 %v2793, %v2785
    %v4610 = vpack.c.b16 %v2794, %v2786
    %v4611 = vpack.c.b16 %v2795, %v2787
    %v4612 = vpack.c.b16 %v2796, %v2788
    %v4613 = vpack.c.b16 %v2797, %v2789
    %v4614 = vpack.c.b16 %v2806, %v2798
    %v4615 = vpack.c.b16 %v2807, %v2799
    %v4616 = vpack.c.b16 %v2808, %v2800
    %v4617 = vpack.c.b16 %v2809, %v2801
    %v4618 = vpack.c.b16 %v2810, %v2802
    %v4619 = vpack.c.b16 %v2811, %v2803
    %v4620 = vpack.c.b16 %v2812, %v2804
    %v4621 = vpack.c.b16 %v2813, %v2805
    %v4622 = vpack.c.b16 %v2822, %v2814
    %v4623 = vpack.c.b16 %v2823, %v2815
    %v4624 = vpack.c.b16 %v2824, %v2816
    %v4625 = vpack.c.b16 %v2825, %v2817
    %v4626 = vpack.c.b16 %v2826, %v2818
    %v4627 = vpack.c.b16 %v2827, %v2819
    %v4628 = vpack.c.b16 %v2828, %v2820
    %v4629 = vpack.c.b16 %v2829, %v2821
    %v4630 = vpack.c.b16 %v2838, %v2830
    %v4631 = vpack.c.b16 %v2839, %v2831
    %v4632 = vpack.c.b16 %v2840, %v2832
    %v4633 = vpack.c.b16 %v2841, %v2833
    %v4634 = vpack.c.b16 %v2842, %v2834
    %v4635 = vpack.c.b16 %v2843, %v2835
    %v4636 = vpack.c.b16 %v2844, %v2836
    %v4637 = vpack.c.b16 %v2845, %v2837
    %v4638 = vpack.c.b16 %v2854, %v2846
    %v4639 = vpack.c.b16 %v2855, %v2847
    %v4640 = vpack.c.b16 %v2856, %v2848
    %v4641 = vpack.c.b16 %v2857, %v2849
    %v4642 = vpack.c.b16 %v2858, %v2850
    %v4643 = vpack.c.b16 %v2859, %v2851
    %v4644 = vpack.c.b16 %v2860, %v2852
    %v4645 = vpack.c.b16 %v2861, %v2853
    %v4646 = vpack.c.b16 %v2870, %v2862
    %v4647 = vpack.c.b16 %v2871, %v2863
    %v4648 = vpack.c.b16 %v2872, %v2864
    %v4649 = vpack.c.b16 %v2873, %v2865
    %v4650 = vpack.c.b16 %v2874, %v2866
    %v4651 = vpack.c.b16 %v2875, %v2867
    %v4652 = vpack.c.b16 %v2876, %v2868
    %v4653 = vpack.c.b16 %v2877, %v2869
    %v4654 = vpack.c.b16 %v2886, %v2878
    %v4655 = vpack.c.b16 %v2887, %v2879
    %v4656 = vpack.c.b16 %v2888, %v2880
    %v4657 = vpack.c.b16 %v2889, %v2881
    %v4658 = vpack.c.b16 %v2890, %v2882
    %v4659 = vpack.c.b16 %v2891, %v2883
    %v4660 = vpack.c.b16 %v2892, %v2884
    %v4661 = vpack.c.b16 %v2893, %v2885
    %v4662 = vpack.c.b16 %v2902, %v2894
    %v4663 = vpack.c.b16 %v2903, %v2895
    %v4664 = vpack.c.b16 %v2904, %v2896
    %v4665 = vpack.c.b16 %v2905, %v2897
    %v4666 = vpack.c.b16 %v2906, %v2898
    %v4667 = vpack.c.b16 %v2907, %v2899
    %v4668 = vpack.c.b16 %v2908, %v2900
    %v4669 = vpack.c.b16 %v2909, %v2901
    %v4670 = vpack.c.b16 %v2918, %v2910
    %v4671 = vpack.c.b16 %v2919, %v2911
    %v4672 = vpack.c.b16 %v2920, %v2912
    %v4673 = vpack.c.b16 %v2921, %v2913
    %v4674 = vpack.c.b16 %v2922, %v2914
    %v4675 = vpack.c.b16 %v2923, %v2915
    %v4676 = vpack.c.b16 %v2924, %v2916
    %v4677 = vpack.c.b16 %v2925, %v2917
    %v4678 = vpack.c.b16 %v2934, %v2926
    %v4679 = vpack.c.b16 %v2935, %v2927
    %v4680 = vpack.c.b16 %v2936, %v2928
    %v4681 = vpack.c.b16 %v2937, %v2929
    %v4682 = vpack.c.b16 %v2938, %v2930
    %v4683 = vpack.c.b16 %v2939, %v2931
    %v4684 = vpack.c.b16 %v2940, %v2932
    %v4685 = vpack.c.b16 %v2941, %v2933
    %v4686 = vpack.c.b16 %v2950, %v2942
    %v4687 = vpack.c.b16 %v2951, %v2943
    %v4688 = vpack.c.b16 %v2952, %v2944
    %v4689 = vpack.c.b16 %v2953, %v2945
    %v4690 = vpack.c.b16 %v2954, %v2946
    %v4691 = vpack.c.b16 %v2955, %v2947
    %v4692 = vpack.c.b16 %v2956, %v2948
    %v4693 = vpack.c.b16 %v2957, %v2949
    %v4694 = vpack.c.b16 %v2966, %v2958
    %v4695 = vpack.c.b16 %v2967, %v2959
    %v4696 = vpack.c.b16 %v2968, %v2960
    %v4697 = vpack.c.b16 %v2969, %v2961
    %v4698 = vpack.c.b16 %v2970, %v2962
    %v4699 = vpack.c.b16 %v2971, %v2963
    %v4700 = vpack.c.b16 %v2972, %v2964
    %v4701 = vpack.c.b16 %v2973, %v2965
    %v4702 = vpack.c.b16 %v2982, %v2974
    %v4703 = vpack.c.b16 %v2983, %v2975
    %v4704 = vpack.c.b16 %v2984, %v2976
    %v4705 = vpack.c.b16 %v2985, %v2977
    %v4706 = vpack.c.b16 %v2986, %v2978
    %v4707 = vpack.c.b16 %v2987, %v2979
    %v4708 = vpack.c.b16 %v2988, %v2980
    %v4709 = vpack.c.b16 %v2989, %v2981
    %v4710 = vpack.c.b16 %v2998, %v2990
    %v4711 = vpack.c.b16 %v2999, %v2991
    %v4712 = vpack.c.b16 %v3000, %v2992
    %v4713 = vpack.c.b16 %v3001, %v2993
    %v4714 = vpack.c.b16 %v3002, %v2994
    %v4715 = vpack.c.b16 %v3003, %v2995
    %v4716 = vpack.c.b16 %v3004, %v2996
    %v4717 = vpack.c.b16 %v3005, %v2997
    %v4718 = vpack.c.b16 %v3014, %v3006
    %v4719 = vpack.c.b16 %v3015, %v3007
    %v4720 = vpack.c.b16 %v3016, %v3008
    %v4721 = vpack.c.b16 %v3017, %v3009
    %v4722 = vpack.c.b16 %v3018, %v3010
    %v4723 = vpack.c.b16 %v3019, %v3011
    %v4724 = vpack.c.b16 %v3020, %v3012
    %v4725 = vpack.c.b16 %v3021, %v3013
    %v4726 = vpack.c.b16 %v3030, %v3022
    %v4727 = vpack.c.b16 %v3031, %v3023
    %v4728 = vpack.c.b16 %v3032, %v3024
    %v4729 = vpack.c.b16 %v3033, %v3025
    %v4730 = vpack.c.b16 %v3034, %v3026
    %v4731 = vpack.c.b16 %v3035, %v3027
    %v4732 = vpack.c.b16 %v3036, %v3028
    %v4733 = vpack.c.b16 %v3037, %v3029
    %v4734 = vpack.c.b16 %v3046, %v3038
    %v4735 = vpack.c.b16 %v3047, %v3039
    %v4736 = vpack.c.b16 %v3048, %v3040
    %v4737 = vpack.c.b16 %v3049, %v3041
    %v4738 = vpack.c.b16 %v3050, %v3042
    %v4739 = vpack.c.b16 %v3051, %v3043
    %v4740 = vpack.c.b16 %v3052, %v3044
    %v4741 = vpack.c.b16 %v3053, %v3045
    %v4742 = vpack.c.b16 %v3062, %v3054
    %v4743 = vpack.c.b16 %v3063, %v3055
    %v4744 = vpack.c.b16 %v3064, %v3056
    %v4745 = vpack.c.b16 %v3065, %v3057
    %v4746 = vpack.c.b16 %v3066, %v3058
    %v4747 = vpack.c.b16 %v3067, %v3059
    %v4748 = vpack.c.b16 %v3068, %v3060
    %v4749 = vpack.c.b16 %v3069, %v3061
    %v4750 = vpack.c.b16 %v3078, %v3070
    %v4751 = vpack.c.b16 %v3079, %v3071
    %v4752 = vpack.c.b16 %v3080, %v3072
    %v4753 = vpack.c.b16 %v3081, %v3073
    %v4754 = vpack.c.b16 %v3082, %v3074
    %v4755 = vpack.c.b16 %v3083, %v3075
    %v4756 = vpack.c.b16 %v3084, %v3076
    %v4757 = vpack.c.b16 %v3085, %v3077
    %v4758 = vpack.c.b16 %v3094, %v3086
    %v4759 = vpack.c.b16 %v3095, %v3087
    %v4760 = vpack.c.b16 %v3096, %v3088
    %v4761 = vpack.c.b16 %v3097, %v3089
    %v4762 = vpack.c.b16 %v3098, %v3090
    %v4763 = vpack.c.b16 %v3099, %v3091
    %v4764 = vpack.c.b16 %v3100, %v3092
    %v4765 = vpack.c.b16 %v3101, %v3093
    %v4766 = vpack.c.b16 %v3110, %v3102
    %v4767 = vpack.c.b16 %v3111, %v3103
    %v4768 = vpack.c.b16 %v3112, %v3104
    %v4769 = vpack.c.b16 %v3113, %v3105
    %v4770 = vpack.c.b16 %v3114, %v3106
    %v4771 = vpack.c.b16 %v3115, %v3107
    %v4772 = vpack.c.b16 %v3116, %v3108
    %v4773 = vpack.c.b16 %v3117, %v3109
    %v4774 = vpack.c.b16 %v3126, %v3118
    %v4775 = vpack.c.b16 %v3127, %v3119
    %v4776 = vpack.c.b16 %v3128, %v3120
    %v4777 = vpack.c.b16 %v3129, %v3121
    %v4778 = vpack.c.b16 %v3130, %v3122
    %v4779 = vpack.c.b16 %v3131, %v3123
    %v4780 = vpack.c.b16 %v3132, %v3124
    %v4781 = vpack.c.b16 %v3133, %v3125
    %v4782 = vpack.c.b16 %v3142, %v3134
    %v4783 = vpack.c.b16 %v3143, %v3135
    %v4784 = vpack.c.b16 %v3144, %v3136
    %v4785 = vpack.c.b16 %v3145, %v3137
    %v4786 = vpack.c.b16 %v3146, %v3138
    %v4787 = vpack.c.b16 %v3147, %v3139
    %v4788 = vpack.c.b16 %v3148, %v3140
    %v4789 = vpack.c.b16 %v3149, %v3141
    %v4790 = vpack.c.b16 %v3158, %v3150
    %v4791 = vpack.c.b16 %v3159, %v3151
    %v4792 = vpack.c.b16 %v3160, %v3152
    %v4793 = vpack.c.b16 %v3161, %v3153
    %v4794 = vpack.c.b16 %v3162, %v3154
    %v4795 = vpack.c.b16 %v3163, %v3155
    %v4796 = vpack.c.b16 %v3164, %v3156
    %v4797 = vpack.c.b16 %v3165, %v3157
    %v4798 = vpack.c.b16 %v3174, %v3166
    %v4799 = vpack.c.b16 %v3175, %v3167
    %v4800 = vpack.c.b16 %v3176, %v3168
    %v4801 = vpack.c.b16 %v3177, %v3169
    %v4802 = vpack.c.b16 %v3178, %v3170
    %v4803 = vpack.c.b16 %v3179, %v3171
    %v4804 = vpack.c.b16 %v3180, %v3172
    %v4805 = vpack.c.b16 %v3181, %v3173
    %v4806 = vpack.c.b16 %v3190, %v3182
    %v4807 = vpack.c.b16 %v3191, %v3183
    %v4808 = vpack.c.b16 %v3192, %v3184
    %v4809 = vpack.c.b16 %v3193, %v3185
    %v4810 = vpack.c.b16 %v3194, %v3186
    %v4811 = vpack.c.b16 %v3195, %v3187
    %v4812 = vpack.c.b16 %v3196, %v3188
    %v4813 = vpack.c.b16 %v3197, %v3189
    %v4814 = vpack.c.b16 %v3206, %v3198
    %v4815 = vpack.c.b16 %v3207, %v3199
    %v4816 = vpack.c.b16 %v3208, %v3200
    %v4817 = vpack.c.b16 %v3209, %v3201
    %v4818 = vpack.c.b16 %v3210, %v3202
    %v4819 = vpack.c.b16 %v3211, %v3203
    %v4820 = vpack.c.b16 %v3212, %v3204
    %v4821 = vpack.c.b16 %v3213, %v3205
    %v4822 = vpack.c.b16 %v3222, %v3214
    %v4823 = vpack.c.b16 %v3223, %v3215
    %v4824 = vpack.c.b16 %v3224, %v3216
    %v4825 = vpack.c.b16 %v3225, %v3217
    %v4826 = vpack.c.b16 %v3226, %v3218
    %v4827 = vpack.c.b16 %v3227, %v3219
    %v4828 = vpack.c.b16 %v3228, %v3220
    %v4829 = vpack.c.b16 %v3229, %v3221
    %v4830 = vpack.c.b16 %v3238, %v3230
    %v4831 = vpack.c.b16 %v3239, %v3231
    %v4832 = vpack.c.b16 %v3240, %v3232
    %v4833 = vpack.c.b16 %v3241, %v3233
    %v4834 = vpack.c.b16 %v3242, %v3234
    %v4835 = vpack.c.b16 %v3243, %v3235
    %v4836 = vpack.c.b16 %v3244, %v3236
    %v4837 = vpack.c.b16 %v3245, %v3237
    %v4838 = vpack.c.b16 %v3254, %v3246
    %v4839 = vpack.c.b16 %v3255, %v3247
    %v4840 = vpack.c.b16 %v3256, %v3248
    %v4841 = vpack.c.b16 %v3257, %v3249
    %v4842 = vpack.c.b16 %v3258, %v3250
    %v4843 = vpack.c.b16 %v3259, %v3251
    %v4844 = vpack.c.b16 %v3260, %v3252
    %v4845 = vpack.c.b16 %v3261, %v3253
    %v4846 = vpack.c.b16 %v3270, %v3262
    %v4847 = vpack.c.b16 %v3271, %v3263
    %v4848 = vpack.c.b16 %v3272, %v3264
    %v4849 = vpack.c.b16 %v3273, %v3265
    %v4850 = vpack.c.b16 %v3274, %v3266
    %v4851 = vpack.c.b16 %v3275, %v3267
    %v4852 = vpack.c.b16 %v3276, %v3268
    %v4853 = vpack.c.b16 %v3277, %v3269
    %v4854 = vpack.c.b16 %v3286, %v3278
    %v4855 = vpack.c.b16 %v3287, %v3279
    %v4856 = vpack.c.b16 %v3288, %v3280
    %v4857 = vpack.c.b16 %v3289, %v3281
    %v4858 = vpack.c.b16 %v3290, %v3282
    %v4859 = vpack.c.b16 %v3291, %v3283
    %v4860 = vpack.c.b16 %v3292, %v3284
    %v4861 = vpack.c.b16 %v3293, %v3285
    %v4862 = vpack.c.b16 %v3302, %v3294
    %v4863 = vpack.c.b16 %v3303, %v3295
    %v4864 = vpack.c.b16 %v3304, %v3296
    %v4865 = vpack.c.b16 %v3305, %v3297
    %v4866 = vpack.c.b16 %v3306, %v3298
    %v4867 = vpack.c.b16 %v3307, %v3299
    %v4868 = vpack.c.b16 %v3308, %v3300
    %v4869 = vpack.c.b16 %v3309, %v3301
    %v4870 = vpack.c.b16 %v3318, %v3310
    %v4871 = vpack.c.b16 %v3319, %v3311
    %v4872 = vpack.c.b16 %v3320, %v3312
    %v4873 = vpack.c.b16 %v3321, %v3313
    %v4874 = vpack.c.b16 %v3322, %v3314
    %v4875 = vpack.c.b16 %v3323, %v3315
    %v4876 = vpack.c.b16 %v3324, %v3316
    %v4877 = vpack.c.b16 %v3325, %v3317
    %v4878 = vpack.c.b16 %v3334, %v3326
    %v4879 = vpack.c.b16 %v3335, %v3327
    %v4880 = vpack.c.b16 %v3336, %v3328
    %v4881 = vpack.c.b16 %v3337, %v3329
    %v4882 = vpack.c.b16 %v3338, %v3330
    %v4883 = vpack.c.b16 %v3339, %v3331
    %v4884 = vpack.c.b16 %v3340, %v3332
    %v4885 = vpack.c.b16 %v3341, %v3333
    %v4886 = vpack.c.b16 %v3350, %v3342
    %v4887 = vpack.c.b16 %v3351, %v3343
    %v4888 = vpack.c.b16 %v3352, %v3344
    %v4889 = vpack.c.b16 %v3353, %v3345
    %v4890 = vpack.c.b16 %v3354, %v3346
    %v4891 = vpack.c.b16 %v3355, %v3347
    %v4892 = vpack.c.b16 %v3356, %v3348
    %v4893 = vpack.c.b16 %v3357, %v3349
    %v4894 = vpack.c.b16 %v3366, %v3358
    %v4895 = vpack.c.b16 %v3367, %v3359
    %v4896 = vpack.c.b16 %v3368, %v3360
    %v4897 = vpack.c.b16 %v3369, %v3361
    %v4898 = vpack.c.b16 %v3370, %v3362
    %v4899 = vpack.c.b16 %v3371, %v3363
    %v4900 = vpack.c.b16 %v3372, %v3364
    %v4901 = vpack.c.b16 %v3373, %v3365
    %v4902 = vpack.c.b16 %v3382, %v3374
    %v4903 = vpack.c.b16 %v3383, %v3375
    %v4904 = vpack.c.b16 %v3384, %v3376
    %v4905 = vpack.c.b16 %v3385, %v3377
    %v4906 = vpack.c.b16 %v3386, %v3378
    %v4907 = vpack.c.b16 %v3387, %v3379
    %v4908 = vpack.c.b16 %v3388, %v3380
    %v4909 = vpack.c.b16 %v3389, %v3381
    %v4910 = vpack.c.b16 %v3398, %v3390
    %v4911 = vpack.c.b16 %v3399, %v3391
    %v4912 = vpack.c.b16 %v3400, %v3392
    %v4913 = vpack.c.b16 %v3401, %v3393
    %v4914 = vpack.c.b16 %v3402, %v3394
    %v4915 = vpack.c.b16 %v3403, %v3395
    %v4916 = vpack.c.b16 %v3404, %v3396
    %v4917 = vpack.c.b16 %v3405, %v3397
    %v4918 = vpack.c.b16 %v3414, %v3406
    %v4919 = vpack.c.b16 %v3415, %v3407
    %v4920 = vpack.c.b16 %v3416, %v3408
    %v4921 = vpack.c.b16 %v3417, %v3409
    %v4922 = vpack.c.b16 %v3418, %v3410
    %v4923 = vpack.c.b16 %v3419, %v3411
    %v4924 = vpack.c.b16 %v3420, %v3412
    %v4925 = vpack.c.b16 %v3421, %v3413
    %v4926 = vpack.c.b16 %v3430, %v3422
    %v4927 = vpack.c.b16 %v3431, %v3423
    %v4928 = vpack.c.b16 %v3432, %v3424
    %v4929 = vpack.c.b16 %v3433, %v3425
    %v4930 = vpack.c.b16 %v3434, %v3426
    %v4931 = vpack.c.b16 %v3435, %v3427
    %v4932 = vpack.c.b16 %v3436, %v3428
    %v4933 = vpack.c.b16 %v3437, %v3429
    %v4934 = vpack.c.b16 %v3446, %v3438
    %v4935 = vpack.c.b16 %v3447, %v3439
    %v4936 = vpack.c.b16 %v3448, %v3440
    %v4937 = vpack.c.b16 %v3449, %v3441
    %v4938 = vpack.c.b16 %v3450, %v3442
    %v4939 = vpack.c.b16 %v3451, %v3443
    %v4940 = vpack.c.b16 %v3452, %v3444
    %v4941 = vpack.c.b16 %v3453, %v3445
    %v4942 = vpack.c.b16 %v3462, %v3454
    %v4943 = vpack.c.b16 %v3463, %v3455
    %v4944 = vpack.c.b16 %v3464, %v3456
    %v4945 = vpack.c.b16 %v3465, %v3457
    %v4946 = vpack.c.b16 %v3466, %v3458
    %v4947 = vpack.c.b16 %v3467, %v3459
    %v4948 = vpack.c.b16 %v3468, %v3460
    %v4949 = vpack.c.b16 %v3469, %v3461
    %v4950 = vpack.c.b16 %v3478, %v3470
    %v4951 = vpack.c.b16 %v3479, %v3471
    %v4952 = vpack.c.b16 %v3480, %v3472
    %v4953 = vpack.c.b16 %v3481, %v3473
    %v4954 = vpack.c.b16 %v3482, %v3474
    %v4955 = vpack.c.b16 %v3483, %v3475
    %v4956 = vpack.c.b16 %v3484, %v3476
    %v4957 = vpack.c.b16 %v3485, %v3477
    %v4958 = vpack.c.b16 %v3494, %v3486
    %v4959 = vpack.c.b16 %v3495, %v3487
    %v4960 = vpack.c.b16 %v3496, %v3488
    %v4961 = vpack.c.b16 %v3497, %v3489
    %v4962 = vpack.c.b16 %v3498, %v3490
    %v4963 = vpack.c.b16 %v3499, %v3491
    %v4964 = vpack.c.b16 %v3500, %v3492
    %v4965 = vpack.c.b16 %v3501, %v3493
    %v4966 = vpack.c.b16 %v3510, %v3502
    %v4967 = vpack.c.b16 %v3511, %v3503
    %v4968 = vpack.c.b16 %v3512, %v3504
    %v4969 = vpack.c.b16 %v3513, %v3505
    %v4970 = vpack.c.b16 %v3514, %v3506
    %v4971 = vpack.c.b16 %v3515, %v3507
    %v4972 = vpack.c.b16 %v3516, %v3508
    %v4973 = vpack.c.b16 %v3517, %v3509
    %v4974 = vpack.c.b16 %v3526, %v3518
    %v4975 = vpack.c.b16 %v3527, %v3519
    %v4976 = vpack.c.b16 %v3528, %v3520
    %v4977 = vpack.c.b16 %v3529, %v3521
    %v4978 = vpack.c.b16 %v3530, %v3522
    %v4979 = vpack.c.b16 %v3531, %v3523
    %v4980 = vpack.c.b16 %v3532, %v3524
    %v4981 = vpack.c.b16 %v3533, %v3525
    %v4982 = vpack.c.b16 %v3542, %v3534
    %v4983 = vpack.c.b16 %v3543, %v3535
    %v4984 = vpack.c.b16 %v3544, %v3536
    %v4985 = vpack.c.b16 %v3545, %v3537
    %v4986 = vpack.c.b16 %v3546, %v3538
    %v4987 = vpack.c.b16 %v3547, %v3539
    %v4988 = vpack.c.b16 %v3548, %v3540
    %v4989 = vpack.c.b16 %v3549, %v3541
    %v4990 = vpack.c.b16 %v3558, %v3550
    %v4991 = vpack.c.b16 %v3559, %v3551
    %v4992 = vpack.c.b16 %v3560, %v3552
    %v4993 = vpack.c.b16 %v3561, %v3553
    %v4994 = vpack.c.b16 %v3562, %v3554
    %v4995 = vpack.c.b16 %v3563, %v3555
    %v4996 = vpack.c.b16 %v3564, %v3556
    %v4997 = vpack.c.b16 %v3565, %v3557
    %v4998 = vpack.c.b16 %v3574, %v3566
    %v4999 = vpack.c.b16 %v3575, %v3567
    %v5000 = vpack.c.b16 %v3576, %v3568
    %v5001 = vpack.c.b16 %v3577, %v3569
    %v5002 = vpack.c.b16 %v3578, %v3570
    %v5003 = vpack.c.b16 %v3579, %v3571
    %v5004 = vpack.c.b16 %v3580, %v3572
    %v5005 = vpack.c.b16 %v3581, %v3573
    %v5006 = vpack.c.b16 %v3590, %v3582
    %v5007 = vpack.c.b16 %v3591, %v3583
    %v5008 = vpack.c.b16 %v3592, %v3584
    %v5009 = vpack.c.b16 %v3593, %v3585
    %v5010 = vpack.c.b16 %v3594, %v3586
    %v5011 = vpack.c.b16 %v3595, %v3587
    %v5012 = vpack.c.b16 %v3596, %v3588
    %v5013 = vpack.c.b16 %v3597, %v3589
    %v5014 = vpack.c.b16 %v3606, %v3598
    %v5015 = vpack.c.b16 %v3607, %v3599
    %v5016 = vpack.c.b16 %v3608, %v3600
    %v5017 = vpack.c.b16 %v3609, %v3601
    %v5018 = vpack.c.b16 %v3610, %v3602
    %v5019 = vpack.c.b16 %v3611, %v3603
    %v5020 = vpack.c.b16 %v3612, %v3604
    %v5021 = vpack.c.b16 %v3613, %v3605
    %v5022 = vpack.c.b16 %v3622, %v3614
    %v5023 = vpack.c.b16 %v3623, %v3615
    %v5024 = vpack.c.b16 %v3624, %v3616
    %v5025 = vpack.c.b16 %v3625, %v3617
    %v5026 = vpack.c.b16 %v3626, %v3618
    %v5027 = vpack.c.b16 %v3627, %v3619
    %v5028 = vpack.c.b16 %v3628, %v3620
    %v5029 = vpack.c.b16 %v3629, %v3621
    %v5030 = vpack.c.b16 %v3638, %v3630
    %v5031 = vpack.c.b16 %v3639, %v3631
    %v5032 = vpack.c.b16 %v3640, %v3632
    %v5033 = vpack.c.b16 %v3641, %v3633
    %v5034 = vpack.c.b16 %v3642, %v3634
    %v5035 = vpack.c.b16 %v3643, %v3635
    %v5036 = vpack.c.b16 %v3644, %v3636
    %v5037 = vpack.c.b16 %v3645, %v3637
    %v5038 = vpack.c.b16 %v3654, %v3646
    %v5039 = vpack.c.b16 %v3655, %v3647
    %v5040 = vpack.c.b16 %v3656, %v3648
    %v5041 = vpack.c.b16 %v3657, %v3649
    %v5042 = vpack.c.b16 %v3658, %v3650
    %v5043 = vpack.c.b16 %v3659, %v3651
    %v5044 = vpack.c.b16 %v3660, %v3652
    %v5045 = vpack.c.b16 %v3661, %v3653
    %v5046 = vpack.c.b16 %v3670, %v3662
    %v5047 = vpack.c.b16 %v3671, %v3663
    %v5048 = vpack.c.b16 %v3672, %v3664
    %v5049 = vpack.c.b16 %v3673, %v3665
    %v5050 = vpack.c.b16 %v3674, %v3666
    %v5051 = vpack.c.b16 %v3675, %v3667
    %v5052 = vpack.c.b16 %v3676, %v3668
    %v5053 = vpack.c.b16 %v3677, %v3669
    %v5054 = vpack.c.b16 %v3686, %v3678
    %v5055 = vpack.c.b16 %v3687, %v3679
    %v5056 = vpack.c.b16 %v3688, %v3680
    %v5057 = vpack.c.b16 %v3689, %v3681
    %v5058 = vpack.c.b16 %v3690, %v3682
    %v5059 = vpack.c.b16 %v3691, %v3683
    %v5060 = vpack.c.b16 %v3692, %v3684
    %v5061 = vpack.c.b16 %v3693, %v3685
    %v5062 = vpack.c.b16 %v3702, %v3694
    %v5063 = vpack.c.b16 %v3703, %v3695
    %v5064 = vpack.c.b16 %v3704, %v3696
    %v5065 = vpack.c.b16 %v3705, %v3697
    %v5066 = vpack.c.b16 %v3706, %v3698
    %v5067 = vpack.c.b16 %v3707, %v3699
    %v5068 = vpack.c.b16 %v3708, %v3700
    %v5069 = vpack.c.b16 %v3709, %v3701
    %v5070 = vpack.c.b16 %v3718, %v3710
    %v5071 = vpack.c.b16 %v3719, %v3711
    %v5072 = vpack.c.b16 %v3720, %v3712
    %v5073 = vpack.c.b16 %v3721, %v3713
    %v5074 = vpack.c.b16 %v3722, %v3714
    %v5075 = vpack.c.b16 %v3723, %v3715
    %v5076 = vpack.c.b16 %v3724, %v3716
    %v5077 = vpack.c.b16 %v3725, %v3717
    %v5078 = vpack.c.b16 %v3734, %v3726
    %v5079 = vpack.c.b16 %v3735, %v3727
    %v5080 = vpack.c.b16 %v3736, %v3728
    %v5081 = vpack.c.b16 %v3737, %v3729
    %v5082 = vpack.c.b16 %v3738, %v3730
    %v5083 = vpack.c.b16 %v3739, %v3731
    %v5084 = vpack.c.b16 %v3740, %v3732
    %v5085 = vpack.c.b16 %v3741, %v3733
    %v5086 = vpack.c.b16 %v3750, %v3742
    %v5087 = vpack.c.b16 %v3751, %v3743
    %v5088 = vpack.c.b16 %v3752, %v3744
    %v5089 = vpack.c.b16 %v3753, %v3745
    %v5090 = vpack.c.b16 %v3754, %v3746
    %v5091 = vpack.c.b16 %v3755, %v3747
    %v5092 = vpack.c.b16 %v3756, %v3748
    %v5093 = vpack.c.b16 %v3757, %v3749
    %v5094 = vpack.c.b16 %v3766, %v3758
    %v5095 = vpack.c.b16 %v3767, %v3759
    %v5096 = vpack.c.b16 %v3768, %v3760
    %v5097 = vpack.c.b16 %v3769, %v3761
    %v5098 = vpack.c.b16 %v3770, %v3762
    %v5099 = vpack.c.b16 %v3771, %v3763
    %v5100 = vpack.c.b16 %v3772, %v3764
    %v5101 = vpack.c.b16 %v3773, %v3765
    %v5102 = vpack.c.b16 %v3782, %v3774
    %v5103 = vpack.c.b16 %v3783, %v3775
    %v5104 = vpack.c.b16 %v3784, %v3776
    %v5105 = vpack.c.b16 %v3785, %v3777
    %v5106 = vpack.c.b16 %v3786, %v3778
    %v5107 = vpack.c.b16 %v3787, %v3779
    %v5108 = vpack.c.b16 %v3788, %v3780
    %v5109 = vpack.c.b16 %v3789, %v3781
    %v5110 = vpack.c.b16 %v3798, %v3790
    %v5111 = vpack.c.b16 %v3799, %v3791
    %v5112 = vpack.c.b16 %v3800, %v3792
    %v5113 = vpack.c.b16 %v3801, %v3793
    %v5114 = vpack.c.b16 %v3802, %v3794
    %v5115 = vpack.c.b16 %v3803, %v3795
    %v5116 = vpack.c.b16 %v3804, %v3796
    %v5117 = vpack.c.b16 %v3805, %v3797
    %v5118 = vpack.c.b16 %v3814, %v3806
    %v5119 = vpack.c.b16 %v3815, %v3807
    %v5120 = vpack.c.b16 %v3816, %v3808
    %v5121 = vpack.c.b16 %v3817, %v3809
    %v5122 = vpack.c.b16 %v3818, %v3810
    %v5123 = vpack.c.b16 %v3819, %v3811
    %v5124 = vpack.c.b16 %v3820, %v3812
    %v5125 = vpack.c.b16 %v3821, %v3813
    %v5126 = vpack.c.b16 %v3830, %v3822
    %v5127 = vpack.c.b16 %v3831, %v3823
    %v5128 = vpack.c.b16 %v3832, %v3824
    %v5129 = vpack.c.b16 %v3833, %v3825
    %v5130 = vpack.c.b16 %v3834, %v3826
    %v5131 = vpack.c.b16 %v3835, %v3827
    %v5132 = vpack.c.b16 %v3836, %v3828
    %v5133 = vpack.c.b16 %v3837, %v3829
    %v5134 = vpack.c.b16 %v3846, %v3838
    %v5135 = vpack.c.b16 %v3847, %v3839
    %v5136 = vpack.c.b16 %v3848, %v3840
    %v5137 = vpack.c.b16 %v3849, %v3841
    %v5138 = vpack.c.b16 %v3850, %v3842
    %v5139 = vpack.c.b16 %v3851, %v3843
    %v5140 = vpack.c.b16 %v3852, %v3844
    %v5141 = vpack.c.b16 %v3853, %v3845
    %v5142 = vpack.c.b16 %v3862, %v3854
    %v5143 = vpack.c.b16 %v3863, %v3855
    %v5144 = vpack.c.b16 %v3864, %v3856
    %v5145 = vpack.c.b16 %v3865, %v3857
    %v5146 = vpack.c.b16 %v3866, %v3858
    %v5147 = vpack.c.b16 %v3867, %v3859
    %v5148 = vpack.c.b16 %v3868, %v3860
    %v5149 = vpack.c.b16 %v3869, %v3861
    %v5150 = vpack.c.b16 %v3878, %v3870
    %v5151 = vpack.c.b16 %v3879, %v3871
    %v5152 = vpack.c.b16 %v3880, %v3872
    %v5153 = vpack.c.b16 %v3881, %v3873
    %v5154 = vpack.c.b16 %v3882, %v3874
    %v5155 = vpack.c.b16 %v3883, %v3875
    %v5156 = vpack.c.b16 %v3884, %v3876
    %v5157 = vpack.c.b16 %v3885, %v3877
    %v5158 = vpack.c.b16 %v3894, %v3886
    %v5159 = vpack.c.b16 %v3895, %v3887
    %v5160 = vpack.c.b16 %v3896, %v3888
    %v5161 = vpack.c.b16 %v3897, %v3889
    %v5162 = vpack.c.b16 %v3898, %v3890
    %v5163 = vpack.c.b16 %v3899, %v3891
    %v5164 = vpack.c.b16 %v3900, %v3892
    %v5165 = vpack.c.b16 %v3901, %v3893
    %v5166 = vpack.c.b16 %v3910, %v3902
    %v5167 = vpack.c.b16 %v3911, %v3903
    %v5168 = vpack.c.b16 %v3912, %v3904
    %v5169 = vpack.c.b16 %v3913, %v3905
    %v5170 = vpack.c.b16 %v3914, %v3906
    %v5171 = vpack.c.b16 %v3915, %v3907
    %v5172 = vpack.c.b16 %v3916, %v3908
    %v5173 = vpack.c.b16 %v3917, %v3909
    %v5174 = vpack.c.b16 %v3926, %v3918
    %v5175 = vpack.c.b16 %v3927, %v3919
    %v5176 = vpack.c.b16 %v3928, %v3920
    %v5177 = vpack.c.b16 %v3929, %v3921
    %v5178 = vpack.c.b16 %v3930, %v3922
    %v5179 = vpack.c.b16 %v3931, %v3923
    %v5180 = vpack.c.b16 %v3932, %v3924
    %v5181 = vpack.c.b16 %v3933, %v3925
    %v5182 = vpack.c.b16 %v3942, %v3934
    %v5183 = vpack.c.b16 %v3943, %v3935
    %v5184 = vpack.c.b16 %v3944, %v3936
    %v5185 = vpack.c.b16 %v3945, %v3937
    %v5186 = vpack.c.b16 %v3946, %v3938
    %v5187 = vpack.c.b16 %v3947, %v3939
    %v5188 = vpack.c.b16 %v3948, %v3940
    %v5189 = vpack.c.b16 %v3949, %v3941
    %v5190 = vpack.c.b16 %v3958, %v3950
    %v5191 = vpack.c.b16 %v3959, %v3951
    %v5192 = vpack.c.b16 %v3960, %v3952
    %v5193 = vpack.c.b16 %v3961, %v3953
    %v5194 = vpack.c.b16 %v3962, %v3954
    %v5195 = vpack.c.b16 %v3963, %v3955
    %v5196 = vpack.c.b16 %v3964, %v3956
    %v5197 = vpack.c.b16 %v3965, %v3957
    %v5198 = vpack.c.b16 %v3974, %v3966
    %v5199 = vpack.c.b16 %v3975, %v3967
    %v5200 = vpack.c.b16 %v3976, %v3968
    %v5201 = vpack.c.b16 %v3977, %v3969
    %v5202 = vpack.c.b16 %v3978, %v3970
    %v5203 = vpack.c.b16 %v3979, %v3971
    %v5204 = vpack.c.b16 %v3980, %v3972
    %v5205 = vpack.c.b16 %v3981, %v3973
    %v5206 = vpack.c.b16 %v3990, %v3982
    %v5207 = vpack.c.b16 %v3991, %v3983
    %v5208 = vpack.c.b16 %v3992, %v3984
    %v5209 = vpack.c.b16 %v3993, %v3985
    %v5210 = vpack.c.b16 %v3994, %v3986
    %v5211 = vpack.c.b16 %v3995, %v3987
    %v5212 = vpack.c.b16 %v3996, %v3988
    %v5213 = vpack.c.b16 %v3997, %v3989
    %v5214 = vpack.c.b16 %v4006, %v3998
    %v5215 = vpack.c.b16 %v4007, %v3999
    %v5216 = vpack.c.b16 %v4008, %v4000
    %v5217 = vpack.c.b16 %v4009, %v4001
    %v5218 = vpack.c.b16 %v4010, %v4002
    %v5219 = vpack.c.b16 %v4011, %v4003
    %v5220 = vpack.c.b16 %v4012, %v4004
    %v5221 = vpack.c.b16 %v4013, %v4005
    %v5222 = vpack.c.b16 %v4022, %v4014
    %v5223 = vpack.c.b16 %v4023, %v4015
    %v5224 = vpack.c.b16 %v4024, %v4016
    %v5225 = vpack.c.b16 %v4025, %v4017
    %v5226 = vpack.c.b16 %v4026, %v4018
    %v5227 = vpack.c.b16 %v4027, %v4019
    %v5228 = vpack.c.b16 %v4028, %v4020
    %v5229 = vpack.c.b16 %v4029, %v4021
    %v5230 = vpack.c.b16 %v4038, %v4030
    %v5231 = vpack.c.b16 %v4039, %v4031
    %v5232 = vpack.c.b16 %v4040, %v4032
    %v5233 = vpack.c.b16 %v4041, %v4033
    %v5234 = vpack.c.b16 %v4042, %v4034
    %v5235 = vpack.c.b16 %v4043, %v4035
    %v5236 = vpack.c.b16 %v4044, %v4036
    %v5237 = vpack.c.b16 %v4045, %v4037
    %v5238 = vpack.c.b16 %v4054, %v4046
    %v5239 = vpack.c.b16 %v4055, %v4047
    %v5240 = vpack.c.b16 %v4056, %v4048
    %v5241 = vpack.c.b16 %v4057, %v4049
    %v5242 = vpack.c.b16 %v4058, %v4050
    %v5243 = vpack.c.b16 %v4059, %v4051
    %v5244 = vpack.c.b16 %v4060, %v4052
    %v5245 = vpack.c.b16 %v4061, %v4053
    %v5246 = vpack.c.b16 %v4070, %v4062
    %v5247 = vpack.c.b16 %v4071, %v4063
    %v5248 = vpack.c.b16 %v4072, %v4064
    %v5249 = vpack.c.b16 %v4073, %v4065
    %v5250 = vpack.c.b16 %v4074, %v4066
    %v5251 = vpack.c.b16 %v4075, %v4067
    %v5252 = vpack.c.b16 %v4076, %v4068
    %v5253 = vpack.c.b16 %v4077, %v4069
    %v5254 = vpack.c.b16 %v4086, %v4078
    %v5255 = vpack.c.b16 %v4087, %v4079
    %v5256 = vpack.c.b16 %v4088, %v4080
    %v5257 = vpack.c.b16 %v4089, %v4081
    %v5258 = vpack.c.b16 %v4090, %v4082
    %v5259 = vpack.c.b16 %v4091, %v4083
    %v5260 = vpack.c.b16 %v4092, %v4084
    %v5261 = vpack.c.b16 %v4093, %v4085
    %v5262 = vpack.c.b16 %v4102, %v4094
    %v5263 = vpack.c.b16 %v4103, %v4095
    %v5264 = vpack.c.b16 %v4104, %v4096
    %v5265 = vpack.c.b16 %v4105, %v4097
    %v5266 = vpack.c.b16 %v4106, %v4098
    %v5267 = vpack.c.b16 %v4107, %v4099
    %v5268 = vpack.c.b16 %v4108, %v4100
    %v5269 = vpack.c.b16 %v4109, %v4101
    %v5270 = vpack.c.b16 %v4118, %v4110
    %v5271 = vpack.c.b16 %v4119, %v4111
    %v5272 = vpack.c.b16 %v4120, %v4112
    %v5273 = vpack.c.b16 %v4121, %v4113
    %v5274 = vpack.c.b16 %v4122, %v4114
    %v5275 = vpack.c.b16 %v4123, %v4115
    %v5276 = vpack.c.b16 %v4124, %v4116
    %v5277 = vpack.c.b16 %v4125, %v4117
    %v5278 = vpack.c.b16 %v4134, %v4126
    %v5279 = vpack.c.b16 %v4135, %v4127
    %v5280 = vpack.c.b16 %v4136, %v4128
    %v5281 = vpack.c.b16 %v4137, %v4129
    %v5282 = vpack.c.b16 %v4138, %v4130
    %v5283 = vpack.c.b16 %v4139, %v4131
    %v5284 = vpack.c.b16 %v4140, %v4132
    %v5285 = vpack.c.b16 %v4141, %v4133
    %v5286 = vpack.c.b16 %v4150, %v4142
    %v5287 = vpack.c.b16 %v4151, %v4143
    %v5288 = vpack.c.b16 %v4152, %v4144
    %v5289 = vpack.c.b16 %v4153, %v4145
    %v5290 = vpack.c.b16 %v4154, %v4146
    %v5291 = vpack.c.b16 %v4155, %v4147
    %v5292 = vpack.c.b16 %v4156, %v4148
    %v5293 = vpack.c.b16 %v4157, %v4149
    %v5294 = vpack.c.b16 %v4166, %v4158
    %v5295 = vpack.c.b16 %v4167, %v4159
    %v5296 = vpack.c.b16 %v4168, %v4160
    %v5297 = vpack.c.b16 %v4169, %v4161
    %v5298 = vpack.c.b16 %v4170, %v4162
    %v5299 = vpack.c.b16 %v4171, %v4163
    %v5300 = vpack.c.b16 %v4172, %v4164
    %v5301 = vpack.c.b16 %v4173, %v4165
    %v5302 = vpack.c.b16 %v4182, %v4174
    %v5303 = vpack.c.b16 %v4183, %v4175
    %v5304 = vpack.c.b16 %v4184, %v4176
    %v5305 = vpack.c.b16 %v4185, %v4177
    %v5306 = vpack.c.b16 %v4186, %v4178
    %v5307 = vpack.c.b16 %v4187, %v4179
    %v5308 = vpack.c.b16 %v4188, %v4180
    %v5309 = vpack.c.b16 %v4189, %v4181
    %v5310 = vpack.c.b16 %v4198, %v4190
    %v5311 = vpack.c.b16 %v4199, %v4191
    %v5312 = vpack.c.b16 %v4200, %v4192
    %v5313 = vpack.c.b16 %v4201, %v4193
    %v5314 = vpack.c.b16 %v4202, %v4194
    %v5315 = vpack.c.b16 %v4203, %v4195
    %v5316 = vpack.c.b16 %v4204, %v4196
    %v5317 = vpack.c.b16 %v4205, %v4197
    %v5318 = vpack.c.b16 %v4214, %v4206
    %v5319 = vpack.c.b16 %v4215, %v4207
    %v5320 = vpack.c.b16 %v4216, %v4208
    %v5321 = vpack.c.b16 %v4217, %v4209
    %v5322 = vpack.c.b16 %v4218, %v4210
    %v5323 = vpack.c.b16 %v4219, %v4211
    %v5324 = vpack.c.b16 %v4220, %v4212
    %v5325 = vpack.c.b16 %v4221, %v4213
    %v5326 = vpack.c.b16 %v4230, %v4222
    %v5327 = vpack.c.b16 %v4231, %v4223
    %v5328 = vpack.c.b16 %v4232, %v4224
    %v5329 = vpack.c.b16 %v4233, %v4225
    %v5330 = vpack.c.b16 %v4234, %v4226
    %v5331 = vpack.c.b16 %v4235, %v4227
    %v5332 = vpack.c.b16 %v4236, %v4228
    %v5333 = vpack.c.b16 %v4237, %v4229
    %v5334 = vpack.c.b16 %v4246, %v4238
    %v5335 = vpack.c.b16 %v4247, %v4239
    %v5336 = vpack.c.b16 %v4248, %v4240
    %v5337 = vpack.c.b16 %v4249, %v4241
    %v5338 = vpack.c.b16 %v4250, %v4242
    %v5339 = vpack.c.b16 %v4251, %v4243
    %v5340 = vpack.c.b16 %v4252, %v4244
    %v5341 = vpack.c.b16 %v4253, %v4245
    %v5342 = vpack.c.b16 %v4262, %v4254
    %v5343 = vpack.c.b16 %v4263, %v4255
    %v5344 = vpack.c.b16 %v4264, %v4256
    %v5345 = vpack.c.b16 %v4265, %v4257
    %v5346 = vpack.c.b16 %v4266, %v4258
    %v5347 = vpack.c.b16 %v4267, %v4259
    %v5348 = vpack.c.b16 %v4268, %v4260
    %v5349 = vpack.c.b16 %v4269, %v4261
    %v5350 = vpack.c.b16 %v4278, %v4270
    %v5351 = vpack.c.b16 %v4279, %v4271
    %v5352 = vpack.c.b16 %v4280, %v4272
    %v5353 = vpack.c.b16 %v4281, %v4273
    %v5354 = vpack.c.b16 %v4282, %v4274
    %v5355 = vpack.c.b16 %v4283, %v4275
    %v5356 = vpack.c.b16 %v4284, %v4276
    %v5357 = vpack.c.b16 %v4285, %v4277
    %v5358 = vpack.c.b16 %v4294, %v4286
    %v5359 = vpack.c.b16 %v4295, %v4287
    %v5360 = vpack.c.b16 %v4296, %v4288
    %v5361 = vpack.c.b16 %v4297, %v4289
    %v5362 = vpack.c.b16 %v4298, %v4290
    %v5363 = vpack.c.b16 %v4299, %v4291
    %v5364 = vpack.c.b16 %v4300, %v4292
    %v5365 = vpack.c.b16 %v4301, %v4293
    %v5366 = vpack.c.b16 %v4310, %v4302
    %v5367 = vpack.c.b16 %v4311, %v4303
    %v5368 = vpack.c.b16 %v4312, %v4304
    %v5369 = vpack.c.b16 %v4313, %v4305
    %v5370 = vpack.c.b16 %v4314, %v4306
    %v5371 = vpack.c.b16 %v4315, %v4307
    %v5372 = vpack.c.b16 %v4316, %v4308
    %v5373 = vpack.c.b16 %v4317, %v4309
    %v5374 = vpack.c.b16 %v4326, %v4318
    %v5375 = vpack.c.b16 %v4327, %v4319
    %v5376 = vpack.c.b16 %v4328, %v4320
    %v5377 = vpack.c.b16 %v4329, %v4321
    %v5378 = vpack.c.b16 %v4330, %v4322
    %v5379 = vpack.c.b16 %v4331, %v4323
    %v5380 = vpack.c.b16 %v4332, %v4324
    %v5381 = vpack.c.b16 %v4333, %v4325
    %v5382 = vpack.c.b16 %v4342, %v4334
    %v5383 = vpack.c.b16 %v4343, %v4335
    %v5384 = vpack.c.b16 %v4344, %v4336
    %v5385 = vpack.c.b16 %v4345, %v4337
    %v5386 = vpack.c.b16 %v4346, %v4338
    %v5387 = vpack.c.b16 %v4347, %v4339
    %v5388 = vpack.c.b16 %v4348, %v4340
    %v5389 = vpack.c.b16 %v4349, %v4341
    %v5390 = vpack.c.b16 %v4358, %v4350
    %v5391 = vpack.c.b16 %v4359, %v4351
    %v5392 = vpack.c.b16 %v4360, %v4352
    %v5393 = vpack.c.b16 %v4361, %v4353
    %v5394 = vpack.c.b16 %v4362, %v4354
    %v5395 = vpack.c.b16 %v4363, %v4355
    %v5396 = vpack.c.b16 %v4364, %v4356
    %v5397 = vpack.c.b16 %v4365, %v4357
    %v5398 = vpack.c.b16 %v4374, %v4366
    %v5399 = vpack.c.b16 %v4375, %v4367
    %v5400 = vpack.c.b16 %v4376, %v4368
    %v5401 = vpack.c.b16 %v4377, %v4369
    %v5402 = vpack.c.b16 %v4378, %v4370
    %v5403 = vpack.c.b16 %v4379, %v4371
    %v5404 = vpack.c.b16 %v4380, %v4372
    %v5405 = vpack.c.b16 %v4381, %v4373
    %6430 = vmatprep.subr.bf16.mxu0 %v4383
    %6431 = vmatpush1.bf16.msra.mxu0 %v4382
    %6432 = vmatprep.subr.bf16.mxu0 %v4391
    %6433 = vmatpush1.bf16.msra.mxu0 %v4390
    %6434 = vmatprep.subr.bf16.mxu0 %v4399
    %6435 = vmatpush1.bf16.msra.mxu0 %v4398
    %6436 = vmatprep.subr.bf16.mxu0 %v4407
    %6437 = vmatpush1.bf16.msra.mxu0 %v4406
    %6438 = vmatprep.subr.bf16.mxu0 %v4415
    %6439 = vmatpush1.bf16.msra.mxu0 %v4414
    %6440 = vmatprep.subr.bf16.mxu0 %v4423
    %6441 = vmatpush1.bf16.msra.mxu0 %v4422
    %6442 = vmatprep.subr.bf16.mxu0 %v4431
    %6443 = vmatpush1.bf16.msra.mxu0 %v4430
    %6444 = vmatprep.subr.bf16.mxu0 %v4439
    %6445 = vmatpush1.bf16.msra.mxu0 %v4438
    %6446 = vmatprep.subr.bf16.mxu0 %v4447
    %6447 = vmatpush1.bf16.msra.mxu0 %v4446
    %6448 = vmatprep.subr.bf16.mxu0 %v4455
    %6449 = vmatpush1.bf16.msra.mxu0 %v4454
    %6450 = vmatprep.subr.bf16.mxu0 %v4463
    %6451 = vmatpush1.bf16.msra.mxu0 %v4462
    %6452 = vmatprep.subr.bf16.mxu0 %v4471
    %6453 = vmatpush1.bf16.msra.mxu0 %v4470
    %6454 = vmatprep.subr.bf16.mxu0 %v4479
    %6455 = vmatpush1.bf16.msra.mxu0 %v4478
    %6456 = vmatprep.subr.bf16.mxu0 %v4487
    %6457 = vmatpush1.bf16.msra.mxu0 %v4486
    %6458 = vmatprep.subr.bf16.mxu0 %v4495
    %6459 = vmatpush1.bf16.msra.mxu0 %v4494
    %6460 = vmatprep.subr.bf16.mxu0 %v4503
    %6461 = vmatpush1.bf16.msra.mxu0 %v4502
    %6462 = vmatprep.mubr.bf16.mxu0 %v1279
    %6463 = vmatmul.mubr.bf16.gmra.mrb[0].mxu0 %v1278
    %v6464 = vpop.f32.mrb[0].mxu0
    %v6465 = vadd.f32 %v1193, %v6464
    %v6466 = vpop.f32.mrb[0].mxu0
    %v6467 = vadd.f32 %v1197, %v6466
    %v6468 = vpop.f32.mrb[0].mxu0
    %v6469 = vadd.f32 %v1193, %v6468
    %v6470 = vpop.f32.mrb[0].mxu0
    %v6471 = vadd.f32 %v1197, %v6470
    %6472 = vdwg.mxu0
    %6473 = vmatprep.subr.bf16.mxu0 %v4511
    %6474 = vmatpush1.bf16.msra.mxu0 %v4510
    %6475 = vmatprep.subr.bf16.mxu0 %v4519
    %6476 = vmatpush1.bf16.msra.mxu0 %v4518
    %6477 = vmatprep.subr.bf16.mxu0 %v4527
    %6478 = vmatpush1.bf16.msra.mxu0 %v4526
    %6479 = vmatprep.subr.bf16.mxu0 %v4535
    %6480 = vmatpush1.bf16.msra.mxu0 %v4534
    %6481 = vmatprep.subr.bf16.mxu0 %v4543
    %6482 = vmatpush1.bf16.msra.mxu0 %v4542
    %6483 = vmatprep.subr.bf16.mxu0 %v4551
    %6484 = vmatpush1.bf16.msra.mxu0 %v4550
    %6485 = vmatprep.subr.bf16.mxu0 %v4559
    %6486 = vmatpush1.bf16.msra.mxu0 %v4558
    %6487 = vmatprep.subr.bf16.mxu0 %v4567
    %6488 = vmatpush1.bf16.msra.mxu0 %v4566
    %6489 = vmatprep.subr.bf16.mxu0 %v4575
    %6490 = vmatpush1.bf16.msra.mxu0 %v4574
    %6491 = vmatprep.subr.bf16.mxu0 %v4583
    %6492 = vmatpush1.bf16.msra.mxu0 %v4582
    %6493 = vmatprep.subr.bf16.mxu0 %v4591
    %6494 = vmatpush1.bf16.msra.mxu0 %v4590
    %6495 = vmatprep.subr.bf16.mxu0 %v4599
    %6496 = vmatpush1.bf16.msra.mxu0 %v4598
    %6497 = vmatprep.subr.bf16.mxu0 %v4607
    %6498 = vmatpush1.bf16.msra.mxu0 %v4606
    %6499 = vmatprep.subr.bf16.mxu0 %v4615
    %6500 = vmatpush1.bf16.msra.mxu0 %v4614
    %6501 = vmatprep.subr.bf16.mxu0 %v4623
    %6502 = vmatpush1.bf16.msra.mxu0 %v4622
    %6503 = vmatprep.subr.bf16.mxu0 %v4631
    %6504 = vmatpush1.bf16.msra.mxu0 %v4630
    %6505 = vmatprep.mubr.bf16.mxu0 %v1281
    %6506 = vmatmul.mubr.bf16.gmra.mrb[0].mxu0 %v1280
    %v6507 = vpop.f32.mrb[0].mxu0
    %v6508 = vadd.f32 %v6465, %v6507
    %v6509 = vpop.f32.mrb[0].mxu0
    %v6510 = vadd.f32 %v6467, %v6509
    %v6511 = vpop.f32.mrb[0].mxu0
    %v6512 = vadd.f32 %v6469, %v6511
    %v6513 = vpop.f32.mrb[0].mxu0
    %v6514 = vadd.f32 %v6471, %v6513
    %6515 = vdwg.mxu0
    %6516 = vmatprep.subr.bf16.mxu0 %v4639
    %6517 = vmatpush1.bf16.msra.mxu0 %v4638
    %6518 = vmatprep.subr.bf16.mxu0 %v4647
    %6519 = vmatpush1.bf16.msra.mxu0 %v4646
    %6520 = vmatprep.subr.bf16.mxu0 %v4655
    %6521 = vmatpush1.bf16.msra.mxu0 %v4654
    %6522 = vmatprep.subr.bf16.mxu0 %v4663
    %6523 = vmatpush1.bf16.msra.mxu0 %v4662
    %6524 = vmatprep.subr.bf16.mxu0 %v4671
    %6525 = vmatpush1.bf16.msra.mxu0 %v4670
    %6526 = vmatprep.subr.bf16.mxu0 %v4679
    %6527 = vmatpush1.bf16.msra.mxu0 %v4678
    %6528 = vmatprep.subr.bf16.mxu0 %v4687
    %6529 = vmatpush1.bf16.msra.mxu0 %v4686
    %6530 = vmatprep.subr.bf16.mxu0 %v4695
    %6531 = vmatpush1.bf16.msra.mxu0 %v4694
    %6532 = vmatprep.subr.bf16.mxu0 %v4703
    %6533 = vmatpush1.bf16.msra.mxu0 %v4702
    %6534 = vmatprep.subr.bf16.mxu0 %v4711
    %6535 = vmatpush1.bf16.msra.mxu0 %v4710
    %6536 = vmatprep.subr.bf16.mxu0 %v4719
    %6537 = vmatpush1.bf16.msra.mxu0 %v4718
    %6538 = vmatprep.subr.bf16.mxu0 %v4727
    %6539 = vmatpush1.bf16.msra.mxu0 %v4726
    %6540 = vmatprep.subr.bf16.mxu0 %v4735
    %6541 = vmatpush1.bf16.msra.mxu0 %v4734
    %6542 = vmatprep.subr.bf16.mxu0 %v4743
    %6543 = vmatpush1.bf16.msra.mxu0 %v4742
    %6544 = vmatprep.subr.bf16.mxu0 %v4751
    %6545 = vmatpush1.bf16.msra.mxu0 %v4750
    %6546 = vmatprep.subr.bf16.mxu0 %v4759
    %6547 = vmatpush1.bf16.msra.mxu0 %v4758
    %6548 = vmatprep.mubr.bf16.mxu0 %v1283
    %6549 = vmatmul.mubr.bf16.gmra.mrb[0].mxu0 %v1282
    %v6550 = vpop.f32.mrb[0].mxu0
    %v6551 = vadd.f32 %v6508, %v6550
    %v6552 = vpop.f32.mrb[0].mxu0
    %v6553 = vadd.f32 %v6510, %v6552
    %v6554 = vpop.f32.mrb[0].mxu0
    %v6555 = vadd.f32 %v6512, %v6554
    %v6556 = vpop.f32.mrb[0].mxu0
    %v6557 = vadd.f32 %v6514, %v6556
    %6558 = vdwg.mxu0
    %6559 = vmatprep.subr.bf16.mxu0 %v4767
    %6560 = vmatpush1.bf16.msra.mxu0 %v4766
    %6561 = vmatprep.subr.bf16.mxu0 %v4775
    %6562 = vmatpush1.bf16.msra.mxu0 %v4774
    %6563 = vmatprep.subr.bf16.mxu0 %v4783
    %6564 = vmatpush1.bf16.msra.mxu0 %v4782
    %6565 = vmatprep.subr.bf16.mxu0 %v4791
    %6566 = vmatpush1.bf16.msra.mxu0 %v4790
    %6567 = vmatprep.subr.bf16.mxu0 %v4799
    %6568 = vmatpush1.bf16.msra.mxu0 %v4798
    %6569 = vmatprep.subr.bf16.mxu0 %v4807
    %6570 = vmatpush1.bf16.msra.mxu0 %v4806
    %6571 = vmatprep.subr.bf16.mxu0 %v4815
    %6572 = vmatpush1.bf16.msra.mxu0 %v4814
    %6573 = vmatprep.subr.bf16.mxu0 %v4823
    %6574 = vmatpush1.bf16.msra.mxu0 %v4822
    %6575 = vmatprep.subr.bf16.mxu0 %v4831
    %6576 = vmatpush1.bf16.msra.mxu0 %v4830
    %6577 = vmatprep.subr.bf16.mxu0 %v4839
    %6578 = vmatpush1.bf16.msra.mxu0 %v4838
    %6579 = vmatprep.subr.bf16.mxu0 %v4847
    %6580 = vmatpush1.bf16.msra.mxu0 %v4846
    %6581 = vmatprep.subr.bf16.mxu0 %v4855
    %6582 = vmatpush1.bf16.msra.mxu0 %v4854
    %6583 = vmatprep.subr.bf16.mxu0 %v4863
    %6584 = vmatpush1.bf16.msra.mxu0 %v4862
    %6585 = vmatprep.subr.bf16.mxu0 %v4871
    %6586 = vmatpush1.bf16.msra.mxu0 %v4870
    %6587 = vmatprep.subr.bf16.mxu0 %v4879
    %6588 = vmatpush1.bf16.msra.mxu0 %v4878
    %6589 = vmatprep.subr.bf16.mxu0 %v4887
    %6590 = vmatpush1.bf16.msra.mxu0 %v4886
    %6591 = vmatprep.mubr.bf16.mxu0 %v1285
    %6592 = vmatmul.mubr.bf16.gmra.mrb[0].mxu0 %v1284
    %v6593 = vpop.f32.mrb[0].mxu0
    %v6594 = vadd.f32 %v6551, %v6593
    %v6595 = vpop.f32.mrb[0].mxu0
    %v6596 = vadd.f32 %v6553, %v6595
    %v6597 = vpop.f32.mrb[0].mxu0
    %v6598 = vadd.f32 %v6555, %v6597
    %v6599 = vpop.f32.mrb[0].mxu0
    %v6600 = vadd.f32 %v6557, %v6599
    %6601 = vdwg.mxu0
    %6602 = vmatprep.subr.bf16.mxu0 %v4895
    %6603 = vmatpush1.bf16.msra.mxu0 %v4894
    %6604 = vmatprep.subr.bf16.mxu0 %v4903
    %6605 = vmatpush1.bf16.msra.mxu0 %v4902
    %6606 = vmatprep.subr.bf16.mxu0 %v4911
    %6607 = vmatpush1.bf16.msra.mxu0 %v4910
    %6608 = vmatprep.subr.bf16.mxu0 %v4919
    %6609 = vmatpush1.bf16.msra.mxu0 %v4918
    %6610 = vmatprep.subr.bf16.mxu0 %v4927
    %6611 = vmatpush1.bf16.msra.mxu0 %v4926
    %6612 = vmatprep.subr.bf16.mxu0 %v4935
    %6613 = vmatpush1.bf16.msra.mxu0 %v4934
    %6614 = vmatprep.subr.bf16.mxu0 %v4943
    %6615 = vmatpush1.bf16.msra.mxu0 %v4942
    %6616 = vmatprep.subr.bf16.mxu0 %v4951
    %6617 = vmatpush1.bf16.msra.mxu0 %v4950
    %6618 = vmatprep.subr.bf16.mxu0 %v4959
    %6619 = vmatpush1.bf16.msra.mxu0 %v4958
    %6620 = vmatprep.subr.bf16.mxu0 %v4967
    %6621 = vmatpush1.bf16.msra.mxu0 %v4966
    %6622 = vmatprep.subr.bf16.mxu0 %v4975
    %6623 = vmatpush1.bf16.msra.mxu0 %v4974
    %6624 = vmatprep.subr.bf16.mxu0 %v4983
    %6625 = vmatpush1.bf16.msra.mxu0 %v4982
    %6626 = vmatprep.subr.bf16.mxu0 %v4991
    %6627 = vmatpush1.bf16.msra.mxu0 %v4990
    %6628 = vmatprep.subr.bf16.mxu0 %v4999
    %6629 = vmatpush1.bf16.msra.mxu0 %v4998
    %6630 = vmatprep.subr.bf16.mxu0 %v5007
    %6631 = vmatpush1.bf16.msra.mxu0 %v5006
    %6632 = vmatprep.subr.bf16.mxu0 %v5015
    %6633 = vmatpush1.bf16.msra.mxu0 %v5014
    %6634 = vmatprep.mubr.bf16.mxu0 %v1287
    %6635 = vmatmul.mubr.bf16.gmra.mrb[0].mxu0 %v1286
    %v6636 = vpop.f32.mrb[0].mxu0
    %v6637 = vadd.f32 %v6594, %v6636
    %v6638 = vpop.f32.mrb[0].mxu0
    %v6639 = vadd.f32 %v6596, %v6638
    %v6640 = vpop.f32.mrb[0].mxu0
    %v6641 = vadd.f32 %v6598, %v6640
    %v6642 = vpop.f32.mrb[0].mxu0
    %v6643 = vadd.f32 %v6600, %v6642
    %6644 = vdwg.mxu0
    %6645 = vmatprep.subr.bf16.mxu0 %v5023
    %6646 = vmatpush1.bf16.msra.mxu0 %v5022
    %6647 = vmatprep.subr.bf16.mxu0 %v5031
    %6648 = vmatpush1.bf16.msra.mxu0 %v5030
    %6649 = vmatprep.subr.bf16.mxu0 %v5039
    %6650 = vmatpush1.bf16.msra.mxu0 %v5038
    %6651 = vmatprep.subr.bf16.mxu0 %v5047
    %6652 = vmatpush1.bf16.msra.mxu0 %v5046
    %6653 = vmatprep.subr.bf16.mxu0 %v5055
    %6654 = vmatpush1.bf16.msra.mxu0 %v5054
    %6655 = vmatprep.subr.bf16.mxu0 %v5063
    %6656 = vmatpush1.bf16.msra.mxu0 %v5062
    %6657 = vmatprep.subr.bf16.mxu0 %v5071
    %6658 = vmatpush1.bf16.msra.mxu0 %v5070
    %6659 = vmatprep.subr.bf16.mxu0 %v5079
    %6660 = vmatpush1.bf16.msra.mxu0 %v5078
    %6661 = vmatprep.subr.bf16.mxu0 %v5087
    %6662 = vmatpush1.bf16.msra.mxu0 %v5086
    %6663 = vmatprep.subr.bf16.mxu0 %v5095
    %6664 = vmatpush1.bf16.msra.mxu0 %v5094
    %6665 = vmatprep.subr.bf16.mxu0 %v5103
    %6666 = vmatpush1.bf16.msra.mxu0 %v5102
    %6667 = vmatprep.subr.bf16.mxu0 %v5111
    %6668 = vmatpush1.bf16.msra.mxu0 %v5110
    %6669 = vmatprep.subr.bf16.mxu0 %v5119
    %6670 = vmatpush1.bf16.msra.mxu0 %v5118
    %6671 = vmatprep.subr.bf16.mxu0 %v5127
    %6672 = vmatpush1.bf16.msra.mxu0 %v5126
    %6673 = vmatprep.subr.bf16.mxu0 %v5135
    %6674 = vmatpush1.bf16.msra.mxu0 %v5134
    %6675 = vmatprep.subr.bf16.mxu0 %v5143
    %6676 = vmatpush1.bf16.msra.mxu0 %v5142
    %6677 = vmatprep.mubr.bf16.mxu0 %v1289
    %6678 = vmatmul.mubr.bf16.gmra.mrb[0].mxu0 %v1288
    %v6679 = vpop.f32.mrb[0].mxu0
    %v6680 = vadd.f32 %v6637, %v6679
    %v6681 = vpop.f32.mrb[0].mxu0
    %v6682 = vadd.f32 %v6639, %v6681
    %v6683 = vpop.f32.mrb[0].mxu0
    %v6684 = vadd.f32 %v6641, %v6683
    %v6685 = vpop.f32.mrb[0].mxu0
    %v6686 = vadd.f32 %v6643, %v6685
    %6687 = vdwg.mxu0
    %6688 = vmatprep.subr.bf16.mxu0 %v5151
    %6689 = vmatpush1.bf16.msra.mxu0 %v5150
    %6690 = vmatprep.subr.bf16.mxu0 %v5159
    %6691 = vmatpush1.bf16.msra.mxu0 %v5158
    %6692 = vmatprep.subr.bf16.mxu0 %v5167
    %6693 = vmatpush1.bf16.msra.mxu0 %v5166
    %6694 = vmatprep.subr.bf16.mxu0 %v5175
    %6695 = vmatpush1.bf16.msra.mxu0 %v5174
    %6696 = vmatprep.subr.bf16.mxu0 %v5183
    %6697 = vmatpush1.bf16.msra.mxu0 %v5182
    %6698 = vmatprep.subr.bf16.mxu0 %v5191
    %6699 = vmatpush1.bf16.msra.mxu0 %v5190
    %6700 = vmatprep.subr.bf16.mxu0 %v5199
    %6701 = vmatpush1.bf16.msra.mxu0 %v5198
    %6702 = vmatprep.subr.bf16.mxu0 %v5207
    %6703 = vmatpush1.bf16.msra.mxu0 %v5206
    %6704 = vmatprep.subr.bf16.mxu0 %v5215
    %6705 = vmatpush1.bf16.msra.mxu0 %v5214
    %6706 = vmatprep.subr.bf16.mxu0 %v5223
    %6707 = vmatpush1.bf16.msra.mxu0 %v5222
    %6708 = vmatprep.subr.bf16.mxu0 %v5231
    %6709 = vmatpush1.bf16.msra.mxu0 %v5230
    %6710 = vmatprep.subr.bf16.mxu0 %v5239
    %6711 = vmatpush1.bf16.msra.mxu0 %v5238
    %6712 = vmatprep.subr.bf16.mxu0 %v5247
    %6713 = vmatpush1.bf16.msra.mxu0 %v5246
    %6714 = vmatprep.subr.bf16.mxu0 %v5255
    %6715 = vmatpush1.bf16.msra.mxu0 %v5254
    %6716 = vmatprep.subr.bf16.mxu0 %v5263
    %6717 = vmatpush1.bf16.msra.mxu0 %v5262
    %6718 = vmatprep.subr.bf16.mxu0 %v5271
    %6719 = vmatpush1.bf16.msra.mxu0 %v5270
    %6720 = vmatprep.mubr.bf16.mxu0 %v1291
    %6721 = vmatmul.mubr.bf16.gmra.mrb[0].mxu0 %v1290
    %v6722 = vpop.f32.mrb[0].mxu0
    %v6723 = vadd.f32 %v6680, %v6722
    %v6724 = vpop.f32.mrb[0].mxu0
    %v6725 = vadd.f32 %v6682, %v6724
    %v6726 = vpop.f32.mrb[0].mxu0
    %v6727 = vadd.f32 %v6684, %v6726
    %v6728 = vpop.f32.mrb[0].mxu0
    %v6729 = vadd.f32 %v6686, %v6728
    %6730 = vdwg.mxu0
    %6731 = vmatprep.subr.bf16.mxu0 %v5279
    %6732 = vmatpush1.bf16.msra.mxu0 %v5278
    %6733 = vmatprep.subr.bf16.mxu0 %v5287
    %6734 = vmatpush1.bf16.msra.mxu0 %v5286
    %6735 = vmatprep.subr.bf16.mxu0 %v5295
    %6736 = vmatpush1.bf16.msra.mxu0 %v5294
    %6737 = vmatprep.subr.bf16.mxu0 %v5303
    %6738 = vmatpush1.bf16.msra.mxu0 %v5302
    %6739 = vmatprep.subr.bf16.mxu0 %v5311
    %6740 = vmatpush1.bf16.msra.mxu0 %v5310
    %6741 = vmatprep.subr.bf16.mxu0 %v5319
    %6742 = vmatpush1.bf16.msra.mxu0 %v5318
    %6743 = vmatprep.subr.bf16.mxu0 %v5327
    %6744 = vmatpush1.bf16.msra.mxu0 %v5326
    %6745 = vmatprep.subr.bf16.mxu0 %v5335
    %6746 = vmatpush1.bf16.msra.mxu0 %v5334
    %6747 = vmatprep.subr.bf16.mxu0 %v5343
    %6748 = vmatpush1.bf16.msra.mxu0 %v5342
    %6749 = vmatprep.subr.bf16.mxu0 %v5351
    %6750 = vmatpush1.bf16.msra.mxu0 %v5350
    %6751 = vmatprep.subr.bf16.mxu0 %v5359
    %6752 = vmatpush1.bf16.msra.mxu0 %v5358
    %6753 = vmatprep.subr.bf16.mxu0 %v5367
    %6754 = vmatpush1.bf16.msra.mxu0 %v5366
    %6755 = vmatprep.subr.bf16.mxu0 %v5375
    %6756 = vmatpush1.bf16.msra.mxu0 %v5374
    %6757 = vmatprep.subr.bf16.mxu0 %v5383
    %6758 = vmatpush1.bf16.msra.mxu0 %v5382
    %6759 = vmatprep.subr.bf16.mxu0 %v5391
    %6760 = vmatpush1.bf16.msra.mxu0 %v5390
    %6761 = vmatprep.subr.bf16.mxu0 %v5399
    %6762 = vmatpush1.bf16.msra.mxu0 %v5398
    %6763 = vmatprep.mubr.bf16.mxu0 %v1293
    %6764 = vmatmul.mubr.bf16.gmra.mrb[0].mxu0 %v1292
    %v6765 = vpop.f32.mrb[0].mxu0
    %v6766 = vadd.f32 %v6723, %v6765
    %v6767 = vpop.f32.mrb[0].mxu0
    %v6768 = vadd.f32 %v6725, %v6767
    %v6769 = vpop.f32.mrb[0].mxu0
    %v6770 = vadd.f32 %v6727, %v6769
    %v6771 = vpop.f32.mrb[0].mxu0
    %v6772 = vadd.f32 %v6729, %v6771
    %6773 = vdwg.mxu0
    %6774 = vmatprep.subr.bf16.mxu0 %v4385
    %6775 = vmatpush1.bf16.msra.mxu0 %v4384
    %6776 = vmatprep.subr.bf16.mxu0 %v4393
    %6777 = vmatpush1.bf16.msra.mxu0 %v4392
    %6778 = vmatprep.subr.bf16.mxu0 %v4401
    %6779 = vmatpush1.bf16.msra.mxu0 %v4400
    %6780 = vmatprep.subr.bf16.mxu0 %v4409
    %6781 = vmatpush1.bf16.msra.mxu0 %v4408
    %6782 = vmatprep.subr.bf16.mxu0 %v4417
    %6783 = vmatpush1.bf16.msra.mxu0 %v4416
    %6784 = vmatprep.subr.bf16.mxu0 %v4425
    %6785 = vmatpush1.bf16.msra.mxu0 %v4424
    %6786 = vmatprep.subr.bf16.mxu0 %v4433
    %6787 = vmatpush1.bf16.msra.mxu0 %v4432
    %6788 = vmatprep.subr.bf16.mxu0 %v4441
    %6789 = vmatpush1.bf16.msra.mxu0 %v4440
    %6790 = vmatprep.subr.bf16.mxu0 %v4449
    %6791 = vmatpush1.bf16.msra.mxu0 %v4448
    %6792 = vmatprep.subr.bf16.mxu0 %v4457
    %6793 = vmatpush1.bf16.msra.mxu0 %v4456
    %6794 = vmatprep.subr.bf16.mxu0 %v4465
    %6795 = vmatpush1.bf16.msra.mxu0 %v4464
    %6796 = vmatprep.subr.bf16.mxu0 %v4473
    %6797 = vmatpush1.bf16.msra.mxu0 %v4472
    %6798 = vmatprep.subr.bf16.mxu0 %v4481
    %6799 = vmatpush1.bf16.msra.mxu0 %v4480
    %6800 = vmatprep.subr.bf16.mxu0 %v4489
    %6801 = vmatpush1.bf16.msra.mxu0 %v4488
    %6802 = vmatprep.subr.bf16.mxu0 %v4497
    %6803 = vmatpush1.bf16.msra.mxu0 %v4496
    %6804 = vmatprep.subr.bf16.mxu0 %v4505
    %6805 = vmatpush1.bf16.msra.mxu0 %v4504
    %6806 = vmatprep.mubr.bf16.mxu0 %v1279
    %6807 = vmatmul.mubr.bf16.gmra.mrb[0].mxu0 %v1278
    %v6808 = vpop.f32.mrb[0].mxu0
    %v6809 = vadd.f32 %v1201, %v6808
    %v6810 = vpop.f32.mrb[0].mxu0
    %v6811 = vadd.f32 %v1205, %v6810
    %v6812 = vpop.f32.mrb[0].mxu0
    %v6813 = vadd.f32 %v1201, %v6812
    %v6814 = vpop.f32.mrb[0].mxu0
    %v6815 = vadd.f32 %v1205, %v6814
    %6816 = vdwg.mxu0
    %6817 = vmatprep.subr.bf16.mxu0 %v4513
    %6818 = vmatpush1.bf16.msra.mxu0 %v4512
    %6819 = vmatprep.subr.bf16.mxu0 %v4521
    %6820 = vmatpush1.bf16.msra.mxu0 %v4520
    %6821 = vmatprep.subr.bf16.mxu0 %v4529
    %6822 = vmatpush1.bf16.msra.mxu0 %v4528
    %6823 = vmatprep.subr.bf16.mxu0 %v4537
    %6824 = vmatpush1.bf16.msra.mxu0 %v4536
    %6825 = vmatprep.subr.bf16.mxu0 %v4545
    %6826 = vmatpush1.bf16.msra.mxu0 %v4544
    %6827 = vmatprep.subr.bf16.mxu0 %v4553
    %6828 = vmatpush1.bf16.msra.mxu0 %v4552
    %6829 = vmatprep.subr.bf16.mxu0 %v4561
    %6830 = vmatpush1.bf16.msra.mxu0 %v4560
    %6831 = vmatprep.subr.bf16.mxu0 %v4569
    %6832 = vmatpush1.bf16.msra.mxu0 %v4568
    %6833 = vmatprep.subr.bf16.mxu0 %v4577
    %6834 = vmatpush1.bf16.msra.mxu0 %v4576
    %6835 = vmatprep.subr.bf16.mxu0 %v4585
    %6836 = vmatpush1.bf16.msra.mxu0 %v4584
    %6837 = vmatprep.subr.bf16.mxu0 %v4593
    %6838 = vmatpush1.bf16.msra.mxu0 %v4592
    %6839 = vmatprep.subr.bf16.mxu0 %v4601
    %6840 = vmatpush1.bf16.msra.mxu0 %v4600
    %6841 = vmatprep.subr.bf16.mxu0 %v4609
    %6842 = vmatpush1.bf16.msra.mxu0 %v4608
    %6843 = vmatprep.subr.bf16.mxu0 %v4617
    %6844 = vmatpush1.bf16.msra.mxu0 %v4616
    %6845 = vmatprep.subr.bf16.mxu0 %v4625
    %6846 = vmatpush1.bf16.msra.mxu0 %v4624
    %6847 = vmatprep.subr.bf16.mxu0 %v4633
    %6848 = vmatpush1.bf16.msra.mxu0 %v4632
    %6849 = vmatprep.mubr.bf16.mxu0 %v1281
    %6850 = vmatmul.mubr.bf16.gmra.mrb[0].mxu0 %v1280
    %v6851 = vpop.f32.mrb[0].mxu0
    %v6852 = vadd.f32 %v6809, %v6851
    %v6853 = vpop.f32.mrb[0].mxu0
    %v6854 = vadd.f32 %v6811, %v6853
    %v6855 = vpop.f32.mrb[0].mxu0
    %v6856 = vadd.f32 %v6813, %v6855
    %v6857 = vpop.f32.mrb[0].mxu0
    %v6858 = vadd.f32 %v6815, %v6857
    %6859 = vdwg.mxu0
    %6860 = vmatprep.subr.bf16.mxu0 %v4641
    %6861 = vmatpush1.bf16.msra.mxu0 %v4640
    %6862 = vmatprep.subr.bf16.mxu0 %v4649
    %6863 = vmatpush1.bf16.msra.mxu0 %v4648
    %6864 = vmatprep.subr.bf16.mxu0 %v4657
    %6865 = vmatpush1.bf16.msra.mxu0 %v4656
    %6866 = vmatprep.subr.bf16.mxu0 %v4665
    %6867 = vmatpush1.bf16.msra.mxu0 %v4664
    %6868 = vmatprep.subr.bf16.mxu0 %v4673
    %6869 = vmatpush1.bf16.msra.mxu0 %v4672
    %6870 = vmatprep.subr.bf16.mxu0 %v4681
    %6871 = vmatpush1.bf16.msra.mxu0 %v4680
    %6872 = vmatprep.subr.bf16.mxu0 %v4689
    %6873 = vmatpush1.bf16.msra.mxu0 %v4688
    %6874 = vmatprep.subr.bf16.mxu0 %v4697
    %6875 = vmatpush1.bf16.msra.mxu0 %v4696
    %6876 = vmatprep.subr.bf16.mxu0 %v4705
    %6877 = vmatpush1.bf16.msra.mxu0 %v4704
    %6878 = vmatprep.subr.bf16.mxu0 %v4713
    %6879 = vmatpush1.bf16.msra.mxu0 %v4712
    %6880 = vmatprep.subr.bf16.mxu0 %v4721
    %6881 = vmatpush1.bf16.msra.mxu0 %v4720
    %6882 = vmatprep.subr.bf16.mxu0 %v4729
    %6883 = vmatpush1.bf16.msra.mxu0 %v4728
    %6884 = vmatprep.subr.bf16.mxu0 %v4737
    %6885 = vmatpush1.bf16.msra.mxu0 %v4736
    %6886 = vmatprep.subr.bf16.mxu0 %v4745
    %6887 = vmatpush1.bf16.msra.mxu0 %v4744
    %6888 = vmatprep.subr.bf16.mxu0 %v4753
    %6889 = vmatpush1.bf16.msra.mxu0 %v4752
    %6890 = vmatprep.subr.bf16.mxu0 %v4761
    %6891 = vmatpush1.bf16.msra.mxu0 %v4760
    %6892 = vmatprep.mubr.bf16.mxu0 %v1283
    %6893 = vmatmul.mubr.bf16.gmra.mrb[0].mxu0 %v1282
    %v6894 = vpop.f32.mrb[0].mxu0
    %v6895 = vadd.f32 %v6852, %v6894
    %v6896 = vpop.f32.mrb[0].mxu0
    %v6897 = vadd.f32 %v6854, %v6896
    %v6898 = vpop.f32.mrb[0].mxu0
    %v6899 = vadd.f32 %v6856, %v6898
    %v6900 = vpop.f32.mrb[0].mxu0
    %v6901 = vadd.f32 %v6858, %v6900
    %6902 = vdwg.mxu0
    %6903 = vmatprep.subr.bf16.mxu0 %v4769
    %6904 = vmatpush1.bf16.msra.mxu0 %v4768
    %6905 = vmatprep.subr.bf16.mxu0 %v4777
    %6906 = vmatpush1.bf16.msra.mxu0 %v4776
    %6907 = vmatprep.subr.bf16.mxu0 %v4785
    %6908 = vmatpush1.bf16.msra.mxu0 %v4784
    %6909 = vmatprep.subr.bf16.mxu0 %v4793
    %6910 = vmatpush1.bf16.msra.mxu0 %v4792
    %6911 = vmatprep.subr.bf16.mxu0 %v4801
    %6912 = vmatpush1.bf16.msra.mxu0 %v4800
    %6913 = vmatprep.subr.bf16.mxu0 %v4809
    %6914 = vmatpush1.bf16.msra.mxu0 %v4808
    %6915 = vmatprep.subr.bf16.mxu0 %v4817
    %6916 = vmatpush1.bf16.msra.mxu0 %v4816
    %6917 = vmatprep.subr.bf16.mxu0 %v4825
    %6918 = vmatpush1.bf16.msra.mxu0 %v4824
    %6919 = vmatprep.subr.bf16.mxu0 %v4833
    %6920 = vmatpush1.bf16.msra.mxu0 %v4832
    %6921 = vmatprep.subr.bf16.mxu0 %v4841
    %6922 = vmatpush1.bf16.msra.mxu0 %v4840
    %6923 = vmatprep.subr.bf16.mxu0 %v4849
    %6924 = vmatpush1.bf16.msra.mxu0 %v4848
    %6925 = vmatprep.subr.bf16.mxu0 %v4857
    %6926 = vmatpush1.bf16.msra.mxu0 %v4856
    %6927 = vmatprep.subr.bf16.mxu0 %v4865
    %6928 = vmatpush1.bf16.msra.mxu0 %v4864
    %6929 = vmatprep.subr.bf16.mxu0 %v4873
    %6930 = vmatpush1.bf16.msra.mxu0 %v4872
    %6931 = vmatprep.subr.bf16.mxu0 %v4881
    %6932 = vmatpush1.bf16.msra.mxu0 %v4880
    %6933 = vmatprep.subr.bf16.mxu0 %v4889
    %6934 = vmatpush1.bf16.msra.mxu0 %v4888
    %6935 = vmatprep.mubr.bf16.mxu0 %v1285
    %6936 = vmatmul.mubr.bf16.gmra.mrb[0].mxu0 %v1284
    %v6937 = vpop.f32.mrb[0].mxu0
    %v6938 = vadd.f32 %v6895, %v6937
    %v6939 = vpop.f32.mrb[0].mxu0
    %v6940 = vadd.f32 %v6897, %v6939
    %v6941 = vpop.f32.mrb[0].mxu0
    %v6942 = vadd.f32 %v6899, %v6941
    %v6943 = vpop.f32.mrb[0].mxu0
    %v6944 = vadd.f32 %v6901, %v6943
    %6945 = vdwg.mxu0
    %6946 = vmatprep.subr.bf16.mxu0 %v4897
    %6947 = vmatpush1.bf16.msra.mxu0 %v4896
    %6948 = vmatprep.subr.bf16.mxu0 %v4905
    %6949 = vmatpush1.bf16.msra.mxu0 %v4904
    %6950 = vmatprep.subr.bf16.mxu0 %v4913
    %6951 = vmatpush1.bf16.msra.mxu0 %v4912
    %6952 = vmatprep.subr.bf16.mxu0 %v4921
    %6953 = vmatpush1.bf16.msra.mxu0 %v4920
    %6954 = vmatprep.subr.bf16.mxu0 %v4929
    %6955 = vmatpush1.bf16.msra.mxu0 %v4928
    %6956 = vmatprep.subr.bf16.mxu0 %v4937
    %6957 = vmatpush1.bf16.msra.mxu0 %v4936
    %6958 = vmatprep.subr.bf16.mxu0 %v4945
    %6959 = vmatpush1.bf16.msra.mxu0 %v4944
    %6960 = vmatprep.subr.bf16.mxu0 %v4953
    %6961 = vmatpush1.bf16.msra.mxu0 %v4952
    %6962 = vmatprep.subr.bf16.mxu0 %v4961
    %6963 = vmatpush1.bf16.msra.mxu0 %v4960
    %6964 = vmatprep.subr.bf16.mxu0 %v4969
    %6965 = vmatpush1.bf16.msra.mxu0 %v4968
    %6966 = vmatprep.subr.bf16.mxu0 %v4977
    %6967 = vmatpush1.bf16.msra.mxu0 %v4976
    %6968 = vmatprep.subr.bf16.mxu0 %v4985
    %6969 = vmatpush1.bf16.msra.mxu0 %v4984
    %6970 = vmatprep.subr.bf16.mxu0 %v4993
    %6971 = vmatpush1.bf16.msra.mxu0 %v4992
    %6972 = vmatprep.subr.bf16.mxu0 %v5001
    %6973 = vmatpush1.bf16.msra.mxu0 %v5000
    %6974 = vmatprep.subr.bf16.mxu0 %v5009
    %6975 = vmatpush1.bf16.msra.mxu0 %v5008
    %6976 = vmatprep.subr.bf16.mxu0 %v5017
    %6977 = vmatpush1.bf16.msra.mxu0 %v5016
    %6978 = vmatprep.mubr.bf16.mxu0 %v1287
    %6979 = vmatmul.mubr.bf16.gmra.mrb[0].mxu0 %v1286
    %v6980 = vpop.f32.mrb[0].mxu0
    %v6981 = vadd.f32 %v6938, %v6980
    %v6982 = vpop.f32.mrb[0].mxu0
    %v6983 = vadd.f32 %v6940, %v6982
    %v6984 = vpop.f32.mrb[0].mxu0
    %v6985 = vadd.f32 %v6942, %v6984
    %v6986 = vpop.f32.mrb[0].mxu0
    %v6987 = vadd.f32 %v6944, %v6986
    %6988 = vdwg.mxu0
    %6989 = vmatprep.subr.bf16.mxu0 %v5025
    %6990 = vmatpush1.bf16.msra.mxu0 %v5024
    %6991 = vmatprep.subr.bf16.mxu0 %v5033
    %6992 = vmatpush1.bf16.msra.mxu0 %v5032
    %6993 = vmatprep.subr.bf16.mxu0 %v5041
    %6994 = vmatpush1.bf16.msra.mxu0 %v5040
    %6995 = vmatprep.subr.bf16.mxu0 %v5049
    %6996 = vmatpush1.bf16.msra.mxu0 %v5048
    %6997 = vmatprep.subr.bf16.mxu0 %v5057
    %6998 = vmatpush1.bf16.msra.mxu0 %v5056
    %6999 = vmatprep.subr.bf16.mxu0 %v5065
    %7000 = vmatpush1.bf16.msra.mxu0 %v5064
    %7001 = vmatprep.subr.bf16.mxu0 %v5073
    %7002 = vmatpush1.bf16.msra.mxu0 %v5072
    %7003 = vmatprep.subr.bf16.mxu0 %v5081
    %7004 = vmatpush1.bf16.msra.mxu0 %v5080
    %7005 = vmatprep.subr.bf16.mxu0 %v5089
    %7006 = vmatpush1.bf16.msra.mxu0 %v5088
    %7007 = vmatprep.subr.bf16.mxu0 %v5097
    %7008 = vmatpush1.bf16.msra.mxu0 %v5096
    %7009 = vmatprep.subr.bf16.mxu0 %v5105
    %7010 = vmatpush1.bf16.msra.mxu0 %v5104
    %7011 = vmatprep.subr.bf16.mxu0 %v5113
    %7012 = vmatpush1.bf16.msra.mxu0 %v5112
    %7013 = vmatprep.subr.bf16.mxu0 %v5121
    %7014 = vmatpush1.bf16.msra.mxu0 %v5120
    %7015 = vmatprep.subr.bf16.mxu0 %v5129
    %7016 = vmatpush1.bf16.msra.mxu0 %v5128
    %7017 = vmatprep.subr.bf16.mxu0 %v5137
    %7018 = vmatpush1.bf16.msra.mxu0 %v5136
    %7019 = vmatprep.subr.bf16.mxu0 %v5145
    %7020 = vmatpush1.bf16.msra.mxu0 %v5144
    %7021 = vmatprep.mubr.bf16.mxu0 %v1289
    %7022 = vmatmul.mubr.bf16.gmra.mrb[0].mxu0 %v1288
    %v7023 = vpop.f32.mrb[0].mxu0
    %v7024 = vadd.f32 %v6981, %v7023
    %v7025 = vpop.f32.mrb[0].mxu0
    %v7026 = vadd.f32 %v6983, %v7025
    %v7027 = vpop.f32.mrb[0].mxu0
    %v7028 = vadd.f32 %v6985, %v7027
    %v7029 = vpop.f32.mrb[0].mxu0
    %v7030 = vadd.f32 %v6987, %v7029
    %7031 = vdwg.mxu0
    %7032 = vmatprep.subr.bf16.mxu0 %v5153
    %7033 = vmatpush1.bf16.msra.mxu0 %v5152
    %7034 = vmatprep.subr.bf16.mxu0 %v5161
    %7035 = vmatpush1.bf16.msra.mxu0 %v5160
    %7036 = vmatprep.subr.bf16.mxu0 %v5169
    %7037 = vmatpush1.bf16.msra.mxu0 %v5168
    %7038 = vmatprep.subr.bf16.mxu0 %v5177
    %7039 = vmatpush1.bf16.msra.mxu0 %v5176
    %7040 = vmatprep.subr.bf16.mxu0 %v5185
    %7041 = vmatpush1.bf16.msra.mxu0 %v5184
    %7042 = vmatprep.subr.bf16.mxu0 %v5193
    %7043 = vmatpush1.bf16.msra.mxu0 %v5192
    %7044 = vmatprep.subr.bf16.mxu0 %v5201
    %7045 = vmatpush1.bf16.msra.mxu0 %v5200
    %7046 = vmatprep.subr.bf16.mxu0 %v5209
    %7047 = vmatpush1.bf16.msra.mxu0 %v5208
    %7048 = vmatprep.subr.bf16.mxu0 %v5217
    %7049 = vmatpush1.bf16.msra.mxu0 %v5216
    %7050 = vmatprep.subr.bf16.mxu0 %v5225
    %7051 = vmatpush1.bf16.msra.mxu0 %v5224
    %7052 = vmatprep.subr.bf16.mxu0 %v5233
    %7053 = vmatpush1.bf16.msra.mxu0 %v5232
    %7054 = vmatprep.subr.bf16.mxu0 %v5241
    %7055 = vmatpush1.bf16.msra.mxu0 %v5240
    %7056 = vmatprep.subr.bf16.mxu0 %v5249
    %7057 = vmatpush1.bf16.msra.mxu0 %v5248
    %7058 = vmatprep.subr.bf16.mxu0 %v5257
    %7059 = vmatpush1.bf16.msra.mxu0 %v5256
    %7060 = vmatprep.subr.bf16.mxu0 %v5265
    %7061 = vmatpush1.bf16.msra.mxu0 %v5264
    %7062 = vmatprep.subr.bf16.mxu0 %v5273
    %7063 = vmatpush1.bf16.msra.mxu0 %v5272
    %7064 = vmatprep.mubr.bf16.mxu0 %v1291
    %7065 = vmatmul.mubr.bf16.gmra.mrb[0].mxu0 %v1290
    %v7066 = vpop.f32.mrb[0].mxu0
    %v7067 = vadd.f32 %v7024, %v7066
    %v7068 = vpop.f32.mrb[0].mxu0
    %v7069 = vadd.f32 %v7026, %v7068
    %v7070 = vpop.f32.mrb[0].mxu0
    %v7071 = vadd.f32 %v7028, %v7070
    %v7072 = vpop.f32.mrb[0].mxu0
    %v7073 = vadd.f32 %v7030, %v7072
    %7074 = vdwg.mxu0
    %7075 = vmatprep.subr.bf16.mxu0 %v5281
    %7076 = vmatpush1.bf16.msra.mxu0 %v5280
    %7077 = vmatprep.subr.bf16.mxu0 %v5289
    %7078 = vmatpush1.bf16.msra.mxu0 %v5288
    %7079 = vmatprep.subr.bf16.mxu0 %v5297
    %7080 = vmatpush1.bf16.msra.mxu0 %v5296
    %7081 = vmatprep.subr.bf16.mxu0 %v5305
    %7082 = vmatpush1.bf16.msra.mxu0 %v5304
    %7083 = vmatprep.subr.bf16.mxu0 %v5313
    %7084 = vmatpush1.bf16.msra.mxu0 %v5312
    %7085 = vmatprep.subr.bf16.mxu0 %v5321
    %7086 = vmatpush1.bf16.msra.mxu0 %v5320
    %7087 = vmatprep.subr.bf16.mxu0 %v5329
    %7088 = vmatpush1.bf16.msra.mxu0 %v5328
    %7089 = vmatprep.subr.bf16.mxu0 %v5337
    %7090 = vmatpush1.bf16.msra.mxu0 %v5336
    %7091 = vmatprep.subr.bf16.mxu0 %v5345
    %7092 = vmatpush1.bf16.msra.mxu0 %v5344
    %7093 = vmatprep.subr.bf16.mxu0 %v5353
    %7094 = vmatpush1.bf16.msra.mxu0 %v5352
    %7095 = vmatprep.subr.bf16.mxu0 %v5361
    %7096 = vmatpush1.bf16.msra.mxu0 %v5360
    %7097 = vmatprep.subr.bf16.mxu0 %v5369
    %7098 = vmatpush1.bf16.msra.mxu0 %v5368
    %7099 = vmatprep.subr.bf16.mxu0 %v5377
    %7100 = vmatpush1.bf16.msra.mxu0 %v5376
    %7101 = vmatprep.subr.bf16.mxu0 %v5385
    %7102 = vmatpush1.bf16.msra.mxu0 %v5384
    %7103 = vmatprep.subr.bf16.mxu0 %v5393
    %7104 = vmatpush1.bf16.msra.mxu0 %v5392
    %7105 = vmatprep.subr.bf16.mxu0 %v5401
    %7106 = vmatpush1.bf16.msra.mxu0 %v5400
    %7107 = vmatprep.mubr.bf16.mxu0 %v1293
    %7108 = vmatmul.mubr.bf16.gmra.mrb[0].mxu0 %v1292
    %v7109 = vpop.f32.mrb[0].mxu0
    %v7110 = vadd.f32 %v7067, %v7109
    %v7111 = vpop.f32.mrb[0].mxu0
    %v7112 = vadd.f32 %v7069, %v7111
    %v7113 = vpop.f32.mrb[0].mxu0
    %v7114 = vadd.f32 %v7071, %v7113
    %v7115 = vpop.f32.mrb[0].mxu0
    %v7116 = vadd.f32 %v7073, %v7115
    %7117 = vdwg.mxu0
    %7118 = vmatprep.subr.bf16.mxu0 %v4387
    %7119 = vmatpush1.bf16.msra.mxu0 %v4386
    %7120 = vmatprep.subr.bf16.mxu0 %v4395
    %7121 = vmatpush1.bf16.msra.mxu0 %v4394
    %7122 = vmatprep.subr.bf16.mxu0 %v4403
    %7123 = vmatpush1.bf16.msra.mxu0 %v4402
    %7124 = vmatprep.subr.bf16.mxu0 %v4411
    %7125 = vmatpush1.bf16.msra.mxu0 %v4410
    %7126 = vmatprep.subr.bf16.mxu0 %v4419
    %7127 = vmatpush1.bf16.msra.mxu0 %v4418
    %7128 = vmatprep.subr.bf16.mxu0 %v4427
    %7129 = vmatpush1.bf16.msra.mxu0 %v4426
    %7130 = vmatprep.subr.bf16.mxu0 %v4435
    %7131 = vmatpush1.bf16.msra.mxu0 %v4434
    %7132 = vmatprep.subr.bf16.mxu0 %v4443
    %7133 = vmatpush1.bf16.msra.mxu0 %v4442
    %7134 = vmatprep.subr.bf16.mxu0 %v4451
    %7135 = vmatpush1.bf16.msra.mxu0 %v4450
    %7136 = vmatprep.subr.bf16.mxu0 %v4459
    %7137 = vmatpush1.bf16.msra.mxu0 %v4458
    %7138 = vmatprep.subr.bf16.mxu0 %v4467
    %7139 = vmatpush1.bf16.msra.mxu0 %v4466
    %7140 = vmatprep.subr.bf16.mxu0 %v4475
    %7141 = vmatpush1.bf16.msra.mxu0 %v4474
    %7142 = vmatprep.subr.bf16.mxu0 %v4483
    %7143 = vmatpush1.bf16.msra.mxu0 %v4482
    %7144 = vmatprep.subr.bf16.mxu0 %v4491
    %7145 = vmatpush1.bf16.msra.mxu0 %v4490
    %7146 = vmatprep.subr.bf16.mxu0 %v4499
    %7147 = vmatpush1.bf16.msra.mxu0 %v4498
    %7148 = vmatprep.subr.bf16.mxu0 %v4507
    %7149 = vmatpush1.bf16.msra.mxu0 %v4506
    %7150 = vmatprep.mubr.bf16.mxu0 %v1279
    %7151 = vmatmul.mubr.bf16.gmra.mrb[0].mxu0 %v1278
    %v7152 = vpop.f32.mrb[0].mxu0
    %v7153 = vadd.f32 %v1209, %v7152
    %v7154 = vpop.f32.mrb[0].mxu0
    %v7155 = vadd.f32 %v1213, %v7154
    %v7156 = vpop.f32.mrb[0].mxu0
    %v7157 = vadd.f32 %v1209, %v7156
    %v7158 = vpop.f32.mrb[0].mxu0
    %v7159 = vadd.f32 %v1213, %v7158
    %7160 = vdwg.mxu0
    %7161 = vmatprep.subr.bf16.mxu0 %v4515
    %7162 = vmatpush1.bf16.msra.mxu0 %v4514
    %7163 = vmatprep.subr.bf16.mxu0 %v4523
    %7164 = vmatpush1.bf16.msra.mxu0 %v4522
    %7165 = vmatprep.subr.bf16.mxu0 %v4531
    %7166 = vmatpush1.bf16.msra.mxu0 %v4530
    %7167 = vmatprep.subr.bf16.mxu0 %v4539
    %7168 = vmatpush1.bf16.msra.mxu0 %v4538
    %7169 = vmatprep.subr.bf16.mxu0 %v4547
    %7170 = vmatpush1.bf16.msra.mxu0 %v4546
    %7171 = vmatprep.subr.bf16.mxu0 %v4555
    %7172 = vmatpush1.bf16.msra.mxu0 %v4554
    %7173 = vmatprep.subr.bf16.mxu0 %v4563
    %7174 = vmatpush1.bf16.msra.mxu0 %v4562
    %7175 = vmatprep.subr.bf16.mxu0 %v4571
    %7176 = vmatpush1.bf16.msra.mxu0 %v4570
    %7177 = vmatprep.subr.bf16.mxu0 %v4579
    %7178 = vmatpush1.bf16.msra.mxu0 %v4578
    %7179 = vmatprep.subr.bf16.mxu0 %v4587
    %7180 = vmatpush1.bf16.msra.mxu0 %v4586
    %7181 = vmatprep.subr.bf16.mxu0 %v4595
    %7182 = vmatpush1.bf16.msra.mxu0 %v4594
    %7183 = vmatprep.subr.bf16.mxu0 %v4603
    %7184 = vmatpush1.bf16.msra.mxu0 %v4602
    %7185 = vmatprep.subr.bf16.mxu0 %v4611
    %7186 = vmatpush1.bf16.msra.mxu0 %v4610
    %7187 = vmatprep.subr.bf16.mxu0 %v4619
    %7188 = vmatpush1.bf16.msra.mxu0 %v4618
    %7189 = vmatprep.subr.bf16.mxu0 %v4627
    %7190 = vmatpush1.bf16.msra.mxu0 %v4626
    %7191 = vmatprep.subr.bf16.mxu0 %v4635
    %7192 = vmatpush1.bf16.msra.mxu0 %v4634
    %7193 = vmatprep.mubr.bf16.mxu0 %v1281
    %7194 = vmatmul.mubr.bf16.gmra.mrb[0].mxu0 %v1280
    %v7195 = vpop.f32.mrb[0].mxu0
    %v7196 = vadd.f32 %v7153, %v7195
    %v7197 = vpop.f32.mrb[0].mxu0
    %v7198 = vadd.f32 %v7155, %v7197
    %v7199 = vpop.f32.mrb[0].mxu0
    %v7200 = vadd.f32 %v7157, %v7199
    %v7201 = vpop.f32.mrb[0].mxu0
    %v7202 = vadd.f32 %v7159, %v7201
    %7203 = vdwg.mxu0
    %7204 = vmatprep.subr.bf16.mxu0 %v4643
    %7205 = vmatpush1.bf16.msra.mxu0 %v4642
    %7206 = vmatprep.subr.bf16.mxu0 %v4651
    %7207 = vmatpush1.bf16.msra.mxu0 %v4650
    %7208 = vmatprep.subr.bf16.mxu0 %v4659
    %7209 = vmatpush1.bf16.msra.mxu0 %v4658
    %7210 = vmatprep.subr.bf16.mxu0 %v4667
    %7211 = vmatpush1.bf16.msra.mxu0 %v4666
    %7212 = vmatprep.subr.bf16.mxu0 %v4675
    %7213 = vmatpush1.bf16.msra.mxu0 %v4674
    %7214 = vmatprep.subr.bf16.mxu0 %v4683
    %7215 = vmatpush1.bf16.msra.mxu0 %v4682
    %7216 = vmatprep.subr.bf16.mxu0 %v4691
    %7217 = vmatpush1.bf16.msra.mxu0 %v4690
    %7218 = vmatprep.subr.bf16.mxu0 %v4699
    %7219 = vmatpush1.bf16.msra.mxu0 %v4698
    %7220 = vmatprep.subr.bf16.mxu0 %v4707
    %7221 = vmatpush1.bf16.msra.mxu0 %v4706
    %7222 = vmatprep.subr.bf16.mxu0 %v4715
    %7223 = vmatpush1.bf16.msra.mxu0 %v4714
    %7224 = vmatprep.subr.bf16.mxu0 %v4723
    %7225 = vmatpush1.bf16.msra.mxu0 %v4722
    %7226 = vmatprep.subr.bf16.mxu0 %v4731
    %7227 = vmatpush1.bf16.msra.mxu0 %v4730
    %7228 = vmatprep.subr.bf16.mxu0 %v4739
    %7229 = vmatpush1.bf16.msra.mxu0 %v4738
    %7230 = vmatprep.subr.bf16.mxu0 %v4747
    %7231 = vmatpush1.bf16.msra.mxu0 %v4746
    %7232 = vmatprep.subr.bf16.mxu0 %v4755
    %7233 = vmatpush1.bf16.msra.mxu0 %v4754
    %7234 = vmatprep.subr.bf16.mxu0 %v4763
    %7235 = vmatpush1.bf16.msra.mxu0 %v4762
    %7236 = vmatprep.mubr.bf16.mxu0 %v1283
    %7237 = vmatmul.mubr.bf16.gmra.mrb[0].mxu0 %v1282
    %v7238 = vpop.f32.mrb[0].mxu0
    %v7239 = vadd.f32 %v7196, %v7238
    %v7240 = vpop.f32.mrb[0].mxu0
    %v7241 = vadd.f32 %v7198, %v7240
    %v7242 = vpop.f32.mrb[0].mxu0
    %v7243 = vadd.f32 %v7200, %v7242
    %v7244 = vpop.f32.mrb[0].mxu0
    %v7245 = vadd.f32 %v7202, %v7244
    %7246 = vdwg.mxu0
    %7247 = vmatprep.subr.bf16.mxu0 %v4771
    %7248 = vmatpush1.bf16.msra.mxu0 %v4770
    %7249 = vmatprep.subr.bf16.mxu0 %v4779
    %7250 = vmatpush1.bf16.msra.mxu0 %v4778
    %7251 = vmatprep.subr.bf16.mxu0 %v4787
    %7252 = vmatpush1.bf16.msra.mxu0 %v4786
    %7253 = vmatprep.subr.bf16.mxu0 %v4795
    %7254 = vmatpush1.bf16.msra.mxu0 %v4794
    %7255 = vmatprep.subr.bf16.mxu0 %v4803
    %7256 = vmatpush1.bf16.msra.mxu0 %v4802
    %7257 = vmatprep.subr.bf16.mxu0 %v4811
    %7258 = vmatpush1.bf16.msra.mxu0 %v4810
    %7259 = vmatprep.subr.bf16.mxu0 %v4819
    %7260 = vmatpush1.bf16.msra.mxu0 %v4818
    %7261 = vmatprep.subr.bf16.mxu0 %v4827
    %7262 = vmatpush1.bf16.msra.mxu0 %v4826
    %7263 = vmatprep.subr.bf16.mxu0 %v4835
    %7264 = vmatpush1.bf16.msra.mxu0 %v4834
    %7265 = vmatprep.subr.bf16.mxu0 %v4843
    %7266 = vmatpush1.bf16.msra.mxu0 %v4842
    %7267 = vmatprep.subr.bf16.mxu0 %v4851
    %7268 = vmatpush1.bf16.msra.mxu0 %v4850
    %7269 = vmatprep.subr.bf16.mxu0 %v4859
    %7270 = vmatpush1.bf16.msra.mxu0 %v4858
    %7271 = vmatprep.subr.bf16.mxu0 %v4867
    %7272 = vmatpush1.bf16.msra.mxu0 %v4866
    %7273 = vmatprep.subr.bf16.mxu0 %v4875
    %7274 = vmatpush1.bf16.msra.mxu0 %v4874
    %7275 = vmatprep.subr.bf16.mxu0 %v4883
    %7276 = vmatpush1.bf16.msra.mxu0 %v4882
    %7277 = vmatprep.subr.bf16.mxu0 %v4891
    %7278 = vmatpush1.bf16.msra.mxu0 %v4890
    %7279 = vmatprep.mubr.bf16.mxu0 %v1285
    %7280 = vmatmul.mubr.bf16.gmra.mrb[0].mxu0 %v1284
    %v7281 = vpop.f32.mrb[0].mxu0
    %v7282 = vadd.f32 %v7239, %v7281
    %v7283 = vpop.f32.mrb[0].mxu0
    %v7284 = vadd.f32 %v7241, %v7283
    %v7285 = vpop.f32.mrb[0].mxu0
    %v7286 = vadd.f32 %v7243, %v7285
    %v7287 = vpop.f32.mrb[0].mxu0
    %v7288 = vadd.f32 %v7245, %v7287
    %7289 = vdwg.mxu0
    %7290 = vmatprep.subr.bf16.mxu0 %v4899
    %7291 = vmatpush1.bf16.msra.mxu0 %v4898
    %7292 = vmatprep.subr.bf16.mxu0 %v4907
    %7293 = vmatpush1.bf16.msra.mxu0 %v4906
    %7294 = vmatprep.subr.bf16.mxu0 %v4915
    %7295 = vmatpush1.bf16.msra.mxu0 %v4914
    %7296 = vmatprep.subr.bf16.mxu0 %v4923
    %7297 = vmatpush1.bf16.msra.mxu0 %v4922
    %7298 = vmatprep.subr.bf16.mxu0 %v4931
    %7299 = vmatpush1.bf16.msra.mxu0 %v4930
    %7300 = vmatprep.subr.bf16.mxu0 %v4939
    %7301 = vmatpush1.bf16.msra.mxu0 %v4938
    %7302 = vmatprep.subr.bf16.mxu0 %v4947
    %7303 = vmatpush1.bf16.msra.mxu0 %v4946
    %7304 = vmatprep.subr.bf16.mxu0 %v4955
    %7305 = vmatpush1.bf16.msra.mxu0 %v4954
    %7306 = vmatprep.subr.bf16.mxu0 %v4963
    %7307 = vmatpush1.bf16.msra.mxu0 %v4962
    %7308 = vmatprep.subr.bf16.mxu0 %v4971
    %7309 = vmatpush1.bf16.msra.mxu0 %v4970
    %7310 = vmatprep.subr.bf16.mxu0 %v4979
    %7311 = vmatpush1.bf16.msra.mxu0 %v4978
    %7312 = vmatprep.subr.bf16.mxu0 %v4987
    %7313 = vmatpush1.bf16.msra.mxu0 %v4986
    %7314 = vmatprep.subr.bf16.mxu0 %v4995
    %7315 = vmatpush1.bf16.msra.mxu0 %v4994
    %7316 = vmatprep.subr.bf16.mxu0 %v5003
    %7317 = vmatpush1.bf16.msra.mxu0 %v5002
    %7318 = vmatprep.subr.bf16.mxu0 %v5011
    %7319 = vmatpush1.bf16.msra.mxu0 %v5010
    %7320 = vmatprep.subr.bf16.mxu0 %v5019
    %7321 = vmatpush1.bf16.msra.mxu0 %v5018
    %7322 = vmatprep.mubr.bf16.mxu0 %v1287
    %7323 = vmatmul.mubr.bf16.gmra.mrb[0].mxu0 %v1286
    %v7324 = vpop.f32.mrb[0].mxu0
    %v7325 = vadd.f32 %v7282, %v7324
    %v7326 = vpop.f32.mrb[0].mxu0
    %v7327 = vadd.f32 %v7284, %v7326
    %v7328 = vpop.f32.mrb[0].mxu0
    %v7329 = vadd.f32 %v7286, %v7328
    %v7330 = vpop.f32.mrb[0].mxu0
    %v7331 = vadd.f32 %v7288, %v7330
    %7332 = vdwg.mxu0
    %7333 = vmatprep.subr.bf16.mxu0 %v5027
    %7334 = vmatpush1.bf16.msra.mxu0 %v5026
    %7335 = vmatprep.subr.bf16.mxu0 %v5035
    %7336 = vmatpush1.bf16.msra.mxu0 %v5034
    %7337 = vmatprep.subr.bf16.mxu0 %v5043
    %7338 = vmatpush1.bf16.msra.mxu0 %v5042
    %7339 = vmatprep.subr.bf16.mxu0 %v5051
    %7340 = vmatpush1.bf16.msra.mxu0 %v5050
    %7341 = vmatprep.subr.bf16.mxu0 %v5059
    %7342 = vmatpush1.bf16.msra.mxu0 %v5058
    %7343 = vmatprep.subr.bf16.mxu0 %v5067
    %7344 = vmatpush1.bf16.msra.mxu0 %v5066
    %7345 = vmatprep.subr.bf16.mxu0 %v5075
    %7346 = vmatpush1.bf16.msra.mxu0 %v5074
    %7347 = vmatprep.subr.bf16.mxu0 %v5083
    %7348 = vmatpush1.bf16.msra.mxu0 %v5082
    %7349 = vmatprep.subr.bf16.mxu0 %v5091
    %7350 = vmatpush1.bf16.msra.mxu0 %v5090
    %7351 = vmatprep.subr.bf16.mxu0 %v5099
    %7352 = vmatpush1.bf16.msra.mxu0 %v5098
    %7353 = vmatprep.subr.bf16.mxu0 %v5107
    %7354 = vmatpush1.bf16.msra.mxu0 %v5106
    %7355 = vmatprep.subr.bf16.mxu0 %v5115
    %7356 = vmatpush1.bf16.msra.mxu0 %v5114
    %7357 = vmatprep.subr.bf16.mxu0 %v5123
    %7358 = vmatpush1.bf16.msra.mxu0 %v5122
    %7359 = vmatprep.subr.bf16.mxu0 %v5131
    %7360 = vmatpush1.bf16.msra.mxu0 %v5130
    %7361 = vmatprep.subr.bf16.mxu0 %v5139
    %7362 = vmatpush1.bf16.msra.mxu0 %v5138
    %7363 = vmatprep.subr.bf16.mxu0 %v5147
    %7364 = vmatpush1.bf16.msra.mxu0 %v5146
    %7365 = vmatprep.mubr.bf16.mxu0 %v1289
    %7366 = vmatmul.mubr.bf16.gmra.mrb[0].mxu0 %v1288
    %v7367 = vpop.f32.mrb[0].mxu0
    %v7368 = vadd.f32 %v7325, %v7367
    %v7369 = vpop.f32.mrb[0].mxu0
    %v7370 = vadd.f32 %v7327, %v7369
    %v7371 = vpop.f32.mrb[0].mxu0
    %v7372 = vadd.f32 %v7329, %v7371
    %v7373 = vpop.f32.mrb[0].mxu0
    %v7374 = vadd.f32 %v7331, %v7373
    %7375 = vdwg.mxu0
    %7376 = vmatprep.subr.bf16.mxu0 %v5155
    %7377 = vmatpush1.bf16.msra.mxu0 %v5154
    %7378 = vmatprep.subr.bf16.mxu0 %v5163
    %7379 = vmatpush1.bf16.msra.mxu0 %v5162
    %7380 = vmatprep.subr.bf16.mxu0 %v5171
    %7381 = vmatpush1.bf16.msra.mxu0 %v5170
    %7382 = vmatprep.subr.bf16.mxu0 %v5179
    %7383 = vmatpush1.bf16.msra.mxu0 %v5178
    %7384 = vmatprep.subr.bf16.mxu0 %v5187
    %7385 = vmatpush1.bf16.msra.mxu0 %v5186
    %7386 = vmatprep.subr.bf16.mxu0 %v5195
    %7387 = vmatpush1.bf16.msra.mxu0 %v5194
    %7388 = vmatprep.subr.bf16.mxu0 %v5203
    %7389 = vmatpush1.bf16.msra.mxu0 %v5202
    %7390 = vmatprep.subr.bf16.mxu0 %v5211
    %7391 = vmatpush1.bf16.msra.mxu0 %v5210
    %7392 = vmatprep.subr.bf16.mxu0 %v5219
    %7393 = vmatpush1.bf16.msra.mxu0 %v5218
    %7394 = vmatprep.subr.bf16.mxu0 %v5227
    %7395 = vmatpush1.bf16.msra.mxu0 %v5226
    %7396 = vmatprep.subr.bf16.mxu0 %v5235
    %7397 = vmatpush1.bf16.msra.mxu0 %v5234
    %7398 = vmatprep.subr.bf16.mxu0 %v5243
    %7399 = vmatpush1.bf16.msra.mxu0 %v5242
    %7400 = vmatprep.subr.bf16.mxu0 %v5251
    %7401 = vmatpush1.bf16.msra.mxu0 %v5250
    %7402 = vmatprep.subr.bf16.mxu0 %v5259
    %7403 = vmatpush1.bf16.msra.mxu0 %v5258
    %7404 = vmatprep.subr.bf16.mxu0 %v5267
    %7405 = vmatpush1.bf16.msra.mxu0 %v5266
    %7406 = vmatprep.subr.bf16.mxu0 %v5275
    %7407 = vmatpush1.bf16.msra.mxu0 %v5274
    %7408 = vmatprep.mubr.bf16.mxu0 %v1291
    %7409 = vmatmul.mubr.bf16.gmra.mrb[0].mxu0 %v1290
    %v7410 = vpop.f32.mrb[0].mxu0
    %v7411 = vadd.f32 %v7368, %v7410
    %v7412 = vpop.f32.mrb[0].mxu0
    %v7413 = vadd.f32 %v7370, %v7412
    %v7414 = vpop.f32.mrb[0].mxu0
    %v7415 = vadd.f32 %v7372, %v7414
    %v7416 = vpop.f32.mrb[0].mxu0
    %v7417 = vadd.f32 %v7374, %v7416
    %7418 = vdwg.mxu0
    %7419 = vmatprep.subr.bf16.mxu0 %v5283
    %7420 = vmatpush1.bf16.msra.mxu0 %v5282
    %7421 = vmatprep.subr.bf16.mxu0 %v5291
    %7422 = vmatpush1.bf16.msra.mxu0 %v5290
    %7423 = vmatprep.subr.bf16.mxu0 %v5299
    %7424 = vmatpush1.bf16.msra.mxu0 %v5298
    %7425 = vmatprep.subr.bf16.mxu0 %v5307
    %7426 = vmatpush1.bf16.msra.mxu0 %v5306
    %7427 = vmatprep.subr.bf16.mxu0 %v5315
    %7428 = vmatpush1.bf16.msra.mxu0 %v5314
    %7429 = vmatprep.subr.bf16.mxu0 %v5323
    %7430 = vmatpush1.bf16.msra.mxu0 %v5322
    %7431 = vmatprep.subr.bf16.mxu0 %v5331
    %7432 = vmatpush1.bf16.msra.mxu0 %v5330
    %7433 = vmatprep.subr.bf16.mxu0 %v5339
    %7434 = vmatpush1.bf16.msra.mxu0 %v5338
    %7435 = vmatprep.subr.bf16.mxu0 %v5347
    %7436 = vmatpush1.bf16.msra.mxu0 %v5346
    %7437 = vmatprep.subr.bf16.mxu0 %v5355
    %7438 = vmatpush1.bf16.msra.mxu0 %v5354
    %7439 = vmatprep.subr.bf16.mxu0 %v5363
    %7440 = vmatpush1.bf16.msra.mxu0 %v5362
    %7441 = vmatprep.subr.bf16.mxu0 %v5371
    %7442 = vmatpush1.bf16.msra.mxu0 %v5370
    %7443 = vmatprep.subr.bf16.mxu0 %v5379
    %7444 = vmatpush1.bf16.msra.mxu0 %v5378
    %7445 = vmatprep.subr.bf16.mxu0 %v5387
    %7446 = vmatpush1.bf16.msra.mxu0 %v5386
    %7447 = vmatprep.subr.bf16.mxu0 %v5395
    %7448 = vmatpush1.bf16.msra.mxu0 %v5394
    %7449 = vmatprep.subr.bf16.mxu0 %v5403
    %7450 = vmatpush1.bf16.msra.mxu0 %v5402
    %7451 = vmatprep.mubr.bf16.mxu0 %v1293
    %7452 = vmatmul.mubr.bf16.gmra.mrb[0].mxu0 %v1292
    %v7453 = vpop.f32.mrb[0].mxu0
    %v7454 = vadd.f32 %v7411, %v7453
    %v7455 = vpop.f32.mrb[0].mxu0
    %v7456 = vadd.f32 %v7413, %v7455
    %v7457 = vpop.f32.mrb[0].mxu0
    %v7458 = vadd.f32 %v7415, %v7457
    %v7459 = vpop.f32.mrb[0].mxu0
    %v7460 = vadd.f32 %v7417, %v7459
    %7461 = vdwg.mxu0
    %7462 = vmatprep.subr.bf16.mxu0 %v4389
    %7463 = vmatpush1.bf16.msra.mxu0 %v4388
    %7464 = vmatprep.subr.bf16.mxu0 %v4397
    %7465 = vmatpush1.bf16.msra.mxu0 %v4396
    %7466 = vmatprep.subr.bf16.mxu0 %v4405
    %7467 = vmatpush1.bf16.msra.mxu0 %v4404
    %7468 = vmatprep.subr.bf16.mxu0 %v4413
    %7469 = vmatpush1.bf16.msra.mxu0 %v4412
    %7470 = vmatprep.subr.bf16.mxu0 %v4421
    %7471 = vmatpush1.bf16.msra.mxu0 %v4420
    %7472 = vmatprep.subr.bf16.mxu0 %v4429
    %7473 = vmatpush1.bf16.msra.mxu0 %v4428
    %7474 = vmatprep.subr.bf16.mxu0 %v4437
    %7475 = vmatpush1.bf16.msra.mxu0 %v4436
    %7476 = vmatprep.subr.bf16.mxu0 %v4445
    %7477 = vmatpush1.bf16.msra.mxu0 %v4444
    %7478 = vmatprep.subr.bf16.mxu0 %v4453
    %7479 = vmatpush1.bf16.msra.mxu0 %v4452
    %7480 = vmatprep.subr.bf16.mxu0 %v4461
    %7481 = vmatpush1.bf16.msra.mxu0 %v4460
    %7482 = vmatprep.subr.bf16.mxu0 %v4469
    %7483 = vmatpush1.bf16.msra.mxu0 %v4468
    %7484 = vmatprep.subr.bf16.mxu0 %v4477
    %7485 = vmatpush1.bf16.msra.mxu0 %v4476
    %7486 = vmatprep.subr.bf16.mxu0 %v4485
    %7487 = vmatpush1.bf16.msra.mxu0 %v4484
    %7488 = vmatprep.subr.bf16.mxu0 %v4493
    %7489 = vmatpush1.bf16.msra.mxu0 %v4492
    %7490 = vmatprep.subr.bf16.mxu0 %v4501
    %7491 = vmatpush1.bf16.msra.mxu0 %v4500
    %7492 = vmatprep.subr.bf16.mxu0 %v4509
    %7493 = vmatpush1.bf16.msra.mxu0 %v4508
    %7494 = vmatprep.mubr.bf16.mxu0 %v1279
    %7495 = vmatmul.mubr.bf16.gmra.mrb[0].mxu0 %v1278
    %v7496 = vpop.f32.mrb[0].mxu0
    %v7497 = vadd.f32 %v1217, %v7496
    %v7498 = vpop.f32.mrb[0].mxu0
    %v7499 = vadd.f32 %v1221, %v7498
    %v7500 = vpop.f32.mrb[0].mxu0
    %v7501 = vadd.f32 %v1217, %v7500
    %v7502 = vpop.f32.mrb[0].mxu0
    %v7503 = vadd.f32 %v1221, %v7502
    %7504 = vdwg.mxu0
    %7505 = vmatprep.subr.bf16.mxu0 %v4517
    %7506 = vmatpush1.bf16.msra.mxu0 %v4516
    %7507 = vmatprep.subr.bf16.mxu0 %v4525
    %7508 = vmatpush1.bf16.msra.mxu0 %v4524
    %7509 = vmatprep.subr.bf16.mxu0 %v4533
    %7510 = vmatpush1.bf16.msra.mxu0 %v4532
    %7511 = vmatprep.subr.bf16.mxu0 %v4541
    %7512 = vmatpush1.bf16.msra.mxu0 %v4540
    %7513 = vmatprep.subr.bf16.mxu0 %v4549
    %7514 = vmatpush1.bf16.msra.mxu0 %v4548
    %7515 = vmatprep.subr.bf16.mxu0 %v4557
    %7516 = vmatpush1.bf16.msra.mxu0 %v4556
    %7517 = vmatprep.subr.bf16.mxu0 %v4565
    %7518 = vmatpush1.bf16.msra.mxu0 %v4564
    %7519 = vmatprep.subr.bf16.mxu0 %v4573
    %7520 = vmatpush1.bf16.msra.mxu0 %v4572
    %7521 = vmatprep.subr.bf16.mxu0 %v4581
    %7522 = vmatpush1.bf16.msra.mxu0 %v4580
    %7523 = vmatprep.subr.bf16.mxu0 %v4589
    %7524 = vmatpush1.bf16.msra.mxu0 %v4588
    %7525 = vmatprep.subr.bf16.mxu0 %v4597
    %7526 = vmatpush1.bf16.msra.mxu0 %v4596
    %7527 = vmatprep.subr.bf16.mxu0 %v4605
    %7528 = vmatpush1.bf16.msra.mxu0 %v4604
    %7529 = vmatprep.subr.bf16.mxu0 %v4613
    %7530 = vmatpush1.bf16.msra.mxu0 %v4612
    %7531 = vmatprep.subr.bf16.mxu0 %v4621
    %7532 = vmatpush1.bf16.msra.mxu0 %v4620
    %7533 = vmatprep.subr.bf16.mxu0 %v4629
    %7534 = vmatpush1.bf16.msra.mxu0 %v4628
    %7535 = vmatprep.subr.bf16.mxu0 %v4637
    %7536 = vmatpush1.bf16.msra.mxu0 %v4636
    %7537 = vmatprep.mubr.bf16.mxu0 %v1281
    %7538 = vmatmul.mubr.bf16.gmra.mrb[0].mxu0 %v1280
    %v7539 = vpop.f32.mrb[0].mxu0
    %v7540 = vadd.f32 %v7497, %v7539
    %v7541 = vpop.f32.mrb[0].mxu0
    %v7542 = vadd.f32 %v7499, %v7541
    %v7543 = vpop.f32.mrb[0].mxu0
    %v7544 = vadd.f32 %v7501, %v7543
    %v7545 = vpop.f32.mrb[0].mxu0
    %v7546 = vadd.f32 %v7503, %v7545
    %7547 = vdwg.mxu0
    %7548 = vmatprep.subr.bf16.mxu0 %v4645
    %7549 = vmatpush1.bf16.msra.mxu0 %v4644
    %7550 = vmatprep.subr.bf16.mxu0 %v4653
    %7551 = vmatpush1.bf16.msra.mxu0 %v4652
    %7552 = vmatprep.subr.bf16.mxu0 %v4661
    %7553 = vmatpush1.bf16.msra.mxu0 %v4660
    %7554 = vmatprep.subr.bf16.mxu0 %v4669
    %7555 = vmatpush1.bf16.msra.mxu0 %v4668
    %7556 = vmatprep.subr.bf16.mxu0 %v4677
    %7557 = vmatpush1.bf16.msra.mxu0 %v4676
    %7558 = vmatprep.subr.bf16.mxu0 %v4685
    %7559 = vmatpush1.bf16.msra.mxu0 %v4684
    %7560 = vmatprep.subr.bf16.mxu0 %v4693
    %7561 = vmatpush1.bf16.msra.mxu0 %v4692
    %7562 = vmatprep.subr.bf16.mxu0 %v4701
    %7563 = vmatpush1.bf16.msra.mxu0 %v4700
    %7564 = vmatprep.subr.bf16.mxu0 %v4709
    %7565 = vmatpush1.bf16.msra.mxu0 %v4708
    %7566 = vmatprep.subr.bf16.mxu0 %v4717
    %7567 = vmatpush1.bf16.msra.mxu0 %v4716
    %7568 = vmatprep.subr.bf16.mxu0 %v4725
    %7569 = vmatpush1.bf16.msra.mxu0 %v4724
    %7570 = vmatprep.subr.bf16.mxu0 %v4733
    %7571 = vmatpush1.bf16.msra.mxu0 %v4732
    %7572 = vmatprep.subr.bf16.mxu0 %v4741
    %7573 = vmatpush1.bf16.msra.mxu0 %v4740
    %7574 = vmatprep.subr.bf16.mxu0 %v4749
    %7575 = vmatpush1.bf16.msra.mxu0 %v4748
    %7576 = vmatprep.subr.bf16.mxu0 %v4757
    %7577 = vmatpush1.bf16.msra.mxu0 %v4756
    %7578 = vmatprep.subr.bf16.mxu0 %v4765
    %7579 = vmatpush1.bf16.msra.mxu0 %v4764
    %7580 = vmatprep.mubr.bf16.mxu0 %v1283
    %7581 = vmatmul.mubr.bf16.gmra.mrb[0].mxu0 %v1282
    %v7582 = vpop.f32.mrb[0].mxu0
    %v7583 = vadd.f32 %v7540, %v7582
    %v7584 = vpop.f32.mrb[0].mxu0
    %v7585 = vadd.f32 %v7542, %v7584
    %v7586 = vpop.f32.mrb[0].mxu0
    %v7587 = vadd.f32 %v7544, %v7586
    %v7588 = vpop.f32.mrb[0].mxu0
    %v7589 = vadd.f32 %v7546, %v7588
    %7590 = vdwg.mxu0
    %7591 = vmatprep.subr.bf16.mxu0 %v4773
    %7592 = vmatpush1.bf16.msra.mxu0 %v4772
    %7593 = vmatprep.subr.bf16.mxu0 %v4781
    %7594 = vmatpush1.bf16.msra.mxu0 %v4780
    %7595 = vmatprep.subr.bf16.mxu0 %v4789
    %7596 = vmatpush1.bf16.msra.mxu0 %v4788
    %7597 = vmatprep.subr.bf16.mxu0 %v4797
    %7598 = vmatpush1.bf16.msra.mxu0 %v4796
    %7599 = vmatprep.subr.bf16.mxu0 %v4805
    %7600 = vmatpush1.bf16.msra.mxu0 %v4804
    %7601 = vmatprep.subr.bf16.mxu0 %v4813
    %7602 = vmatpush1.bf16.msra.mxu0 %v4812
    %7603 = vmatprep.subr.bf16.mxu0 %v4821
    %7604 = vmatpush1.bf16.msra.mxu0 %v4820
    %7605 = vmatprep.subr.bf16.mxu0 %v4829
    %7606 = vmatpush1.bf16.msra.mxu0 %v4828
    %7607 = vmatprep.subr.bf16.mxu0 %v4837
    %7608 = vmatpush1.bf16.msra.mxu0 %v4836
    %7609 = vmatprep.subr.bf16.mxu0 %v4845
    %7610 = vmatpush1.bf16.msra.mxu0 %v4844
    %7611 = vmatprep.subr.bf16.mxu0 %v4853
    %7612 = vmatpush1.bf16.msra.mxu0 %v4852
    %7613 = vmatprep.subr.bf16.mxu0 %v4861
    %7614 = vmatpush1.bf16.msra.mxu0 %v4860
    %7615 = vmatprep.subr.bf16.mxu0 %v4869
    %7616 = vmatpush1.bf16.msra.mxu0 %v4868
    %7617 = vmatprep.subr.bf16.mxu0 %v4877
    %7618 = vmatpush1.bf16.msra.mxu0 %v4876
    %7619 = vmatprep.subr.bf16.mxu0 %v4885
    %7620 = vmatpush1.bf16.msra.mxu0 %v4884
    %7621 = vmatprep.subr.bf16.mxu0 %v4893
    %7622 = vmatpush1.bf16.msra.mxu0 %v4892
    %7623 = vmatprep.mubr.bf16.mxu0 %v1285
    %7624 = vmatmul.mubr.bf16.gmra.mrb[0].mxu0 %v1284
    %v7625 = vpop.f32.mrb[0].mxu0
    %v7626 = vadd.f32 %v7583, %v7625
    %v7627 = vpop.f32.mrb[0].mxu0
    %v7628 = vadd.f32 %v7585, %v7627
    %v7629 = vpop.f32.mrb[0].mxu0
    %v7630 = vadd.f32 %v7587, %v7629
    %v7631 = vpop.f32.mrb[0].mxu0
    %v7632 = vadd.f32 %v7589, %v7631
    %7633 = vdwg.mxu0
    %7634 = vmatprep.subr.bf16.mxu0 %v4901
    %7635 = vmatpush1.bf16.msra.mxu0 %v4900
    %7636 = vmatprep.subr.bf16.mxu0 %v4909
    %7637 = vmatpush1.bf16.msra.mxu0 %v4908
    %7638 = vmatprep.subr.bf16.mxu0 %v4917
    %7639 = vmatpush1.bf16.msra.mxu0 %v4916
    %7640 = vmatprep.subr.bf16.mxu0 %v4925
    %7641 = vmatpush1.bf16.msra.mxu0 %v4924
    %7642 = vmatprep.subr.bf16.mxu0 %v4933
    %7643 = vmatpush1.bf16.msra.mxu0 %v4932
    %7644 = vmatprep.subr.bf16.mxu0 %v4941
    %7645 = vmatpush1.bf16.msra.mxu0 %v4940
    %7646 = vmatprep.subr.bf16.mxu0 %v4949
    %7647 = vmatpush1.bf16.msra.mxu0 %v4948
    %7648 = vmatprep.subr.bf16.mxu0 %v4957
    %7649 = vmatpush1.bf16.msra.mxu0 %v4956
    %7650 = vmatprep.subr.bf16.mxu0 %v4965
    %7651 = vmatpush1.bf16.msra.mxu0 %v4964
    %7652 = vmatprep.subr.bf16.mxu0 %v4973
    %7653 = vmatpush1.bf16.msra.mxu0 %v4972
    %7654 = vmatprep.subr.bf16.mxu0 %v4981
    %7655 = vmatpush1.bf16.msra.mxu0 %v4980
    %7656 = vmatprep.subr.bf16.mxu0 %v4989
    %7657 = vmatpush1.bf16.msra.mxu0 %v4988
    %7658 = vmatprep.subr.bf16.mxu0 %v4997
    %7659 = vmatpush1.bf16.msra.mxu0 %v4996
    %7660 = vmatprep.subr.bf16.mxu0 %v5005
    %7661 = vmatpush1.bf16.msra.mxu0 %v5004
    %7662 = vmatprep.subr.bf16.mxu0 %v5013
    %7663 = vmatpush1.bf16.msra.mxu0 %v5012
    %7664 = vmatprep.subr.bf16.mxu0 %v5021
    %7665 = vmatpush1.bf16.msra.mxu0 %v5020
    %7666 = vmatprep.mubr.bf16.mxu0 %v1287
    %7667 = vmatmul.mubr.bf16.gmra.mrb[0].mxu0 %v1286
    %v7668 = vpop.f32.mrb[0].mxu0
    %v7669 = vadd.f32 %v7626, %v7668
    %v7670 = vpop.f32.mrb[0].mxu0
    %v7671 = vadd.f32 %v7628, %v7670
    %v7672 = vpop.f32.mrb[0].mxu0
    %v7673 = vadd.f32 %v7630, %v7672
    %v7674 = vpop.f32.mrb[0].mxu0
    %v7675 = vadd.f32 %v7632, %v7674
    %7676 = vdwg.mxu0
    %7677 = vmatprep.subr.bf16.mxu0 %v5029
    %7678 = vmatpush1.bf16.msra.mxu0 %v5028
    %7679 = vmatprep.subr.bf16.mxu0 %v5037
    %7680 = vmatpush1.bf16.msra.mxu0 %v5036
    %7681 = vmatprep.subr.bf16.mxu0 %v5045
    %7682 = vmatpush1.bf16.msra.mxu0 %v5044
    %7683 = vmatprep.subr.bf16.mxu0 %v5053
    %7684 = vmatpush1.bf16.msra.mxu0 %v5052
    %7685 = vmatprep.subr.bf16.mxu0 %v5061
    %7686 = vmatpush1.bf16.msra.mxu0 %v5060
    %7687 = vmatprep.subr.bf16.mxu0 %v5069
    %7688 = vmatpush1.bf16.msra.mxu0 %v5068
    %7689 = vmatprep.subr.bf16.mxu0 %v5077
    %7690 = vmatpush1.bf16.msra.mxu0 %v5076
    %7691 = vmatprep.subr.bf16.mxu0 %v5085
    %7692 = vmatpush1.bf16.msra.mxu0 %v5084
    %7693 = vmatprep.subr.bf16.mxu0 %v5093
    %7694 = vmatpush1.bf16.msra.mxu0 %v5092
    %7695 = vmatprep.subr.bf16.mxu0 %v5101
    %7696 = vmatpush1.bf16.msra.mxu0 %v5100
    %7697 = vmatprep.subr.bf16.mxu0 %v5109
    %7698 = vmatpush1.bf16.msra.mxu0 %v5108
    %7699 = vmatprep.subr.bf16.mxu0 %v5117
    %7700 = vmatpush1.bf16.msra.mxu0 %v5116
    %7701 = vmatprep.subr.bf16.mxu0 %v5125
    %7702 = vmatpush1.bf16.msra.mxu0 %v5124
    %7703 = vmatprep.subr.bf16.mxu0 %v5133
    %7704 = vmatpush1.bf16.msra.mxu0 %v5132
    %7705 = vmatprep.subr.bf16.mxu0 %v5141
    %7706 = vmatpush1.bf16.msra.mxu0 %v5140
    %7707 = vmatprep.subr.bf16.mxu0 %v5149
    %7708 = vmatpush1.bf16.msra.mxu0 %v5148
    %7709 = vmatprep.mubr.bf16.mxu0 %v1289
    %7710 = vmatmul.mubr.bf16.gmra.mrb[0].mxu0 %v1288
    %v7711 = vpop.f32.mrb[0].mxu0
    %v7712 = vadd.f32 %v7669, %v7711
    %v7713 = vpop.f32.mrb[0].mxu0
    %v7714 = vadd.f32 %v7671, %v7713
    %v7715 = vpop.f32.mrb[0].mxu0
    %v7716 = vadd.f32 %v7673, %v7715
    %v7717 = vpop.f32.mrb[0].mxu0
    %v7718 = vadd.f32 %v7675, %v7717
    %7719 = vdwg.mxu0
    %7720 = vmatprep.subr.bf16.mxu0 %v5157
    %7721 = vmatpush1.bf16.msra.mxu0 %v5156
    %7722 = vmatprep.subr.bf16.mxu0 %v5165
    %7723 = vmatpush1.bf16.msra.mxu0 %v5164
    %7724 = vmatprep.subr.bf16.mxu0 %v5173
    %7725 = vmatpush1.bf16.msra.mxu0 %v5172
    %7726 = vmatprep.subr.bf16.mxu0 %v5181
    %7727 = vmatpush1.bf16.msra.mxu0 %v5180
    %7728 = vmatprep.subr.bf16.mxu0 %v5189
    %7729 = vmatpush1.bf16.msra.mxu0 %v5188
    %7730 = vmatprep.subr.bf16.mxu0 %v5197
    %7731 = vmatpush1.bf16.msra.mxu0 %v5196
    %7732 = vmatprep.subr.bf16.mxu0 %v5205
    %7733 = vmatpush1.bf16.msra.mxu0 %v5204
    %7734 = vmatprep.subr.bf16.mxu0 %v5213
    %7735 = vmatpush1.bf16.msra.mxu0 %v5212
    %7736 = vmatprep.subr.bf16.mxu0 %v5221
    %7737 = vmatpush1.bf16.msra.mxu0 %v5220
    %7738 = vmatprep.subr.bf16.mxu0 %v5229
    %7739 = vmatpush1.bf16.msra.mxu0 %v5228
    %7740 = vmatprep.subr.bf16.mxu0 %v5237
    %7741 = vmatpush1.bf16.msra.mxu0 %v5236
    %7742 = vmatprep.subr.bf16.mxu0 %v5245
    %7743 = vmatpush1.bf16.msra.mxu0 %v5244
    %7744 = vmatprep.subr.bf16.mxu0 %v5253
    %7745 = vmatpush1.bf16.msra.mxu0 %v5252
    %7746 = vmatprep.subr.bf16.mxu0 %v5261
    %7747 = vmatpush1.bf16.msra.mxu0 %v5260
    %7748 = vmatprep.subr.bf16.mxu0 %v5269
    %7749 = vmatpush1.bf16.msra.mxu0 %v5268
    %7750 = vmatprep.subr.bf16.mxu0 %v5277
    %7751 = vmatpush1.bf16.msra.mxu0 %v5276
    %7752 = vmatprep.mubr.bf16.mxu0 %v1291
    %7753 = vmatmul.mubr.bf16.gmra.mrb[0].mxu0 %v1290
    %v7754 = vpop.f32.mrb[0].mxu0
    %v7755 = vadd.f32 %v7712, %v7754
    %v7756 = vpop.f32.mrb[0].mxu0
    %v7757 = vadd.f32 %v7714, %v7756
    %v7758 = vpop.f32.mrb[0].mxu0
    %v7759 = vadd.f32 %v7716, %v7758
    %v7760 = vpop.f32.mrb[0].mxu0
    %v7761 = vadd.f32 %v7718, %v7760
    %7762 = vdwg.mxu0
    %7763 = vmatprep.subr.bf16.mxu0 %v5285
    %7764 = vmatpush1.bf16.msra.mxu0 %v5284
    %7765 = vmatprep.subr.bf16.mxu0 %v5293
    %7766 = vmatpush1.bf16.msra.mxu0 %v5292
    %7767 = vmatprep.subr.bf16.mxu0 %v5301
    %7768 = vmatpush1.bf16.msra.mxu0 %v5300
    %7769 = vmatprep.subr.bf16.mxu0 %v5309
    %7770 = vmatpush1.bf16.msra.mxu0 %v5308
    %7771 = vmatprep.subr.bf16.mxu0 %v5317
    %7772 = vmatpush1.bf16.msra.mxu0 %v5316
    %7773 = vmatprep.subr.bf16.mxu0 %v5325
    %7774 = vmatpush1.bf16.msra.mxu0 %v5324
    %7775 = vmatprep.subr.bf16.mxu0 %v5333
    %7776 = vmatpush1.bf16.msra.mxu0 %v5332
    %7777 = vmatprep.subr.bf16.mxu0 %v5341
    %7778 = vmatpush1.bf16.msra.mxu0 %v5340
    %7779 = vmatprep.subr.bf16.mxu0 %v5349
    %7780 = vmatpush1.bf16.msra.mxu0 %v5348
    %7781 = vmatprep.subr.bf16.mxu0 %v5357
    %7782 = vmatpush1.bf16.msra.mxu0 %v5356
    %7783 = vmatprep.subr.bf16.mxu0 %v5365
    %7784 = vmatpush1.bf16.msra.mxu0 %v5364
    %7785 = vmatprep.subr.bf16.mxu0 %v5373
    %7786 = vmatpush1.bf16.msra.mxu0 %v5372
    %7787 = vmatprep.subr.bf16.mxu0 %v5381
    %7788 = vmatpush1.bf16.msra.mxu0 %v5380
    %7789 = vmatprep.subr.bf16.mxu0 %v5389
    %7790 = vmatpush1.bf16.msra.mxu0 %v5388
    %7791 = vmatprep.subr.bf16.mxu0 %v5397
    %7792 = vmatpush1.bf16.msra.mxu0 %v5396
    %7793 = vmatprep.subr.bf16.mxu0 %v5405
    %7794 = vmatpush1.bf16.msra.mxu0 %v5404
    %7795 = vmatprep.mubr.bf16.mxu0 %v1293
    %7796 = vmatmul.mubr.bf16.gmra.mrb[0].mxu0 %v1292
    %v7797 = vpop.f32.mrb[0].mxu0
    %v7798 = vadd.f32 %v7755, %v7797
    %v7799 = vpop.f32.mrb[0].mxu0
    %v7800 = vadd.f32 %v7757, %v7799
    %v7801 = vpop.f32.mrb[0].mxu0
    %v7802 = vadd.f32 %v7759, %v7801
    %v7803 = vpop.f32.mrb[0].mxu0
    %v7804 = vadd.f32 %v7761, %v7803
    %7805 = vdwg.mxu0
    %v7806 = vmax.f32 %v6766, 0.0
    %v7807 = vmax.f32 %v6768, 0.0
    %v7808 = vmax.f32 %v7110, 0.0
    %v7809 = vmax.f32 %v7112, 0.0
    %v7810 = vmax.f32 %v7454, 0.0
    %v7811 = vmax.f32 %v7456, 0.0
    %v7812 = vmax.f32 %v7798, 0.0
    %v7813 = vmax.f32 %v7800, 0.0
    %v7814 = vmax.f32 %v6770, 0.0
    %v7815 = vmax.f32 %v6772, 0.0
    %v7816 = vmax.f32 %v7114, 0.0
    %v7817 = vmax.f32 %v7116, 0.0
    %v7818 = vmax.f32 %v7458, 0.0
    %v7819 = vmax.f32 %v7460, 0.0
    %v7820 = vmax.f32 %v7802, 0.0
    %v7821 = vmax.f32 %v7804, 0.0
    %v7822 = vpack.c.bf16 %v7814, %v7806
    %v7823 = vpack.c.bf16 %v7815, %v7807
    %v7824 = vpack.c.bf16 %v7816, %v7808
    %v7825 = vpack.c.bf16 %v7817, %v7809
    %v7826 = vpack.c.bf16 %v7818, %v7810
    %v7827 = vpack.c.bf16 %v7819, %v7811
    %v7828 = vpack.c.bf16 %v7820, %v7812
    %v7829 = vpack.c.bf16 %v7821, %v7813
    %v7830 = vld [vmem:[#allocation8] sm:$0xff]
    %v7831 = vld [vmem:[#allocation8 + $0x8] sm:$0xff]
    %v7832 = vld [vmem:[#allocation8 + $0x10] sm:$0xff]
    %v7833 = vld [vmem:[#allocation8 + $0x18] sm:$0xff]
    %v7834 = vld [vmem:[#allocation8 + $0x20] sm:$0xff]
    %v7835 = vld [vmem:[#allocation8 + $0x28] sm:$0xff]
    %v7836 = vld [vmem:[#allocation8 + $0x30] sm:$0xff]
    %v7837 = vld [vmem:[#allocation8 + $0x38] sm:$0xff]
    %v7838 = vld [vmem:[#allocation8 + $0x40] sm:$0xff]
    %v7839 = vld [vmem:[#allocation8 + $0x48] sm:$0xff]
    %v7840 = vld [vmem:[#allocation8 + $0x50] sm:$0xff]
    %v7841 = vld [vmem:[#allocation8 + $0x58] sm:$0xff]
    %v7842 = vld [vmem:[#allocation8 + $0x60] sm:$0xff]
    %v7843 = vld [vmem:[#allocation8 + $0x68] sm:$0xff]
    %v7844 = vld [vmem:[#allocation8 + $0x70] sm:$0xff]
    %v7845 = vld [vmem:[#allocation8 + $0x78] sm:$0xff]
    %v7846 = vld [vmem:[#allocation8 + $0x80] sm:$0xff]
    %v7847 = vld [vmem:[#allocation8 + $0x88] sm:$0xff]
    %v7848 = vld [vmem:[#allocation8 + $0x90] sm:$0xff]
    %v7849 = vld [vmem:[#allocation8 + $0x98] sm:$0xff]
    %v7850 = vld [vmem:[#allocation8 + $0xa0] sm:$0xff]
    %v7851 = vld [vmem:[#allocation8 + $0xa8] sm:$0xff]
    %v7852 = vld [vmem:[#allocation8 + $0xb0] sm:$0xff]
    %v7853 = vld [vmem:[#allocation8 + $0xb8] sm:$0xff]
    %v7854 = vld [vmem:[#allocation8 + $0xc0] sm:$0xff]
    %v7855 = vld [vmem:[#allocation8 + $0xc8] sm:$0xff]
    %v7856 = vld [vmem:[#allocation8 + $0xd0] sm:$0xff]
    %v7857 = vld [vmem:[#allocation8 + $0xd8] sm:$0xff]
    %v7858 = vld [vmem:[#allocation8 + $0xe0] sm:$0xff]
    %v7859 = vld [vmem:[#allocation8 + $0xe8] sm:$0xff]
    %v7860 = vld [vmem:[#allocation8 + $0xf0] sm:$0xff]
    %v7861 = vld [vmem:[#allocation8 + $0xf8] sm:$0xff]
    %v7862 = vld [vmem:[#allocation8 + $0x100] sm:$0xff]
    %v7863 = vld [vmem:[#allocation8 + $0x108] sm:$0xff]
    %v7864 = vld [vmem:[#allocation8 + $0x110] sm:$0xff]
    %v7865 = vld [vmem:[#allocation8 + $0x118] sm:$0xff]
    %v7866 = vld [vmem:[#allocation8 + $0x120] sm:$0xff]
    %v7867 = vld [vmem:[#allocation8 + $0x128] sm:$0xff]
    %v7868 = vld [vmem:[#allocation8 + $0x130] sm:$0xff]
    %v7869 = vld [vmem:[#allocation8 + $0x138] sm:$0xff]
    %v7870 = vld [vmem:[#allocation8 + $0x140] sm:$0xff]
    %v7871 = vld [vmem:[#allocation8 + $0x148] sm:$0xff]
    %v7872 = vld [vmem:[#allocation8 + $0x150] sm:$0xff]
    %v7873 = vld [vmem:[#allocation8 + $0x158] sm:$0xff]
    %v7874 = vld [vmem:[#allocation8 + $0x160] sm:$0xff]
    %v7875 = vld [vmem:[#allocation8 + $0x168] sm:$0xff]
    %v7876 = vld [vmem:[#allocation8 + $0x170] sm:$0xff]
    %v7877 = vld [vmem:[#allocation8 + $0x178] sm:$0xff]
    %v7878 = vld [vmem:[#allocation8 + $0x180] sm:$0xff]
    %v7879 = vld [vmem:[#allocation8 + $0x188] sm:$0xff]
    %v7880 = vld [vmem:[#allocation8 + $0x190] sm:$0xff]
    %v7881 = vld [vmem:[#allocation8 + $0x198] sm:$0xff]
    %v7882 = vld [vmem:[#allocation8 + $0x1a0] sm:$0xff]
    %v7883 = vld [vmem:[#allocation8 + $0x1a8] sm:$0xff]
    %v7884 = vld [vmem:[#allocation8 + $0x1b0] sm:$0xff]
    %v7885 = vld [vmem:[#allocation8 + $0x1b8] sm:$0xff]
    %v7886 = vld [vmem:[#allocation8 + $0x1c0] sm:$0xff]
    %v7887 = vld [vmem:[#allocation8 + $0x1c8] sm:$0xff]
    %v7888 = vld [vmem:[#allocation8 + $0x1d0] sm:$0xff]
    %v7889 = vld [vmem:[#allocation8 + $0x1d8] sm:$0xff]
    %v7890 = vld [vmem:[#allocation8 + $0x1e0] sm:$0xff]
    %v7891 = vld [vmem:[#allocation8 + $0x1e8] sm:$0xff]
    %v7892 = vld [vmem:[#allocation8 + $0x1f0] sm:$0xff]
    %v7893 = vld [vmem:[#allocation8 + $0x1f8] sm:$0xff]
    %v7894 = vld [vmem:[#allocation8 + $0x200] sm:$0xff]
    %v7895 = vld [vmem:[#allocation8 + $0x208] sm:$0xff]
    %v7896 = vld [vmem:[#allocation8 + $0x210] sm:$0xff]
    %v7897 = vld [vmem:[#allocation8 + $0x218] sm:$0xff]
    %v7898 = vld [vmem:[#allocation8 + $0x220] sm:$0xff]
    %v7899 = vld [vmem:[#allocation8 + $0x228] sm:$0xff]
    %v7900 = vld [vmem:[#allocation8 + $0x230] sm:$0xff]
    %v7901 = vld [vmem:[#allocation8 + $0x238] sm:$0xff]
    %v7902 = vld [vmem:[#allocation8 + $0x240] sm:$0xff]
    %v7903 = vld [vmem:[#allocation8 + $0x248] sm:$0xff]
    %v7904 = vld [vmem:[#allocation8 + $0x250] sm:$0xff]
    %v7905 = vld [vmem:[#allocation8 + $0x258] sm:$0xff]
    %v7906 = vld [vmem:[#allocation8 + $0x260] sm:$0xff]
    %v7907 = vld [vmem:[#allocation8 + $0x268] sm:$0xff]
    %v7908 = vld [vmem:[#allocation8 + $0x270] sm:$0xff]
    %v7909 = vld [vmem:[#allocation8 + $0x278] sm:$0xff]
    %v7910 = vld [vmem:[#allocation8 + $0x280] sm:$0xff]
    %v7911 = vld [vmem:[#allocation8 + $0x288] sm:$0xff]
    %v7912 = vld [vmem:[#allocation8 + $0x290] sm:$0xff]
    %v7913 = vld [vmem:[#allocation8 + $0x298] sm:$0xff]
    %v7914 = vld [vmem:[#allocation8 + $0x2a0] sm:$0xff]
    %v7915 = vld [vmem:[#allocation8 + $0x2a8] sm:$0xff]
    %v7916 = vld [vmem:[#allocation8 + $0x2b0] sm:$0xff]
    %v7917 = vld [vmem:[#allocation8 + $0x2b8] sm:$0xff]
    %v7918 = vld [vmem:[#allocation8 + $0x2c0] sm:$0xff]
    %v7919 = vld [vmem:[#allocation8 + $0x2c8] sm:$0xff]
    %v7920 = vld [vmem:[#allocation8 + $0x2d0] sm:$0xff]
    %v7921 = vld [vmem:[#allocation8 + $0x2d8] sm:$0xff]
    %v7922 = vld [vmem:[#allocation8 + $0x2e0] sm:$0xff]
    %v7923 = vld [vmem:[#allocation8 + $0x2e8] sm:$0xff]
    %v7924 = vld [vmem:[#allocation8 + $0x2f0] sm:$0xff]
    %v7925 = vld [vmem:[#allocation8 + $0x2f8] sm:$0xff]
    %v7926 = vld [vmem:[#allocation8 + $0x300] sm:$0xff]
    %v7927 = vld [vmem:[#allocation8 + $0x308] sm:$0xff]
    %v7928 = vld [vmem:[#allocation8 + $0x310] sm:$0xff]
    %v7929 = vld [vmem:[#allocation8 + $0x318] sm:$0xff]
    %v7930 = vld [vmem:[#allocation8 + $0x320] sm:$0xff]
    %v7931 = vld [vmem:[#allocation8 + $0x328] sm:$0xff]
    %v7932 = vld [vmem:[#allocation8 + $0x330] sm:$0xff]
    %v7933 = vld [vmem:[#allocation8 + $0x338] sm:$0xff]
    %v7934 = vld [vmem:[#allocation8 + $0x340] sm:$0xff]
    %v7935 = vld [vmem:[#allocation8 + $0x348] sm:$0xff]
    %v7936 = vld [vmem:[#allocation8 + $0x350] sm:$0xff]
    %v7937 = vld [vmem:[#allocation8 + $0x358] sm:$0xff]
    %v7938 = vld [vmem:[#allocation8 + $0x360] sm:$0xff]
    %v7939 = vld [vmem:[#allocation8 + $0x368] sm:$0xff]
    %v7940 = vld [vmem:[#allocation8 + $0x370] sm:$0xff]
    %v7941 = vld [vmem:[#allocation8 + $0x378] sm:$0xff]
    %v7942 = vld [vmem:[#allocation8 + $0x380] sm:$0xff]
    %v7943 = vld [vmem:[#allocation8 + $0x388] sm:$0xff]
    %v7944 = vld [vmem:[#allocation8 + $0x390] sm:$0xff]
    %v7945 = vld [vmem:[#allocation8 + $0x398] sm:$0xff]
    %v7946 = vld [vmem:[#allocation8 + $0x3a0] sm:$0xff]
    %v7947 = vld [vmem:[#allocation8 + $0x3a8] sm:$0xff]
    %v7948 = vld [vmem:[#allocation8 + $0x3b0] sm:$0xff]
    %v7949 = vld [vmem:[#allocation8 + $0x3b8] sm:$0xff]
    %v7950 = vld [vmem:[#allocation8 + $0x3c0] sm:$0xff]
    %v7951 = vld [vmem:[#allocation8 + $0x3c8] sm:$0xff]
    %v7952 = vld [vmem:[#allocation8 + $0x3d0] sm:$0xff]
    %v7953 = vld [vmem:[#allocation8 + $0x3d8] sm:$0xff]
    %v7954 = vld [vmem:[#allocation8 + $0x3e0] sm:$0xff]
    %v7955 = vld [vmem:[#allocation8 + $0x3e8] sm:$0xff]
    %v7956 = vld [vmem:[#allocation8 + $0x3f0] sm:$0xff]
    %v7957 = vld [vmem:[#allocation8 + $0x3f8] sm:$0xff]
    %v7958 = vld [vmem:[#allocation8 + $0x400] sm:$0xff]
    %v7959 = vld [vmem:[#allocation8 + $0x408] sm:$0xff]
    %v7960 = vld [vmem:[#allocation8 + $0x410] sm:$0xff]
    %v7961 = vld [vmem:[#allocation8 + $0x418] sm:$0xff]
    %v7962 = vld [vmem:[#allocation8 + $0x420] sm:$0xff]
    %v7963 = vld [vmem:[#allocation8 + $0x428] sm:$0xff]
    %v7964 = vld [vmem:[#allocation8 + $0x430] sm:$0xff]
    %v7965 = vld [vmem:[#allocation8 + $0x438] sm:$0xff]
    %v7966 = vld [vmem:[#allocation8 + $0x440] sm:$0xff]
    %v7967 = vld [vmem:[#allocation8 + $0x448] sm:$0xff]
    %v7968 = vld [vmem:[#allocation8 + $0x450] sm:$0xff]
    %v7969 = vld [vmem:[#allocation8 + $0x458] sm:$0xff]
    %v7970 = vld [vmem:[#allocation8 + $0x460] sm:$0xff]
    %v7971 = vld [vmem:[#allocation8 + $0x468] sm:$0xff]
    %v7972 = vld [vmem:[#allocation8 + $0x470] sm:$0xff]
    %v7973 = vld [vmem:[#allocation8 + $0x478] sm:$0xff]
    %v7974 = vld [vmem:[#allocation8 + $0x480] sm:$0xff]
    %v7975 = vld [vmem:[#allocation8 + $0x488] sm:$0xff]
    %v7976 = vld [vmem:[#allocation8 + $0x490] sm:$0xff]
    %v7977 = vld [vmem:[#allocation8 + $0x498] sm:$0xff]
    %v7978 = vld [vmem:[#allocation8 + $0x4a0] sm:$0xff]
    %v7979 = vld [vmem:[#allocation8 + $0x4a8] sm:$0xff]
    %v7980 = vld [vmem:[#allocation8 + $0x4b0] sm:$0xff]
    %v7981 = vld [vmem:[#allocation8 + $0x4b8] sm:$0xff]
    %v7982 = vld [vmem:[#allocation8 + $0x4c0] sm:$0xff]
    %v7983 = vld [vmem:[#allocation8 + $0x4c8] sm:$0xff]
    %v7984 = vld [vmem:[#allocation8 + $0x4d0] sm:$0xff]
    %v7985 = vld [vmem:[#allocation8 + $0x4d8] sm:$0xff]
    %v7986 = vld [vmem:[#allocation8 + $0x4e0] sm:$0xff]
    %v7987 = vld [vmem:[#allocation8 + $0x4e8] sm:$0xff]
    %v7988 = vld [vmem:[#allocation8 + $0x4f0] sm:$0xff]
    %v7989 = vld [vmem:[#allocation8 + $0x4f8] sm:$0xff]
    %v7990 = vld [vmem:[#allocation8 + $0x500] sm:$0xff]
    %v7991 = vld [vmem:[#allocation8 + $0x508] sm:$0xff]
    %v7992 = vld [vmem:[#allocation8 + $0x510] sm:$0xff]
    %v7993 = vld [vmem:[#allocation8 + $0x518] sm:$0xff]
    %v7994 = vld [vmem:[#allocation8 + $0x520] sm:$0xff]
    %v7995 = vld [vmem:[#allocation8 + $0x528] sm:$0xff]
    %v7996 = vld [vmem:[#allocation8 + $0x530] sm:$0xff]
    %v7997 = vld [vmem:[#allocation8 + $0x538] sm:$0xff]
    %v7998 = vld [vmem:[#allocation8 + $0x540] sm:$0xff]
    %v7999 = vld [vmem:[#allocation8 + $0x548] sm:$0xff]
    %v8000 = vld [vmem:[#allocation8 + $0x550] sm:$0xff]
    %v8001 = vld [vmem:[#allocation8 + $0x558] sm:$0xff]
    %v8002 = vld [vmem:[#allocation8 + $0x560] sm:$0xff]
    %v8003 = vld [vmem:[#allocation8 + $0x568] sm:$0xff]
    %v8004 = vld [vmem:[#allocation8 + $0x570] sm:$0xff]
    %v8005 = vld [vmem:[#allocation8 + $0x578] sm:$0xff]
    %v8006 = vld [vmem:[#allocation8 + $0x580] sm:$0xff]
    %v8007 = vld [vmem:[#allocation8 + $0x588] sm:$0xff]
    %v8008 = vld [vmem:[#allocation8 + $0x590] sm:$0xff]
    %v8009 = vld [vmem:[#allocation8 + $0x598] sm:$0xff]
    %v8010 = vld [vmem:[#allocation8 + $0x5a0] sm:$0xff]
    %v8011 = vld [vmem:[#allocation8 + $0x5a8] sm:$0xff]
    %v8012 = vld [vmem:[#allocation8 + $0x5b0] sm:$0xff]
    %v8013 = vld [vmem:[#allocation8 + $0x5b8] sm:$0xff]
    %v8014 = vld [vmem:[#allocation8 + $0x5c0] sm:$0xff]
    %v8015 = vld [vmem:[#allocation8 + $0x5c8] sm:$0xff]
    %v8016 = vld [vmem:[#allocation8 + $0x5d0] sm:$0xff]
    %v8017 = vld [vmem:[#allocation8 + $0x5d8] sm:$0xff]
    %v8018 = vld [vmem:[#allocation8 + $0x5e0] sm:$0xff]
    %v8019 = vld [vmem:[#allocation8 + $0x5e8] sm:$0xff]
    %v8020 = vld [vmem:[#allocation8 + $0x5f0] sm:$0xff]
    %v8021 = vld [vmem:[#allocation8 + $0x5f8] sm:$0xff]
    %v8022 = vld [vmem:[#allocation8 + $0x600] sm:$0xff]
    %v8023 = vld [vmem:[#allocation8 + $0x608] sm:$0xff]
    %v8024 = vld [vmem:[#allocation8 + $0x610] sm:$0xff]
    %v8025 = vld [vmem:[#allocation8 + $0x618] sm:$0xff]
    %v8026 = vld [vmem:[#allocation8 + $0x620] sm:$0xff]
    %v8027 = vld [vmem:[#allocation8 + $0x628] sm:$0xff]
    %v8028 = vld [vmem:[#allocation8 + $0x630] sm:$0xff]
    %v8029 = vld [vmem:[#allocation8 + $0x638] sm:$0xff]
    %v8030 = vld [vmem:[#allocation8 + $0x640] sm:$0xff]
    %v8031 = vld [vmem:[#allocation8 + $0x648] sm:$0xff]
    %v8032 = vld [vmem:[#allocation8 + $0x650] sm:$0xff]
    %v8033 = vld [vmem:[#allocation8 + $0x658] sm:$0xff]
    %v8034 = vld [vmem:[#allocation8 + $0x660] sm:$0xff]
    %v8035 = vld [vmem:[#allocation8 + $0x668] sm:$0xff]
    %v8036 = vld [vmem:[#allocation8 + $0x670] sm:$0xff]
    %v8037 = vld [vmem:[#allocation8 + $0x678] sm:$0xff]
    %v8038 = vld [vmem:[#allocation8 + $0x680] sm:$0xff]
    %v8039 = vld [vmem:[#allocation8 + $0x688] sm:$0xff]
    %v8040 = vld [vmem:[#allocation8 + $0x690] sm:$0xff]
    %v8041 = vld [vmem:[#allocation8 + $0x698] sm:$0xff]
    %v8042 = vld [vmem:[#allocation8 + $0x6a0] sm:$0xff]
    %v8043 = vld [vmem:[#allocation8 + $0x6a8] sm:$0xff]
    %v8044 = vld [vmem:[#allocation8 + $0x6b0] sm:$0xff]
    %v8045 = vld [vmem:[#allocation8 + $0x6b8] sm:$0xff]
    %v8046 = vld [vmem:[#allocation8 + $0x6c0] sm:$0xff]
    %v8047 = vld [vmem:[#allocation8 + $0x6c8] sm:$0xff]
    %v8048 = vld [vmem:[#allocation8 + $0x6d0] sm:$0xff]
    %v8049 = vld [vmem:[#allocation8 + $0x6d8] sm:$0xff]
    %v8050 = vld [vmem:[#allocation8 + $0x6e0] sm:$0xff]
    %v8051 = vld [vmem:[#allocation8 + $0x6e8] sm:$0xff]
    %v8052 = vld [vmem:[#allocation8 + $0x6f0] sm:$0xff]
    %v8053 = vld [vmem:[#allocation8 + $0x6f8] sm:$0xff]
    %v8054 = vld [vmem:[#allocation8 + $0x700] sm:$0xff]
    %v8055 = vld [vmem:[#allocation8 + $0x708] sm:$0xff]
    %v8056 = vld [vmem:[#allocation8 + $0x710] sm:$0xff]
    %v8057 = vld [vmem:[#allocation8 + $0x718] sm:$0xff]
    %v8058 = vld [vmem:[#allocation8 + $0x720] sm:$0xff]
    %v8059 = vld [vmem:[#allocation8 + $0x728] sm:$0xff]
    %v8060 = vld [vmem:[#allocation8 + $0x730] sm:$0xff]
    %v8061 = vld [vmem:[#allocation8 + $0x738] sm:$0xff]
    %v8062 = vld [vmem:[#allocation8 + $0x740] sm:$0xff]
    %v8063 = vld [vmem:[#allocation8 + $0x748] sm:$0xff]
    %v8064 = vld [vmem:[#allocation8 + $0x750] sm:$0xff]
    %v8065 = vld [vmem:[#allocation8 + $0x758] sm:$0xff]
    %v8066 = vld [vmem:[#allocation8 + $0x760] sm:$0xff]
    %v8067 = vld [vmem:[#allocation8 + $0x768] sm:$0xff]
    %v8068 = vld [vmem:[#allocation8 + $0x770] sm:$0xff]
    %v8069 = vld [vmem:[#allocation8 + $0x778] sm:$0xff]
    %v8070 = vld [vmem:[#allocation8 + $0x780] sm:$0xff]
    %v8071 = vld [vmem:[#allocation8 + $0x788] sm:$0xff]
    %v8072 = vld [vmem:[#allocation8 + $0x790] sm:$0xff]
    %v8073 = vld [vmem:[#allocation8 + $0x798] sm:$0xff]
    %v8074 = vld [vmem:[#allocation8 + $0x7a0] sm:$0xff]
    %v8075 = vld [vmem:[#allocation8 + $0x7a8] sm:$0xff]
    %v8076 = vld [vmem:[#allocation8 + $0x7b0] sm:$0xff]
    %v8077 = vld [vmem:[#allocation8 + $0x7b8] sm:$0xff]
    %v8078 = vld [vmem:[#allocation8 + $0x7c0] sm:$0xff]
    %v8079 = vld [vmem:[#allocation8 + $0x7c8] sm:$0xff]
    %v8080 = vld [vmem:[#allocation8 + $0x7d0] sm:$0xff]
    %v8081 = vld [vmem:[#allocation8 + $0x7d8] sm:$0xff]
    %v8082 = vld [vmem:[#allocation8 + $0x7e0] sm:$0xff]
    %v8083 = vld [vmem:[#allocation8 + $0x7e8] sm:$0xff]
    %v8084 = vld [vmem:[#allocation8 + $0x7f0] sm:$0xff]
    %v8085 = vld [vmem:[#allocation8 + $0x7f8] sm:$0xff]
    %v8086 = vld [vmem:[#allocation10] sm:$0xf]
    %v8088 = vlaneseq
    %v8089 = vshrl.u32 %v8088, 7
    %v8090 = vsub.s32 0, %v8089
    %v8091 = vrot.slane %v8086, %v8090
    %v8092 = vlaneseq
    %v8093 = vshrl.u32 %v8092, 7
    %v8094 = vsub.s32 1, %v8093
    %v8095 = vrot.slane %v8086, %v8094
    %v8096 = vlaneseq
    %v8097 = vshrl.u32 %v8096, 7
    %v8098 = vsub.s32 2, %v8097
    %v8099 = vrot.slane %v8086, %v8098
    %v8100 = vlaneseq
    %v8101 = vshrl.u32 %v8100, 7
    %v8102 = vsub.s32 3, %v8101
    %v8103 = vrot.slane %v8086, %v8102
    %v8364 = vunpack.c.l.b16 %v7830
    %v8365 = vunpack.c.h.b16 %v7830
    %v8366 = vunpack.c.l.b16 %v7831
    %v8367 = vunpack.c.h.b16 %v7831
    %v8368 = vunpack.c.l.b16 %v7832
    %v8369 = vunpack.c.h.b16 %v7832
    %v8370 = vunpack.c.l.b16 %v7833
    %v8371 = vunpack.c.h.b16 %v7833
    %v8372 = vunpack.c.l.b16 %v7834
    %v8373 = vunpack.c.h.b16 %v7834
    %v8374 = vunpack.c.l.b16 %v7835
    %v8375 = vunpack.c.h.b16 %v7835
    %v8376 = vunpack.c.l.b16 %v7836
    %v8377 = vunpack.c.h.b16 %v7836
    %v8378 = vunpack.c.l.b16 %v7837
    %v8379 = vunpack.c.h.b16 %v7837
    %v8380 = vunpack.c.l.b16 %v7838
    %v8381 = vunpack.c.h.b16 %v7838
    %v8382 = vunpack.c.l.b16 %v7839
    %v8383 = vunpack.c.h.b16 %v7839
    %v8384 = vunpack.c.l.b16 %v7840
    %v8385 = vunpack.c.h.b16 %v7840
    %v8386 = vunpack.c.l.b16 %v7841
    %v8387 = vunpack.c.h.b16 %v7841
    %v8388 = vunpack.c.l.b16 %v7842
    %v8389 = vunpack.c.h.b16 %v7842
    %v8390 = vunpack.c.l.b16 %v7843
    %v8391 = vunpack.c.h.b16 %v7843
    %v8392 = vunpack.c.l.b16 %v7844
    %v8393 = vunpack.c.h.b16 %v7844
    %v8394 = vunpack.c.l.b16 %v7845
    %v8395 = vunpack.c.h.b16 %v7845
    %v8396 = vunpack.c.l.b16 %v7846
    %v8397 = vunpack.c.h.b16 %v7846
    %v8398 = vunpack.c.l.b16 %v7847
    %v8399 = vunpack.c.h.b16 %v7847
    %v8400 = vunpack.c.l.b16 %v7848
    %v8401 = vunpack.c.h.b16 %v7848
    %v8402 = vunpack.c.l.b16 %v7849
    %v8403 = vunpack.c.h.b16 %v7849
    %v8404 = vunpack.c.l.b16 %v7850
    %v8405 = vunpack.c.h.b16 %v7850
    %v8406 = vunpack.c.l.b16 %v7851
    %v8407 = vunpack.c.h.b16 %v7851
    %v8408 = vunpack.c.l.b16 %v7852
    %v8409 = vunpack.c.h.b16 %v7852
    %v8410 = vunpack.c.l.b16 %v7853
    %v8411 = vunpack.c.h.b16 %v7853
    %v8412 = vunpack.c.l.b16 %v7854
    %v8413 = vunpack.c.h.b16 %v7854
    %v8414 = vunpack.c.l.b16 %v7855
    %v8415 = vunpack.c.h.b16 %v7855
    %v8416 = vunpack.c.l.b16 %v7856
    %v8417 = vunpack.c.h.b16 %v7856
    %v8418 = vunpack.c.l.b16 %v7857
    %v8419 = vunpack.c.h.b16 %v7857
    %v8420 = vunpack.c.l.b16 %v7858
    %v8421 = vunpack.c.h.b16 %v7858
    %v8422 = vunpack.c.l.b16 %v7859
    %v8423 = vunpack.c.h.b16 %v7859
    %v8424 = vunpack.c.l.b16 %v7860
    %v8425 = vunpack.c.h.b16 %v7860
    %v8426 = vunpack.c.l.b16 %v7861
    %v8427 = vunpack.c.h.b16 %v7861
    %v8428 = vunpack.c.l.b16 %v7862
    %v8429 = vunpack.c.h.b16 %v7862
    %v8430 = vunpack.c.l.b16 %v7863
    %v8431 = vunpack.c.h.b16 %v7863
    %v8432 = vunpack.c.l.b16 %v7864
    %v8433 = vunpack.c.h.b16 %v7864
    %v8434 = vunpack.c.l.b16 %v7865
    %v8435 = vunpack.c.h.b16 %v7865
    %v8436 = vunpack.c.l.b16 %v7866
    %v8437 = vunpack.c.h.b16 %v7866
    %v8438 = vunpack.c.l.b16 %v7867
    %v8439 = vunpack.c.h.b16 %v7867
    %v8440 = vunpack.c.l.b16 %v7868
    %v8441 = vunpack.c.h.b16 %v7868
    %v8442 = vunpack.c.l.b16 %v7869
    %v8443 = vunpack.c.h.b16 %v7869
    %v8444 = vunpack.c.l.b16 %v7870
    %v8445 = vunpack.c.h.b16 %v7870
    %v8446 = vunpack.c.l.b16 %v7871
    %v8447 = vunpack.c.h.b16 %v7871
    %v8448 = vunpack.c.l.b16 %v7872
    %v8449 = vunpack.c.h.b16 %v7872
    %v8450 = vunpack.c.l.b16 %v7873
    %v8451 = vunpack.c.h.b16 %v7873
    %v8452 = vunpack.c.l.b16 %v7874
    %v8453 = vunpack.c.h.b16 %v7874
    %v8454 = vunpack.c.l.b16 %v7875
    %v8455 = vunpack.c.h.b16 %v7875
    %v8456 = vunpack.c.l.b16 %v7876
    %v8457 = vunpack.c.h.b16 %v7876
    %v8458 = vunpack.c.l.b16 %v7877
    %v8459 = vunpack.c.h.b16 %v7877
    %v8460 = vunpack.c.l.b16 %v7878
    %v8461 = vunpack.c.h.b16 %v7878
    %v8462 = vunpack.c.l.b16 %v7879
    %v8463 = vunpack.c.h.b16 %v7879
    %v8464 = vunpack.c.l.b16 %v7880
    %v8465 = vunpack.c.h.b16 %v7880
    %v8466 = vunpack.c.l.b16 %v7881
    %v8467 = vunpack.c.h.b16 %v7881
    %v8468 = vunpack.c.l.b16 %v7882
    %v8469 = vunpack.c.h.b16 %v7882
    %v8470 = vunpack.c.l.b16 %v7883
    %v8471 = vunpack.c.h.b16 %v7883
    %v8472 = vunpack.c.l.b16 %v7884
    %v8473 = vunpack.c.h.b16 %v7884
    %v8474 = vunpack.c.l.b16 %v7885
    %v8475 = vunpack.c.h.b16 %v7885
    %v8476 = vunpack.c.l.b16 %v7886
    %v8477 = vunpack.c.h.b16 %v7886
    %v8478 = vunpack.c.l.b16 %v7887
    %v8479 = vunpack.c.h.b16 %v7887
    %v8480 = vunpack.c.l.b16 %v7888
    %v8481 = vunpack.c.h.b16 %v7888
    %v8482 = vunpack.c.l.b16 %v7889
    %v8483 = vunpack.c.h.b16 %v7889
    %v8484 = vunpack.c.l.b16 %v7890
    %v8485 = vunpack.c.h.b16 %v7890
    %v8486 = vunpack.c.l.b16 %v7891
    %v8487 = vunpack.c.h.b16 %v7891
    %v8488 = vunpack.c.l.b16 %v7892
    %v8489 = vunpack.c.h.b16 %v7892
    %v8490 = vunpack.c.l.b16 %v7893
    %v8491 = vunpack.c.h.b16 %v7893
    %v8492 = vunpack.c.l.b16 %v7894
    %v8493 = vunpack.c.h.b16 %v7894
    %v8494 = vunpack.c.l.b16 %v7895
    %v8495 = vunpack.c.h.b16 %v7895
    %v8496 = vunpack.c.l.b16 %v7896
    %v8497 = vunpack.c.h.b16 %v7896
    %v8498 = vunpack.c.l.b16 %v7897
    %v8499 = vunpack.c.h.b16 %v7897
    %v8500 = vunpack.c.l.b16 %v7898
    %v8501 = vunpack.c.h.b16 %v7898
    %v8502 = vunpack.c.l.b16 %v7899
    %v8503 = vunpack.c.h.b16 %v7899
    %v8504 = vunpack.c.l.b16 %v7900
    %v8505 = vunpack.c.h.b16 %v7900
    %v8506 = vunpack.c.l.b16 %v7901
    %v8507 = vunpack.c.h.b16 %v7901
    %v8508 = vunpack.c.l.b16 %v7902
    %v8509 = vunpack.c.h.b16 %v7902
    %v8510 = vunpack.c.l.b16 %v7903
    %v8511 = vunpack.c.h.b16 %v7903
    %v8512 = vunpack.c.l.b16 %v7904
    %v8513 = vunpack.c.h.b16 %v7904
    %v8514 = vunpack.c.l.b16 %v7905
    %v8515 = vunpack.c.h.b16 %v7905
    %v8516 = vunpack.c.l.b16 %v7906
    %v8517 = vunpack.c.h.b16 %v7906
    %v8518 = vunpack.c.l.b16 %v7907
    %v8519 = vunpack.c.h.b16 %v7907
    %v8520 = vunpack.c.l.b16 %v7908
    %v8521 = vunpack.c.h.b16 %v7908
    %v8522 = vunpack.c.l.b16 %v7909
    %v8523 = vunpack.c.h.b16 %v7909
    %v8524 = vunpack.c.l.b16 %v7910
    %v8525 = vunpack.c.h.b16 %v7910
    %v8526 = vunpack.c.l.b16 %v7911
    %v8527 = vunpack.c.h.b16 %v7911
    %v8528 = vunpack.c.l.b16 %v7912
    %v8529 = vunpack.c.h.b16 %v7912
    %v8530 = vunpack.c.l.b16 %v7913
    %v8531 = vunpack.c.h.b16 %v7913
    %v8532 = vunpack.c.l.b16 %v7914
    %v8533 = vunpack.c.h.b16 %v7914
    %v8534 = vunpack.c.l.b16 %v7915
    %v8535 = vunpack.c.h.b16 %v7915
    %v8536 = vunpack.c.l.b16 %v7916
    %v8537 = vunpack.c.h.b16 %v7916
    %v8538 = vunpack.c.l.b16 %v7917
    %v8539 = vunpack.c.h.b16 %v7917
    %v8540 = vunpack.c.l.b16 %v7918
    %v8541 = vunpack.c.h.b16 %v7918
    %v8542 = vunpack.c.l.b16 %v7919
    %v8543 = vunpack.c.h.b16 %v7919
    %v8544 = vunpack.c.l.b16 %v7920
    %v8545 = vunpack.c.h.b16 %v7920
    %v8546 = vunpack.c.l.b16 %v7921
    %v8547 = vunpack.c.h.b16 %v7921
    %v8548 = vunpack.c.l.b16 %v7922
    %v8549 = vunpack.c.h.b16 %v7922
    %v8550 = vunpack.c.l.b16 %v7923
    %v8551 = vunpack.c.h.b16 %v7923
    %v8552 = vunpack.c.l.b16 %v7924
    %v8553 = vunpack.c.h.b16 %v7924
    %v8554 = vunpack.c.l.b16 %v7925
    %v8555 = vunpack.c.h.b16 %v7925
    %v8556 = vunpack.c.l.b16 %v7926
    %v8557 = vunpack.c.h.b16 %v7926
    %v8558 = vunpack.c.l.b16 %v7927
    %v8559 = vunpack.c.h.b16 %v7927
    %v8560 = vunpack.c.l.b16 %v7928
    %v8561 = vunpack.c.h.b16 %v7928
    %v8562 = vunpack.c.l.b16 %v7929
    %v8563 = vunpack.c.h.b16 %v7929
    %v8564 = vunpack.c.l.b16 %v7930
    %v8565 = vunpack.c.h.b16 %v7930
    %v8566 = vunpack.c.l.b16 %v7931
    %v8567 = vunpack.c.h.b16 %v7931
    %v8568 = vunpack.c.l.b16 %v7932
    %v8569 = vunpack.c.h.b16 %v7932
    %v8570 = vunpack.c.l.b16 %v7933
    %v8571 = vunpack.c.h.b16 %v7933
    %v8572 = vunpack.c.l.b16 %v7934
    %v8573 = vunpack.c.h.b16 %v7934
    %v8574 = vunpack.c.l.b16 %v7935
    %v8575 = vunpack.c.h.b16 %v7935
    %v8576 = vunpack.c.l.b16 %v7936
    %v8577 = vunpack.c.h.b16 %v7936
    %v8578 = vunpack.c.l.b16 %v7937
    %v8579 = vunpack.c.h.b16 %v7937
    %v8580 = vunpack.c.l.b16 %v7938
    %v8581 = vunpack.c.h.b16 %v7938
    %v8582 = vunpack.c.l.b16 %v7939
    %v8583 = vunpack.c.h.b16 %v7939
    %v8584 = vunpack.c.l.b16 %v7940
    %v8585 = vunpack.c.h.b16 %v7940
    %v8586 = vunpack.c.l.b16 %v7941
    %v8587 = vunpack.c.h.b16 %v7941
    %v8588 = vunpack.c.l.b16 %v7942
    %v8589 = vunpack.c.h.b16 %v7942
    %v8590 = vunpack.c.l.b16 %v7943
    %v8591 = vunpack.c.h.b16 %v7943
    %v8592 = vunpack.c.l.b16 %v7944
    %v8593 = vunpack.c.h.b16 %v7944
    %v8594 = vunpack.c.l.b16 %v7945
    %v8595 = vunpack.c.h.b16 %v7945
    %v8596 = vunpack.c.l.b16 %v7946
    %v8597 = vunpack.c.h.b16 %v7946
    %v8598 = vunpack.c.l.b16 %v7947
    %v8599 = vunpack.c.h.b16 %v7947
    %v8600 = vunpack.c.l.b16 %v7948
    %v8601 = vunpack.c.h.b16 %v7948
    %v8602 = vunpack.c.l.b16 %v7949
    %v8603 = vunpack.c.h.b16 %v7949
    %v8604 = vunpack.c.l.b16 %v7950
    %v8605 = vunpack.c.h.b16 %v7950
    %v8606 = vunpack.c.l.b16 %v7951
    %v8607 = vunpack.c.h.b16 %v7951
    %v8608 = vunpack.c.l.b16 %v7952
    %v8609 = vunpack.c.h.b16 %v7952
    %v8610 = vunpack.c.l.b16 %v7953
    %v8611 = vunpack.c.h.b16 %v7953
    %v8612 = vunpack.c.l.b16 %v7954
    %v8613 = vunpack.c.h.b16 %v7954
    %v8614 = vunpack.c.l.b16 %v7955
    %v8615 = vunpack.c.h.b16 %v7955
    %v8616 = vunpack.c.l.b16 %v7956
    %v8617 = vunpack.c.h.b16 %v7956
    %v8618 = vunpack.c.l.b16 %v7957
    %v8619 = vunpack.c.h.b16 %v7957
    %v8620 = vunpack.c.l.b16 %v7958
    %v8621 = vunpack.c.h.b16 %v7958
    %v8622 = vunpack.c.l.b16 %v7959
    %v8623 = vunpack.c.h.b16 %v7959
    %v8624 = vunpack.c.l.b16 %v7960
    %v8625 = vunpack.c.h.b16 %v7960
    %v8626 = vunpack.c.l.b16 %v7961
    %v8627 = vunpack.c.h.b16 %v7961
    %v8628 = vunpack.c.l.b16 %v7962
    %v8629 = vunpack.c.h.b16 %v7962
    %v8630 = vunpack.c.l.b16 %v7963
    %v8631 = vunpack.c.h.b16 %v7963
    %v8632 = vunpack.c.l.b16 %v7964
    %v8633 = vunpack.c.h.b16 %v7964
    %v8634 = vunpack.c.l.b16 %v7965
    %v8635 = vunpack.c.h.b16 %v7965
    %v8636 = vunpack.c.l.b16 %v7966
    %v8637 = vunpack.c.h.b16 %v7966
    %v8638 = vunpack.c.l.b16 %v7967
    %v8639 = vunpack.c.h.b16 %v7967
    %v8640 = vunpack.c.l.b16 %v7968
    %v8641 = vunpack.c.h.b16 %v7968
    %v8642 = vunpack.c.l.b16 %v7969
    %v8643 = vunpack.c.h.b16 %v7969
    %v8644 = vunpack.c.l.b16 %v7970
    %v8645 = vunpack.c.h.b16 %v7970
    %v8646 = vunpack.c.l.b16 %v7971
    %v8647 = vunpack.c.h.b16 %v7971
    %v8648 = vunpack.c.l.b16 %v7972
    %v8649 = vunpack.c.h.b16 %v7972
    %v8650 = vunpack.c.l.b16 %v7973
    %v8651 = vunpack.c.h.b16 %v7973
    %v8652 = vunpack.c.l.b16 %v7974
    %v8653 = vunpack.c.h.b16 %v7974
    %v8654 = vunpack.c.l.b16 %v7975
    %v8655 = vunpack.c.h.b16 %v7975
    %v8656 = vunpack.c.l.b16 %v7976
    %v8657 = vunpack.c.h.b16 %v7976
    %v8658 = vunpack.c.l.b16 %v7977
    %v8659 = vunpack.c.h.b16 %v7977
    %v8660 = vunpack.c.l.b16 %v7978
    %v8661 = vunpack.c.h.b16 %v7978
    %v8662 = vunpack.c.l.b16 %v7979
    %v8663 = vunpack.c.h.b16 %v7979
    %v8664 = vunpack.c.l.b16 %v7980
    %v8665 = vunpack.c.h.b16 %v7980
    %v8666 = vunpack.c.l.b16 %v7981
    %v8667 = vunpack.c.h.b16 %v7981
    %v8668 = vunpack.c.l.b16 %v7982
    %v8669 = vunpack.c.h.b16 %v7982
    %v8670 = vunpack.c.l.b16 %v7983
    %v8671 = vunpack.c.h.b16 %v7983
    %v8672 = vunpack.c.l.b16 %v7984
    %v8673 = vunpack.c.h.b16 %v7984
    %v8674 = vunpack.c.l.b16 %v7985
    %v8675 = vunpack.c.h.b16 %v7985
    %v8676 = vunpack.c.l.b16 %v7986
    %v8677 = vunpack.c.h.b16 %v7986
    %v8678 = vunpack.c.l.b16 %v7987
    %v8679 = vunpack.c.h.b16 %v7987
    %v8680 = vunpack.c.l.b16 %v7988
    %v8681 = vunpack.c.h.b16 %v7988
    %v8682 = vunpack.c.l.b16 %v7989
    %v8683 = vunpack.c.h.b16 %v7989
    %v8684 = vunpack.c.l.b16 %v7990
    %v8685 = vunpack.c.h.b16 %v7990
    %v8686 = vunpack.c.l.b16 %v7991
    %v8687 = vunpack.c.h.b16 %v7991
    %v8688 = vunpack.c.l.b16 %v7992
    %v8689 = vunpack.c.h.b16 %v7992
    %v8690 = vunpack.c.l.b16 %v7993
    %v8691 = vunpack.c.h.b16 %v7993
    %v8692 = vunpack.c.l.b16 %v7994
    %v8693 = vunpack.c.h.b16 %v7994
    %v8694 = vunpack.c.l.b16 %v7995
    %v8695 = vunpack.c.h.b16 %v7995
    %v8696 = vunpack.c.l.b16 %v7996
    %v8697 = vunpack.c.h.b16 %v7996
    %v8698 = vunpack.c.l.b16 %v7997
    %v8699 = vunpack.c.h.b16 %v7997
    %v8700 = vunpack.c.l.b16 %v7998
    %v8701 = vunpack.c.h.b16 %v7998
    %v8702 = vunpack.c.l.b16 %v7999
    %v8703 = vunpack.c.h.b16 %v7999
    %v8704 = vunpack.c.l.b16 %v8000
    %v8705 = vunpack.c.h.b16 %v8000
    %v8706 = vunpack.c.l.b16 %v8001
    %v8707 = vunpack.c.h.b16 %v8001
    %v8708 = vunpack.c.l.b16 %v8002
    %v8709 = vunpack.c.h.b16 %v8002
    %v8710 = vunpack.c.l.b16 %v8003
    %v8711 = vunpack.c.h.b16 %v8003
    %v8712 = vunpack.c.l.b16 %v8004
    %v8713 = vunpack.c.h.b16 %v8004
    %v8714 = vunpack.c.l.b16 %v8005
    %v8715 = vunpack.c.h.b16 %v8005
    %v8716 = vunpack.c.l.b16 %v8006
    %v8717 = vunpack.c.h.b16 %v8006
    %v8718 = vunpack.c.l.b16 %v8007
    %v8719 = vunpack.c.h.b16 %v8007
    %v8720 = vunpack.c.l.b16 %v8008
    %v8721 = vunpack.c.h.b16 %v8008
    %v8722 = vunpack.c.l.b16 %v8009
    %v8723 = vunpack.c.h.b16 %v8009
    %v8724 = vunpack.c.l.b16 %v8010
    %v8725 = vunpack.c.h.b16 %v8010
    %v8726 = vunpack.c.l.b16 %v8011
    %v8727 = vunpack.c.h.b16 %v8011
    %v8728 = vunpack.c.l.b16 %v8012
    %v8729 = vunpack.c.h.b16 %v8012
    %v8730 = vunpack.c.l.b16 %v8013
    %v8731 = vunpack.c.h.b16 %v8013
    %v8732 = vunpack.c.l.b16 %v8014
    %v8733 = vunpack.c.h.b16 %v8014
    %v8734 = vunpack.c.l.b16 %v8015
    %v8735 = vunpack.c.h.b16 %v8015
    %v8736 = vunpack.c.l.b16 %v8016
    %v8737 = vunpack.c.h.b16 %v8016
    %v8738 = vunpack.c.l.b16 %v8017
    %v8739 = vunpack.c.h.b16 %v8017
    %v8740 = vunpack.c.l.b16 %v8018
    %v8741 = vunpack.c.h.b16 %v8018
    %v8742 = vunpack.c.l.b16 %v8019
    %v8743 = vunpack.c.h.b16 %v8019
    %v8744 = vunpack.c.l.b16 %v8020
    %v8745 = vunpack.c.h.b16 %v8020
    %v8746 = vunpack.c.l.b16 %v8021
    %v8747 = vunpack.c.h.b16 %v8021
    %v8748 = vunpack.c.l.b16 %v8022
    %v8749 = vunpack.c.h.b16 %v8022
    %v8750 = vunpack.c.l.b16 %v8023
    %v8751 = vunpack.c.h.b16 %v8023
    %v8752 = vunpack.c.l.b16 %v8024
    %v8753 = vunpack.c.h.b16 %v8024
    %v8754 = vunpack.c.l.b16 %v8025
    %v8755 = vunpack.c.h.b16 %v8025
    %v8756 = vunpack.c.l.b16 %v8026
    %v8757 = vunpack.c.h.b16 %v8026
    %v8758 = vunpack.c.l.b16 %v8027
    %v8759 = vunpack.c.h.b16 %v8027
    %v8760 = vunpack.c.l.b16 %v8028
    %v8761 = vunpack.c.h.b16 %v8028
    %v8762 = vunpack.c.l.b16 %v8029
    %v8763 = vunpack.c.h.b16 %v8029
    %v8764 = vunpack.c.l.b16 %v8030
    %v8765 = vunpack.c.h.b16 %v8030
    %v8766 = vunpack.c.l.b16 %v8031
    %v8767 = vunpack.c.h.b16 %v8031
    %v8768 = vunpack.c.l.b16 %v8032
    %v8769 = vunpack.c.h.b16 %v8032
    %v8770 = vunpack.c.l.b16 %v8033
    %v8771 = vunpack.c.h.b16 %v8033
    %v8772 = vunpack.c.l.b16 %v8034
    %v8773 = vunpack.c.h.b16 %v8034
    %v8774 = vunpack.c.l.b16 %v8035
    %v8775 = vunpack.c.h.b16 %v8035
    %v8776 = vunpack.c.l.b16 %v8036
    %v8777 = vunpack.c.h.b16 %v8036
    %v8778 = vunpack.c.l.b16 %v8037
    %v8779 = vunpack.c.h.b16 %v8037
    %v8780 = vunpack.c.l.b16 %v8038
    %v8781 = vunpack.c.h.b16 %v8038
    %v8782 = vunpack.c.l.b16 %v8039
    %v8783 = vunpack.c.h.b16 %v8039
    %v8784 = vunpack.c.l.b16 %v8040
    %v8785 = vunpack.c.h.b16 %v8040
    %v8786 = vunpack.c.l.b16 %v8041
    %v8787 = vunpack.c.h.b16 %v8041
    %v8788 = vunpack.c.l.b16 %v8042
    %v8789 = vunpack.c.h.b16 %v8042
    %v8790 = vunpack.c.l.b16 %v8043
    %v8791 = vunpack.c.h.b16 %v8043
    %v8792 = vunpack.c.l.b16 %v8044
    %v8793 = vunpack.c.h.b16 %v8044
    %v8794 = vunpack.c.l.b16 %v8045
    %v8795 = vunpack.c.h.b16 %v8045
    %v8796 = vunpack.c.l.b16 %v8046
    %v8797 = vunpack.c.h.b16 %v8046
    %v8798 = vunpack.c.l.b16 %v8047
    %v8799 = vunpack.c.h.b16 %v8047
    %v8800 = vunpack.c.l.b16 %v8048
    %v8801 = vunpack.c.h.b16 %v8048
    %v8802 = vunpack.c.l.b16 %v8049
    %v8803 = vunpack.c.h.b16 %v8049
    %v8804 = vunpack.c.l.b16 %v8050
    %v8805 = vunpack.c.h.b16 %v8050
    %v8806 = vunpack.c.l.b16 %v8051
    %v8807 = vunpack.c.h.b16 %v8051
    %v8808 = vunpack.c.l.b16 %v8052
    %v8809 = vunpack.c.h.b16 %v8052
    %v8810 = vunpack.c.l.b16 %v8053
    %v8811 = vunpack.c.h.b16 %v8053
    %v8812 = vunpack.c.l.b16 %v8054
    %v8813 = vunpack.c.h.b16 %v8054
    %v8814 = vunpack.c.l.b16 %v8055
    %v8815 = vunpack.c.h.b16 %v8055
    %v8816 = vunpack.c.l.b16 %v8056
    %v8817 = vunpack.c.h.b16 %v8056
    %v8818 = vunpack.c.l.b16 %v8057
    %v8819 = vunpack.c.h.b16 %v8057
    %v8820 = vunpack.c.l.b16 %v8058
    %v8821 = vunpack.c.h.b16 %v8058
    %v8822 = vunpack.c.l.b16 %v8059
    %v8823 = vunpack.c.h.b16 %v8059
    %v8824 = vunpack.c.l.b16 %v8060
    %v8825 = vunpack.c.h.b16 %v8060
    %v8826 = vunpack.c.l.b16 %v8061
    %v8827 = vunpack.c.h.b16 %v8061
    %v8828 = vunpack.c.l.b16 %v8062
    %v8829 = vunpack.c.h.b16 %v8062
    %v8830 = vunpack.c.l.b16 %v8063
    %v8831 = vunpack.c.h.b16 %v8063
    %v8832 = vunpack.c.l.b16 %v8064
    %v8833 = vunpack.c.h.b16 %v8064
    %v8834 = vunpack.c.l.b16 %v8065
    %v8835 = vunpack.c.h.b16 %v8065
    %v8836 = vunpack.c.l.b16 %v8066
    %v8837 = vunpack.c.h.b16 %v8066
    %v8838 = vunpack.c.l.b16 %v8067
    %v8839 = vunpack.c.h.b16 %v8067
    %v8840 = vunpack.c.l.b16 %v8068
    %v8841 = vunpack.c.h.b16 %v8068
    %v8842 = vunpack.c.l.b16 %v8069
    %v8843 = vunpack.c.h.b16 %v8069
    %v8844 = vunpack.c.l.b16 %v8070
    %v8845 = vunpack.c.h.b16 %v8070
    %v8846 = vunpack.c.l.b16 %v8071
    %v8847 = vunpack.c.h.b16 %v8071
    %v8848 = vunpack.c.l.b16 %v8072
    %v8849 = vunpack.c.h.b16 %v8072
    %v8850 = vunpack.c.l.b16 %v8073
    %v8851 = vunpack.c.h.b16 %v8073
    %v8852 = vunpack.c.l.b16 %v8074
    %v8853 = vunpack.c.h.b16 %v8074
    %v8854 = vunpack.c.l.b16 %v8075
    %v8855 = vunpack.c.h.b16 %v8075
    %v8856 = vunpack.c.l.b16 %v8076
    %v8857 = vunpack.c.h.b16 %v8076
    %v8858 = vunpack.c.l.b16 %v8077
    %v8859 = vunpack.c.h.b16 %v8077
    %v8860 = vunpack.c.l.b16 %v8078
    %v8861 = vunpack.c.h.b16 %v8078
    %v8862 = vunpack.c.l.b16 %v8079
    %v8863 = vunpack.c.h.b16 %v8079
    %v8864 = vunpack.c.l.b16 %v8080
    %v8865 = vunpack.c.h.b16 %v8080
    %v8866 = vunpack.c.l.b16 %v8081
    %v8867 = vunpack.c.h.b16 %v8081
    %v8868 = vunpack.c.l.b16 %v8082
    %v8869 = vunpack.c.h.b16 %v8082
    %v8870 = vunpack.c.l.b16 %v8083
    %v8871 = vunpack.c.h.b16 %v8083
    %v8872 = vunpack.c.l.b16 %v8084
    %v8873 = vunpack.c.h.b16 %v8084
    %v8874 = vunpack.c.l.b16 %v8085
    %v8875 = vunpack.c.h.b16 %v8085
    %v8876 = vpack.c.b16 %v8368, %v8364
    %v8877 = vpack.c.b16 %v8369, %v8365
    %v8878 = vpack.c.b16 %v8370, %v8366
    %v8879 = vpack.c.b16 %v8371, %v8367
    %v8880 = vpack.c.b16 %v8376, %v8372
    %v8881 = vpack.c.b16 %v8377, %v8373
    %v8882 = vpack.c.b16 %v8378, %v8374
    %v8883 = vpack.c.b16 %v8379, %v8375
    %v8884 = vpack.c.b16 %v8384, %v8380
    %v8885 = vpack.c.b16 %v8385, %v8381
    %v8886 = vpack.c.b16 %v8386, %v8382
    %v8887 = vpack.c.b16 %v8387, %v8383
    %v8888 = vpack.c.b16 %v8392, %v8388
    %v8889 = vpack.c.b16 %v8393, %v8389
    %v8890 = vpack.c.b16 %v8394, %v8390
    %v8891 = vpack.c.b16 %v8395, %v8391
    %v8892 = vpack.c.b16 %v8400, %v8396
    %v8893 = vpack.c.b16 %v8401, %v8397
    %v8894 = vpack.c.b16 %v8402, %v8398
    %v8895 = vpack.c.b16 %v8403, %v8399
    %v8896 = vpack.c.b16 %v8408, %v8404
    %v8897 = vpack.c.b16 %v8409, %v8405
    %v8898 = vpack.c.b16 %v8410, %v8406
    %v8899 = vpack.c.b16 %v8411, %v8407
    %v8900 = vpack.c.b16 %v8416, %v8412
    %v8901 = vpack.c.b16 %v8417, %v8413
    %v8902 = vpack.c.b16 %v8418, %v8414
    %v8903 = vpack.c.b16 %v8419, %v8415
    %v8904 = vpack.c.b16 %v8424, %v8420
    %v8905 = vpack.c.b16 %v8425, %v8421
    %v8906 = vpack.c.b16 %v8426, %v8422
    %v8907 = vpack.c.b16 %v8427, %v8423
    %v8908 = vpack.c.b16 %v8432, %v8428
    %v8909 = vpack.c.b16 %v8433, %v8429
    %v8910 = vpack.c.b16 %v8434, %v8430
    %v8911 = vpack.c.b16 %v8435, %v8431
    %v8912 = vpack.c.b16 %v8440, %v8436
    %v8913 = vpack.c.b16 %v8441, %v8437
    %v8914 = vpack.c.b16 %v8442, %v8438
    %v8915 = vpack.c.b16 %v8443, %v8439
    %v8916 = vpack.c.b16 %v8448, %v8444
    %v8917 = vpack.c.b16 %v8449, %v8445
    %v8918 = vpack.c.b16 %v8450, %v8446
    %v8919 = vpack.c.b16 %v8451, %v8447
    %v8920 = vpack.c.b16 %v8456, %v8452
    %v8921 = vpack.c.b16 %v8457, %v8453
    %v8922 = vpack.c.b16 %v8458, %v8454
    %v8923 = vpack.c.b16 %v8459, %v8455
    %v8924 = vpack.c.b16 %v8464, %v8460
    %v8925 = vpack.c.b16 %v8465, %v8461
    %v8926 = vpack.c.b16 %v8466, %v8462
    %v8927 = vpack.c.b16 %v8467, %v8463
    %v8928 = vpack.c.b16 %v8472, %v8468
    %v8929 = vpack.c.b16 %v8473, %v8469
    %v8930 = vpack.c.b16 %v8474, %v8470
    %v8931 = vpack.c.b16 %v8475, %v8471
    %v8932 = vpack.c.b16 %v8480, %v8476
    %v8933 = vpack.c.b16 %v8481, %v8477
    %v8934 = vpack.c.b16 %v8482, %v8478
    %v8935 = vpack.c.b16 %v8483, %v8479
    %v8936 = vpack.c.b16 %v8488, %v8484
    %v8937 = vpack.c.b16 %v8489, %v8485
    %v8938 = vpack.c.b16 %v8490, %v8486
    %v8939 = vpack.c.b16 %v8491, %v8487
    %v8940 = vpack.c.b16 %v8496, %v8492
    %v8941 = vpack.c.b16 %v8497, %v8493
    %v8942 = vpack.c.b16 %v8498, %v8494
    %v8943 = vpack.c.b16 %v8499, %v8495
    %v8944 = vpack.c.b16 %v8504, %v8500
    %v8945 = vpack.c.b16 %v8505, %v8501
    %v8946 = vpack.c.b16 %v8506, %v8502
    %v8947 = vpack.c.b16 %v8507, %v8503
    %v8948 = vpack.c.b16 %v8512, %v8508
    %v8949 = vpack.c.b16 %v8513, %v8509
    %v8950 = vpack.c.b16 %v8514, %v8510
    %v8951 = vpack.c.b16 %v8515, %v8511
    %v8952 = vpack.c.b16 %v8520, %v8516
    %v8953 = vpack.c.b16 %v8521, %v8517
    %v8954 = vpack.c.b16 %v8522, %v8518
    %v8955 = vpack.c.b16 %v8523, %v8519
    %v8956 = vpack.c.b16 %v8528, %v8524
    %v8957 = vpack.c.b16 %v8529, %v8525
    %v8958 = vpack.c.b16 %v8530, %v8526
    %v8959 = vpack.c.b16 %v8531, %v8527
    %v8960 = vpack.c.b16 %v8536, %v8532
    %v8961 = vpack.c.b16 %v8537, %v8533
    %v8962 = vpack.c.b16 %v8538, %v8534
    %v8963 = vpack.c.b16 %v8539, %v8535
    %v8964 = vpack.c.b16 %v8544, %v8540
    %v8965 = vpack.c.b16 %v8545, %v8541
    %v8966 = vpack.c.b16 %v8546, %v8542
    %v8967 = vpack.c.b16 %v8547, %v8543
    %v8968 = vpack.c.b16 %v8552, %v8548
    %v8969 = vpack.c.b16 %v8553, %v8549
    %v8970 = vpack.c.b16 %v8554, %v8550
    %v8971 = vpack.c.b16 %v8555, %v8551
    %v8972 = vpack.c.b16 %v8560, %v8556
    %v8973 = vpack.c.b16 %v8561, %v8557
    %v8974 = vpack.c.b16 %v8562, %v8558
    %v8975 = vpack.c.b16 %v8563, %v8559
    %v8976 = vpack.c.b16 %v8568, %v8564
    %v8977 = vpack.c.b16 %v8569, %v8565
    %v8978 = vpack.c.b16 %v8570, %v8566
    %v8979 = vpack.c.b16 %v8571, %v8567
    %v8980 = vpack.c.b16 %v8576, %v8572
    %v8981 = vpack.c.b16 %v8577, %v8573
    %v8982 = vpack.c.b16 %v8578, %v8574
    %v8983 = vpack.c.b16 %v8579, %v8575
    %v8984 = vpack.c.b16 %v8584, %v8580
    %v8985 = vpack.c.b16 %v8585, %v8581
    %v8986 = vpack.c.b16 %v8586, %v8582
    %v8987 = vpack.c.b16 %v8587, %v8583
    %v8988 = vpack.c.b16 %v8592, %v8588
    %v8989 = vpack.c.b16 %v8593, %v8589
    %v8990 = vpack.c.b16 %v8594, %v8590
    %v8991 = vpack.c.b16 %v8595, %v8591
    %v8992 = vpack.c.b16 %v8600, %v8596
    %v8993 = vpack.c.b16 %v8601, %v8597
    %v8994 = vpack.c.b16 %v8602, %v8598
    %v8995 = vpack.c.b16 %v8603, %v8599
    %v8996 = vpack.c.b16 %v8608, %v8604
    %v8997 = vpack.c.b16 %v8609, %v8605
    %v8998 = vpack.c.b16 %v8610, %v8606
    %v8999 = vpack.c.b16 %v8611, %v8607
    %v9000 = vpack.c.b16 %v8616, %v8612
    %v9001 = vpack.c.b16 %v8617, %v8613
    %v9002 = vpack.c.b16 %v8618, %v8614
    %v9003 = vpack.c.b16 %v8619, %v8615
    %v9004 = vpack.c.b16 %v8624, %v8620
    %v9005 = vpack.c.b16 %v8625, %v8621
    %v9006 = vpack.c.b16 %v8626, %v8622
    %v9007 = vpack.c.b16 %v8627, %v8623
    %v9008 = vpack.c.b16 %v8632, %v8628
    %v9009 = vpack.c.b16 %v8633, %v8629
    %v9010 = vpack.c.b16 %v8634, %v8630
    %v9011 = vpack.c.b16 %v8635, %v8631
    %v9012 = vpack.c.b16 %v8640, %v8636
    %v9013 = vpack.c.b16 %v8641, %v8637
    %v9014 = vpack.c.b16 %v8642, %v8638
    %v9015 = vpack.c.b16 %v8643, %v8639
    %v9016 = vpack.c.b16 %v8648, %v8644
    %v9017 = vpack.c.b16 %v8649, %v8645
    %v9018 = vpack.c.b16 %v8650, %v8646
    %v9019 = vpack.c.b16 %v8651, %v8647
    %v9020 = vpack.c.b16 %v8656, %v8652
    %v9021 = vpack.c.b16 %v8657, %v8653
    %v9022 = vpack.c.b16 %v8658, %v8654
    %v9023 = vpack.c.b16 %v8659, %v8655
    %v9024 = vpack.c.b16 %v8664, %v8660
    %v9025 = vpack.c.b16 %v8665, %v8661
    %v9026 = vpack.c.b16 %v8666, %v8662
    %v9027 = vpack.c.b16 %v8667, %v8663
    %v9028 = vpack.c.b16 %v8672, %v8668
    %v9029 = vpack.c.b16 %v8673, %v8669
    %v9030 = vpack.c.b16 %v8674, %v8670
    %v9031 = vpack.c.b16 %v8675, %v8671
    %v9032 = vpack.c.b16 %v8680, %v8676
    %v9033 = vpack.c.b16 %v8681, %v8677
    %v9034 = vpack.c.b16 %v8682, %v8678
    %v9035 = vpack.c.b16 %v8683, %v8679
    %v9036 = vpack.c.b16 %v8688, %v8684
    %v9037 = vpack.c.b16 %v8689, %v8685
    %v9038 = vpack.c.b16 %v8690, %v8686
    %v9039 = vpack.c.b16 %v8691, %v8687
    %v9040 = vpack.c.b16 %v8696, %v8692
    %v9041 = vpack.c.b16 %v8697, %v8693
    %v9042 = vpack.c.b16 %v8698, %v8694
    %v9043 = vpack.c.b16 %v8699, %v8695
    %v9044 = vpack.c.b16 %v8704, %v8700
    %v9045 = vpack.c.b16 %v8705, %v8701
    %v9046 = vpack.c.b16 %v8706, %v8702
    %v9047 = vpack.c.b16 %v8707, %v8703
    %v9048 = vpack.c.b16 %v8712, %v8708
    %v9049 = vpack.c.b16 %v8713, %v8709
    %v9050 = vpack.c.b16 %v8714, %v8710
    %v9051 = vpack.c.b16 %v8715, %v8711
    %v9052 = vpack.c.b16 %v8720, %v8716
    %v9053 = vpack.c.b16 %v8721, %v8717
    %v9054 = vpack.c.b16 %v8722, %v8718
    %v9055 = vpack.c.b16 %v8723, %v8719
    %v9056 = vpack.c.b16 %v8728, %v8724
    %v9057 = vpack.c.b16 %v8729, %v8725
    %v9058 = vpack.c.b16 %v8730, %v8726
    %v9059 = vpack.c.b16 %v8731, %v8727
    %v9060 = vpack.c.b16 %v8736, %v8732
    %v9061 = vpack.c.b16 %v8737, %v8733
    %v9062 = vpack.c.b16 %v8738, %v8734
    %v9063 = vpack.c.b16 %v8739, %v8735
    %v9064 = vpack.c.b16 %v8744, %v8740
    %v9065 = vpack.c.b16 %v8745, %v8741
    %v9066 = vpack.c.b16 %v8746, %v8742
    %v9067 = vpack.c.b16 %v8747, %v8743
    %v9068 = vpack.c.b16 %v8752, %v8748
    %v9069 = vpack.c.b16 %v8753, %v8749
    %v9070 = vpack.c.b16 %v8754, %v8750
    %v9071 = vpack.c.b16 %v8755, %v8751
    %v9072 = vpack.c.b16 %v8760, %v8756
    %v9073 = vpack.c.b16 %v8761, %v8757
    %v9074 = vpack.c.b16 %v8762, %v8758
    %v9075 = vpack.c.b16 %v8763, %v8759
    %v9076 = vpack.c.b16 %v8768, %v8764
    %v9077 = vpack.c.b16 %v8769, %v8765
    %v9078 = vpack.c.b16 %v8770, %v8766
    %v9079 = vpack.c.b16 %v8771, %v8767
    %v9080 = vpack.c.b16 %v8776, %v8772
    %v9081 = vpack.c.b16 %v8777, %v8773
    %v9082 = vpack.c.b16 %v8778, %v8774
    %v9083 = vpack.c.b16 %v8779, %v8775
    %v9084 = vpack.c.b16 %v8784, %v8780
    %v9085 = vpack.c.b16 %v8785, %v8781
    %v9086 = vpack.c.b16 %v8786, %v8782
    %v9087 = vpack.c.b16 %v8787, %v8783
    %v9088 = vpack.c.b16 %v8792, %v8788
    %v9089 = vpack.c.b16 %v8793, %v8789
    %v9090 = vpack.c.b16 %v8794, %v8790
    %v9091 = vpack.c.b16 %v8795, %v8791
    %v9092 = vpack.c.b16 %v8800, %v8796
    %v9093 = vpack.c.b16 %v8801, %v8797
    %v9094 = vpack.c.b16 %v8802, %v8798
    %v9095 = vpack.c.b16 %v8803, %v8799
    %v9096 = vpack.c.b16 %v8808, %v8804
    %v9097 = vpack.c.b16 %v8809, %v8805
    %v9098 = vpack.c.b16 %v8810, %v8806
    %v9099 = vpack.c.b16 %v8811, %v8807
    %v9100 = vpack.c.b16 %v8816, %v8812
    %v9101 = vpack.c.b16 %v8817, %v8813
    %v9102 = vpack.c.b16 %v8818, %v8814
    %v9103 = vpack.c.b16 %v8819, %v8815
    %v9104 = vpack.c.b16 %v8824, %v8820
    %v9105 = vpack.c.b16 %v8825, %v8821
    %v9106 = vpack.c.b16 %v8826, %v8822
    %v9107 = vpack.c.b16 %v8827, %v8823
    %v9108 = vpack.c.b16 %v8832, %v8828
    %v9109 = vpack.c.b16 %v8833, %v8829
    %v9110 = vpack.c.b16 %v8834, %v8830
    %v9111 = vpack.c.b16 %v8835, %v8831
    %v9112 = vpack.c.b16 %v8840, %v8836
    %v9113 = vpack.c.b16 %v8841, %v8837
    %v9114 = vpack.c.b16 %v8842, %v8838
    %v9115 = vpack.c.b16 %v8843, %v8839
    %v9116 = vpack.c.b16 %v8848, %v8844
    %v9117 = vpack.c.b16 %v8849, %v8845
    %v9118 = vpack.c.b16 %v8850, %v8846
    %v9119 = vpack.c.b16 %v8851, %v8847
    %v9120 = vpack.c.b16 %v8856, %v8852
    %v9121 = vpack.c.b16 %v8857, %v8853
    %v9122 = vpack.c.b16 %v8858, %v8854
    %v9123 = vpack.c.b16 %v8859, %v8855
    %v9124 = vpack.c.b16 %v8864, %v8860
    %v9125 = vpack.c.b16 %v8865, %v8861
    %v9126 = vpack.c.b16 %v8866, %v8862
    %v9127 = vpack.c.b16 %v8867, %v8863
    %v9128 = vpack.c.b16 %v8872, %v8868
    %v9129 = vpack.c.b16 %v8873, %v8869
    %v9130 = vpack.c.b16 %v8874, %v8870
    %v9131 = vpack.c.b16 %v8875, %v8871
    %9388 = vmatprep.subr.bf16.mxu0 %v8877
    %9389 = vmatpush1.bf16.msra.mxu0 %v8876
    %9390 = vmatprep.subr.bf16.mxu0 %v8881
    %9391 = vmatpush1.bf16.msra.mxu0 %v8880
    %9392 = vmatprep.subr.bf16.mxu0 %v8885
    %9393 = vmatpush1.bf16.msra.mxu0 %v8884
    %9394 = vmatprep.subr.bf16.mxu0 %v8889
    %9395 = vmatpush1.bf16.msra.mxu0 %v8888
    %9396 = vmatprep.subr.bf16.mxu0 %v8893
    %9397 = vmatpush1.bf16.msra.mxu0 %v8892
    %9398 = vmatprep.subr.bf16.mxu0 %v8897
    %9399 = vmatpush1.bf16.msra.mxu0 %v8896
    %9400 = vmatprep.subr.bf16.mxu0 %v8901
    %9401 = vmatpush1.bf16.msra.mxu0 %v8900
    %9402 = vmatprep.subr.bf16.mxu0 %v8905
    %9403 = vmatpush1.bf16.msra.mxu0 %v8904
    %9404 = vmatprep.subr.bf16.mxu0 %v8909
    %9405 = vmatpush1.bf16.msra.mxu0 %v8908
    %9406 = vmatprep.subr.bf16.mxu0 %v8913
    %9407 = vmatpush1.bf16.msra.mxu0 %v8912
    %9408 = vmatprep.subr.bf16.mxu0 %v8917
    %9409 = vmatpush1.bf16.msra.mxu0 %v8916
    %9410 = vmatprep.subr.bf16.mxu0 %v8921
    %9411 = vmatpush1.bf16.msra.mxu0 %v8920
    %9412 = vmatprep.subr.bf16.mxu0 %v8925
    %9413 = vmatpush1.bf16.msra.mxu0 %v8924
    %9414 = vmatprep.subr.bf16.mxu0 %v8929
    %9415 = vmatpush1.bf16.msra.mxu0 %v8928
    %9416 = vmatprep.subr.bf16.mxu0 %v8933
    %9417 = vmatpush1.bf16.msra.mxu0 %v8932
    %9418 = vmatprep.subr.bf16.mxu0 %v8937
    %9419 = vmatpush1.bf16.msra.mxu0 %v8936
    %9420 = vmatprep.mubr.bf16.mxu0 %v7823
    %9421 = vmatmul.mubr.bf16.gmra.mrb[0].mxu0 %v7822
    %v9422 = vpop.f32.mrb[0].mxu0
    %v9423 = vadd.f32 %v8091, %v9422
    %v9424 = vpop.f32.mrb[0].mxu0
    %v9425 = vadd.f32 %v8095, %v9424
    %v9426 = vpop.f32.mrb[0].mxu0
    %v9427 = vadd.f32 %v8091, %v9426
    %v9428 = vpop.f32.mrb[0].mxu0
    %v9429 = vadd.f32 %v8095, %v9428
    %9430 = vdwg.mxu0
    %9431 = vmatprep.subr.bf16.mxu0 %v8941
    %9432 = vmatpush1.bf16.msra.mxu0 %v8940
    %9433 = vmatprep.subr.bf16.mxu0 %v8945
    %9434 = vmatpush1.bf16.msra.mxu0 %v8944
    %9435 = vmatprep.subr.bf16.mxu0 %v8949
    %9436 = vmatpush1.bf16.msra.mxu0 %v8948
    %9437 = vmatprep.subr.bf16.mxu0 %v8953
    %9438 = vmatpush1.bf16.msra.mxu0 %v8952
    %9439 = vmatprep.subr.bf16.mxu0 %v8957
    %9440 = vmatpush1.bf16.msra.mxu0 %v8956
    %9441 = vmatprep.subr.bf16.mxu0 %v8961
    %9442 = vmatpush1.bf16.msra.mxu0 %v8960
    %9443 = vmatprep.subr.bf16.mxu0 %v8965
    %9444 = vmatpush1.bf16.msra.mxu0 %v8964
    %9445 = vmatprep.subr.bf16.mxu0 %v8969
    %9446 = vmatpush1.bf16.msra.mxu0 %v8968
    %9447 = vmatprep.subr.bf16.mxu0 %v8973
    %9448 = vmatpush1.bf16.msra.mxu0 %v8972
    %9449 = vmatprep.subr.bf16.mxu0 %v8977
    %9450 = vmatpush1.bf16.msra.mxu0 %v8976
    %9451 = vmatprep.subr.bf16.mxu0 %v8981
    %9452 = vmatpush1.bf16.msra.mxu0 %v8980
    %9453 = vmatprep.subr.bf16.mxu0 %v8985
    %9454 = vmatpush1.bf16.msra.mxu0 %v8984
    %9455 = vmatprep.subr.bf16.mxu0 %v8989
    %9456 = vmatpush1.bf16.msra.mxu0 %v8988
    %9457 = vmatprep.subr.bf16.mxu0 %v8993
    %9458 = vmatpush1.bf16.msra.mxu0 %v8992
    %9459 = vmatprep.subr.bf16.mxu0 %v8997
    %9460 = vmatpush1.bf16.msra.mxu0 %v8996
    %9461 = vmatprep.subr.bf16.mxu0 %v9001
    %9462 = vmatpush1.bf16.msra.mxu0 %v9000
    %9463 = vmatprep.mubr.bf16.mxu0 %v7825
    %9464 = vmatmul.mubr.bf16.gmra.mrb[0].mxu0 %v7824
    %v9465 = vpop.f32.mrb[0].mxu0
    %v9466 = vadd.f32 %v9423, %v9465
    %v9467 = vpop.f32.mrb[0].mxu0
    %v9468 = vadd.f32 %v9425, %v9467
    %v9469 = vpop.f32.mrb[0].mxu0
    %v9470 = vadd.f32 %v9427, %v9469
    %v9471 = vpop.f32.mrb[0].mxu0
    %v9472 = vadd.f32 %v9429, %v9471
    %9473 = vdwg.mxu0
    %9474 = vmatprep.subr.bf16.mxu0 %v9005
    %9475 = vmatpush1.bf16.msra.mxu0 %v9004
    %9476 = vmatprep.subr.bf16.mxu0 %v9009
    %9477 = vmatpush1.bf16.msra.mxu0 %v9008
    %9478 = vmatprep.subr.bf16.mxu0 %v9013
    %9479 = vmatpush1.bf16.msra.mxu0 %v9012
    %9480 = vmatprep.subr.bf16.mxu0 %v9017
    %9481 = vmatpush1.bf16.msra.mxu0 %v9016
    %9482 = vmatprep.subr.bf16.mxu0 %v9021
    %9483 = vmatpush1.bf16.msra.mxu0 %v9020
    %9484 = vmatprep.subr.bf16.mxu0 %v9025
    %9485 = vmatpush1.bf16.msra.mxu0 %v9024
    %9486 = vmatprep.subr.bf16.mxu0 %v9029
    %9487 = vmatpush1.bf16.msra.mxu0 %v9028
    %9488 = vmatprep.subr.bf16.mxu0 %v9033
    %9489 = vmatpush1.bf16.msra.mxu0 %v9032
    %9490 = vmatprep.subr.bf16.mxu0 %v9037
    %9491 = vmatpush1.bf16.msra.mxu0 %v9036
    %9492 = vmatprep.subr.bf16.mxu0 %v9041
    %9493 = vmatpush1.bf16.msra.mxu0 %v9040
    %9494 = vmatprep.subr.bf16.mxu0 %v9045
    %9495 = vmatpush1.bf16.msra.mxu0 %v9044
    %9496 = vmatprep.subr.bf16.mxu0 %v9049
    %9497 = vmatpush1.bf16.msra.mxu0 %v9048
    %9498 = vmatprep.subr.bf16.mxu0 %v9053
    %9499 = vmatpush1.bf16.msra.mxu0 %v9052
    %9500 = vmatprep.subr.bf16.mxu0 %v9057
    %9501 = vmatpush1.bf16.msra.mxu0 %v9056
    %9502 = vmatprep.subr.bf16.mxu0 %v9061
    %9503 = vmatpush1.bf16.msra.mxu0 %v9060
    %9504 = vmatprep.subr.bf16.mxu0 %v9065
    %9505 = vmatpush1.bf16.msra.mxu0 %v9064
    %9506 = vmatprep.mubr.bf16.mxu0 %v7827
    %9507 = vmatmul.mubr.bf16.gmra.mrb[0].mxu0 %v7826
    %v9508 = vpop.f32.mrb[0].mxu0
    %v9509 = vadd.f32 %v9466, %v9508
    %v9510 = vpop.f32.mrb[0].mxu0
    %v9511 = vadd.f32 %v9468, %v9510
    %v9512 = vpop.f32.mrb[0].mxu0
    %v9513 = vadd.f32 %v9470, %v9512
    %v9514 = vpop.f32.mrb[0].mxu0
    %v9515 = vadd.f32 %v9472, %v9514
    %9516 = vdwg.mxu0
    %9517 = vmatprep.subr.bf16.mxu0 %v9069
    %9518 = vmatpush1.bf16.msra.mxu0 %v9068
    %9519 = vmatprep.subr.bf16.mxu0 %v9073
    %9520 = vmatpush1.bf16.msra.mxu0 %v9072
    %9521 = vmatprep.subr.bf16.mxu0 %v9077
    %9522 = vmatpush1.bf16.msra.mxu0 %v9076
    %9523 = vmatprep.subr.bf16.mxu0 %v9081
    %9524 = vmatpush1.bf16.msra.mxu0 %v9080
    %9525 = vmatprep.subr.bf16.mxu0 %v9085
    %9526 = vmatpush1.bf16.msra.mxu0 %v9084
    %9527 = vmatprep.subr.bf16.mxu0 %v9089
    %9528 = vmatpush1.bf16.msra.mxu0 %v9088
    %9529 = vmatprep.subr.bf16.mxu0 %v9093
    %9530 = vmatpush1.bf16.msra.mxu0 %v9092
    %9531 = vmatprep.subr.bf16.mxu0 %v9097
    %9532 = vmatpush1.bf16.msra.mxu0 %v9096
    %9533 = vmatprep.subr.bf16.mxu0 %v9101
    %9534 = vmatpush1.bf16.msra.mxu0 %v9100
    %9535 = vmatprep.subr.bf16.mxu0 %v9105
    %9536 = vmatpush1.bf16.msra.mxu0 %v9104
    %9537 = vmatprep.subr.bf16.mxu0 %v9109
    %9538 = vmatpush1.bf16.msra.mxu0 %v9108
    %9539 = vmatprep.subr.bf16.mxu0 %v9113
    %9540 = vmatpush1.bf16.msra.mxu0 %v9112
    %9541 = vmatprep.subr.bf16.mxu0 %v9117
    %9542 = vmatpush1.bf16.msra.mxu0 %v9116
    %9543 = vmatprep.subr.bf16.mxu0 %v9121
    %9544 = vmatpush1.bf16.msra.mxu0 %v9120
    %9545 = vmatprep.subr.bf16.mxu0 %v9125
    %9546 = vmatpush1.bf16.msra.mxu0 %v9124
    %9547 = vmatprep.subr.bf16.mxu0 %v9129
    %9548 = vmatpush1.bf16.msra.mxu0 %v9128
    %9549 = vmatprep.mubr.bf16.mxu0 %v7829
    %9550 = vmatmul.mubr.bf16.gmra.mrb[0].mxu0 %v7828
    %v9551 = vpop.f32.mrb[0].mxu0
    %v9552 = vadd.f32 %v9509, %v9551
    %v9553 = vpop.f32.mrb[0].mxu0
    %v9554 = vadd.f32 %v9511, %v9553
    %v9555 = vpop.f32.mrb[0].mxu0
    %v9556 = vadd.f32 %v9513, %v9555
    %v9557 = vpop.f32.mrb[0].mxu0
    %v9558 = vadd.f32 %v9515, %v9557
    %9559 = vdwg.mxu0
    %9560 = vmatprep.subr.bf16.mxu0 %v8879
    %9561 = vmatpush1.bf16.msra.mxu0 %v8878
    %9562 = vmatprep.subr.bf16.mxu0 %v8883
    %9563 = vmatpush1.bf16.msra.mxu0 %v8882
    %9564 = vmatprep.subr.bf16.mxu0 %v8887
    %9565 = vmatpush1.bf16.msra.mxu0 %v8886
    %9566 = vmatprep.subr.bf16.mxu0 %v8891
    %9567 = vmatpush1.bf16.msra.mxu0 %v8890
    %9568 = vmatprep.subr.bf16.mxu0 %v8895
    %9569 = vmatpush1.bf16.msra.mxu0 %v8894
    %9570 = vmatprep.subr.bf16.mxu0 %v8899
    %9571 = vmatpush1.bf16.msra.mxu0 %v8898
    %9572 = vmatprep.subr.bf16.mxu0 %v8903
    %9573 = vmatpush1.bf16.msra.mxu0 %v8902
    %9574 = vmatprep.subr.bf16.mxu0 %v8907
    %9575 = vmatpush1.bf16.msra.mxu0 %v8906
    %9576 = vmatprep.subr.bf16.mxu0 %v8911
    %9577 = vmatpush1.bf16.msra.mxu0 %v8910
    %9578 = vmatprep.subr.bf16.mxu0 %v8915
    %9579 = vmatpush1.bf16.msra.mxu0 %v8914
    %9580 = vmatprep.subr.bf16.mxu0 %v8919
    %9581 = vmatpush1.bf16.msra.mxu0 %v8918
    %9582 = vmatprep.subr.bf16.mxu0 %v8923
    %9583 = vmatpush1.bf16.msra.mxu0 %v8922
    %9584 = vmatprep.subr.bf16.mxu0 %v8927
    %9585 = vmatpush1.bf16.msra.mxu0 %v8926
    %9586 = vmatprep.subr.bf16.mxu0 %v8931
    %9587 = vmatpush1.bf16.msra.mxu0 %v8930
    %9588 = vmatprep.subr.bf16.mxu0 %v8935
    %9589 = vmatpush1.bf16.msra.mxu0 %v8934
    %9590 = vmatprep.subr.bf16.mxu0 %v8939
    %9591 = vmatpush1.bf16.msra.mxu0 %v8938
    %9592 = vmatprep.mubr.bf16.mxu0 %v7823
    %9593 = vmatmul.mubr.bf16.gmra.mrb[0].mxu0 %v7822
    %v9594 = vpop.f32.mrb[0].mxu0
    %v9595 = vadd.f32 %v8099, %v9594
    %v9596 = vpop.f32.mrb[0].mxu0
    %v9597 = vadd.f32 %v8103, %v9596
    %v9598 = vpop.f32.mrb[0].mxu0
    %v9599 = vadd.f32 %v8099, %v9598
    %v9600 = vpop.f32.mrb[0].mxu0
    %v9601 = vadd.f32 %v8103, %v9600
    %9602 = vdwg.mxu0
    %9603 = vmatprep.subr.bf16.mxu0 %v8943
    %9604 = vmatpush1.bf16.msra.mxu0 %v8942
    %9605 = vmatprep.subr.bf16.mxu0 %v8947
    %9606 = vmatpush1.bf16.msra.mxu0 %v8946
    %9607 = vmatprep.subr.bf16.mxu0 %v8951
    %9608 = vmatpush1.bf16.msra.mxu0 %v8950
    %9609 = vmatprep.subr.bf16.mxu0 %v8955
    %9610 = vmatpush1.bf16.msra.mxu0 %v8954
    %9611 = vmatprep.subr.bf16.mxu0 %v8959
    %9612 = vmatpush1.bf16.msra.mxu0 %v8958
    %9613 = vmatprep.subr.bf16.mxu0 %v8963
    %9614 = vmatpush1.bf16.msra.mxu0 %v8962
    %9615 = vmatprep.subr.bf16.mxu0 %v8967
    %9616 = vmatpush1.bf16.msra.mxu0 %v8966
    %9617 = vmatprep.subr.bf16.mxu0 %v8971
    %9618 = vmatpush1.bf16.msra.mxu0 %v8970
    %9619 = vmatprep.subr.bf16.mxu0 %v8975
    %9620 = vmatpush1.bf16.msra.mxu0 %v8974
    %9621 = vmatprep.subr.bf16.mxu0 %v8979
    %9622 = vmatpush1.bf16.msra.mxu0 %v8978
    %9623 = vmatprep.subr.bf16.mxu0 %v8983
    %9624 = vmatpush1.bf16.msra.mxu0 %v8982
    %9625 = vmatprep.subr.bf16.mxu0 %v8987
    %9626 = vmatpush1.bf16.msra.mxu0 %v8986
    %9627 = vmatprep.subr.bf16.mxu0 %v8991
    %9628 = vmatpush1.bf16.msra.mxu0 %v8990
    %9629 = vmatprep.subr.bf16.mxu0 %v8995
    %9630 = vmatpush1.bf16.msra.mxu0 %v8994
    %9631 = vmatprep.subr.bf16.mxu0 %v8999
    %9632 = vmatpush1.bf16.msra.mxu0 %v8998
    %9633 = vmatprep.subr.bf16.mxu0 %v9003
    %9634 = vmatpush1.bf16.msra.mxu0 %v9002
    %9635 = vmatprep.mubr.bf16.mxu0 %v7825
    %9636 = vmatmul.mubr.bf16.gmra.mrb[0].mxu0 %v7824
    %v9637 = vpop.f32.mrb[0].mxu0
    %v9638 = vadd.f32 %v9595, %v9637
    %v9639 = vpop.f32.mrb[0].mxu0
    %v9640 = vadd.f32 %v9597, %v9639
    %v9641 = vpop.f32.mrb[0].mxu0
    %v9642 = vadd.f32 %v9599, %v9641
    %v9643 = vpop.f32.mrb[0].mxu0
    %v9644 = vadd.f32 %v9601, %v9643
    %9645 = vdwg.mxu0
    %9646 = vmatprep.subr.bf16.mxu0 %v9007
    %9647 = vmatpush1.bf16.msra.mxu0 %v9006
    %9648 = vmatprep.subr.bf16.mxu0 %v9011
    %9649 = vmatpush1.bf16.msra.mxu0 %v9010
    %9650 = vmatprep.subr.bf16.mxu0 %v9015
    %9651 = vmatpush1.bf16.msra.mxu0 %v9014
    %9652 = vmatprep.subr.bf16.mxu0 %v9019
    %9653 = vmatpush1.bf16.msra.mxu0 %v9018
    %9654 = vmatprep.subr.bf16.mxu0 %v9023
    %9655 = vmatpush1.bf16.msra.mxu0 %v9022
    %9656 = vmatprep.subr.bf16.mxu0 %v9027
    %9657 = vmatpush1.bf16.msra.mxu0 %v9026
    %9658 = vmatprep.subr.bf16.mxu0 %v9031
    %9659 = vmatpush1.bf16.msra.mxu0 %v9030
    %9660 = vmatprep.subr.bf16.mxu0 %v9035
    %9661 = vmatpush1.bf16.msra.mxu0 %v9034
    %9662 = vmatprep.subr.bf16.mxu0 %v9039
    %9663 = vmatpush1.bf16.msra.mxu0 %v9038
    %9664 = vmatprep.subr.bf16.mxu0 %v9043
    %9665 = vmatpush1.bf16.msra.mxu0 %v9042
    %9666 = vmatprep.subr.bf16.mxu0 %v9047
    %9667 = vmatpush1.bf16.msra.mxu0 %v9046
    %9668 = vmatprep.subr.bf16.mxu0 %v9051
    %9669 = vmatpush1.bf16.msra.mxu0 %v9050
    %9670 = vmatprep.subr.bf16.mxu0 %v9055
    %9671 = vmatpush1.bf16.msra.mxu0 %v9054
    %9672 = vmatprep.subr.bf16.mxu0 %v9059
    %9673 = vmatpush1.bf16.msra.mxu0 %v9058
    %9674 = vmatprep.subr.bf16.mxu0 %v9063
    %9675 = vmatpush1.bf16.msra.mxu0 %v9062
    %9676 = vmatprep.subr.bf16.mxu0 %v9067
    %9677 = vmatpush1.bf16.msra.mxu0 %v9066
    %9678 = vmatprep.mubr.bf16.mxu0 %v7827
    %9679 = vmatmul.mubr.bf16.gmra.mrb[0].mxu0 %v7826
    %v9680 = vpop.f32.mrb[0].mxu0
    %v9681 = vadd.f32 %v9638, %v9680
    %v9682 = vpop.f32.mrb[0].mxu0
    %v9683 = vadd.f32 %v9640, %v9682
    %v9684 = vpop.f32.mrb[0].mxu0
    %v9685 = vadd.f32 %v9642, %v9684
    %v9686 = vpop.f32.mrb[0].mxu0
    %v9687 = vadd.f32 %v9644, %v9686
    %9688 = vdwg.mxu0
    %9689 = vmatprep.subr.bf16.mxu0 %v9071
    %9690 = vmatpush1.bf16.msra.mxu0 %v9070
    %9691 = vmatprep.subr.bf16.mxu0 %v9075
    %9692 = vmatpush1.bf16.msra.mxu0 %v9074
    %9693 = vmatprep.subr.bf16.mxu0 %v9079
    %9694 = vmatpush1.bf16.msra.mxu0 %v9078
    %9695 = vmatprep.subr.bf16.mxu0 %v9083
    %9696 = vmatpush1.bf16.msra.mxu0 %v9082
    %9697 = vmatprep.subr.bf16.mxu0 %v9087
    %9698 = vmatpush1.bf16.msra.mxu0 %v9086
    %9699 = vmatprep.subr.bf16.mxu0 %v9091
    %9700 = vmatpush1.bf16.msra.mxu0 %v9090
    %9701 = vmatprep.subr.bf16.mxu0 %v9095
    %9702 = vmatpush1.bf16.msra.mxu0 %v9094
    %9703 = vmatprep.subr.bf16.mxu0 %v9099
    %9704 = vmatpush1.bf16.msra.mxu0 %v9098
    %9705 = vmatprep.subr.bf16.mxu0 %v9103
    %9706 = vmatpush1.bf16.msra.mxu0 %v9102
    %9707 = vmatprep.subr.bf16.mxu0 %v9107
    %9708 = vmatpush1.bf16.msra.mxu0 %v9106
    %9709 = vmatprep.subr.bf16.mxu0 %v9111
    %9710 = vmatpush1.bf16.msra.mxu0 %v9110
    %9711 = vmatprep.subr.bf16.mxu0 %v9115
    %9712 = vmatpush1.bf16.msra.mxu0 %v9114
    %9713 = vmatprep.subr.bf16.mxu0 %v9119
    %9714 = vmatpush1.bf16.msra.mxu0 %v9118
    %9715 = vmatprep.subr.bf16.mxu0 %v9123
    %9716 = vmatpush1.bf16.msra.mxu0 %v9122
    %9717 = vmatprep.subr.bf16.mxu0 %v9127
    %9718 = vmatpush1.bf16.msra.mxu0 %v9126
    %9719 = vmatprep.subr.bf16.mxu0 %v9131
    %9720 = vmatpush1.bf16.msra.mxu0 %v9130
    %9721 = vmatprep.mubr.bf16.mxu0 %v7829
    %9722 = vmatmul.mubr.bf16.gmra.mrb[0].mxu0 %v7828
    %v9723 = vpop.f32.mrb[0].mxu0
    %v9724 = vadd.f32 %v9681, %v9723
    %v9725 = vpop.f32.mrb[0].mxu0
    %v9726 = vadd.f32 %v9683, %v9725
    %v9727 = vpop.f32.mrb[0].mxu0
    %v9728 = vadd.f32 %v9685, %v9727
    %v9729 = vpop.f32.mrb[0].mxu0
    %v9730 = vadd.f32 %v9687, %v9729
    %9731 = vdwg.mxu0
    %v9732 = vmax.f32 %v9552, 0.0
    %v9733 = vmax.f32 %v9554, 0.0
    %v9734 = vmax.f32 %v9724, 0.0
    %v9735 = vmax.f32 %v9726, 0.0
    %v9736 = vmax.f32 %v9556, 0.0
    %v9737 = vmax.f32 %v9558, 0.0
    %v9738 = vmax.f32 %v9728, 0.0
    %v9739 = vmax.f32 %v9730, 0.0
    %v9740 = vpack.c.bf16 %v9736, %v9732
    %v9741 = vpack.c.bf16 %v9737, %v9733
    %v9742 = vpack.c.bf16 %v9738, %v9734
    %v9743 = vpack.c.bf16 %v9739, %v9735
    %v9744 = vld [vmem:[#allocation11] sm:$0xff]
    %v9745 = vld [vmem:[#allocation11 + $0x8] sm:$0xff]
    %v9746 = vld [vmem:[#allocation11 + $0x10] sm:$0xff]
    %v9747 = vld [vmem:[#allocation11 + $0x18] sm:$0xff]
    %v9748 = vld [vmem:[#allocation11 + $0x20] sm:$0xff]
    %v9749 = vld [vmem:[#allocation11 + $0x28] sm:$0xff]
    %v9750 = vld [vmem:[#allocation11 + $0x30] sm:$0xff]
    %v9751 = vld [vmem:[#allocation11 + $0x38] sm:$0xff]
    %v9752 = vld [vmem:[#allocation11 + $0x40] sm:$0xff]
    %v9753 = vld [vmem:[#allocation11 + $0x48] sm:$0xff]
    %v9754 = vld [vmem:[#allocation11 + $0x50] sm:$0xff]
    %v9755 = vld [vmem:[#allocation11 + $0x58] sm:$0xff]
    %v9756 = vld [vmem:[#allocation11 + $0x60] sm:$0xff]
    %v9757 = vld [vmem:[#allocation11 + $0x68] sm:$0xff]
    %v9758 = vld [vmem:[#allocation11 + $0x70] sm:$0xff]
    %v9759 = vld [vmem:[#allocation11 + $0x78] sm:$0xff]
    %v9760 = vld [vmem:[#allocation11 + $0x80] sm:$0xff]
    %v9761 = vld [vmem:[#allocation11 + $0x88] sm:$0xff]
    %v9762 = vld [vmem:[#allocation11 + $0x90] sm:$0xff]
    %v9763 = vld [vmem:[#allocation11 + $0x98] sm:$0xff]
    %v9764 = vld [vmem:[#allocation11 + $0xa0] sm:$0xff]
    %v9765 = vld [vmem:[#allocation11 + $0xa8] sm:$0xff]
    %v9766 = vld [vmem:[#allocation11 + $0xb0] sm:$0xff]
    %v9767 = vld [vmem:[#allocation11 + $0xb8] sm:$0xff]
    %v9768 = vld [vmem:[#allocation11 + $0xc0] sm:$0xff]
    %v9769 = vld [vmem:[#allocation11 + $0xc8] sm:$0xff]
    %v9770 = vld [vmem:[#allocation11 + $0xd0] sm:$0xff]
    %v9771 = vld [vmem:[#allocation11 + $0xd8] sm:$0xff]
    %v9772 = vld [vmem:[#allocation11 + $0xe0] sm:$0xff]
    %v9773 = vld [vmem:[#allocation11 + $0xe8] sm:$0xff]
    %v9774 = vld [vmem:[#allocation11 + $0xf0] sm:$0xff]
    %v9775 = vld [vmem:[#allocation11 + $0xf8] sm:$0xff]
    %v9776 = vld [vmem:[#allocation11 + $0x100] sm:$0xff]
    %v9777 = vld [vmem:[#allocation11 + $0x108] sm:$0xff]
    %v9778 = vld [vmem:[#allocation11 + $0x110] sm:$0xff]
    %v9779 = vld [vmem:[#allocation11 + $0x118] sm:$0xff]
    %v9780 = vld [vmem:[#allocation11 + $0x120] sm:$0xff]
    %v9781 = vld [vmem:[#allocation11 + $0x128] sm:$0xff]
    %v9782 = vld [vmem:[#allocation11 + $0x130] sm:$0xff]
    %v9783 = vld [vmem:[#allocation11 + $0x138] sm:$0xff]
    %v9784 = vld [vmem:[#allocation11 + $0x140] sm:$0xff]
    %v9785 = vld [vmem:[#allocation11 + $0x148] sm:$0xff]
    %v9786 = vld [vmem:[#allocation11 + $0x150] sm:$0xff]
    %v9787 = vld [vmem:[#allocation11 + $0x158] sm:$0xff]
    %v9788 = vld [vmem:[#allocation11 + $0x160] sm:$0xff]
    %v9789 = vld [vmem:[#allocation11 + $0x168] sm:$0xff]
    %v9790 = vld [vmem:[#allocation11 + $0x170] sm:$0xff]
    %v9791 = vld [vmem:[#allocation11 + $0x178] sm:$0xff]
    %v9792 = vld [vmem:[#allocation11 + $0x180] sm:$0xff]
    %v9793 = vld [vmem:[#allocation11 + $0x188] sm:$0xff]
    %v9794 = vld [vmem:[#allocation11 + $0x190] sm:$0xff]
    %v9795 = vld [vmem:[#allocation11 + $0x198] sm:$0xff]
    %v9796 = vld [vmem:[#allocation11 + $0x1a0] sm:$0xff]
    %v9797 = vld [vmem:[#allocation11 + $0x1a8] sm:$0xff]
    %v9798 = vld [vmem:[#allocation11 + $0x1b0] sm:$0xff]
    %v9799 = vld [vmem:[#allocation11 + $0x1b8] sm:$0xff]
    %v9800 = vld [vmem:[#allocation11 + $0x1c0] sm:$0xff]
    %v9801 = vld [vmem:[#allocation11 + $0x1c8] sm:$0xff]
    %v9802 = vld [vmem:[#allocation11 + $0x1d0] sm:$0xff]
    %v9803 = vld [vmem:[#allocation11 + $0x1d8] sm:$0xff]
    %v9804 = vld [vmem:[#allocation11 + $0x1e0] sm:$0xff]
    %v9805 = vld [vmem:[#allocation11 + $0x1e8] sm:$0xff]
    %v9806 = vld [vmem:[#allocation11 + $0x1f0] sm:$0xff]
    %v9807 = vld [vmem:[#allocation11 + $0x1f8] sm:$0xff]
    %v9808 = vld [vmem:[#allocation13] sm:$0x3]
    %v9810 = vlaneseq
    %v9811 = vshrl.u32 %v9810, 7
    %v9812 = vsub.s32 0, %v9811
    %v9813 = vrot.slane %v9808, %v9812
    %v9814 = vlaneseq
    %v9815 = vshrl.u32 %v9814, 7
    %v9816 = vsub.s32 1, %v9815
    %v9817 = vrot.slane %v9808, %v9816
    %v9884 = vunpack.c.l.b16 %v9744
    %v9885 = vunpack.c.h.b16 %v9744
    %v9886 = vunpack.c.l.b16 %v9745
    %v9887 = vunpack.c.h.b16 %v9745
    %v9888 = vunpack.c.l.b16 %v9746
    %v9889 = vunpack.c.h.b16 %v9746
    %v9890 = vunpack.c.l.b16 %v9747
    %v9891 = vunpack.c.h.b16 %v9747
    %v9892 = vunpack.c.l.b16 %v9748
    %v9893 = vunpack.c.h.b16 %v9748
    %v9894 = vunpack.c.l.b16 %v9749
    %v9895 = vunpack.c.h.b16 %v9749
    %v9896 = vunpack.c.l.b16 %v9750
    %v9897 = vunpack.c.h.b16 %v9750
    %v9898 = vunpack.c.l.b16 %v9751
    %v9899 = vunpack.c.h.b16 %v9751
    %v9900 = vunpack.c.l.b16 %v9752
    %v9901 = vunpack.c.h.b16 %v9752
    %v9902 = vunpack.c.l.b16 %v9753
    %v9903 = vunpack.c.h.b16 %v9753
    %v9904 = vunpack.c.l.b16 %v9754
    %v9905 = vunpack.c.h.b16 %v9754
    %v9906 = vunpack.c.l.b16 %v9755
    %v9907 = vunpack.c.h.b16 %v9755
    %v9908 = vunpack.c.l.b16 %v9756
    %v9909 = vunpack.c.h.b16 %v9756
    %v9910 = vunpack.c.l.b16 %v9757
    %v9911 = vunpack.c.h.b16 %v9757
    %v9912 = vunpack.c.l.b16 %v9758
    %v9913 = vunpack.c.h.b16 %v9758
    %v9914 = vunpack.c.l.b16 %v9759
    %v9915 = vunpack.c.h.b16 %v9759
    %v9916 = vunpack.c.l.b16 %v9760
    %v9917 = vunpack.c.h.b16 %v9760
    %v9918 = vunpack.c.l.b16 %v9761
    %v9919 = vunpack.c.h.b16 %v9761
    %v9920 = vunpack.c.l.b16 %v9762
    %v9921 = vunpack.c.h.b16 %v9762
    %v9922 = vunpack.c.l.b16 %v9763
    %v9923 = vunpack.c.h.b16 %v9763
    %v9924 = vunpack.c.l.b16 %v9764
    %v9925 = vunpack.c.h.b16 %v9764
    %v9926 = vunpack.c.l.b16 %v9765
    %v9927 = vunpack.c.h.b16 %v9765
    %v9928 = vunpack.c.l.b16 %v9766
    %v9929 = vunpack.c.h.b16 %v9766
    %v9930 = vunpack.c.l.b16 %v9767
    %v9931 = vunpack.c.h.b16 %v9767
    %v9932 = vunpack.c.l.b16 %v9768
    %v9933 = vunpack.c.h.b16 %v9768
    %v9934 = vunpack.c.l.b16 %v9769
    %v9935 = vunpack.c.h.b16 %v9769
    %v9936 = vunpack.c.l.b16 %v9770
    %v9937 = vunpack.c.h.b16 %v9770
    %v9938 = vunpack.c.l.b16 %v9771
    %v9939 = vunpack.c.h.b16 %v9771
    %v9940 = vunpack.c.l.b16 %v9772
    %v9941 = vunpack.c.h.b16 %v9772
    %v9942 = vunpack.c.l.b16 %v9773
    %v9943 = vunpack.c.h.b16 %v9773
    %v9944 = vunpack.c.l.b16 %v9774
    %v9945 = vunpack.c.h.b16 %v9774
    %v9946 = vunpack.c.l.b16 %v9775
    %v9947 = vunpack.c.h.b16 %v9775
    %v9948 = vunpack.c.l.b16 %v9776
    %v9949 = vunpack.c.h.b16 %v9776
    %v9950 = vunpack.c.l.b16 %v9777
    %v9951 = vunpack.c.h.b16 %v9777
    %v9952 = vunpack.c.l.b16 %v9778
    %v9953 = vunpack.c.h.b16 %v9778
    %v9954 = vunpack.c.l.b16 %v9779
    %v9955 = vunpack.c.h.b16 %v9779
    %v9956 = vunpack.c.l.b16 %v9780
    %v9957 = vunpack.c.h.b16 %v9780
    %v9958 = vunpack.c.l.b16 %v9781
    %v9959 = vunpack.c.h.b16 %v9781
    %v9960 = vunpack.c.l.b16 %v9782
    %v9961 = vunpack.c.h.b16 %v9782
    %v9962 = vunpack.c.l.b16 %v9783
    %v9963 = vunpack.c.h.b16 %v9783
    %v9964 = vunpack.c.l.b16 %v9784
    %v9965 = vunpack.c.h.b16 %v9784
    %v9966 = vunpack.c.l.b16 %v9785
    %v9967 = vunpack.c.h.b16 %v9785
    %v9968 = vunpack.c.l.b16 %v9786
    %v9969 = vunpack.c.h.b16 %v9786
    %v9970 = vunpack.c.l.b16 %v9787
    %v9971 = vunpack.c.h.b16 %v9787
    %v9972 = vunpack.c.l.b16 %v9788
    %v9973 = vunpack.c.h.b16 %v9788
    %v9974 = vunpack.c.l.b16 %v9789
    %v9975 = vunpack.c.h.b16 %v9789
    %v9976 = vunpack.c.l.b16 %v9790
    %v9977 = vunpack.c.h.b16 %v9790
    %v9978 = vunpack.c.l.b16 %v9791
    %v9979 = vunpack.c.h.b16 %v9791
    %v9980 = vunpack.c.l.b16 %v9792
    %v9981 = vunpack.c.h.b16 %v9792
    %v9982 = vunpack.c.l.b16 %v9793
    %v9983 = vunpack.c.h.b16 %v9793
    %v9984 = vunpack.c.l.b16 %v9794
    %v9985 = vunpack.c.h.b16 %v9794
    %v9986 = vunpack.c.l.b16 %v9795
    %v9987 = vunpack.c.h.b16 %v9795
    %v9988 = vunpack.c.l.b16 %v9796
    %v9989 = vunpack.c.h.b16 %v9796
    %v9990 = vunpack.c.l.b16 %v9797
    %v9991 = vunpack.c.h.b16 %v9797
    %v9992 = vunpack.c.l.b16 %v9798
    %v9993 = vunpack.c.h.b16 %v9798
    %v9994 = vunpack.c.l.b16 %v9799
    %v9995 = vunpack.c.h.b16 %v9799
    %v9996 = vunpack.c.l.b16 %v9800
    %v9997 = vunpack.c.h.b16 %v9800
    %v9998 = vunpack.c.l.b16 %v9801
    %v9999 = vunpack.c.h.b16 %v9801
    %v10000 = vunpack.c.l.b16 %v9802
    %v10001 = vunpack.c.h.b16 %v9802
    %v10002 = vunpack.c.l.b16 %v9803
    %v10003 = vunpack.c.h.b16 %v9803
    %v10004 = vunpack.c.l.b16 %v9804
    %v10005 = vunpack.c.h.b16 %v9804
    %v10006 = vunpack.c.l.b16 %v9805
    %v10007 = vunpack.c.h.b16 %v9805
    %v10008 = vunpack.c.l.b16 %v9806
    %v10009 = vunpack.c.h.b16 %v9806
    %v10010 = vunpack.c.l.b16 %v9807
    %v10011 = vunpack.c.h.b16 %v9807
    %v10012 = vpack.c.b16 %v9886, %v9884
    %v10013 = vpack.c.b16 %v9887, %v9885
    %v10014 = vpack.c.b16 %v9890, %v9888
    %v10015 = vpack.c.b16 %v9891, %v9889
    %v10016 = vpack.c.b16 %v9894, %v9892
    %v10017 = vpack.c.b16 %v9895, %v9893
    %v10018 = vpack.c.b16 %v9898, %v9896
    %v10019 = vpack.c.b16 %v9899, %v9897
    %v10020 = vpack.c.b16 %v9902, %v9900
    %v10021 = vpack.c.b16 %v9903, %v9901
    %v10022 = vpack.c.b16 %v9906, %v9904
    %v10023 = vpack.c.b16 %v9907, %v9905
    %v10024 = vpack.c.b16 %v9910, %v9908
    %v10025 = vpack.c.b16 %v9911, %v9909
    %v10026 = vpack.c.b16 %v9914, %v9912
    %v10027 = vpack.c.b16 %v9915, %v9913
    %v10028 = vpack.c.b16 %v9918, %v9916
    %v10029 = vpack.c.b16 %v9919, %v9917
    %v10030 = vpack.c.b16 %v9922, %v9920
    %v10031 = vpack.c.b16 %v9923, %v9921
    %v10032 = vpack.c.b16 %v9926, %v9924
    %v10033 = vpack.c.b16 %v9927, %v9925
    %v10034 = vpack.c.b16 %v9930, %v9928
    %v10035 = vpack.c.b16 %v9931, %v9929
    %v10036 = vpack.c.b16 %v9934, %v9932
    %v10037 = vpack.c.b16 %v9935, %v9933
    %v10038 = vpack.c.b16 %v9938, %v9936
    %v10039 = vpack.c.b16 %v9939, %v9937
    %v10040 = vpack.c.b16 %v9942, %v9940
    %v10041 = vpack.c.b16 %v9943, %v9941
    %v10042 = vpack.c.b16 %v9946, %v9944
    %v10043 = vpack.c.b16 %v9947, %v9945
    %v10044 = vpack.c.b16 %v9950, %v9948
    %v10045 = vpack.c.b16 %v9951, %v9949
    %v10046 = vpack.c.b16 %v9954, %v9952
    %v10047 = vpack.c.b16 %v9955, %v9953
    %v10048 = vpack.c.b16 %v9958, %v9956
    %v10049 = vpack.c.b16 %v9959, %v9957
    %v10050 = vpack.c.b16 %v9962, %v9960
    %v10051 = vpack.c.b16 %v9963, %v9961
    %v10052 = vpack.c.b16 %v9966, %v9964
    %v10053 = vpack.c.b16 %v9967, %v9965
    %v10054 = vpack.c.b16 %v9970, %v9968
    %v10055 = vpack.c.b16 %v9971, %v9969
    %v10056 = vpack.c.b16 %v9974, %v9972
    %v10057 = vpack.c.b16 %v9975, %v9973
    %v10058 = vpack.c.b16 %v9978, %v9976
    %v10059 = vpack.c.b16 %v9979, %v9977
    %v10060 = vpack.c.b16 %v9982, %v9980
    %v10061 = vpack.c.b16 %v9983, %v9981
    %v10062 = vpack.c.b16 %v9986, %v9984
    %v10063 = vpack.c.b16 %v9987, %v9985
    %v10064 = vpack.c.b16 %v9990, %v9988
    %v10065 = vpack.c.b16 %v9991, %v9989
    %v10066 = vpack.c.b16 %v9994, %v9992
    %v10067 = vpack.c.b16 %v9995, %v9993
    %v10068 = vpack.c.b16 %v9998, %v9996
    %v10069 = vpack.c.b16 %v9999, %v9997
    %v10070 = vpack.c.b16 %v10002, %v10000
    %v10071 = vpack.c.b16 %v10003, %v10001
    %v10072 = vpack.c.b16 %v10006, %v10004
    %v10073 = vpack.c.b16 %v10007, %v10005
    %v10074 = vpack.c.b16 %v10010, %v10008
    %v10075 = vpack.c.b16 %v10011, %v10009
    %10140 = vmatprep.subr.bf16.mxu0 %v10013
    %10141 = vmatpush1.bf16.msra.mxu0 %v10012
    %10142 = vmatprep.subr.bf16.mxu0 %v10015
    %10143 = vmatpush1.bf16.msra.mxu0 %v10014
    %10144 = vmatprep.subr.bf16.mxu0 %v10017
    %10145 = vmatpush1.bf16.msra.mxu0 %v10016
    %10146 = vmatprep.subr.bf16.mxu0 %v10019
    %10147 = vmatpush1.bf16.msra.mxu0 %v10018
    %10148 = vmatprep.subr.bf16.mxu0 %v10021
    %10149 = vmatpush1.bf16.msra.mxu0 %v10020
    %10150 = vmatprep.subr.bf16.mxu0 %v10023
    %10151 = vmatpush1.bf16.msra.mxu0 %v10022
    %10152 = vmatprep.subr.bf16.mxu0 %v10025
    %10153 = vmatpush1.bf16.msra.mxu0 %v10024
    %10154 = vmatprep.subr.bf16.mxu0 %v10027
    %10155 = vmatpush1.bf16.msra.mxu0 %v10026
    %10156 = vmatprep.subr.bf16.mxu0 %v10029
    %10157 = vmatpush1.bf16.msra.mxu0 %v10028
    %10158 = vmatprep.subr.bf16.mxu0 %v10031
    %10159 = vmatpush1.bf16.msra.mxu0 %v10030
    %10160 = vmatprep.subr.bf16.mxu0 %v10033
    %10161 = vmatpush1.bf16.msra.mxu0 %v10032
    %10162 = vmatprep.subr.bf16.mxu0 %v10035
    %10163 = vmatpush1.bf16.msra.mxu0 %v10034
    %10164 = vmatprep.subr.bf16.mxu0 %v10037
    %10165 = vmatpush1.bf16.msra.mxu0 %v10036
    %10166 = vmatprep.subr.bf16.mxu0 %v10039
    %10167 = vmatpush1.bf16.msra.mxu0 %v10038
    %10168 = vmatprep.subr.bf16.mxu0 %v10041
    %10169 = vmatpush1.bf16.msra.mxu0 %v10040
    %10170 = vmatprep.subr.bf16.mxu0 %v10043
    %10171 = vmatpush1.bf16.msra.mxu0 %v10042
    %10172 = vmatprep.mubr.bf16.mxu0 %v9741
    %10173 = vmatmul.mubr.bf16.gmra.mrb[0].mxu0 %v9740
    %v10174 = vpop.f32.mrb[0].mxu0
    %v10175 = vadd.f32 %v9813, %v10174
    %v10176 = vpop.f32.mrb[0].mxu0
    %v10177 = vadd.f32 %v9817, %v10176
    %v10178 = vpop.f32.mrb[0].mxu0
    %v10179 = vadd.f32 %v9813, %v10178
    %v10180 = vpop.f32.mrb[0].mxu0
    %v10181 = vadd.f32 %v9817, %v10180
    %10182 = vdwg.mxu0
    %10183 = vmatprep.subr.bf16.mxu0 %v10045
    %10184 = vmatpush1.bf16.msra.mxu0 %v10044
    %10185 = vmatprep.subr.bf16.mxu0 %v10047
    %10186 = vmatpush1.bf16.msra.mxu0 %v10046
    %10187 = vmatprep.subr.bf16.mxu0 %v10049
    %10188 = vmatpush1.bf16.msra.mxu0 %v10048
    %10189 = vmatprep.subr.bf16.mxu0 %v10051
    %10190 = vmatpush1.bf16.msra.mxu0 %v10050
    %10191 = vmatprep.subr.bf16.mxu0 %v10053
    %10192 = vmatpush1.bf16.msra.mxu0 %v10052
    %10193 = vmatprep.subr.bf16.mxu0 %v10055
    %10194 = vmatpush1.bf16.msra.mxu0 %v10054
    %10195 = vmatprep.subr.bf16.mxu0 %v10057
    %10196 = vmatpush1.bf16.msra.mxu0 %v10056
    %10197 = vmatprep.subr.bf16.mxu0 %v10059
    %10198 = vmatpush1.bf16.msra.mxu0 %v10058
    %10199 = vmatprep.subr.bf16.mxu0 %v10061
    %10200 = vmatpush1.bf16.msra.mxu0 %v10060
    %10201 = vmatprep.subr.bf16.mxu0 %v10063
    %10202 = vmatpush1.bf16.msra.mxu0 %v10062
    %10203 = vmatprep.subr.bf16.mxu0 %v10065
    %10204 = vmatpush1.bf16.msra.mxu0 %v10064
    %10205 = vmatprep.subr.bf16.mxu0 %v10067
    %10206 = vmatpush1.bf16.msra.mxu0 %v10066
    %10207 = vmatprep.subr.bf16.mxu0 %v10069
    %10208 = vmatpush1.bf16.msra.mxu0 %v10068
    %10209 = vmatprep.subr.bf16.mxu0 %v10071
    %10210 = vmatpush1.bf16.msra.mxu0 %v10070
    %10211 = vmatprep.subr.bf16.mxu0 %v10073
    %10212 = vmatpush1.bf16.msra.mxu0 %v10072
    %10213 = vmatprep.subr.bf16.mxu0 %v10075
    %10214 = vmatpush1.bf16.msra.mxu0 %v10074
    %10215 = vmatprep.mubr.bf16.mxu0 %v9743
    %10216 = vmatmul.mubr.bf16.gmra.mrb[0].mxu0 %v9742
    %v10217 = vpop.f32.mrb[0].mxu0
    %v10218 = vadd.f32 %v10175, %v10217
    %v10219 = vpop.f32.mrb[0].mxu0
    %v10220 = vadd.f32 %v10177, %v10219
    %v10221 = vpop.f32.mrb[0].mxu0
    %v10222 = vadd.f32 %v10179, %v10221
    %v10223 = vpop.f32.mrb[0].mxu0
    %v10224 = vadd.f32 %v10181, %v10223
    %10225 = vdwg.mxu0
    %v10226 = vmax.f32 %v10218, 0.0
    %v10227 = vmax.f32 %v10220, 0.0
    %v10228 = vmax.f32 %v10222, 0.0
    %v10229 = vmax.f32 %v10224, 0.0
    %v10230 = vpack.c.bf16 %v10228, %v10226
    %v10231 = vpack.c.bf16 %v10229, %v10227
    %v10232 = vld [vmem:[#allocation14] sm:$0xf]
    %v10233 = vld [vmem:[#allocation14 + $0x4] sm:$0xf]
    %v10234 = vld [vmem:[#allocation14 + $0x8] sm:$0xf]
    %v10235 = vld [vmem:[#allocation14 + $0xc] sm:$0xf]
    %v10236 = vld [vmem:[#allocation14 + $0x10] sm:$0xf]
    %v10237 = vld [vmem:[#allocation14 + $0x14] sm:$0xf]
    %v10238 = vld [vmem:[#allocation14 + $0x18] sm:$0xf]
    %v10239 = vld [vmem:[#allocation14 + $0x1c] sm:$0xf]
    %v10240 = vld [vmem:[#allocation14 + $0x20] sm:$0xf]
    %v10241 = vld [vmem:[#allocation14 + $0x24] sm:$0xf]
    %v10242 = vld [vmem:[#allocation14 + $0x28] sm:$0xf]
    %v10243 = vld [vmem:[#allocation14 + $0x2c] sm:$0xf]
    %v10244 = vld [vmem:[#allocation14 + $0x30] sm:$0xf]
    %v10245 = vld [vmem:[#allocation14 + $0x34] sm:$0xf]
    %v10246 = vld [vmem:[#allocation14 + $0x38] sm:$0xf]
    %v10247 = vld [vmem:[#allocation14 + $0x3c] sm:$0xf]
    %v10248 = vld [vmem:[#allocation14 + $0x40] sm:$0xf]
    %v10249 = vld [vmem:[#allocation14 + $0x44] sm:$0xf]
    %v10250 = vld [vmem:[#allocation14 + $0x48] sm:$0xf]
    %v10251 = vld [vmem:[#allocation14 + $0x4c] sm:$0xf]
    %v10252 = vld [vmem:[#allocation14 + $0x50] sm:$0xf]
    %v10253 = vld [vmem:[#allocation14 + $0x54] sm:$0xf]
    %v10254 = vld [vmem:[#allocation14 + $0x58] sm:$0xf]
    %v10255 = vld [vmem:[#allocation14 + $0x5c] sm:$0xf]
    %v10256 = vld [vmem:[#allocation14 + $0x60] sm:$0xf]
    %v10257 = vld [vmem:[#allocation14 + $0x64] sm:$0xf]
    %v10258 = vld [vmem:[#allocation14 + $0x68] sm:$0xf]
    %v10259 = vld [vmem:[#allocation14 + $0x6c] sm:$0xf]
    %v10260 = vld [vmem:[#allocation14 + $0x70] sm:$0xf]
    %v10261 = vld [vmem:[#allocation14 + $0x74] sm:$0xf]
    %v10262 = vld [vmem:[#allocation14 + $0x78] sm:$0xf]
    %v10263 = vld [vmem:[#allocation14 + $0x7c] sm:$0xf]
    %v10264 = vld [vmem:[#allocation16] sm:$0x1]
    %v10266 = vlaneseq
    %v10267 = vshrl.u32 %v10266, 7
    %v10268 = vsub.s32 0, %v10267
    %v10269 = vrot.slane %v10264, %v10268
    %v10303 = vunpack.c.l.b16 %v10232
    %v10304 = vunpack.c.l.b16 %v10233
    %v10305 = vunpack.c.l.b16 %v10234
    %v10306 = vunpack.c.l.b16 %v10235
    %v10307 = vunpack.c.l.b16 %v10236
    %v10308 = vunpack.c.l.b16 %v10237
    %v10309 = vunpack.c.l.b16 %v10238
    %v10310 = vunpack.c.l.b16 %v10239
    %v10311 = vunpack.c.l.b16 %v10240
    %v10312 = vunpack.c.l.b16 %v10241
    %v10313 = vunpack.c.l.b16 %v10242
    %v10314 = vunpack.c.l.b16 %v10243
    %v10315 = vunpack.c.l.b16 %v10244
    %v10316 = vunpack.c.l.b16 %v10245
    %v10317 = vunpack.c.l.b16 %v10246
    %v10318 = vunpack.c.l.b16 %v10247
    %v10319 = vunpack.c.l.b16 %v10248
    %v10320 = vunpack.c.l.b16 %v10249
    %v10321 = vunpack.c.l.b16 %v10250
    %v10322 = vunpack.c.l.b16 %v10251
    %v10323 = vunpack.c.l.b16 %v10252
    %v10324 = vunpack.c.l.b16 %v10253
    %v10325 = vunpack.c.l.b16 %v10254
    %v10326 = vunpack.c.l.b16 %v10255
    %v10327 = vunpack.c.l.b16 %v10256
    %v10328 = vunpack.c.l.b16 %v10257
    %v10329 = vunpack.c.l.b16 %v10258
    %v10330 = vunpack.c.l.b16 %v10259
    %v10331 = vunpack.c.l.b16 %v10260
    %v10332 = vunpack.c.l.b16 %v10261
    %v10333 = vunpack.c.l.b16 %v10262
    %v10334 = vunpack.c.l.b16 %v10263
    %v10335 = vpack.c.b16 %v10304, %v10303
    %v10336 = vpack.c.b16 %v10306, %v10305
    %v10337 = vpack.c.b16 %v10308, %v10307
    %v10338 = vpack.c.b16 %v10310, %v10309
    %v10339 = vpack.c.b16 %v10312, %v10311
    %v10340 = vpack.c.b16 %v10314, %v10313
    %v10341 = vpack.c.b16 %v10316, %v10315
    %v10342 = vpack.c.b16 %v10318, %v10317
    %v10343 = vpack.c.b16 %v10320, %v10319
    %v10344 = vpack.c.b16 %v10322, %v10321
    %v10345 = vpack.c.b16 %v10324, %v10323
    %v10346 = vpack.c.b16 %v10326, %v10325
    %v10347 = vpack.c.b16 %v10328, %v10327
    %v10348 = vpack.c.b16 %v10330, %v10329
    %v10349 = vpack.c.b16 %v10332, %v10331
    %v10350 = vpack.c.b16 %v10334, %v10333
    %10367 = vmatprep.subr.bf16.mxu0 0
    %10368 = vmatpush1.bf16.msra.mxu0 %v10335
    %10369 = vmatprep.subr.bf16.mxu0 0
    %10370 = vmatpush1.bf16.msra.mxu0 %v10336
    %10371 = vmatprep.subr.bf16.mxu0 0
    %10372 = vmatpush1.bf16.msra.mxu0 %v10337
    %10373 = vmatprep.subr.bf16.mxu0 0
    %10374 = vmatpush1.bf16.msra.mxu0 %v10338
    %10375 = vmatprep.subr.bf16.mxu0 0
    %10376 = vmatpush1.bf16.msra.mxu0 %v10339
    %10377 = vmatprep.subr.bf16.mxu0 0
    %10378 = vmatpush1.bf16.msra.mxu0 %v10340
    %10379 = vmatprep.subr.bf16.mxu0 0
    %10380 = vmatpush1.bf16.msra.mxu0 %v10341
    %10381 = vmatprep.subr.bf16.mxu0 0
    %10382 = vmatpush1.bf16.msra.mxu0 %v10342
    %10383 = vmatprep.subr.bf16.mxu0 0
    %10384 = vmatpush1.bf16.msra.mxu0 %v10343
    %10385 = vmatprep.subr.bf16.mxu0 0
    %10386 = vmatpush1.bf16.msra.mxu0 %v10344
    %10387 = vmatprep.subr.bf16.mxu0 0
    %10388 = vmatpush1.bf16.msra.mxu0 %v10345
    %10389 = vmatprep.subr.bf16.mxu0 0
    %10390 = vmatpush1.bf16.msra.mxu0 %v10346
    %10391 = vmatprep.subr.bf16.mxu0 0
    %10392 = vmatpush1.bf16.msra.mxu0 %v10347
    %10393 = vmatprep.subr.bf16.mxu0 0
    %10394 = vmatpush1.bf16.msra.mxu0 %v10348
    %10395 = vmatprep.subr.bf16.mxu0 0
    %10396 = vmatpush1.bf16.msra.mxu0 %v10349
    %10397 = vmatprep.subr.bf16.mxu0 0
    %10398 = vmatpush1.bf16.msra.mxu0 %v10350
    %10399 = vmatprep.mubr.bf16.mxu0 %v10231
    %10400 = vmatmul.mubr.bf16.gmra.mrb[0].mxu0 %v10230
    %v10401 = vpop.f32.mrb[0].mxu0
    %v10402 = vadd.f32 %v10269, %v10401
    %v10403 = vpop.f32.mrb[0].mxu0
    %v10404 = vpop.f32.mrb[0].mxu0
    %v10405 = vadd.f32 %v10269, %v10404
    %v10406 = vpop.f32.mrb[0].mxu0
    %10407 = vdwg.mxu0
    %10408 = vst [vmem:[#allocation17] sm:$0xff] %v10402
    %10409 = vst [vmem:[#allocation17 + $0x8] sm:$0xff] %v10405
    // Predicated region
    $region74: #{tpu_custom_call.1} parent=1 // pred_check
      _
    $region75: #{tpu_custom_call.1} parent=1 // pred_check_branch
      %10411 = sbr.rel (0) target = $region77
    $region76: #{tpu_custom_call.1} parent=1 // pred_region
      %s10413 = ssub.s32 256, 256
      %10414 = vsyncadd [#allocation4], %s10413
      %s10415 = sshll.u32 [#allocation17], 4
      %s10416 = int_to_ptr.vmem [resolvable:$true] %s10415
      %10421 = dma.vmem_to_hbm [thread:$0]  %s10416, 256, %s9, [#allocation4], 128, 128, 8
    $region77: #{tpu_custom_call.1} parent=1 // pred_fallthru
      _
    // Predicated region
    $region78: #{tpu_custom_call.1} parent=1 // pred_check
      _
    $region79: #{tpu_custom_call.1} parent=1 // pred_check_branch
      %10423 = sbr.rel (0) target = $region81
    $region80: #{tpu_custom_call.1} parent=1 // pred_region
      %10424 = dma.done [#allocation4], 256
    $region81: #{tpu_custom_call.1} parent=1 // pred_fallthru
      _
    %10425 = vsyncpa [#allocation3], 1
    %10426 = vsyncpa [#allocation6], 1
    %10427 = vsyncpa [#allocation9], 1
    %10428 = vsyncpa [#allocation12], 1
    %10429 = vsyncpa [#allocation15], 1
    %10430 = vsyncpa [#allocation4], 1

</llo_original>
